<compile_context>
chip_gen: v7x
topology: tpu7x:2x2x1
jax: 0.10.0
libtpu: 0.0.40
codegen_flags: <defaults>
</compile_context>

<pallas_src>
import functools

import jax
import jax.numpy as jnp
import numpy as np
from jax.experimental import pallas as pl
from jax.experimental.pallas import tpu as pltpu


HIDDEN = 32      # generator / cfd-predictor feature width
CFD_DIM = 4      # cfd vector length per sample
NUM_SEG = 2      # segmentation classes
MAX_TILE_ROWS = 4096   # row tile (fits comfortably in v7x's 32 MiB scoped VMEM)


# ----------------------------------------------------------------------------
# Pallas kernels
# ----------------------------------------------------------------------------
def _cfd_kernel(x_ref, w1_ref, b1_ref, w2_ref, b2_ref, cfd_ref, acc_ref, *, inv_s):
    """Fused cfd predictor: relu(conv1x1) -> global-avg-pool -> linear.

    Grid = (B, S_tiles); the S axis is a reduction accumulated in acc_ref.
    x_ref: (ts, C), w1: (C, H), b1: (1, H), w2: (H, CFD), b2: (1, CFD),
    cfd_ref: (1, CFD), acc_ref: (1, H) f32 scratch.
    """
    s = pl.program_id(1)

    @pl.when(s == 0)
    def _():
        acc_ref[...] = jnp.zeros_like(acc_ref)

    x = x_ref[...]                                     # (ts, C)
    if x.shape[-1] == 1:
        # K=1: VPU broadcast multiply, skip the MXU entirely (v5e-friendly).
        h = x * w1_ref[...]                            # (ts,1)*(1,H) -> (ts,H)
    else:
        h = jnp.dot(x, w1_ref[...], preferred_element_type=jnp.float32)
    h = jnp.maximum(h + b1_ref[...], 0.0)              # (ts, H)
    acc_ref[...] += jnp.sum(h, axis=0, keepdims=True)  # per-batch partial sum

    @pl.when(s == pl.num_programs(1) - 1)
    def _():
        pooled = acc_ref[...] * inv_s                  # (1, H) global avg pool
        cfd = jnp.dot(pooled, w2_ref[...], preferred_element_type=jnp.float32)
        cfd_ref[...] = (cfd + b2_ref[...]).astype(cfd_ref.dtype)


def _gen_kernel(x_ref, we_ref, be_ref, cfd_ref, wc_ref, bc_ref,
                ws_ref, bs_ref, wt_ref, bt_ref,
                enc_ref, seg_ref, cta_ref):
    """Fused generator: enc = relu(x@We+be) + embed(cfd); seg / tanh(cta) heads.

    One x tile is read once; enc / seg / cta tiles are written once.
    x: (ts, C); we: (C, H); be: (1, H); cfd: (1, CFD); wc: (CFD, H); bc: (1, H);
    ws: (H, NSEG); bs: (1, NSEG); wt: (1, H) (transposed cta head); bt: (1, 1).
    """
    x = x_ref[...]                                     # (ts, C)
    if x.shape[-1] == 1:
        h = x * we_ref[...]                            # VPU path for K=1
    else:
        h = jnp.dot(x, we_ref[...], preferred_element_type=jnp.float32)
    h = jnp.maximum(h + be_ref[...], 0.0)              # (ts, H)

    # Per-batch cfd embedding computed in-kernel (tiny (1,CFD)@(CFD,H) dot),
    # broadcast over the tile -- replaces the old jnp.repeat + add pass.
    emb = jnp.dot(cfd_ref[...], wc_ref[...], preferred_element_type=jnp.float32)
    enc = h + (emb + bc_ref[...])                      # (ts, H)

    seg = jnp.dot(enc, ws_ref[...], preferred_element_type=jnp.float32) + bs_ref[...]
    # N=1 head as a VPU multiply + lane reduce (no degenerate MXU matmul).
    cta = jnp.tanh(jnp.sum(enc * wt_ref[...], axis=-1, keepdims=True) + bt_ref[...])

    enc_ref[...] = enc.astype(enc_ref.dtype)
    seg_ref[...] = seg.astype(seg_ref.dtype)
    cta_ref[...] = cta.astype(cta_ref.dtype)


# ----------------------------------------------------------------------------
# Wrappers
# ----------------------------------------------------------------------------
def _pick_tile(n_rows, max_rows):
    """Largest row tile <= max_rows that divides n_rows and is sublane-aligned."""
    if n_rows <= max_rows:
        return n_rows
    start = max_rows - (max_rows % 8)
    for t in range(start, 7, -8):
        if n_rows % t == 0:
            return t
    # TODO(synk): no multiple-of-8 divisor <= max_rows; fall back to full extent.
    return n_rows


def init_params(key, in_channels=1):
    ks = jax.random.split(key, 12)
    s = 0.1
    return {
        # cfd predictor (TransBTS_cfd stand-in): conv1x1 -> GAP -> linear
        "cfd_w1": s * jax.random.normal(ks[0], (in_channels, HIDDEN), jnp.float32),
        "cfd_b1": s * jax.random.normal(ks[1], (1, HIDDEN), jnp.float32),
        "cfd_w2": s * jax.random.normal(ks[2], (HIDDEN, CFD_DIM), jnp.float32),
        "cfd_b2": s * jax.random.normal(ks[3], (1, CFD_DIM), jnp.float32),
        # generator (TransBTS stand-in): encoder conv + cfd embedding + heads
        "gen_we": s * jax.random.normal(ks[4], (in_channels, HIDDEN), jnp.float32),
        "gen_be": s * jax.random.normal(ks[5], (1, HIDDEN), jnp.float32),
        "gen_wc": s * jax.random.normal(ks[6], (CFD_DIM, HIDDEN), jnp.float32),
        "gen_bc": s * jax.random.normal(ks[7], (1, HIDDEN), jnp.float32),
        "seg_w": s * jax.random.normal(ks[8], (HIDDEN, NUM_SEG), jnp.float32),
        "seg_b": s * jax.random.normal(ks[9], (1, NUM_SEG), jnp.float32),
        # cta head stored transposed (1, HIDDEN) for the VPU reduce path.
        "cta_w": s * jax.random.normal(ks[10], (1, HIDDEN), jnp.float32),
        "cta_b": s * jax.random.normal(ks[11], (1, 1), jnp.float32),
    }


def madl_forward(ct, params, max_tile_rows=MAX_TILE_ROWS):
    """Mirrors MADL.forward() with opt['cfd_embedding'] = True.

    ct: (B, C, D, H, W) float32 (NCDHW, like PyTorch).
    Returns (generate_segment, generate_cta, encoder_output, cfd), NCDHW layout.
    """
    B, C, D, H, W = ct.shape
    S = D * H * W
    hid = params["cfd_w1"].shape[1]
    cfd_dim = params["cfd_w2"].shape[1]
    num_seg = params["seg_w"].shape[1]

    # NCDHW -> channels-last (B, S, C); no channel padding anywhere.
    x = jnp.transpose(ct, (0, 2, 3, 4, 1)).reshape(B, S, C).astype(jnp.float32)

    ts = _pick_tile(S, max_tile_rows)
    n_s = S // ts

    # --- cfd = self.cfdpredict(self.ct): fused conv+relu -> GAP -> linear ---
    cfd3 = pl.pallas_call(
        functools.partial(_cfd_kernel, inv_s=1.0 / S),
        out_shape=jax.ShapeDtypeStruct((B, 1, cfd_dim), jnp.float32),
        grid_spec=pltpu.PrefetchScalarGridSpec(
            num_scalar_prefetch=0,
            grid=(B, n_s),
            in_specs=[
                pl.BlockSpec((None, ts, C), lambda b, s: (b, s, 0)),
                pl.BlockSpec((C, hid), lambda b, s: (0, 0)),
                pl.BlockSpec((1, hid), lambda b, s: (0, 0)),
                pl.BlockSpec((hid, cfd_dim), lambda b, s: (0, 0)),
                pl.BlockSpec((1, cfd_dim), lambda b, s: (0, 0)),
            ],
            out_specs=pl.BlockSpec((None, 1, cfd_dim), lambda b, s: (b, 0, 0)),
            scratch_shapes=[pltpu.VMEM((1, hid), jnp.float32)],
        ),
        compiler_params=pltpu.CompilerParams(
            dimension_semantics=("parallel", "arbitrary")),
    )(x, params["cfd_w1"], params["cfd_b1"], params["cfd_w2"], params["cfd_b2"])
    cfd = cfd3.reshape(B, cfd_dim)

    # --- seg, cta, enc = self.generator(self.ct, cfd.detach()): one fused kernel ---
    cfd_det = jax.lax.stop_gradient(cfd3)
    enc, seg, cta = pl.pallas_call(
        _gen_kernel,
        out_shape=(
            jax.ShapeDtypeStruct((B, S, hid), jnp.float32),
            jax.ShapeDtypeStruct((B, S, num_seg), jnp.float32),
            jax.ShapeDtypeStruct((B, S, 1), jnp.float32),
        ),
        grid_spec=pltpu.PrefetchScalarGridSpec(
            num_scalar_prefetch=0,
            grid=(B, n_s),
            in_specs=[
                pl.BlockSpec((None, ts, C), lambda b, s: (b, s, 0)),
                pl.BlockSpec((C, hid), lambda b, s: (0, 0)),
                pl.BlockSpec((1, hid), lambda b, s: (0, 0)),
                pl.BlockSpec((None, 1, cfd_dim), lambda b, s: (b, 0, 0)),
                pl.BlockSpec((cfd_dim, hid), lambda b, s: (0, 0)),
                pl.BlockSpec((1, hid), lambda b, s: (0, 0)),
                pl.BlockSpec((hid, num_seg), lambda b, s: (0, 0)),
                pl.BlockSpec((1, num_seg), lambda b, s: (0, 0)),
                pl.BlockSpec((1, hid), lambda b, s: (0, 0)),
                pl.BlockSpec((1, 1), lambda b, s: (0, 0)),
            ],
            out_specs=[
                pl.BlockSpec((None, ts, hid), lambda b, s: (b, s, 0)),
                pl.BlockSpec((None, ts, num_seg), lambda b, s: (b, s, 0)),
                pl.BlockSpec((None, ts, 1), lambda b, s: (b, s, 0)),
            ],
        ),
        compiler_params=pltpu.CompilerParams(
            dimension_semantics=("parallel", "parallel")),
    )(x, params["gen_we"], params["gen_be"], cfd_det,
      params["gen_wc"], params["gen_bc"],
      params["seg_w"], params["seg_b"], params["cta_w"], params["cta_b"])

    # channels-last flat -> NCDHW (layout plumbing done once, outside the kernels)
    encoder_output = jnp.transpose(enc.reshape(B, D, H, W, hid), (0, 4, 1, 2, 3))
    generate_segment = jnp.transpose(seg.reshape(B, D, H, W, num_seg), (0, 4, 1, 2, 3))
    generate_cta = jnp.transpose(cta.reshape(B, D, H, W, 1), (0, 4, 1, 2, 3))
    return generate_segment, generate_cta, encoder_output, cfd


# ----------------------------------------------------------------------------
# Pure-JAX reference (for correctness check only)
# ----------------------------------------------------------------------------
def _reference_forward(ct, params):
    B, C, D, H, W = ct.shape
    S = D * H * W
    hp = jax.lax.Precision.HIGHEST
    x = jnp.transpose(ct, (0, 2, 3, 4, 1)).reshape(B, S, C).astype(jnp.float32)
    h = jax.nn.relu(jnp.dot(x, params["cfd_w1"], precision=hp) + params["cfd_b1"])
    pooled = jnp.mean(h, axis=1)                                        # (B, H)
    cfd = jnp.dot(pooled, params["cfd_w2"], precision=hp) + params["cfd_b2"]
    emb = jnp.dot(cfd, params["gen_wc"], precision=hp) + params["gen_bc"]
    enc = jax.nn.relu(jnp.dot(x, params["gen_we"], precision=hp)
                      + params["gen_be"]) + emb[:, None, :]
    seg = jnp.dot(enc, params["seg_w"], precision=hp) + params["seg_b"]
    cta = jnp.tanh(jnp.dot(enc, params["cta_w"].T, precision=hp) + params["cta_b"])
    to_ncdhw = lambda a: jnp.transpose(a.reshape(B, D, H, W, -1), (0, 4, 1, 2, 3))
    return to_ncdhw(seg), to_ncdhw(cta), to_ncdhw(enc), cfd


if __name__ == "__main__":
    B, Cin, D, H, W = 2, 1, 8, 16, 16
    ct = jax.random.normal(jax.random.PRNGKey(0), (B, Cin, D, H, W), dtype=jnp.float32)
    params = init_params(jax.random.PRNGKey(42), in_channels=Cin)

    seg, cta, enc, cfd = jax.jit(madl_forward)(ct, params)
    jax.block_until_ready((seg, cta, enc, cfd))

    assert seg.shape == (B, NUM_SEG, D, H, W)
    assert cta.shape == (B, 1, D, H, W)
    assert enc.shape == (B, HIDDEN, D, H, W)
    assert cfd.shape == (B, CFD_DIM)

    ref_seg, ref_cta, ref_enc, ref_cfd = _reference_forward(ct, params)
    np.testing.assert_allclose(np.asarray(cfd), np.asarray(ref_cfd), rtol=1e-2, atol=2e-3)
    np.testing.assert_allclose(np.asarray(enc), np.asarray(ref_enc), rtol=1e-2, atol=2e-3)
    np.testing.assert_allclose(np.asarray(seg), np.asarray(ref_seg), rtol=1e-2, atol=2e-3)
    np.testing.assert_allclose(np.asarray(cta), np.asarray(ref_cta), rtol=1e-2, atol=2e-3)

    print("KERNEL_OK")
</pallas_src>

<mosaic_0001>
module attributes {stable_mosaic.version = 11 : i64} {
  func.func @_cfd_kernel(%arg0: i32, %arg1: i32, %arg2: memref<1x2048x1xf32, #tpu.memory_space<vmem>>, %arg3: memref<1x32xf32, #tpu.memory_space<vmem>>, %arg4: memref<1x32xf32, #tpu.memory_space<vmem>>, %arg5: memref<32x4xf32, #tpu.memory_space<vmem>>, %arg6: memref<1x4xf32, #tpu.memory_space<vmem>>, %arg7: memref<1x1x4xf32, #tpu.memory_space<vmem>>, %arg8: memref<1x32xf32, #tpu.memory_space<vmem>>) attributes {dimension_semantics = [#tpu.dimension_semantics<parallel>, #tpu.dimension_semantics<arbitrary>], iteration_bounds = array<i64: 2, 1>, scalar_prefetch = 0 : i64, scratch_operands = 1 : i64, tpu.core_type = #tpu.core_type<tc>, window_params = [{transform_indices = @transform_0, window_bounds = array<i64: 1, 2048, 1>}, {pipeline_mode = #tpu.pipeline_mode<synchronous>, transform_indices = @transform_1, window_bounds = array<i64: 1, 32>}, {pipeline_mode = #tpu.pipeline_mode<synchronous>, transform_indices = @transform_2, window_bounds = array<i64: 1, 32>}, {pipeline_mode = #tpu.pipeline_mode<synchronous>, transform_indices = @transform_3, window_bounds = array<i64: 32, 4>}, {pipeline_mode = #tpu.pipeline_mode<synchronous>, transform_indices = @transform_4, window_bounds = array<i64: 1, 4>}, {transform_indices = @transform_5, window_bounds = array<i64: 1, 1, 4>}]} {
    %c0_i32 = arith.constant 0 : i32
    %0 = arith.cmpi eq, %arg1, %c0_i32 : i32
    %1 = arith.extui %0 : i1 to i32
    %c0_i32_0 = arith.constant 0 : i32
    %2 = arith.cmpi ne, %1, %c0_i32_0 : i32
    scf.if %2 {
      %cst_14 = arith.constant 0.000000e+00 : f32
      %22 = vector.broadcast %cst_14 : f32 to vector<1x32xf32>
      %c0_15 = arith.constant 0 : index
      %c0_16 = arith.constant 0 : index
      %23 = vector.load %arg8[%c0_15, %c0_16] : memref<1x32xf32, #tpu.memory_space<vmem>>, vector<1x32xf32>
      tpu.vector_store %arg8[%c0_15, %c0_16], %22 {strides = array<i32>} : memref<1x32xf32, #tpu.memory_space<vmem>>, vector<1x32xf32>,
    } else {
    }
    %c0 = arith.constant 0 : index
    %c0_1 = arith.constant 0 : index
    %c0_2 = arith.constant 0 : index
    %3 = vector.load %arg2[%c0, %c0_1, %c0_2] : memref<1x2048x1xf32, #tpu.memory_space<vmem>>, vector<1x2048x1xf32>
    %4 = vector.shape_cast %3 : vector<1x2048x1xf32> to vector<2048x1xf32>
    %c0_3 = arith.constant 0 : index
    %c0_4 = arith.constant 0 : index
    %5 = vector.load %arg3[%c0_3, %c0_4] : memref<1x32xf32, #tpu.memory_space<vmem>>, vector<1x32xf32>
    %6 = vector.broadcast %4 : vector<2048x1xf32> to vector<2048x32xf32>
    %7 = vector.broadcast %5 : vector<1x32xf32> to vector<2048x32xf32>
    %8 = arith.mulf %6, %7 : vector<2048x32xf32>
    %c0_5 = arith.constant 0 : index
    %c0_6 = arith.constant 0 : index
    %9 = vector.load %arg4[%c0_5, %c0_6] : memref<1x32xf32, #tpu.memory_space<vmem>>, vector<1x32xf32>
    %10 = vector.broadcast %9 : vector<1x32xf32> to vector<2048x32xf32>
    %11 = arith.addf %8, %10 : vector<2048x32xf32>
    %cst = arith.constant 0.000000e+00 : f32
    %12 = vector.broadcast %cst : f32 to vector<2048x32xf32>
    %13 = arith.maximumf %11, %12 : vector<2048x32xf32>
    %c0_7 = arith.constant 0 : index
    %c0_8 = arith.constant 0 : index
    %14 = vector.load %arg8[%c0_7, %c0_8] : memref<1x32xf32, #tpu.memory_space<vmem>>, vector<1x32xf32>
    %cst_9 = arith.constant dense<0.000000e+00> : vector<32xf32>
    %15 = vector.multi_reduction <add>, %13, %cst_9 [0] : vector<2048x32xf32> to vector<32xf32>
    %16 = vector.shape_cast %15 : vector<32xf32> to vector<1x32xf32>
    %17 = arith.addf %14, %16 : vector<1x32xf32>
    %c0_10 = arith.constant 0 : index
    %c0_11 = arith.constant 0 : index
    %18 = vector.load %arg8[%c0_10, %c0_11] : memref<1x32xf32, #tpu.memory_space<vmem>>, vector<1x32xf32>
    tpu.vector_store %arg8[%c0_10, %c0_11], %17 {strides = array<i32>} : memref<1x32xf32, #tpu.memory_space<vmem>>, vector<1x32xf32>,
    %c0_i32_12 = arith.constant 0 : i32
    %19 = arith.cmpi eq, %arg1, %c0_i32_12 : i32
    %20 = arith.extui %19 : i1 to i32
    %c0_i32_13 = arith.constant 0 : i32
    %21 = arith.cmpi ne, %20, %c0_i32_13 : i32
    scf.if %21 {
      %c0_14 = arith.constant 0 : index
      %c0_15 = arith.constant 0 : index
      %22 = vector.load %arg8[%c0_14, %c0_15] : memref<1x32xf32, #tpu.memory_space<vmem>>, vector<1x32xf32>
      %cst_16 = arith.constant 4.8828125E-4 : f32
      %23 = vector.broadcast %cst_16 : f32 to vector<1x32xf32>
      %24 = arith.mulf %22, %23 : vector<1x32xf32>
      %c0_17 = arith.constant 0 : index
      %c0_18 = arith.constant 0 : index
      %25 = vector.load %arg5[%c0_17, %c0_18] : memref<32x4xf32, #tpu.memory_space<vmem>>, vector<32x4xf32>
      %cst_19 = arith.constant dense<0.000000e+00> : vector<1x4xf32>
      %26 = tpu.matmul %24, %25, %cst_19 {dimension_numbers = #tpu.dot_dimension_numbers<[1], [0], [0], [1], [0, 0, 1, 1], [], []>} : vector<1x32xf32>, vector<32x4xf32>, vector<1x4xf32> -> vector<1x4xf32>
      %c0_20 = arith.constant 0 : index
      %c0_21 = arith.constant 0 : index
      %27 = vector.load %arg6[%c0_20, %c0_21] : memref<1x4xf32, #tpu.memory_space<vmem>>, vector<1x4xf32>
      %28 = arith.addf %26, %27 : vector<1x4xf32>
      %c0_22 = arith.constant 0 : index
      %c0_23 = arith.constant 0 : index
      %c0_24 = arith.constant 0 : index
      %29 = vector.load %arg7[%c0_22, %c0_23, %c0_24] : memref<1x1x4xf32, #tpu.memory_space<vmem>>, vector<1x1x4xf32>
      %30 = vector.shape_cast %29 : vector<1x1x4xf32> to vector<1x4xf32>
      %31 = vector.shape_cast %28 : vector<1x4xf32> to vector<1x1x4xf32>
      tpu.vector_store %arg7[%c0_22, %c0_23, %c0_24], %31 {strides = array<i32>} : memref<1x1x4xf32, #tpu.memory_space<vmem>>, vector<1x1x4xf32>,
    } else {
    }
    return
  }
  func.func @transform_0(%arg0: i32, %arg1: i32) -> (i32, i32, i32) {
    %c0_i32 = arith.constant 0 : i32
    %c0_i32_0 = arith.constant 0 : i32
    return %arg0, %arg1, %c0_i32 : i32, i32, i32
  }
  func.func @transform_1(%arg0: i32, %arg1: i32) -> (i32, i32) {
    %c0_i32 = arith.constant 0 : i32
    %c0_i32_0 = arith.constant 0 : i32
    %c0_i32_1 = arith.constant 0 : i32
    return %c0_i32, %c0_i32_0 : i32, i32
  }
  func.func @transform_2(%arg0: i32, %arg1: i32) -> (i32, i32) {
    %c0_i32 = arith.constant 0 : i32
    %c0_i32_0 = arith.constant 0 : i32
    %c0_i32_1 = arith.constant 0 : i32
    return %c0_i32, %c0_i32_0 : i32, i32
  }
  func.func @transform_3(%arg0: i32, %arg1: i32) -> (i32, i32) {
    %c0_i32 = arith.constant 0 : i32
    %c0_i32_0 = arith.constant 0 : i32
    %c0_i32_1 = arith.constant 0 : i32
    return %c0_i32, %c0_i32_0 : i32, i32
  }
  func.func @transform_4(%arg0: i32, %arg1: i32) -> (i32, i32) {
    %c0_i32 = arith.constant 0 : i32
    %c0_i32_0 = arith.constant 0 : i32
    %c0_i32_1 = arith.constant 0 : i32
    return %c0_i32, %c0_i32_0 : i32, i32
  }
  func.func @transform_5(%arg0: i32, %arg1: i32) -> (i32, i32, i32) {
    %c0_i32 = arith.constant 0 : i32
    %c0_i32_0 = arith.constant 0 : i32
    %c0_i32_1 = arith.constant 0 : i32
    return %arg0, %c0_i32, %c0_i32_0 : i32, i32, i32
  }
}

module attributes {stable_mosaic.version = 11 : i64} {
  func.func @_gen_kernel(%arg0: i32, %arg1: i32, %arg2: memref<1x2048x1xf32, #tpu.memory_space<vmem>>, %arg3: memref<1x32xf32, #tpu.memory_space<vmem>>, %arg4: memref<1x32xf32, #tpu.memory_space<vmem>>, %arg5: memref<1x1x4xf32, #tpu.memory_space<vmem>>, %arg6: memref<4x32xf32, #tpu.memory_space<vmem>>, %arg7: memref<1x32xf32, #tpu.memory_space<vmem>>, %arg8: memref<32x2xf32, #tpu.memory_space<vmem>>, %arg9: memref<1x2xf32, #tpu.memory_space<vmem>>, %arg10: memref<1x32xf32, #tpu.memory_space<vmem>>, %arg11: memref<1x1xf32, #tpu.memory_space<vmem>>, %arg12: memref<1x2048x32xf32, #tpu.memory_space<vmem>>, %arg13: memref<1x2048x2xf32, #tpu.memory_space<vmem>>, %arg14: memref<1x2048x1xf32, #tpu.memory_space<vmem>>) attributes {dimension_semantics = [#tpu.dimension_semantics<parallel>, #tpu.dimension_semantics<parallel>], iteration_bounds = array<i64: 2, 1>, scalar_prefetch = 0 : i64, scratch_operands = 0 : i64, tpu.core_type = #tpu.core_type<tc>, window_params = [{transform_indices = @transform_0, window_bounds = array<i64: 1, 2048, 1>}, {pipeline_mode = #tpu.pipeline_mode<synchronous>, transform_indices = @transform_1, window_bounds = array<i64: 1, 32>}, {pipeline_mode = #tpu.pipeline_mode<synchronous>, transform_indices = @transform_2, window_bounds = array<i64: 1, 32>}, {transform_indices = @transform_3, window_bounds = array<i64: 1, 1, 4>}, {pipeline_mode = #tpu.pipeline_mode<synchronous>, transform_indices = @transform_4, window_bounds = array<i64: 4, 32>}, {pipeline_mode = #tpu.pipeline_mode<synchronous>, transform_indices = @transform_5, window_bounds = array<i64: 1, 32>}, {pipeline_mode = #tpu.pipeline_mode<synchronous>, transform_indices = @transform_6, window_bounds = array<i64: 32, 2>}, {pipeline_mode = #tpu.pipeline_mode<synchronous>, transform_indices = @transform_7, window_bounds = array<i64: 1, 2>}, {pipeline_mode = #tpu.pipeline_mode<synchronous>, transform_indices = @transform_8, window_bounds = array<i64: 1, 32>}, {pipeline_mode = #tpu.pipeline_mode<synchronous>, transform_indices = @transform_9, window_bounds = array<i64: 1, 1>}, {transform_indices = @transform_10, window_bounds = array<i64: 1, 2048, 32>}, {transform_indices = @transform_11, window_bounds = array<i64: 1, 2048, 2>}, {transform_indices = @transform_12, window_bounds = array<i64: 1, 2048, 1>}]} {
    %c0 = arith.constant 0 : index
    %c0_0 = arith.constant 0 : index
    %c0_1 = arith.constant 0 : index
    %0 = vector.load %arg2[%c0, %c0_0, %c0_1] : memref<1x2048x1xf32, #tpu.memory_space<vmem>>, vector<1x2048x1xf32>
    %1 = vector.shape_cast %0 : vector<1x2048x1xf32> to vector<2048x1xf32>
    %c0_2 = arith.constant 0 : index
    %c0_3 = arith.constant 0 : index
    %2 = vector.load %arg3[%c0_2, %c0_3] : memref<1x32xf32, #tpu.memory_space<vmem>>, vector<1x32xf32>
    %3 = vector.broadcast %1 : vector<2048x1xf32> to vector<2048x32xf32>
    %4 = vector.broadcast %2 : vector<1x32xf32> to vector<2048x32xf32>
    %5 = arith.mulf %3, %4 : vector<2048x32xf32>
    %c0_4 = arith.constant 0 : index
    %c0_5 = arith.constant 0 : index
    %6 = vector.load %arg4[%c0_4, %c0_5] : memref<1x32xf32, #tpu.memory_space<vmem>>, vector<1x32xf32>
    %7 = vector.broadcast %6 : vector<1x32xf32> to vector<2048x32xf32>
    %8 = arith.addf %5, %7 : vector<2048x32xf32>
    %cst = arith.constant 0.000000e+00 : f32
    %9 = vector.broadcast %cst : f32 to vector<2048x32xf32>
    %10 = arith.maximumf %8, %9 : vector<2048x32xf32>
    %c0_6 = arith.constant 0 : index
    %c0_7 = arith.constant 0 : index
    %c0_8 = arith.constant 0 : index
    %11 = vector.load %arg5[%c0_6, %c0_7, %c0_8] : memref<1x1x4xf32, #tpu.memory_space<vmem>>, vector<1x1x4xf32>
    %12 = vector.shape_cast %11 : vector<1x1x4xf32> to vector<1x4xf32>
    %c0_9 = arith.constant 0 : index
    %c0_10 = arith.constant 0 : index
    %13 = vector.load %arg6[%c0_9, %c0_10] : memref<4x32xf32, #tpu.memory_space<vmem>>, vector<4x32xf32>
    %cst_11 = arith.constant dense<0.000000e+00> : vector<1x32xf32>
    %14 = tpu.matmul %12, %13, %cst_11 {dimension_numbers = #tpu.dot_dimension_numbers<[1], [0], [0], [1], [0, 0, 1, 1], [], []>} : vector<1x4xf32>, vector<4x32xf32>, vector<1x32xf32> -> vector<1x32xf32>
    %c0_12 = arith.constant 0 : index
    %c0_13 = arith.constant 0 : index
    %15 = vector.load %arg7[%c0_12, %c0_13] : memref<1x32xf32, #tpu.memory_space<vmem>>, vector<1x32xf32>
    %16 = arith.addf %14, %15 : vector<1x32xf32>
    %17 = vector.broadcast %16 : vector<1x32xf32> to vector<2048x32xf32>
    %18 = arith.addf %10, %17 : vector<2048x32xf32>
    %c0_14 = arith.constant 0 : index
    %c0_15 = arith.constant 0 : index
    %19 = vector.load %arg8[%c0_14, %c0_15] : memref<32x2xf32, #tpu.memory_space<vmem>>, vector<32x2xf32>
    %cst_16 = arith.constant dense<0.000000e+00> : vector<2048x2xf32>
    %20 = tpu.matmul %18, %19, %cst_16 {dimension_numbers = #tpu.dot_dimension_numbers<[1], [0], [0], [1], [0, 0, 1, 1], [], []>} : vector<2048x32xf32>, vector<32x2xf32>, vector<2048x2xf32> -> vector<2048x2xf32>
    %c0_17 = arith.constant 0 : index
    %c0_18 = arith.constant 0 : index
    %21 = vector.load %arg9[%c0_17, %c0_18] : memref<1x2xf32, #tpu.memory_space<vmem>>, vector<1x2xf32>
    %22 = vector.broadcast %21 : vector<1x2xf32> to vector<2048x2xf32>
    %23 = arith.addf %20, %22 : vector<2048x2xf32>
    %c0_19 = arith.constant 0 : index
    %c0_20 = arith.constant 0 : index
    %24 = vector.load %arg10[%c0_19, %c0_20] : memref<1x32xf32, #tpu.memory_space<vmem>>, vector<1x32xf32>
    %25 = vector.broadcast %24 : vector<1x32xf32> to vector<2048x32xf32>
    %26 = arith.mulf %18, %25 : vector<2048x32xf32>
    %cst_21 = arith.constant dense<0.000000e+00> : vector<2048xf32>
    %27 = vector.multi_reduction <add>, %26, %cst_21 [1] : vector<2048x32xf32> to vector<2048xf32>
    %28 = vector.shape_cast %27 : vector<2048xf32> to vector<2048x1xf32>
    %c0_22 = arith.constant 0 : index
    %c0_23 = arith.constant 0 : index
    %29 = vector.load %arg11[%c0_22, %c0_23] : memref<1x1xf32, #tpu.memory_space<vmem>>, vector<1x1xf32>
    %30 = vector.broadcast %29 : vector<1x1xf32> to vector<2048x1xf32>
    %31 = arith.addf %28, %30 : vector<2048x1xf32>
    %32 = math.tanh %31 : vector<2048x1xf32>
    %c0_24 = arith.constant 0 : index
    %c0_25 = arith.constant 0 : index
    %c0_26 = arith.constant 0 : index
    %33 = vector.load %arg12[%c0_24, %c0_25, %c0_26] : memref<1x2048x32xf32, #tpu.memory_space<vmem>>, vector<1x2048x32xf32>
    %34 = vector.shape_cast %33 : vector<1x2048x32xf32> to vector<2048x32xf32>
    %35 = vector.shape_cast %18 : vector<2048x32xf32> to vector<1x2048x32xf32>
    tpu.vector_store %arg12[%c0_24, %c0_25, %c0_26], %35 {strides = array<i32>} : memref<1x2048x32xf32, #tpu.memory_space<vmem>>, vector<1x2048x32xf32>,
    %c0_27 = arith.constant 0 : index
    %c0_28 = arith.constant 0 : index
    %c0_29 = arith.constant 0 : index
    %36 = vector.load %arg13[%c0_27, %c0_28, %c0_29] : memref<1x2048x2xf32, #tpu.memory_space<vmem>>, vector<1x2048x2xf32>
    %37 = vector.shape_cast %36 : vector<1x2048x2xf32> to vector<2048x2xf32>
    %38 = vector.shape_cast %23 : vector<2048x2xf32> to vector<1x2048x2xf32>
    tpu.vector_store %arg13[%c0_27, %c0_28, %c0_29], %38 {strides = array<i32>} : memref<1x2048x2xf32, #tpu.memory_space<vmem>>, vector<1x2048x2xf32>,
    %c0_30 = arith.constant 0 : index
    %c0_31 = arith.constant 0 : index
    %c0_32 = arith.constant 0 : index
    %39 = vector.load %arg14[%c0_30, %c0_31, %c0_32] : memref<1x2048x1xf32, #tpu.memory_space<vmem>>, vector<1x2048x1xf32>
    %40 = vector.shape_cast %39 : vector<1x2048x1xf32> to vector<2048x1xf32>
    %41 = vector.shape_cast %32 : vector<2048x1xf32> to vector<1x2048x1xf32>
    tpu.vector_store %arg14[%c0_30, %c0_31, %c0_32], %41 {strides = array<i32>} : memref<1x2048x1xf32, #tpu.memory_space<vmem>>, vector<1x2048x1xf32>,
    return
  }
  func.func @transform_0(%arg0: i32, %arg1: i32) -> (i32, i32, i32) {
    %c0_i32 = arith.constant 0 : i32
    %c0_i32_0 = arith.constant 0 : i32
    return %arg0, %arg1, %c0_i32 : i32, i32, i32
  }
  func.func @transform_1(%arg0: i32, %arg1: i32) -> (i32, i32) {
    %c0_i32 = arith.constant 0 : i32
    %c0_i32_0 = arith.constant 0 : i32
    %c0_i32_1 = arith.constant 0 : i32
    return %c0_i32, %c0_i32_0 : i32, i32
  }
  func.func @transform_2(%arg0: i32, %arg1: i32) -> (i32, i32) {
    %c0_i32 = arith.constant 0 : i32
    %c0_i32_0 = arith.constant 0 : i32
    %c0_i32_1 = arith.constant 0 : i32
    return %c0_i32, %c0_i32_0 : i32, i32
  }
  func.func @transform_3(%arg0: i32, %arg1: i32) -> (i32, i32, i32) {
    %c0_i32 = arith.constant 0 : i32
    %c0_i32_0 = arith.constant 0 : i32
    %c0_i32_1 = arith.constant 0 : i32
    return %arg0, %c0_i32, %c0_i32_0 : i32, i32, i32
  }
  func.func @transform_4(%arg0: i32, %arg1: i32) -> (i32, i32) {
    %c0_i32 = arith.constant 0 : i32
    %c0_i32_0 = arith.constant 0 : i32
    %c0_i32_1 = arith.constant 0 : i32
    return %c0_i32, %c0_i32_0 : i32, i32
  }
  func.func @transform_5(%arg0: i32, %arg1: i32) -> (i32, i32) {
    %c0_i32 = arith.constant 0 : i32
    %c0_i32_0 = arith.constant 0 : i32
    %c0_i32_1 = arith.constant 0 : i32
    return %c0_i32, %c0_i32_0 : i32, i32
  }
  func.func @transform_6(%arg0: i32, %arg1: i32) -> (i32, i32) {
    %c0_i32 = arith.constant 0 : i32
    %c0_i32_0 = arith.constant 0 : i32
    %c0_i32_1 = arith.constant 0 : i32
    return %c0_i32, %c0_i32_0 : i32, i32
  }
  func.func @transform_7(%arg0: i32, %arg1: i32) -> (i32, i32) {
    %c0_i32 = arith.constant 0 : i32
    %c0_i32_0 = arith.constant 0 : i32
    %c0_i32_1 = arith.constant 0 : i32
    return %c0_i32, %c0_i32_0 : i32, i32
  }
  func.func @transform_8(%arg0: i32, %arg1: i32) -> (i32, i32) {
    %c0_i32 = arith.constant 0 : i32
    %c0_i32_0 = arith.constant 0 : i32
    %c0_i32_1 = arith.constant 0 : i32
    return %c0_i32, %c0_i32_0 : i32, i32
  }
  func.func @transform_9(%arg0: i32, %arg1: i32) -> (i32, i32) {
    %c0_i32 = arith.constant 0 : i32
    %c0_i32_0 = arith.constant 0 : i32
    %c0_i32_1 = arith.constant 0 : i32
    return %c0_i32, %c0_i32_0 : i32, i32
  }
  func.func @transform_10(%arg0: i32, %arg1: i32) -> (i32, i32, i32) {
    %c0_i32 = arith.constant 0 : i32
    %c0_i32_0 = arith.constant 0 : i32
    return %arg0, %arg1, %c0_i32 : i32, i32, i32
  }
  func.func @transform_11(%arg0: i32, %arg1: i32) -> (i32, i32, i32) {
    %c0_i32 = arith.constant 0 : i32
    %c0_i32_0 = arith.constant 0 : i32
    return %arg0, %arg1, %c0_i32 : i32, i32, i32
  }
  func.func @transform_12(%arg0: i32, %arg1: i32) -> (i32, i32, i32) {
    %c0_i32 = arith.constant 0 : i32
    %c0_i32_0 = arith.constant 0 : i32
    return %arg0, %arg1, %c0_i32 : i32, i32, i32
  }
}

</mosaic_0001>

<llo_original>
// kernel: madl_forward.2
$region0: #{madl_forward.2}
  #allocation0 [shape = 'u32[]', space=smem, size = 0x4, offset = 0x4, fixed_abs, tag = 'smem constant byte address 0x4 - core index']
  #allocation1 [shape = 'u32[144,128]{1,0:T(1,128)}', space=vmem, size = 0x12000, scoped, tag = 'internal scratch']
  #allocation2 [shape = 'f32[1,32]{1,0:T(1,128)}', space=vmem, size = 0x200, scoped, tag = 'scratch operand']
  %s0 = inlined_call_operand.vmem [shape: f32[2,2048,1], index: 0, kind: input, shape index: {}]
  %s1 = inlined_call_operand.vmem [shape: f32[1,32], index: 1, kind: input, shape index: {}]
  %s2 = inlined_call_operand.vmem [shape: f32[1,32], index: 2, kind: input, shape index: {}]
  %s3 = inlined_call_operand.vmem [shape: f32[32,4], index: 3, kind: input, shape index: {}]
  %s4 = inlined_call_operand.vmem [shape: f32[1,4], index: 4, kind: input, shape index: {}]
  %s5 = inlined_call_operand.vmem [shape: f32[2,1,4], index: 5, kind: output, shape index: {}]
  %s6 = sld [smem:[#allocation0]]
  $region61: #{madl_forward.2} parent=0
    _
  %s8 = ssub.s32 1, %s6
  %s9 = scalar_select 0, %s8, %s6
  loop: start=0, step=1, limit=4
  $region2: #{madl_forward.2} parent=0 // loop_pre_header
    _
  $region3: #{madl_forward.2} parent=0 // loop_header
    %s11 = sphi 0, %s15
    %p12 = scmp.ge.s32.totalorder %s11, 4
    %s18 = sphi 0, %s30
    %s19 = sphi 0, %s26
    %s20 = sphi 0, %s18
    %s21 = sphi 0, %s19
    %s22 = sphi 0, %s20
    %s23 = sphi 0, %s21
    %s35 = sphi 0, %s37
    %s38 = sphi 0, %s35
    %s39 = sphi 0, %s38
    %s55 = sphi 0, %s39
    %s59 = sphi 0, %s59
    %s61 = sphi 0, %s59
    %s62 = sphi 0, %s61
    %s76 = sphi 0, %s62
    %s80 = sphi 0, %s80
    %s82 = sphi 0, %s80
    %s83 = sphi 0, %s82
    %s97 = sphi 0, %s83
    %s101 = sphi 0, %s101
    %s103 = sphi 0, %s101
    %s104 = sphi 0, %s103
    %s118 = sphi 0, %s104
    %s122 = sphi 0, %s122
    %s124 = sphi 0, %s122
    %s125 = sphi 0, %s124
    %s139 = sphi 0, %s125
    %s145 = sphi 0, %s147
    %s148 = sphi 0, %s145
    %s149 = sphi 0, %s148
    %s165 = sphi 0, %s149
  $region4: #{madl_forward.2} parent=0 // loop_header_branch
    %14 = sbr.rel (%p12) target = $region8
  $region5: #{madl_forward.2} parent=0 // loop_body
    %s16 = ssub.s32 %s11, 1
    %s17 = ssub.s32 %s11, 2
    %s24 = sadd.s32 1, %s19
    %p25 = scmp.ge.s32.totalorder %s24, 1
    %s26 = scalar_select %p25, 0, %s24
    %s27 = sadd.s32 1, %s18
    %s28 = scalar_select %p25, %s27, %s18
    %p29 = scmp.ge.s32.totalorder %s28, 2
    %s30 = scalar_select %p29, 0, %s28
    %s31 = ssub.s32 %s18, %s30
    %s32 = ssub.s32 %s19, %s26
    %s33 = sor.u32 %s31, %s32
    %p34 = scmp.eq.s32.totalorder %s33, 0
    %s36 = sadd.s32 %s35, 1
    %s37 = scalar_select %p34, %s35, %s36
    %p40 = pneg %p34
    %p41 = scmp.eq.s32.totalorder %s11, 1
    %p42 = por %p40, %p41
    %p43 = scmp.ne.s32.totalorder %s35, %s38
    %p44 = scmp.eq.s32.totalorder %s11, 0
    %p45 = por %p43, %p44
    %p46 = scmp.ne.s32.totalorder %s35, %s38
    %p47 = scmp.eq.s32.totalorder %s16, 1
    %p48 = por %p46, %p47
    %p49 = scmp.ne.s32.totalorder %s38, %s39
    %p50 = scmp.eq.s32.totalorder %s16, 0
    %p51 = por %p49, %p50
    %p52 = scmp.ne.s32.totalorder %s38, %s39
    %p53 = scmp.eq.s32.totalorder %s17, 1
    %p54 = por %p52, %p53
    %p56 = scmp.ne.s32.totalorder %s39, %s55
    %p57 = scmp.eq.s32.totalorder %s17, 0
    %p58 = por %p56, %p57
    %s60 = sadd.s32 %s59, 1
    %p63 = scmp.eq.s32.totalorder %s11, 1
    %p64 = scmp.ne.s32.totalorder %s59, %s61
    %p65 = scmp.eq.s32.totalorder %s11, 0
    %p66 = por %p64, %p65
    %p67 = scmp.ne.s32.totalorder %s59, %s61
    %p68 = scmp.eq.s32.totalorder %s16, 1
    %p69 = por %p67, %p68
    %p70 = scmp.ne.s32.totalorder %s61, %s62
    %p71 = scmp.eq.s32.totalorder %s16, 0
    %p72 = por %p70, %p71
    %p73 = scmp.ne.s32.totalorder %s61, %s62
    %p74 = scmp.eq.s32.totalorder %s17, 1
    %p75 = por %p73, %p74
    %p77 = scmp.ne.s32.totalorder %s62, %s76
    %p78 = scmp.eq.s32.totalorder %s17, 0
    %p79 = por %p77, %p78
    %s81 = sadd.s32 %s80, 1
    %p84 = scmp.eq.s32.totalorder %s11, 1
    %p85 = scmp.ne.s32.totalorder %s80, %s82
    %p86 = scmp.eq.s32.totalorder %s11, 0
    %p87 = por %p85, %p86
    %p88 = scmp.ne.s32.totalorder %s80, %s82
    %p89 = scmp.eq.s32.totalorder %s16, 1
    %p90 = por %p88, %p89
    %p91 = scmp.ne.s32.totalorder %s82, %s83
    %p92 = scmp.eq.s32.totalorder %s16, 0
    %p93 = por %p91, %p92
    %p94 = scmp.ne.s32.totalorder %s82, %s83
    %p95 = scmp.eq.s32.totalorder %s17, 1
    %p96 = por %p94, %p95
    %p98 = scmp.ne.s32.totalorder %s83, %s97
    %p99 = scmp.eq.s32.totalorder %s17, 0
    %p100 = por %p98, %p99
    %s102 = sadd.s32 %s101, 1
    %p105 = scmp.eq.s32.totalorder %s11, 1
    %p106 = scmp.ne.s32.totalorder %s101, %s103
    %p107 = scmp.eq.s32.totalorder %s11, 0
    %p108 = por %p106, %p107
    %p109 = scmp.ne.s32.totalorder %s101, %s103
    %p110 = scmp.eq.s32.totalorder %s16, 1
    %p111 = por %p109, %p110
    %p112 = scmp.ne.s32.totalorder %s103, %s104
    %p113 = scmp.eq.s32.totalorder %s16, 0
    %p114 = por %p112, %p113
    %p115 = scmp.ne.s32.totalorder %s103, %s104
    %p116 = scmp.eq.s32.totalorder %s17, 1
    %p117 = por %p115, %p116
    %p119 = scmp.ne.s32.totalorder %s104, %s118
    %p120 = scmp.eq.s32.totalorder %s17, 0
    %p121 = por %p119, %p120
    %s123 = sadd.s32 %s122, 1
    %p126 = scmp.eq.s32.totalorder %s11, 1
    %p127 = scmp.ne.s32.totalorder %s122, %s124
    %p128 = scmp.eq.s32.totalorder %s11, 0
    %p129 = por %p127, %p128
    %p130 = scmp.ne.s32.totalorder %s122, %s124
    %p131 = scmp.eq.s32.totalorder %s16, 1
    %p132 = por %p130, %p131
    %p133 = scmp.ne.s32.totalorder %s124, %s125
    %p134 = scmp.eq.s32.totalorder %s16, 0
    %p135 = por %p133, %p134
    %p136 = scmp.ne.s32.totalorder %s124, %s125
    %p137 = scmp.eq.s32.totalorder %s17, 1
    %p138 = por %p136, %p137
    %p140 = scmp.ne.s32.totalorder %s125, %s139
    %p141 = scmp.eq.s32.totalorder %s17, 0
    %p142 = por %p140, %p141
    %s143 = ssub.s32 %s18, %s30
    %p144 = scmp.eq.s32.totalorder %s143, 0
    %s146 = sadd.s32 %s145, 1
    %s147 = scalar_select %p144, %s145, %s146
    %p150 = pneg %p144
    %p151 = scmp.eq.s32.totalorder %s11, 1
    %p152 = por %p150, %p151
    %p153 = scmp.ne.s32.totalorder %s145, %s148
    %p154 = scmp.eq.s32.totalorder %s11, 0
    %p155 = por %p153, %p154
    %p156 = scmp.ne.s32.totalorder %s145, %s148
    %p157 = scmp.eq.s32.totalorder %s16, 1
    %p158 = por %p156, %p157
    %p159 = scmp.ne.s32.totalorder %s148, %s149
    %p160 = scmp.eq.s32.totalorder %s16, 0
    %p161 = por %p159, %p160
    %p162 = scmp.ne.s32.totalorder %s148, %s149
    %p163 = scmp.eq.s32.totalorder %s17, 1
    %p164 = por %p162, %p163
    %p166 = scmp.ne.s32.totalorder %s149, %s165
    %p167 = scmp.eq.s32.totalorder %s17, 0
    %p168 = por %p166, %p167
    %p169 = scmp.le.s32.totalorder 1, %s11
    %p170 = scmp.lt.s32.totalorder %s11, 3
    %p171 = pnand %p169, %p170
    %p172 = pneg %p171
    // Predicated region
    $region9: #{madl_forward.2} parent=5 // pred_check
      _
    $region10: #{madl_forward.2} parent=5 // pred_check_branch
      %174 = sbr.rel (%p171) target = $region12
    $region11: #{madl_forward.2} parent=5 // pred_region
      %s175 = ssub.s32 %s11, 1
      // Predicated region
      $region13: #{madl_forward.2} parent=11 // pred_check
        %p176 = pneg %p72
      $region14: #{madl_forward.2} parent=11 // pred_check_branch
        %178 = sbr.rel (%p176) target = $region16
      $region15: #{madl_forward.2} parent=11 // pred_region
        _
      $region16: #{madl_forward.2} parent=11 // pred_fallthru
        _
      // Predicated region
      $region17: #{madl_forward.2} parent=11 // pred_check
        %p179 = pneg %p93
      $region18: #{madl_forward.2} parent=11 // pred_check_branch
        %181 = sbr.rel (%p179) target = $region20
      $region19: #{madl_forward.2} parent=11 // pred_region
        _
      $region20: #{madl_forward.2} parent=11 // pred_fallthru
        _
      // Predicated region
      $region21: #{madl_forward.2} parent=11 // pred_check
        %p182 = pneg %p114
      $region22: #{madl_forward.2} parent=11 // pred_check_branch
        %184 = sbr.rel (%p182) target = $region24
      $region23: #{madl_forward.2} parent=11 // pred_region
        _
      $region24: #{madl_forward.2} parent=11 // pred_fallthru
        _
      // Predicated region
      $region25: #{madl_forward.2} parent=11 // pred_check
        %p185 = pneg %p135
      $region26: #{madl_forward.2} parent=11 // pred_check_branch
        %187 = sbr.rel (%p185) target = $region28
      $region27: #{madl_forward.2} parent=11 // pred_region
        _
      $region28: #{madl_forward.2} parent=11 // pred_fallthru
        _
    $region12: #{madl_forward.2} parent=5 // pred_fallthru
      _
    %p188 = scmp.lt.s32.totalorder %s11, 2
    // Predicated region
    $region29: #{madl_forward.2} parent=5 // pred_check
      %p189 = pneg %p188
    $region30: #{madl_forward.2} parent=5 // pred_check_branch
      %191 = sbr.rel (%p189) target = $region32
    $region31: #{madl_forward.2} parent=5 // pred_region
      // Predicated region
      $region33: #{madl_forward.2} parent=31 // pred_check
        %p192 = pneg %p45
      $region34: #{madl_forward.2} parent=31 // pred_check_branch
        %194 = sbr.rel (%p192) target = $region36
      $region35: #{madl_forward.2} parent=31 // pred_region
        %s195 = smul.u32 256, %s19
        %p196 = scmp.lt.s32.totalorder %s18, 1
        %s197 = scalar_select %p196, %s18, 1
        %p198 = scmp.lt.s32.totalorder %s195, 255
        %s199 = scalar_select %p198, %s195, 255
        %s200 = smul.addr %s197, 256
        %s201 = sadd.s32 %s199, %s200
        %s202 = smul.addr %s201, 8
        %s203 = scalar_lea.vmem %s0, %s202
        %s204 = smul.u32 256, %s19
      $region36: #{madl_forward.2} parent=31 // pred_fallthru
        _
    $region32: #{madl_forward.2} parent=5 // pred_fallthru
      _
    %p205 = scmp.le.s32.totalorder 1, %s11
    %p206 = scmp.lt.s32.totalorder %s11, 3
    %p207 = pnand %p205, %p206
    %p208 = pneg %p207
    // Predicated region
    $region37: #{madl_forward.2} parent=5 // pred_check
      _
    $region38: #{madl_forward.2} parent=5 // pred_check_branch
      %210 = sbr.rel (%p207) target = $region40
    $region39: #{madl_forward.2} parent=5 // pred_region
      %s211 = ssub.s32 %s11, 1
      %s212 = smul.u32 256, %s21
      %p213 = scmp.lt.s32.totalorder %s20, 1
      %s214 = scalar_select %p213, %s20, 1
      %p215 = scmp.lt.s32.totalorder %s212, 255
      %s216 = scalar_select %p215, %s212, 255
      %s217 = smul.addr %s214, 256
      %s218 = sadd.s32 %s216, %s217
      %s219 = smul.addr %s218, 8
      %s220 = scalar_lea.vmem %s0, %s219
      %p221 = pneg %p51
      %p222 = pneg %p48
      %p223 = pneg %p72
      %p224 = pneg %p69
      %p225 = pneg %p93
      %p226 = pneg %p90
      %p227 = pneg %p114
      %p228 = pneg %p111
      %p229 = pneg %p135
      %p230 = pneg %p132
      %p231 = pneg %p161
      %p232 = pneg %p158
      %p233 = scmp.lt.s32.totalorder %s20, 1
      %s234 = scalar_select %p233, %s20, 1
      %s235 = scalar_lea.vmem %s5, %s234
      %s236 = smul.u32 256, %s21
      %p237 = scmp.lt.s32.totalorder %s20, 1
      %s238 = scalar_select %p237, %s20, 1
      %p239 = scmp.lt.s32.totalorder %s236, 255
      %s240 = scalar_select %p239, %s236, 255
      %s241 = smul.addr %s238, 256
      %s242 = sadd.s32 %s240, %s241
      %s243 = smul.addr %s242, 8
      %s244 = scalar_lea.vmem %s0, %s243
      %s245 = smul.u32 256, %s21
      %p246 = scmp.lt.s32.totalorder %s20, 1
      %s247 = scalar_select %p246, %s20, 1
      %s248 = scalar_lea.vmem %s5, %s247
      %p249 = scmp.eq.s32.totalorder %s21, 0
      // Predicated region
      $region41: #{madl_forward.2} parent=39 // pred_check
        %p250 = pneg %p249
      $region42: #{madl_forward.2} parent=39 // pred_check_branch
        %252 = sbr.rel (%p250) target = $region44
      $region43: #{madl_forward.2} parent=39 // pred_region
        %vm253 = vcmask 253952
        %254 = vst.msk [vmem:[#allocation2] sm:$0x1] %vm253, 0.0
      $region44: #{madl_forward.2} parent=39 // pred_fallthru
        _
      %v255 = vld [vmem:[%s244] sm:$0xff]
      %v256 = vld [vmem:[%s244 + $0x8] sm:$0xff]
      %v257 = vld [vmem:[%s244 + $0x10] sm:$0xff]
      %v258 = vld [vmem:[%s244 + $0x18] sm:$0xff]
      %v259 = vld [vmem:[%s244 + $0x20] sm:$0xff]
      %v260 = vld [vmem:[%s244 + $0x28] sm:$0xff]
      %v261 = vld [vmem:[%s244 + $0x30] sm:$0xff]
      %v262 = vld [vmem:[%s244 + $0x38] sm:$0xff]
      %v263 = vld [vmem:[%s244 + $0x40] sm:$0xff]
      %v264 = vld [vmem:[%s244 + $0x48] sm:$0xff]
      %v265 = vld [vmem:[%s244 + $0x50] sm:$0xff]
      %v266 = vld [vmem:[%s244 + $0x58] sm:$0xff]
      %v267 = vld [vmem:[%s244 + $0x60] sm:$0xff]
      %v268 = vld [vmem:[%s244 + $0x68] sm:$0xff]
      %v269 = vld [vmem:[%s244 + $0x70] sm:$0xff]
      %v270 = vld [vmem:[%s244 + $0x78] sm:$0xff]
      %v271 = vld [vmem:[%s244 + $0x80] sm:$0xff]
      %v272 = vld [vmem:[%s244 + $0x88] sm:$0xff]
      %v273 = vld [vmem:[%s244 + $0x90] sm:$0xff]
      %v274 = vld [vmem:[%s244 + $0x98] sm:$0xff]
      %v275 = vld [vmem:[%s244 + $0xa0] sm:$0xff]
      %v276 = vld [vmem:[%s244 + $0xa8] sm:$0xff]
      %v277 = vld [vmem:[%s244 + $0xb0] sm:$0xff]
      %v278 = vld [vmem:[%s244 + $0xb8] sm:$0xff]
      %v279 = vld [vmem:[%s244 + $0xc0] sm:$0xff]
      %v280 = vld [vmem:[%s244 + $0xc8] sm:$0xff]
      %v281 = vld [vmem:[%s244 + $0xd0] sm:$0xff]
      %v282 = vld [vmem:[%s244 + $0xd8] sm:$0xff]
      %v283 = vld [vmem:[%s244 + $0xe0] sm:$0xff]
      %v284 = vld [vmem:[%s244 + $0xe8] sm:$0xff]
      %v285 = vld [vmem:[%s244 + $0xf0] sm:$0xff]
      %v286 = vld [vmem:[%s244 + $0xf8] sm:$0xff]
      %v287 = vld [vmem:[%s244 + $0x100] sm:$0xff]
      %v288 = vld [vmem:[%s244 + $0x108] sm:$0xff]
      %v289 = vld [vmem:[%s244 + $0x110] sm:$0xff]
      %v290 = vld [vmem:[%s244 + $0x118] sm:$0xff]
      %v291 = vld [vmem:[%s244 + $0x120] sm:$0xff]
      %v292 = vld [vmem:[%s244 + $0x128] sm:$0xff]
      %v293 = vld [vmem:[%s244 + $0x130] sm:$0xff]
      %v294 = vld [vmem:[%s244 + $0x138] sm:$0xff]
      %v295 = vld [vmem:[%s244 + $0x140] sm:$0xff]
      %v296 = vld [vmem:[%s244 + $0x148] sm:$0xff]
      %v297 = vld [vmem:[%s244 + $0x150] sm:$0xff]
      %v298 = vld [vmem:[%s244 + $0x158] sm:$0xff]
      %v299 = vld [vmem:[%s244 + $0x160] sm:$0xff]
      %v300 = vld [vmem:[%s244 + $0x168] sm:$0xff]
      %v301 = vld [vmem:[%s244 + $0x170] sm:$0xff]
      %v302 = vld [vmem:[%s244 + $0x178] sm:$0xff]
      %v303 = vld [vmem:[%s244 + $0x180] sm:$0xff]
      %v304 = vld [vmem:[%s244 + $0x188] sm:$0xff]
      %v305 = vld [vmem:[%s244 + $0x190] sm:$0xff]
      %v306 = vld [vmem:[%s244 + $0x198] sm:$0xff]
      %v307 = vld [vmem:[%s244 + $0x1a0] sm:$0xff]
      %v308 = vld [vmem:[%s244 + $0x1a8] sm:$0xff]
      %v309 = vld [vmem:[%s244 + $0x1b0] sm:$0xff]
      %v310 = vld [vmem:[%s244 + $0x1b8] sm:$0xff]
      %v311 = vld [vmem:[%s244 + $0x1c0] sm:$0xff]
      %v312 = vld [vmem:[%s244 + $0x1c8] sm:$0xff]
      %v313 = vld [vmem:[%s244 + $0x1d0] sm:$0xff]
      %v314 = vld [vmem:[%s244 + $0x1d8] sm:$0xff]
      %v315 = vld [vmem:[%s244 + $0x1e0] sm:$0xff]
      %v316 = vld [vmem:[%s244 + $0x1e8] sm:$0xff]
      %v317 = vld [vmem:[%s244 + $0x1f0] sm:$0xff]
      %v318 = vld [vmem:[%s244 + $0x1f8] sm:$0xff]
      %v319 = vld [vmem:[%s244 + $0x200] sm:$0xff]
      %v320 = vld [vmem:[%s244 + $0x208] sm:$0xff]
      %v321 = vld [vmem:[%s244 + $0x210] sm:$0xff]
      %v322 = vld [vmem:[%s244 + $0x218] sm:$0xff]
      %v323 = vld [vmem:[%s244 + $0x220] sm:$0xff]
      %v324 = vld [vmem:[%s244 + $0x228] sm:$0xff]
      %v325 = vld [vmem:[%s244 + $0x230] sm:$0xff]
      %v326 = vld [vmem:[%s244 + $0x238] sm:$0xff]
      %v327 = vld [vmem:[%s244 + $0x240] sm:$0xff]
      %v328 = vld [vmem:[%s244 + $0x248] sm:$0xff]
      %v329 = vld [vmem:[%s244 + $0x250] sm:$0xff]
      %v330 = vld [vmem:[%s244 + $0x258] sm:$0xff]
      %v331 = vld [vmem:[%s244 + $0x260] sm:$0xff]
      %v332 = vld [vmem:[%s244 + $0x268] sm:$0xff]
      %v333 = vld [vmem:[%s244 + $0x270] sm:$0xff]
      %v334 = vld [vmem:[%s244 + $0x278] sm:$0xff]
      %v335 = vld [vmem:[%s244 + $0x280] sm:$0xff]
      %v336 = vld [vmem:[%s244 + $0x288] sm:$0xff]
      %v337 = vld [vmem:[%s244 + $0x290] sm:$0xff]
      %v338 = vld [vmem:[%s244 + $0x298] sm:$0xff]
      %v339 = vld [vmem:[%s244 + $0x2a0] sm:$0xff]
      %v340 = vld [vmem:[%s244 + $0x2a8] sm:$0xff]
      %v341 = vld [vmem:[%s244 + $0x2b0] sm:$0xff]
      %v342 = vld [vmem:[%s244 + $0x2b8] sm:$0xff]
      %v343 = vld [vmem:[%s244 + $0x2c0] sm:$0xff]
      %v344 = vld [vmem:[%s244 + $0x2c8] sm:$0xff]
      %v345 = vld [vmem:[%s244 + $0x2d0] sm:$0xff]
      %v346 = vld [vmem:[%s244 + $0x2d8] sm:$0xff]
      %v347 = vld [vmem:[%s244 + $0x2e0] sm:$0xff]
      %v348 = vld [vmem:[%s244 + $0x2e8] sm:$0xff]
      %v349 = vld [vmem:[%s244 + $0x2f0] sm:$0xff]
      %v350 = vld [vmem:[%s244 + $0x2f8] sm:$0xff]
      %v351 = vld [vmem:[%s244 + $0x300] sm:$0xff]
      %v352 = vld [vmem:[%s244 + $0x308] sm:$0xff]
      %v353 = vld [vmem:[%s244 + $0x310] sm:$0xff]
      %v354 = vld [vmem:[%s244 + $0x318] sm:$0xff]
      %v355 = vld [vmem:[%s244 + $0x320] sm:$0xff]
      %v356 = vld [vmem:[%s244 + $0x328] sm:$0xff]
      %v357 = vld [vmem:[%s244 + $0x330] sm:$0xff]
      %v358 = vld [vmem:[%s244 + $0x338] sm:$0xff]
      %v359 = vld [vmem:[%s244 + $0x340] sm:$0xff]
      %v360 = vld [vmem:[%s244 + $0x348] sm:$0xff]
      %v361 = vld [vmem:[%s244 + $0x350] sm:$0xff]
      %v362 = vld [vmem:[%s244 + $0x358] sm:$0xff]
      %v363 = vld [vmem:[%s244 + $0x360] sm:$0xff]
      %v364 = vld [vmem:[%s244 + $0x368] sm:$0xff]
      %v365 = vld [vmem:[%s244 + $0x370] sm:$0xff]
      %v366 = vld [vmem:[%s244 + $0x378] sm:$0xff]
      %v367 = vld [vmem:[%s244 + $0x380] sm:$0xff]
      %v368 = vld [vmem:[%s244 + $0x388] sm:$0xff]
      %v369 = vld [vmem:[%s244 + $0x390] sm:$0xff]
      %v370 = vld [vmem:[%s244 + $0x398] sm:$0xff]
      %v371 = vld [vmem:[%s244 + $0x3a0] sm:$0xff]
      %v372 = vld [vmem:[%s244 + $0x3a8] sm:$0xff]
      %v373 = vld [vmem:[%s244 + $0x3b0] sm:$0xff]
      %v374 = vld [vmem:[%s244 + $0x3b8] sm:$0xff]
      %v375 = vld [vmem:[%s244 + $0x3c0] sm:$0xff]
      %v376 = vld [vmem:[%s244 + $0x3c8] sm:$0xff]
      %v377 = vld [vmem:[%s244 + $0x3d0] sm:$0xff]
      %v378 = vld [vmem:[%s244 + $0x3d8] sm:$0xff]
      %v379 = vld [vmem:[%s244 + $0x3e0] sm:$0xff]
      %v380 = vld [vmem:[%s244 + $0x3e8] sm:$0xff]
      %v381 = vld [vmem:[%s244 + $0x3f0] sm:$0xff]
      %v382 = vld [vmem:[%s244 + $0x3f8] sm:$0xff]
      %v383 = vld [vmem:[%s244 + $0x400] sm:$0xff]
      %v384 = vld [vmem:[%s244 + $0x408] sm:$0xff]
      %v385 = vld [vmem:[%s244 + $0x410] sm:$0xff]
      %v386 = vld [vmem:[%s244 + $0x418] sm:$0xff]
      %v387 = vld [vmem:[%s244 + $0x420] sm:$0xff]
      %v388 = vld [vmem:[%s244 + $0x428] sm:$0xff]
      %v389 = vld [vmem:[%s244 + $0x430] sm:$0xff]
      %v390 = vld [vmem:[%s244 + $0x438] sm:$0xff]
      %v391 = vld [vmem:[%s244 + $0x440] sm:$0xff]
      %v392 = vld [vmem:[%s244 + $0x448] sm:$0xff]
      %v393 = vld [vmem:[%s244 + $0x450] sm:$0xff]
      %v394 = vld [vmem:[%s244 + $0x458] sm:$0xff]
      %v395 = vld [vmem:[%s244 + $0x460] sm:$0xff]
      %v396 = vld [vmem:[%s244 + $0x468] sm:$0xff]
      %v397 = vld [vmem:[%s244 + $0x470] sm:$0xff]
      %v398 = vld [vmem:[%s244 + $0x478] sm:$0xff]
      %v399 = vld [vmem:[%s244 + $0x480] sm:$0xff]
      %v400 = vld [vmem:[%s244 + $0x488] sm:$0xff]
      %v401 = vld [vmem:[%s244 + $0x490] sm:$0xff]
      %v402 = vld [vmem:[%s244 + $0x498] sm:$0xff]
      %v403 = vld [vmem:[%s244 + $0x4a0] sm:$0xff]
      %v404 = vld [vmem:[%s244 + $0x4a8] sm:$0xff]
      %v405 = vld [vmem:[%s244 + $0x4b0] sm:$0xff]
      %v406 = vld [vmem:[%s244 + $0x4b8] sm:$0xff]
      %v407 = vld [vmem:[%s244 + $0x4c0] sm:$0xff]
      %v408 = vld [vmem:[%s244 + $0x4c8] sm:$0xff]
      %v409 = vld [vmem:[%s244 + $0x4d0] sm:$0xff]
      %v410 = vld [vmem:[%s244 + $0x4d8] sm:$0xff]
      %v411 = vld [vmem:[%s244 + $0x4e0] sm:$0xff]
      %v412 = vld [vmem:[%s244 + $0x4e8] sm:$0xff]
      %v413 = vld [vmem:[%s244 + $0x4f0] sm:$0xff]
      %v414 = vld [vmem:[%s244 + $0x4f8] sm:$0xff]
      %v415 = vld [vmem:[%s244 + $0x500] sm:$0xff]
      %v416 = vld [vmem:[%s244 + $0x508] sm:$0xff]
      %v417 = vld [vmem:[%s244 + $0x510] sm:$0xff]
      %v418 = vld [vmem:[%s244 + $0x518] sm:$0xff]
      %v419 = vld [vmem:[%s244 + $0x520] sm:$0xff]
      %v420 = vld [vmem:[%s244 + $0x528] sm:$0xff]
      %v421 = vld [vmem:[%s244 + $0x530] sm:$0xff]
      %v422 = vld [vmem:[%s244 + $0x538] sm:$0xff]
      %v423 = vld [vmem:[%s244 + $0x540] sm:$0xff]
      %v424 = vld [vmem:[%s244 + $0x548] sm:$0xff]
      %v425 = vld [vmem:[%s244 + $0x550] sm:$0xff]
      %v426 = vld [vmem:[%s244 + $0x558] sm:$0xff]
      %v427 = vld [vmem:[%s244 + $0x560] sm:$0xff]
      %v428 = vld [vmem:[%s244 + $0x568] sm:$0xff]
      %v429 = vld [vmem:[%s244 + $0x570] sm:$0xff]
      %v430 = vld [vmem:[%s244 + $0x578] sm:$0xff]
      %v431 = vld [vmem:[%s244 + $0x580] sm:$0xff]
      %v432 = vld [vmem:[%s244 + $0x588] sm:$0xff]
      %v433 = vld [vmem:[%s244 + $0x590] sm:$0xff]
      %v434 = vld [vmem:[%s244 + $0x598] sm:$0xff]
      %v435 = vld [vmem:[%s244 + $0x5a0] sm:$0xff]
      %v436 = vld [vmem:[%s244 + $0x5a8] sm:$0xff]
      %v437 = vld [vmem:[%s244 + $0x5b0] sm:$0xff]
      %v438 = vld [vmem:[%s244 + $0x5b8] sm:$0xff]
      %v439 = vld [vmem:[%s244 + $0x5c0] sm:$0xff]
      %v440 = vld [vmem:[%s244 + $0x5c8] sm:$0xff]
      %v441 = vld [vmem:[%s244 + $0x5d0] sm:$0xff]
      %v442 = vld [vmem:[%s244 + $0x5d8] sm:$0xff]
      %v443 = vld [vmem:[%s244 + $0x5e0] sm:$0xff]
      %v444 = vld [vmem:[%s244 + $0x5e8] sm:$0xff]
      %v445 = vld [vmem:[%s244 + $0x5f0] sm:$0xff]
      %v446 = vld [vmem:[%s244 + $0x5f8] sm:$0xff]
      %v447 = vld [vmem:[%s244 + $0x600] sm:$0xff]
      %v448 = vld [vmem:[%s244 + $0x608] sm:$0xff]
      %v449 = vld [vmem:[%s244 + $0x610] sm:$0xff]
      %v450 = vld [vmem:[%s244 + $0x618] sm:$0xff]
      %v451 = vld [vmem:[%s244 + $0x620] sm:$0xff]
      %v452 = vld [vmem:[%s244 + $0x628] sm:$0xff]
      %v453 = vld [vmem:[%s244 + $0x630] sm:$0xff]
      %v454 = vld [vmem:[%s244 + $0x638] sm:$0xff]
      %v455 = vld [vmem:[%s244 + $0x640] sm:$0xff]
      %v456 = vld [vmem:[%s244 + $0x648] sm:$0xff]
      %v457 = vld [vmem:[%s244 + $0x650] sm:$0xff]
      %v458 = vld [vmem:[%s244 + $0x658] sm:$0xff]
      %v459 = vld [vmem:[%s244 + $0x660] sm:$0xff]
      %v460 = vld [vmem:[%s244 + $0x668] sm:$0xff]
      %v461 = vld [vmem:[%s244 + $0x670] sm:$0xff]
      %v462 = vld [vmem:[%s244 + $0x678] sm:$0xff]
      %v463 = vld [vmem:[%s244 + $0x680] sm:$0xff]
      %v464 = vld [vmem:[%s244 + $0x688] sm:$0xff]
      %v465 = vld [vmem:[%s244 + $0x690] sm:$0xff]
      %v466 = vld [vmem:[%s244 + $0x698] sm:$0xff]
      %v467 = vld [vmem:[%s244 + $0x6a0] sm:$0xff]
      %v468 = vld [vmem:[%s244 + $0x6a8] sm:$0xff]
      %v469 = vld [vmem:[%s244 + $0x6b0] sm:$0xff]
      %v470 = vld [vmem:[%s244 + $0x6b8] sm:$0xff]
      %v471 = vld [vmem:[%s244 + $0x6c0] sm:$0xff]
      %v472 = vld [vmem:[%s244 + $0x6c8] sm:$0xff]
      %v473 = vld [vmem:[%s244 + $0x6d0] sm:$0xff]
      %v474 = vld [vmem:[%s244 + $0x6d8] sm:$0xff]
      %v475 = vld [vmem:[%s244 + $0x6e0] sm:$0xff]
      %v476 = vld [vmem:[%s244 + $0x6e8] sm:$0xff]
      %v477 = vld [vmem:[%s244 + $0x6f0] sm:$0xff]
      %v478 = vld [vmem:[%s244 + $0x6f8] sm:$0xff]
      %v479 = vld [vmem:[%s244 + $0x700] sm:$0xff]
      %v480 = vld [vmem:[%s244 + $0x708] sm:$0xff]
      %v481 = vld [vmem:[%s244 + $0x710] sm:$0xff]
      %v482 = vld [vmem:[%s244 + $0x718] sm:$0xff]
      %v483 = vld [vmem:[%s244 + $0x720] sm:$0xff]
      %v484 = vld [vmem:[%s244 + $0x728] sm:$0xff]
      %v485 = vld [vmem:[%s244 + $0x730] sm:$0xff]
      %v486 = vld [vmem:[%s244 + $0x738] sm:$0xff]
      %v487 = vld [vmem:[%s244 + $0x740] sm:$0xff]
      %v488 = vld [vmem:[%s244 + $0x748] sm:$0xff]
      %v489 = vld [vmem:[%s244 + $0x750] sm:$0xff]
      %v490 = vld [vmem:[%s244 + $0x758] sm:$0xff]
      %v491 = vld [vmem:[%s244 + $0x760] sm:$0xff]
      %v492 = vld [vmem:[%s244 + $0x768] sm:$0xff]
      %v493 = vld [vmem:[%s244 + $0x770] sm:$0xff]
      %v494 = vld [vmem:[%s244 + $0x778] sm:$0xff]
      %v495 = vld [vmem:[%s244 + $0x780] sm:$0xff]
      %v496 = vld [vmem:[%s244 + $0x788] sm:$0xff]
      %v497 = vld [vmem:[%s244 + $0x790] sm:$0xff]
      %v498 = vld [vmem:[%s244 + $0x798] sm:$0xff]
      %v499 = vld [vmem:[%s244 + $0x7a0] sm:$0xff]
      %v500 = vld [vmem:[%s244 + $0x7a8] sm:$0xff]
      %v501 = vld [vmem:[%s244 + $0x7b0] sm:$0xff]
      %v502 = vld [vmem:[%s244 + $0x7b8] sm:$0xff]
      %v503 = vld [vmem:[%s244 + $0x7c0] sm:$0xff]
      %v504 = vld [vmem:[%s244 + $0x7c8] sm:$0xff]
      %v505 = vld [vmem:[%s244 + $0x7d0] sm:$0xff]
      %v506 = vld [vmem:[%s244 + $0x7d8] sm:$0xff]
      %v507 = vld [vmem:[%s244 + $0x7e0] sm:$0xff]
      %v508 = vld [vmem:[%s244 + $0x7e8] sm:$0xff]
      %v509 = vld [vmem:[%s244 + $0x7f0] sm:$0xff]
      %v510 = vld [vmem:[%s244 + $0x7f8] sm:$0xff]
      %v511 = vld [vmem:[%s1] sm:$0x1]
      %513 = vset.pattern.permute.xlu0 0
      %514 = vperm.xlu0 %513, %v255
      %v515 = vpop.permute.xlu0 %514
      %518 = vset.pattern.permute.xlu0 0
      %519 = vperm.xlu0 %518, %v256
      %v520 = vpop.permute.xlu0 %519
      %523 = vset.pattern.permute.xlu0 0
      %524 = vperm.xlu0 %523, %v257
      %v525 = vpop.permute.xlu0 %524
      %528 = vset.pattern.permute.xlu0 0
      %529 = vperm.xlu0 %528, %v258
      %v530 = vpop.permute.xlu0 %529
      %533 = vset.pattern.permute.xlu0 0
      %534 = vperm.xlu0 %533, %v259
      %v535 = vpop.permute.xlu0 %534
      %538 = vset.pattern.permute.xlu0 0
      %539 = vperm.xlu0 %538, %v260
      %v540 = vpop.permute.xlu0 %539
      %543 = vset.pattern.permute.xlu0 0
      %544 = vperm.xlu0 %543, %v261
      %v545 = vpop.permute.xlu0 %544
      %548 = vset.pattern.permute.xlu0 0
      %549 = vperm.xlu0 %548, %v262
      %v550 = vpop.permute.xlu0 %549
      %553 = vset.pattern.permute.xlu0 0
      %554 = vperm.xlu0 %553, %v263
      %v555 = vpop.permute.xlu0 %554
      %558 = vset.pattern.permute.xlu0 0
      %559 = vperm.xlu0 %558, %v264
      %v560 = vpop.permute.xlu0 %559
      %563 = vset.pattern.permute.xlu0 0
      %564 = vperm.xlu0 %563, %v265
      %v565 = vpop.permute.xlu0 %564
      %568 = vset.pattern.permute.xlu0 0
      %569 = vperm.xlu0 %568, %v266
      %v570 = vpop.permute.xlu0 %569
      %573 = vset.pattern.permute.xlu0 0
      %574 = vperm.xlu0 %573, %v267
      %v575 = vpop.permute.xlu0 %574
      %578 = vset.pattern.permute.xlu0 0
      %579 = vperm.xlu0 %578, %v268
      %v580 = vpop.permute.xlu0 %579
      %583 = vset.pattern.permute.xlu0 0
      %584 = vperm.xlu0 %583, %v269
      %v585 = vpop.permute.xlu0 %584
      %588 = vset.pattern.permute.xlu0 0
      %589 = vperm.xlu0 %588, %v270
      %v590 = vpop.permute.xlu0 %589
      %593 = vset.pattern.permute.xlu0 0
      %594 = vperm.xlu0 %593, %v271
      %v595 = vpop.permute.xlu0 %594
      %598 = vset.pattern.permute.xlu0 0
      %599 = vperm.xlu0 %598, %v272
      %v600 = vpop.permute.xlu0 %599
      %603 = vset.pattern.permute.xlu0 0
      %604 = vperm.xlu0 %603, %v273
      %v605 = vpop.permute.xlu0 %604
      %608 = vset.pattern.permute.xlu0 0
      %609 = vperm.xlu0 %608, %v274
      %v610 = vpop.permute.xlu0 %609
      %613 = vset.pattern.permute.xlu0 0
      %614 = vperm.xlu0 %613, %v275
      %v615 = vpop.permute.xlu0 %614
      %618 = vset.pattern.permute.xlu0 0
      %619 = vperm.xlu0 %618, %v276
      %v620 = vpop.permute.xlu0 %619
      %623 = vset.pattern.permute.xlu0 0
      %624 = vperm.xlu0 %623, %v277
      %v625 = vpop.permute.xlu0 %624
      %628 = vset.pattern.permute.xlu0 0
      %629 = vperm.xlu0 %628, %v278
      %v630 = vpop.permute.xlu0 %629
      %633 = vset.pattern.permute.xlu0 0
      %634 = vperm.xlu0 %633, %v279
      %v635 = vpop.permute.xlu0 %634
      %638 = vset.pattern.permute.xlu0 0
      %639 = vperm.xlu0 %638, %v280
      %v640 = vpop.permute.xlu0 %639
      %643 = vset.pattern.permute.xlu0 0
      %644 = vperm.xlu0 %643, %v281
      %v645 = vpop.permute.xlu0 %644
      %648 = vset.pattern.permute.xlu0 0
      %649 = vperm.xlu0 %648, %v282
      %v650 = vpop.permute.xlu0 %649
      %653 = vset.pattern.permute.xlu0 0
      %654 = vperm.xlu0 %653, %v283
      %v655 = vpop.permute.xlu0 %654
      %658 = vset.pattern.permute.xlu0 0
      %659 = vperm.xlu0 %658, %v284
      %v660 = vpop.permute.xlu0 %659
      %663 = vset.pattern.permute.xlu0 0
      %664 = vperm.xlu0 %663, %v285
      %v665 = vpop.permute.xlu0 %664
      %668 = vset.pattern.permute.xlu0 0
      %669 = vperm.xlu0 %668, %v286
      %v670 = vpop.permute.xlu0 %669
      %673 = vset.pattern.permute.xlu0 0
      %674 = vperm.xlu0 %673, %v287
      %v675 = vpop.permute.xlu0 %674
      %678 = vset.pattern.permute.xlu0 0
      %679 = vperm.xlu0 %678, %v288
      %v680 = vpop.permute.xlu0 %679
      %683 = vset.pattern.permute.xlu0 0
      %684 = vperm.xlu0 %683, %v289
      %v685 = vpop.permute.xlu0 %684
      %688 = vset.pattern.permute.xlu0 0
      %689 = vperm.xlu0 %688, %v290
      %v690 = vpop.permute.xlu0 %689
      %693 = vset.pattern.permute.xlu0 0
      %694 = vperm.xlu0 %693, %v291
      %v695 = vpop.permute.xlu0 %694
      %698 = vset.pattern.permute.xlu0 0
      %699 = vperm.xlu0 %698, %v292
      %v700 = vpop.permute.xlu0 %699
      %703 = vset.pattern.permute.xlu0 0
      %704 = vperm.xlu0 %703, %v293
      %v705 = vpop.permute.xlu0 %704
      %708 = vset.pattern.permute.xlu0 0
      %709 = vperm.xlu0 %708, %v294
      %v710 = vpop.permute.xlu0 %709
      %713 = vset.pattern.permute.xlu0 0
      %714 = vperm.xlu0 %713, %v295
      %v715 = vpop.permute.xlu0 %714
      %718 = vset.pattern.permute.xlu0 0
      %719 = vperm.xlu0 %718, %v296
      %v720 = vpop.permute.xlu0 %719
      %723 = vset.pattern.permute.xlu0 0
      %724 = vperm.xlu0 %723, %v297
      %v725 = vpop.permute.xlu0 %724
      %728 = vset.pattern.permute.xlu0 0
      %729 = vperm.xlu0 %728, %v298
      %v730 = vpop.permute.xlu0 %729
      %733 = vset.pattern.permute.xlu0 0
      %734 = vperm.xlu0 %733, %v299
      %v735 = vpop.permute.xlu0 %734
      %738 = vset.pattern.permute.xlu0 0
      %739 = vperm.xlu0 %738, %v300
      %v740 = vpop.permute.xlu0 %739
      %743 = vset.pattern.permute.xlu0 0
      %744 = vperm.xlu0 %743, %v301
      %v745 = vpop.permute.xlu0 %744
      %748 = vset.pattern.permute.xlu0 0
      %749 = vperm.xlu0 %748, %v302
      %v750 = vpop.permute.xlu0 %749
      %753 = vset.pattern.permute.xlu0 0
      %754 = vperm.xlu0 %753, %v303
      %v755 = vpop.permute.xlu0 %754
      %758 = vset.pattern.permute.xlu0 0
      %759 = vperm.xlu0 %758, %v304
      %v760 = vpop.permute.xlu0 %759
      %763 = vset.pattern.permute.xlu0 0
      %764 = vperm.xlu0 %763, %v305
      %v765 = vpop.permute.xlu0 %764
      %768 = vset.pattern.permute.xlu0 0
      %769 = vperm.xlu0 %768, %v306
      %v770 = vpop.permute.xlu0 %769
      %773 = vset.pattern.permute.xlu0 0
      %774 = vperm.xlu0 %773, %v307
      %v775 = vpop.permute.xlu0 %774
      %778 = vset.pattern.permute.xlu0 0
      %779 = vperm.xlu0 %778, %v308
      %v780 = vpop.permute.xlu0 %779
      %783 = vset.pattern.permute.xlu0 0
      %784 = vperm.xlu0 %783, %v309
      %v785 = vpop.permute.xlu0 %784
      %788 = vset.pattern.permute.xlu0 0
      %789 = vperm.xlu0 %788, %v310
      %v790 = vpop.permute.xlu0 %789
      %793 = vset.pattern.permute.xlu0 0
      %794 = vperm.xlu0 %793, %v311
      %v795 = vpop.permute.xlu0 %794
      %798 = vset.pattern.permute.xlu0 0
      %799 = vperm.xlu0 %798, %v312
      %v800 = vpop.permute.xlu0 %799
      %803 = vset.pattern.permute.xlu0 0
      %804 = vperm.xlu0 %803, %v313
      %v805 = vpop.permute.xlu0 %804
      %808 = vset.pattern.permute.xlu0 0
      %809 = vperm.xlu0 %808, %v314
      %v810 = vpop.permute.xlu0 %809
      %813 = vset.pattern.permute.xlu0 0
      %814 = vperm.xlu0 %813, %v315
      %v815 = vpop.permute.xlu0 %814
      %818 = vset.pattern.permute.xlu0 0
      %819 = vperm.xlu0 %818, %v316
      %v820 = vpop.permute.xlu0 %819
      %823 = vset.pattern.permute.xlu0 0
      %824 = vperm.xlu0 %823, %v317
      %v825 = vpop.permute.xlu0 %824
      %828 = vset.pattern.permute.xlu0 0
      %829 = vperm.xlu0 %828, %v318
      %v830 = vpop.permute.xlu0 %829
      %833 = vset.pattern.permute.xlu0 0
      %834 = vperm.xlu0 %833, %v319
      %v835 = vpop.permute.xlu0 %834
      %838 = vset.pattern.permute.xlu0 0
      %839 = vperm.xlu0 %838, %v320
      %v840 = vpop.permute.xlu0 %839
      %843 = vset.pattern.permute.xlu0 0
      %844 = vperm.xlu0 %843, %v321
      %v845 = vpop.permute.xlu0 %844
      %848 = vset.pattern.permute.xlu0 0
      %849 = vperm.xlu0 %848, %v322
      %v850 = vpop.permute.xlu0 %849
      %853 = vset.pattern.permute.xlu0 0
      %854 = vperm.xlu0 %853, %v323
      %v855 = vpop.permute.xlu0 %854
      %858 = vset.pattern.permute.xlu0 0
      %859 = vperm.xlu0 %858, %v324
      %v860 = vpop.permute.xlu0 %859
      %863 = vset.pattern.permute.xlu0 0
      %864 = vperm.xlu0 %863, %v325
      %v865 = vpop.permute.xlu0 %864
      %868 = vset.pattern.permute.xlu0 0
      %869 = vperm.xlu0 %868, %v326
      %v870 = vpop.permute.xlu0 %869
      %873 = vset.pattern.permute.xlu0 0
      %874 = vperm.xlu0 %873, %v327
      %v875 = vpop.permute.xlu0 %874
      %878 = vset.pattern.permute.xlu0 0
      %879 = vperm.xlu0 %878, %v328
      %v880 = vpop.permute.xlu0 %879
      %883 = vset.pattern.permute.xlu0 0
      %884 = vperm.xlu0 %883, %v329
      %v885 = vpop.permute.xlu0 %884
      %888 = vset.pattern.permute.xlu0 0
      %889 = vperm.xlu0 %888, %v330
      %v890 = vpop.permute.xlu0 %889
      %893 = vset.pattern.permute.xlu0 0
      %894 = vperm.xlu0 %893, %v331
      %v895 = vpop.permute.xlu0 %894
      %898 = vset.pattern.permute.xlu0 0
      %899 = vperm.xlu0 %898, %v332
      %v900 = vpop.permute.xlu0 %899
      %903 = vset.pattern.permute.xlu0 0
      %904 = vperm.xlu0 %903, %v333
      %v905 = vpop.permute.xlu0 %904
      %908 = vset.pattern.permute.xlu0 0
      %909 = vperm.xlu0 %908, %v334
      %v910 = vpop.permute.xlu0 %909
      %913 = vset.pattern.permute.xlu0 0
      %914 = vperm.xlu0 %913, %v335
      %v915 = vpop.permute.xlu0 %914
      %918 = vset.pattern.permute.xlu0 0
      %919 = vperm.xlu0 %918, %v336
      %v920 = vpop.permute.xlu0 %919
      %923 = vset.pattern.permute.xlu0 0
      %924 = vperm.xlu0 %923, %v337
      %v925 = vpop.permute.xlu0 %924
      %928 = vset.pattern.permute.xlu0 0
      %929 = vperm.xlu0 %928, %v338
      %v930 = vpop.permute.xlu0 %929
      %933 = vset.pattern.permute.xlu0 0
      %934 = vperm.xlu0 %933, %v339
      %v935 = vpop.permute.xlu0 %934
      %938 = vset.pattern.permute.xlu0 0
      %939 = vperm.xlu0 %938, %v340
      %v940 = vpop.permute.xlu0 %939
      %943 = vset.pattern.permute.xlu0 0
      %944 = vperm.xlu0 %943, %v341
      %v945 = vpop.permute.xlu0 %944
      %948 = vset.pattern.permute.xlu0 0
      %949 = vperm.xlu0 %948, %v342
      %v950 = vpop.permute.xlu0 %949
      %953 = vset.pattern.permute.xlu0 0
      %954 = vperm.xlu0 %953, %v343
      %v955 = vpop.permute.xlu0 %954
      %958 = vset.pattern.permute.xlu0 0
      %959 = vperm.xlu0 %958, %v344
      %v960 = vpop.permute.xlu0 %959
      %963 = vset.pattern.permute.xlu0 0
      %964 = vperm.xlu0 %963, %v345
      %v965 = vpop.permute.xlu0 %964
      %968 = vset.pattern.permute.xlu0 0
      %969 = vperm.xlu0 %968, %v346
      %v970 = vpop.permute.xlu0 %969
      %973 = vset.pattern.permute.xlu0 0
      %974 = vperm.xlu0 %973, %v347
      %v975 = vpop.permute.xlu0 %974
      %978 = vset.pattern.permute.xlu0 0
      %979 = vperm.xlu0 %978, %v348
      %v980 = vpop.permute.xlu0 %979
      %983 = vset.pattern.permute.xlu0 0
      %984 = vperm.xlu0 %983, %v349
      %v985 = vpop.permute.xlu0 %984
      %988 = vset.pattern.permute.xlu0 0
      %989 = vperm.xlu0 %988, %v350
      %v990 = vpop.permute.xlu0 %989
      %993 = vset.pattern.permute.xlu0 0
      %994 = vperm.xlu0 %993, %v351
      %v995 = vpop.permute.xlu0 %994
      %998 = vset.pattern.permute.xlu0 0
      %999 = vperm.xlu0 %998, %v352
      %v1000 = vpop.permute.xlu0 %999
      %1003 = vset.pattern.permute.xlu0 0
      %1004 = vperm.xlu0 %1003, %v353
      %v1005 = vpop.permute.xlu0 %1004
      %1008 = vset.pattern.permute.xlu0 0
      %1009 = vperm.xlu0 %1008, %v354
      %v1010 = vpop.permute.xlu0 %1009
      %1013 = vset.pattern.permute.xlu0 0
      %1014 = vperm.xlu0 %1013, %v355
      %v1015 = vpop.permute.xlu0 %1014
      %1018 = vset.pattern.permute.xlu0 0
      %1019 = vperm.xlu0 %1018, %v356
      %v1020 = vpop.permute.xlu0 %1019
      %1023 = vset.pattern.permute.xlu0 0
      %1024 = vperm.xlu0 %1023, %v357
      %v1025 = vpop.permute.xlu0 %1024
      %1028 = vset.pattern.permute.xlu0 0
      %1029 = vperm.xlu0 %1028, %v358
      %v1030 = vpop.permute.xlu0 %1029
      %1033 = vset.pattern.permute.xlu0 0
      %1034 = vperm.xlu0 %1033, %v359
      %v1035 = vpop.permute.xlu0 %1034
      %1038 = vset.pattern.permute.xlu0 0
      %1039 = vperm.xlu0 %1038, %v360
      %v1040 = vpop.permute.xlu0 %1039
      %1043 = vset.pattern.permute.xlu0 0
      %1044 = vperm.xlu0 %1043, %v361
      %v1045 = vpop.permute.xlu0 %1044
      %1048 = vset.pattern.permute.xlu0 0
      %1049 = vperm.xlu0 %1048, %v362
      %v1050 = vpop.permute.xlu0 %1049
      %1053 = vset.pattern.permute.xlu0 0
      %1054 = vperm.xlu0 %1053, %v363
      %v1055 = vpop.permute.xlu0 %1054
      %1058 = vset.pattern.permute.xlu0 0
      %1059 = vperm.xlu0 %1058, %v364
      %v1060 = vpop.permute.xlu0 %1059
      %1063 = vset.pattern.permute.xlu0 0
      %1064 = vperm.xlu0 %1063, %v365
      %v1065 = vpop.permute.xlu0 %1064
      %1068 = vset.pattern.permute.xlu0 0
      %1069 = vperm.xlu0 %1068, %v366
      %v1070 = vpop.permute.xlu0 %1069
      %1073 = vset.pattern.permute.xlu0 0
      %1074 = vperm.xlu0 %1073, %v367
      %v1075 = vpop.permute.xlu0 %1074
      %1078 = vset.pattern.permute.xlu0 0
      %1079 = vperm.xlu0 %1078, %v368
      %v1080 = vpop.permute.xlu0 %1079
      %1083 = vset.pattern.permute.xlu0 0
      %1084 = vperm.xlu0 %1083, %v369
      %v1085 = vpop.permute.xlu0 %1084
      %1088 = vset.pattern.permute.xlu0 0
      %1089 = vperm.xlu0 %1088, %v370
      %v1090 = vpop.permute.xlu0 %1089
      %1093 = vset.pattern.permute.xlu0 0
      %1094 = vperm.xlu0 %1093, %v371
      %v1095 = vpop.permute.xlu0 %1094
      %1098 = vset.pattern.permute.xlu0 0
      %1099 = vperm.xlu0 %1098, %v372
      %v1100 = vpop.permute.xlu0 %1099
      %1103 = vset.pattern.permute.xlu0 0
      %1104 = vperm.xlu0 %1103, %v373
      %v1105 = vpop.permute.xlu0 %1104
      %1108 = vset.pattern.permute.xlu0 0
      %1109 = vperm.xlu0 %1108, %v374
      %v1110 = vpop.permute.xlu0 %1109
      %1113 = vset.pattern.permute.xlu0 0
      %1114 = vperm.xlu0 %1113, %v375
      %v1115 = vpop.permute.xlu0 %1114
      %1118 = vset.pattern.permute.xlu0 0
      %1119 = vperm.xlu0 %1118, %v376
      %v1120 = vpop.permute.xlu0 %1119
      %1123 = vset.pattern.permute.xlu0 0
      %1124 = vperm.xlu0 %1123, %v377
      %v1125 = vpop.permute.xlu0 %1124
      %1128 = vset.pattern.permute.xlu0 0
      %1129 = vperm.xlu0 %1128, %v378
      %v1130 = vpop.permute.xlu0 %1129
      %1133 = vset.pattern.permute.xlu0 0
      %1134 = vperm.xlu0 %1133, %v379
      %v1135 = vpop.permute.xlu0 %1134
      %1138 = vset.pattern.permute.xlu0 0
      %1139 = vperm.xlu0 %1138, %v380
      %v1140 = vpop.permute.xlu0 %1139
      %1143 = vset.pattern.permute.xlu0 0
      %1144 = vperm.xlu0 %1143, %v381
      %v1145 = vpop.permute.xlu0 %1144
      %1148 = vset.pattern.permute.xlu0 0
      %1149 = vperm.xlu0 %1148, %v382
      %v1150 = vpop.permute.xlu0 %1149
      %1153 = vset.pattern.permute.xlu0 0
      %1154 = vperm.xlu0 %1153, %v383
      %v1155 = vpop.permute.xlu0 %1154
      %1158 = vset.pattern.permute.xlu0 0
      %1159 = vperm.xlu0 %1158, %v384
      %v1160 = vpop.permute.xlu0 %1159
      %1163 = vset.pattern.permute.xlu0 0
      %1164 = vperm.xlu0 %1163, %v385
      %v1165 = vpop.permute.xlu0 %1164
      %1168 = vset.pattern.permute.xlu0 0
      %1169 = vperm.xlu0 %1168, %v386
      %v1170 = vpop.permute.xlu0 %1169
      %1173 = vset.pattern.permute.xlu0 0
      %1174 = vperm.xlu0 %1173, %v387
      %v1175 = vpop.permute.xlu0 %1174
      %1178 = vset.pattern.permute.xlu0 0
      %1179 = vperm.xlu0 %1178, %v388
      %v1180 = vpop.permute.xlu0 %1179
      %1183 = vset.pattern.permute.xlu0 0
      %1184 = vperm.xlu0 %1183, %v389
      %v1185 = vpop.permute.xlu0 %1184
      %1188 = vset.pattern.permute.xlu0 0
      %1189 = vperm.xlu0 %1188, %v390
      %v1190 = vpop.permute.xlu0 %1189
      %1193 = vset.pattern.permute.xlu0 0
      %1194 = vperm.xlu0 %1193, %v391
      %v1195 = vpop.permute.xlu0 %1194
      %1198 = vset.pattern.permute.xlu0 0
      %1199 = vperm.xlu0 %1198, %v392
      %v1200 = vpop.permute.xlu0 %1199
      %1203 = vset.pattern.permute.xlu0 0
      %1204 = vperm.xlu0 %1203, %v393
      %v1205 = vpop.permute.xlu0 %1204
      %1208 = vset.pattern.permute.xlu0 0
      %1209 = vperm.xlu0 %1208, %v394
      %v1210 = vpop.permute.xlu0 %1209
      %1213 = vset.pattern.permute.xlu0 0
      %1214 = vperm.xlu0 %1213, %v395
      %v1215 = vpop.permute.xlu0 %1214
      %1218 = vset.pattern.permute.xlu0 0
      %1219 = vperm.xlu0 %1218, %v396
      %v1220 = vpop.permute.xlu0 %1219
      %1223 = vset.pattern.permute.xlu0 0
      %1224 = vperm.xlu0 %1223, %v397
      %v1225 = vpop.permute.xlu0 %1224
      %1228 = vset.pattern.permute.xlu0 0
      %1229 = vperm.xlu0 %1228, %v398
      %v1230 = vpop.permute.xlu0 %1229
      %1233 = vset.pattern.permute.xlu0 0
      %1234 = vperm.xlu0 %1233, %v399
      %v1235 = vpop.permute.xlu0 %1234
      %1238 = vset.pattern.permute.xlu0 0
      %1239 = vperm.xlu0 %1238, %v400
      %v1240 = vpop.permute.xlu0 %1239
      %1243 = vset.pattern.permute.xlu0 0
      %1244 = vperm.xlu0 %1243, %v401
      %v1245 = vpop.permute.xlu0 %1244
      %1248 = vset.pattern.permute.xlu0 0
      %1249 = vperm.xlu0 %1248, %v402
      %v1250 = vpop.permute.xlu0 %1249
      %1253 = vset.pattern.permute.xlu0 0
      %1254 = vperm.xlu0 %1253, %v403
      %v1255 = vpop.permute.xlu0 %1254
      %1258 = vset.pattern.permute.xlu0 0
      %1259 = vperm.xlu0 %1258, %v404
      %v1260 = vpop.permute.xlu0 %1259
      %1263 = vset.pattern.permute.xlu0 0
      %1264 = vperm.xlu0 %1263, %v405
      %v1265 = vpop.permute.xlu0 %1264
      %1268 = vset.pattern.permute.xlu0 0
      %1269 = vperm.xlu0 %1268, %v406
      %v1270 = vpop.permute.xlu0 %1269
      %1273 = vset.pattern.permute.xlu0 0
      %1274 = vperm.xlu0 %1273, %v407
      %v1275 = vpop.permute.xlu0 %1274
      %1278 = vset.pattern.permute.xlu0 0
      %1279 = vperm.xlu0 %1278, %v408
      %v1280 = vpop.permute.xlu0 %1279
      %1283 = vset.pattern.permute.xlu0 0
      %1284 = vperm.xlu0 %1283, %v409
      %v1285 = vpop.permute.xlu0 %1284
      %1288 = vset.pattern.permute.xlu0 0
      %1289 = vperm.xlu0 %1288, %v410
      %v1290 = vpop.permute.xlu0 %1289
      %1293 = vset.pattern.permute.xlu0 0
      %1294 = vperm.xlu0 %1293, %v411
      %v1295 = vpop.permute.xlu0 %1294
      %1298 = vset.pattern.permute.xlu0 0
      %1299 = vperm.xlu0 %1298, %v412
      %v1300 = vpop.permute.xlu0 %1299
      %1303 = vset.pattern.permute.xlu0 0
      %1304 = vperm.xlu0 %1303, %v413
      %v1305 = vpop.permute.xlu0 %1304
      %1308 = vset.pattern.permute.xlu0 0
      %1309 = vperm.xlu0 %1308, %v414
      %v1310 = vpop.permute.xlu0 %1309
      %1313 = vset.pattern.permute.xlu0 0
      %1314 = vperm.xlu0 %1313, %v415
      %v1315 = vpop.permute.xlu0 %1314
      %1318 = vset.pattern.permute.xlu0 0
      %1319 = vperm.xlu0 %1318, %v416
      %v1320 = vpop.permute.xlu0 %1319
      %1323 = vset.pattern.permute.xlu0 0
      %1324 = vperm.xlu0 %1323, %v417
      %v1325 = vpop.permute.xlu0 %1324
      %1328 = vset.pattern.permute.xlu0 0
      %1329 = vperm.xlu0 %1328, %v418
      %v1330 = vpop.permute.xlu0 %1329
      %1333 = vset.pattern.permute.xlu0 0
      %1334 = vperm.xlu0 %1333, %v419
      %v1335 = vpop.permute.xlu0 %1334
      %1338 = vset.pattern.permute.xlu0 0
      %1339 = vperm.xlu0 %1338, %v420
      %v1340 = vpop.permute.xlu0 %1339
      %1343 = vset.pattern.permute.xlu0 0
      %1344 = vperm.xlu0 %1343, %v421
      %v1345 = vpop.permute.xlu0 %1344
      %1348 = vset.pattern.permute.xlu0 0
      %1349 = vperm.xlu0 %1348, %v422
      %v1350 = vpop.permute.xlu0 %1349
      %1353 = vset.pattern.permute.xlu0 0
      %1354 = vperm.xlu0 %1353, %v423
      %v1355 = vpop.permute.xlu0 %1354
      %1358 = vset.pattern.permute.xlu0 0
      %1359 = vperm.xlu0 %1358, %v424
      %v1360 = vpop.permute.xlu0 %1359
      %1363 = vset.pattern.permute.xlu0 0
      %1364 = vperm.xlu0 %1363, %v425
      %v1365 = vpop.permute.xlu0 %1364
      %1368 = vset.pattern.permute.xlu0 0
      %1369 = vperm.xlu0 %1368, %v426
      %v1370 = vpop.permute.xlu0 %1369
      %1373 = vset.pattern.permute.xlu0 0
      %1374 = vperm.xlu0 %1373, %v427
      %v1375 = vpop.permute.xlu0 %1374
      %1378 = vset.pattern.permute.xlu0 0
      %1379 = vperm.xlu0 %1378, %v428
      %v1380 = vpop.permute.xlu0 %1379
      %1383 = vset.pattern.permute.xlu0 0
      %1384 = vperm.xlu0 %1383, %v429
      %v1385 = vpop.permute.xlu0 %1384
      %1388 = vset.pattern.permute.xlu0 0
      %1389 = vperm.xlu0 %1388, %v430
      %v1390 = vpop.permute.xlu0 %1389
      %1393 = vset.pattern.permute.xlu0 0
      %1394 = vperm.xlu0 %1393, %v431
      %v1395 = vpop.permute.xlu0 %1394
      %1398 = vset.pattern.permute.xlu0 0
      %1399 = vperm.xlu0 %1398, %v432
      %v1400 = vpop.permute.xlu0 %1399
      %1403 = vset.pattern.permute.xlu0 0
      %1404 = vperm.xlu0 %1403, %v433
      %v1405 = vpop.permute.xlu0 %1404
      %1408 = vset.pattern.permute.xlu0 0
      %1409 = vperm.xlu0 %1408, %v434
      %v1410 = vpop.permute.xlu0 %1409
      %1413 = vset.pattern.permute.xlu0 0
      %1414 = vperm.xlu0 %1413, %v435
      %v1415 = vpop.permute.xlu0 %1414
      %1418 = vset.pattern.permute.xlu0 0
      %1419 = vperm.xlu0 %1418, %v436
      %v1420 = vpop.permute.xlu0 %1419
      %1423 = vset.pattern.permute.xlu0 0
      %1424 = vperm.xlu0 %1423, %v437
      %v1425 = vpop.permute.xlu0 %1424
      %1428 = vset.pattern.permute.xlu0 0
      %1429 = vperm.xlu0 %1428, %v438
      %v1430 = vpop.permute.xlu0 %1429
      %1433 = vset.pattern.permute.xlu0 0
      %1434 = vperm.xlu0 %1433, %v439
      %v1435 = vpop.permute.xlu0 %1434
      %1438 = vset.pattern.permute.xlu0 0
      %1439 = vperm.xlu0 %1438, %v440
      %v1440 = vpop.permute.xlu0 %1439
      %1443 = vset.pattern.permute.xlu0 0
      %1444 = vperm.xlu0 %1443, %v441
      %v1445 = vpop.permute.xlu0 %1444
      %1448 = vset.pattern.permute.xlu0 0
      %1449 = vperm.xlu0 %1448, %v442
      %v1450 = vpop.permute.xlu0 %1449
      %1453 = vset.pattern.permute.xlu0 0
      %1454 = vperm.xlu0 %1453, %v443
      %v1455 = vpop.permute.xlu0 %1454
      %1458 = vset.pattern.permute.xlu0 0
      %1459 = vperm.xlu0 %1458, %v444
      %v1460 = vpop.permute.xlu0 %1459
      %1463 = vset.pattern.permute.xlu0 0
      %1464 = vperm.xlu0 %1463, %v445
      %v1465 = vpop.permute.xlu0 %1464
      %1468 = vset.pattern.permute.xlu0 0
      %1469 = vperm.xlu0 %1468, %v446
      %v1470 = vpop.permute.xlu0 %1469
      %1473 = vset.pattern.permute.xlu0 0
      %1474 = vperm.xlu0 %1473, %v447
      %v1475 = vpop.permute.xlu0 %1474
      %1478 = vset.pattern.permute.xlu0 0
      %1479 = vperm.xlu0 %1478, %v448
      %v1480 = vpop.permute.xlu0 %1479
      %1483 = vset.pattern.permute.xlu0 0
      %1484 = vperm.xlu0 %1483, %v449
      %v1485 = vpop.permute.xlu0 %1484
      %1488 = vset.pattern.permute.xlu0 0
      %1489 = vperm.xlu0 %1488, %v450
      %v1490 = vpop.permute.xlu0 %1489
      %1493 = vset.pattern.permute.xlu0 0
      %1494 = vperm.xlu0 %1493, %v451
      %v1495 = vpop.permute.xlu0 %1494
      %1498 = vset.pattern.permute.xlu0 0
      %1499 = vperm.xlu0 %1498, %v452
      %v1500 = vpop.permute.xlu0 %1499
      %1503 = vset.pattern.permute.xlu0 0
      %1504 = vperm.xlu0 %1503, %v453
      %v1505 = vpop.permute.xlu0 %1504
      %1508 = vset.pattern.permute.xlu0 0
      %1509 = vperm.xlu0 %1508, %v454
      %v1510 = vpop.permute.xlu0 %1509
      %1513 = vset.pattern.permute.xlu0 0
      %1514 = vperm.xlu0 %1513, %v455
      %v1515 = vpop.permute.xlu0 %1514
      %1518 = vset.pattern.permute.xlu0 0
      %1519 = vperm.xlu0 %1518, %v456
      %v1520 = vpop.permute.xlu0 %1519
      %1523 = vset.pattern.permute.xlu0 0
      %1524 = vperm.xlu0 %1523, %v457
      %v1525 = vpop.permute.xlu0 %1524
      %1528 = vset.pattern.permute.xlu0 0
      %1529 = vperm.xlu0 %1528, %v458
      %v1530 = vpop.permute.xlu0 %1529
      %1533 = vset.pattern.permute.xlu0 0
      %1534 = vperm.xlu0 %1533, %v459
      %v1535 = vpop.permute.xlu0 %1534
      %1538 = vset.pattern.permute.xlu0 0
      %1539 = vperm.xlu0 %1538, %v460
      %v1540 = vpop.permute.xlu0 %1539
      %1543 = vset.pattern.permute.xlu0 0
      %1544 = vperm.xlu0 %1543, %v461
      %v1545 = vpop.permute.xlu0 %1544
      %1548 = vset.pattern.permute.xlu0 0
      %1549 = vperm.xlu0 %1548, %v462
      %v1550 = vpop.permute.xlu0 %1549
      %1553 = vset.pattern.permute.xlu0 0
      %1554 = vperm.xlu0 %1553, %v463
      %v1555 = vpop.permute.xlu0 %1554
      %1558 = vset.pattern.permute.xlu0 0
      %1559 = vperm.xlu0 %1558, %v464
      %v1560 = vpop.permute.xlu0 %1559
      %1563 = vset.pattern.permute.xlu0 0
      %1564 = vperm.xlu0 %1563, %v465
      %v1565 = vpop.permute.xlu0 %1564
      %1568 = vset.pattern.permute.xlu0 0
      %1569 = vperm.xlu0 %1568, %v466
      %v1570 = vpop.permute.xlu0 %1569
      %1573 = vset.pattern.permute.xlu0 0
      %1574 = vperm.xlu0 %1573, %v467
      %v1575 = vpop.permute.xlu0 %1574
      %1578 = vset.pattern.permute.xlu0 0
      %1579 = vperm.xlu0 %1578, %v468
      %v1580 = vpop.permute.xlu0 %1579
      %1583 = vset.pattern.permute.xlu0 0
      %1584 = vperm.xlu0 %1583, %v469
      %v1585 = vpop.permute.xlu0 %1584
      %1588 = vset.pattern.permute.xlu0 0
      %1589 = vperm.xlu0 %1588, %v470
      %v1590 = vpop.permute.xlu0 %1589
      %1593 = vset.pattern.permute.xlu0 0
      %1594 = vperm.xlu0 %1593, %v471
      %v1595 = vpop.permute.xlu0 %1594
      %1598 = vset.pattern.permute.xlu0 0
      %1599 = vperm.xlu0 %1598, %v472
      %v1600 = vpop.permute.xlu0 %1599
      %1603 = vset.pattern.permute.xlu0 0
      %1604 = vperm.xlu0 %1603, %v473
      %v1605 = vpop.permute.xlu0 %1604
      %1608 = vset.pattern.permute.xlu0 0
      %1609 = vperm.xlu0 %1608, %v474
      %v1610 = vpop.permute.xlu0 %1609
      %1613 = vset.pattern.permute.xlu0 0
      %1614 = vperm.xlu0 %1613, %v475
      %v1615 = vpop.permute.xlu0 %1614
      %1618 = vset.pattern.permute.xlu0 0
      %1619 = vperm.xlu0 %1618, %v476
      %v1620 = vpop.permute.xlu0 %1619
      %1623 = vset.pattern.permute.xlu0 0
      %1624 = vperm.xlu0 %1623, %v477
      %v1625 = vpop.permute.xlu0 %1624
      %1628 = vset.pattern.permute.xlu0 0
      %1629 = vperm.xlu0 %1628, %v478
      %v1630 = vpop.permute.xlu0 %1629
      %1633 = vset.pattern.permute.xlu0 0
      %1634 = vperm.xlu0 %1633, %v479
      %v1635 = vpop.permute.xlu0 %1634
      %1638 = vset.pattern.permute.xlu0 0
      %1639 = vperm.xlu0 %1638, %v480
      %v1640 = vpop.permute.xlu0 %1639
      %1643 = vset.pattern.permute.xlu0 0
      %1644 = vperm.xlu0 %1643, %v481
      %v1645 = vpop.permute.xlu0 %1644
      %1648 = vset.pattern.permute.xlu0 0
      %1649 = vperm.xlu0 %1648, %v482
      %v1650 = vpop.permute.xlu0 %1649
      %1653 = vset.pattern.permute.xlu0 0
      %1654 = vperm.xlu0 %1653, %v483
      %v1655 = vpop.permute.xlu0 %1654
      %1658 = vset.pattern.permute.xlu0 0
      %1659 = vperm.xlu0 %1658, %v484
      %v1660 = vpop.permute.xlu0 %1659
      %1663 = vset.pattern.permute.xlu0 0
      %1664 = vperm.xlu0 %1663, %v485
      %v1665 = vpop.permute.xlu0 %1664
      %1668 = vset.pattern.permute.xlu0 0
      %1669 = vperm.xlu0 %1668, %v486
      %v1670 = vpop.permute.xlu0 %1669
      %1673 = vset.pattern.permute.xlu0 0
      %1674 = vperm.xlu0 %1673, %v487
      %v1675 = vpop.permute.xlu0 %1674
      %1678 = vset.pattern.permute.xlu0 0
      %1679 = vperm.xlu0 %1678, %v488
      %v1680 = vpop.permute.xlu0 %1679
      %1683 = vset.pattern.permute.xlu0 0
      %1684 = vperm.xlu0 %1683, %v489
      %v1685 = vpop.permute.xlu0 %1684
      %1688 = vset.pattern.permute.xlu0 0
      %1689 = vperm.xlu0 %1688, %v490
      %v1690 = vpop.permute.xlu0 %1689
      %1693 = vset.pattern.permute.xlu0 0
      %1694 = vperm.xlu0 %1693, %v491
      %v1695 = vpop.permute.xlu0 %1694
      %1698 = vset.pattern.permute.xlu0 0
      %1699 = vperm.xlu0 %1698, %v492
      %v1700 = vpop.permute.xlu0 %1699
      %1703 = vset.pattern.permute.xlu0 0
      %1704 = vperm.xlu0 %1703, %v493
      %v1705 = vpop.permute.xlu0 %1704
      %1708 = vset.pattern.permute.xlu0 0
      %1709 = vperm.xlu0 %1708, %v494
      %v1710 = vpop.permute.xlu0 %1709
      %1713 = vset.pattern.permute.xlu0 0
      %1714 = vperm.xlu0 %1713, %v495
      %v1715 = vpop.permute.xlu0 %1714
      %1718 = vset.pattern.permute.xlu0 0
      %1719 = vperm.xlu0 %1718, %v496
      %v1720 = vpop.permute.xlu0 %1719
      %1723 = vset.pattern.permute.xlu0 0
      %1724 = vperm.xlu0 %1723, %v497
      %v1725 = vpop.permute.xlu0 %1724
      %1728 = vset.pattern.permute.xlu0 0
      %1729 = vperm.xlu0 %1728, %v498
      %v1730 = vpop.permute.xlu0 %1729
      %1733 = vset.pattern.permute.xlu0 0
      %1734 = vperm.xlu0 %1733, %v499
      %v1735 = vpop.permute.xlu0 %1734
      %1738 = vset.pattern.permute.xlu0 0
      %1739 = vperm.xlu0 %1738, %v500
      %v1740 = vpop.permute.xlu0 %1739
      %1743 = vset.pattern.permute.xlu0 0
      %1744 = vperm.xlu0 %1743, %v501
      %v1745 = vpop.permute.xlu0 %1744
      %1748 = vset.pattern.permute.xlu0 0
      %1749 = vperm.xlu0 %1748, %v502
      %v1750 = vpop.permute.xlu0 %1749
      %1753 = vset.pattern.permute.xlu0 0
      %1754 = vperm.xlu0 %1753, %v503
      %v1755 = vpop.permute.xlu0 %1754
      %1758 = vset.pattern.permute.xlu0 0
      %1759 = vperm.xlu0 %1758, %v504
      %v1760 = vpop.permute.xlu0 %1759
      %1763 = vset.pattern.permute.xlu0 0
      %1764 = vperm.xlu0 %1763, %v505
      %v1765 = vpop.permute.xlu0 %1764
      %1768 = vset.pattern.permute.xlu0 0
      %1769 = vperm.xlu0 %1768, %v506
      %v1770 = vpop.permute.xlu0 %1769
      %1773 = vset.pattern.permute.xlu0 0
      %1774 = vperm.xlu0 %1773, %v507
      %v1775 = vpop.permute.xlu0 %1774
      %1778 = vset.pattern.permute.xlu0 0
      %1779 = vperm.xlu0 %1778, %v508
      %v1780 = vpop.permute.xlu0 %1779
      %1783 = vset.pattern.permute.xlu0 0
      %1784 = vperm.xlu0 %1783, %v509
      %v1785 = vpop.permute.xlu0 %1784
      %1788 = vset.pattern.permute.xlu0 0
      %1789 = vperm.xlu0 %1788, %v510
      %v1790 = vpop.permute.xlu0 %1789
      %v1793 = vlaneseq
      %v1794 = vshrl.u32 %v1793, 7
      %v1795 = vsub.s32 0, %v1794
      %v1796 = vrot.slane %v511, %v1795
      %v1798 = vmul.f32 %v515, %v1796
      %v1799 = vmul.f32 %v520, %v1796
      %v1800 = vmul.f32 %v525, %v1796
      %v1801 = vmul.f32 %v530, %v1796
      %v1802 = vmul.f32 %v535, %v1796
      %v1803 = vmul.f32 %v540, %v1796
      %v1804 = vmul.f32 %v545, %v1796
      %v1805 = vmul.f32 %v550, %v1796
      %v1806 = vmul.f32 %v555, %v1796
      %v1807 = vmul.f32 %v560, %v1796
      %v1808 = vmul.f32 %v565, %v1796
      %v1809 = vmul.f32 %v570, %v1796
      %v1810 = vmul.f32 %v575, %v1796
      %v1811 = vmul.f32 %v580, %v1796
      %v1812 = vmul.f32 %v585, %v1796
      %v1813 = vmul.f32 %v590, %v1796
      %v1814 = vmul.f32 %v595, %v1796
      %v1815 = vmul.f32 %v600, %v1796
      %v1816 = vmul.f32 %v605, %v1796
      %v1817 = vmul.f32 %v610, %v1796
      %v1818 = vmul.f32 %v615, %v1796
      %v1819 = vmul.f32 %v620, %v1796
      %v1820 = vmul.f32 %v625, %v1796
      %v1821 = vmul.f32 %v630, %v1796
      %v1822 = vmul.f32 %v635, %v1796
      %v1823 = vmul.f32 %v640, %v1796
      %v1824 = vmul.f32 %v645, %v1796
      %v1825 = vmul.f32 %v650, %v1796
      %v1826 = vmul.f32 %v655, %v1796
      %v1827 = vmul.f32 %v660, %v1796
      %v1828 = vmul.f32 %v665, %v1796
      %v1829 = vmul.f32 %v670, %v1796
      %v1830 = vmul.f32 %v675, %v1796
      %v1831 = vmul.f32 %v680, %v1796
      %v1832 = vmul.f32 %v685, %v1796
      %v1833 = vmul.f32 %v690, %v1796
      %v1834 = vmul.f32 %v695, %v1796
      %v1835 = vmul.f32 %v700, %v1796
      %v1836 = vmul.f32 %v705, %v1796
      %v1837 = vmul.f32 %v710, %v1796
      %v1838 = vmul.f32 %v715, %v1796
      %v1839 = vmul.f32 %v720, %v1796
      %v1840 = vmul.f32 %v725, %v1796
      %v1841 = vmul.f32 %v730, %v1796
      %v1842 = vmul.f32 %v735, %v1796
      %v1843 = vmul.f32 %v740, %v1796
      %v1844 = vmul.f32 %v745, %v1796
      %v1845 = vmul.f32 %v750, %v1796
      %v1846 = vmul.f32 %v755, %v1796
      %v1847 = vmul.f32 %v760, %v1796
      %v1848 = vmul.f32 %v765, %v1796
      %v1849 = vmul.f32 %v770, %v1796
      %v1850 = vmul.f32 %v775, %v1796
      %v1851 = vmul.f32 %v780, %v1796
      %v1852 = vmul.f32 %v785, %v1796
      %v1853 = vmul.f32 %v790, %v1796
      %v1854 = vmul.f32 %v795, %v1796
      %v1855 = vmul.f32 %v800, %v1796
      %v1856 = vmul.f32 %v805, %v1796
      %v1857 = vmul.f32 %v810, %v1796
      %v1858 = vmul.f32 %v815, %v1796
      %v1859 = vmul.f32 %v820, %v1796
      %v1860 = vmul.f32 %v825, %v1796
      %v1861 = vmul.f32 %v830, %v1796
      %v1862 = vmul.f32 %v835, %v1796
      %v1863 = vmul.f32 %v840, %v1796
      %v1864 = vmul.f32 %v845, %v1796
      %v1865 = vmul.f32 %v850, %v1796
      %v1866 = vmul.f32 %v855, %v1796
      %v1867 = vmul.f32 %v860, %v1796
      %v1868 = vmul.f32 %v865, %v1796
      %v1869 = vmul.f32 %v870, %v1796
      %v1870 = vmul.f32 %v875, %v1796
      %v1871 = vmul.f32 %v880, %v1796
      %v1872 = vmul.f32 %v885, %v1796
      %v1873 = vmul.f32 %v890, %v1796
      %v1874 = vmul.f32 %v895, %v1796
      %v1875 = vmul.f32 %v900, %v1796
      %v1876 = vmul.f32 %v905, %v1796
      %v1877 = vmul.f32 %v910, %v1796
      %v1878 = vmul.f32 %v915, %v1796
      %v1879 = vmul.f32 %v920, %v1796
      %v1880 = vmul.f32 %v925, %v1796
      %v1881 = vmul.f32 %v930, %v1796
      %v1882 = vmul.f32 %v935, %v1796
      %v1883 = vmul.f32 %v940, %v1796
      %v1884 = vmul.f32 %v945, %v1796
      %v1885 = vmul.f32 %v950, %v1796
      %v1886 = vmul.f32 %v955, %v1796
      %v1887 = vmul.f32 %v960, %v1796
      %v1888 = vmul.f32 %v965, %v1796
      %v1889 = vmul.f32 %v970, %v1796
      %v1890 = vmul.f32 %v975, %v1796
      %v1891 = vmul.f32 %v980, %v1796
      %v1892 = vmul.f32 %v985, %v1796
      %v1893 = vmul.f32 %v990, %v1796
      %v1894 = vmul.f32 %v995, %v1796
      %v1895 = vmul.f32 %v1000, %v1796
      %v1896 = vmul.f32 %v1005, %v1796
      %v1897 = vmul.f32 %v1010, %v1796
      %v1898 = vmul.f32 %v1015, %v1796
      %v1899 = vmul.f32 %v1020, %v1796
      %v1900 = vmul.f32 %v1025, %v1796
      %v1901 = vmul.f32 %v1030, %v1796
      %v1902 = vmul.f32 %v1035, %v1796
      %v1903 = vmul.f32 %v1040, %v1796
      %v1904 = vmul.f32 %v1045, %v1796
      %v1905 = vmul.f32 %v1050, %v1796
      %v1906 = vmul.f32 %v1055, %v1796
      %v1907 = vmul.f32 %v1060, %v1796
      %v1908 = vmul.f32 %v1065, %v1796
      %v1909 = vmul.f32 %v1070, %v1796
      %v1910 = vmul.f32 %v1075, %v1796
      %v1911 = vmul.f32 %v1080, %v1796
      %v1912 = vmul.f32 %v1085, %v1796
      %v1913 = vmul.f32 %v1090, %v1796
      %v1914 = vmul.f32 %v1095, %v1796
      %v1915 = vmul.f32 %v1100, %v1796
      %v1916 = vmul.f32 %v1105, %v1796
      %v1917 = vmul.f32 %v1110, %v1796
      %v1918 = vmul.f32 %v1115, %v1796
      %v1919 = vmul.f32 %v1120, %v1796
      %v1920 = vmul.f32 %v1125, %v1796
      %v1921 = vmul.f32 %v1130, %v1796
      %v1922 = vmul.f32 %v1135, %v1796
      %v1923 = vmul.f32 %v1140, %v1796
      %v1924 = vmul.f32 %v1145, %v1796
      %v1925 = vmul.f32 %v1150, %v1796
      %v1926 = vmul.f32 %v1155, %v1796
      %v1927 = vmul.f32 %v1160, %v1796
      %v1928 = vmul.f32 %v1165, %v1796
      %v1929 = vmul.f32 %v1170, %v1796
      %v1930 = vmul.f32 %v1175, %v1796
      %v1931 = vmul.f32 %v1180, %v1796
      %v1932 = vmul.f32 %v1185, %v1796
      %v1933 = vmul.f32 %v1190, %v1796
      %v1934 = vmul.f32 %v1195, %v1796
      %v1935 = vmul.f32 %v1200, %v1796
      %v1936 = vmul.f32 %v1205, %v1796
      %v1937 = vmul.f32 %v1210, %v1796
      %v1938 = vmul.f32 %v1215, %v1796
      %v1939 = vmul.f32 %v1220, %v1796
      %v1940 = vmul.f32 %v1225, %v1796
      %v1941 = vmul.f32 %v1230, %v1796
      %v1942 = vmul.f32 %v1235, %v1796
      %v1943 = vmul.f32 %v1240, %v1796
      %v1944 = vmul.f32 %v1245, %v1796
      %v1945 = vmul.f32 %v1250, %v1796
      %v1946 = vmul.f32 %v1255, %v1796
      %v1947 = vmul.f32 %v1260, %v1796
      %v1948 = vmul.f32 %v1265, %v1796
      %v1949 = vmul.f32 %v1270, %v1796
      %v1950 = vmul.f32 %v1275, %v1796
      %v1951 = vmul.f32 %v1280, %v1796
      %v1952 = vmul.f32 %v1285, %v1796
      %v1953 = vmul.f32 %v1290, %v1796
      %v1954 = vmul.f32 %v1295, %v1796
      %v1955 = vmul.f32 %v1300, %v1796
      %v1956 = vmul.f32 %v1305, %v1796
      %v1957 = vmul.f32 %v1310, %v1796
      %v1958 = vmul.f32 %v1315, %v1796
      %v1959 = vmul.f32 %v1320, %v1796
      %v1960 = vmul.f32 %v1325, %v1796
      %v1961 = vmul.f32 %v1330, %v1796
      %v1962 = vmul.f32 %v1335, %v1796
      %v1963 = vmul.f32 %v1340, %v1796
      %v1964 = vmul.f32 %v1345, %v1796
      %v1965 = vmul.f32 %v1350, %v1796
      %v1966 = vmul.f32 %v1355, %v1796
      %v1967 = vmul.f32 %v1360, %v1796
      %v1968 = vmul.f32 %v1365, %v1796
      %v1969 = vmul.f32 %v1370, %v1796
      %v1970 = vmul.f32 %v1375, %v1796
      %v1971 = vmul.f32 %v1380, %v1796
      %v1972 = vmul.f32 %v1385, %v1796
      %v1973 = vmul.f32 %v1390, %v1796
      %v1974 = vmul.f32 %v1395, %v1796
      %v1975 = vmul.f32 %v1400, %v1796
      %v1976 = vmul.f32 %v1405, %v1796
      %v1977 = vmul.f32 %v1410, %v1796
      %v1978 = vmul.f32 %v1415, %v1796
      %v1979 = vmul.f32 %v1420, %v1796
      %v1980 = vmul.f32 %v1425, %v1796
      %v1981 = vmul.f32 %v1430, %v1796
      %v1982 = vmul.f32 %v1435, %v1796
      %v1983 = vmul.f32 %v1440, %v1796
      %v1984 = vmul.f32 %v1445, %v1796
      %v1985 = vmul.f32 %v1450, %v1796
      %v1986 = vmul.f32 %v1455, %v1796
      %v1987 = vmul.f32 %v1460, %v1796
      %v1988 = vmul.f32 %v1465, %v1796
      %v1989 = vmul.f32 %v1470, %v1796
      %v1990 = vmul.f32 %v1475, %v1796
      %v1991 = vmul.f32 %v1480, %v1796
      %v1992 = vmul.f32 %v1485, %v1796
      %v1993 = vmul.f32 %v1490, %v1796
      %v1994 = vmul.f32 %v1495, %v1796
      %v1995 = vmul.f32 %v1500, %v1796
      %v1996 = vmul.f32 %v1505, %v1796
      %v1997 = vmul.f32 %v1510, %v1796
      %v1998 = vmul.f32 %v1515, %v1796
      %v1999 = vmul.f32 %v1520, %v1796
      %v2000 = vmul.f32 %v1525, %v1796
      %v2001 = vmul.f32 %v1530, %v1796
      %v2002 = vmul.f32 %v1535, %v1796
      %v2003 = vmul.f32 %v1540, %v1796
      %v2004 = vmul.f32 %v1545, %v1796
      %v2005 = vmul.f32 %v1550, %v1796
      %v2006 = vmul.f32 %v1555, %v1796
      %v2007 = vmul.f32 %v1560, %v1796
      %v2008 = vmul.f32 %v1565, %v1796
      %v2009 = vmul.f32 %v1570, %v1796
      %v2010 = vmul.f32 %v1575, %v1796
      %v2011 = vmul.f32 %v1580, %v1796
      %v2012 = vmul.f32 %v1585, %v1796
      %v2013 = vmul.f32 %v1590, %v1796
      %v2014 = vmul.f32 %v1595, %v1796
      %v2015 = vmul.f32 %v1600, %v1796
      %v2016 = vmul.f32 %v1605, %v1796
      %v2017 = vmul.f32 %v1610, %v1796
      %v2018 = vmul.f32 %v1615, %v1796
      %v2019 = vmul.f32 %v1620, %v1796
      %v2020 = vmul.f32 %v1625, %v1796
      %v2021 = vmul.f32 %v1630, %v1796
      %v2022 = vmul.f32 %v1635, %v1796
      %v2023 = vmul.f32 %v1640, %v1796
      %v2024 = vmul.f32 %v1645, %v1796
      %v2025 = vmul.f32 %v1650, %v1796
      %v2026 = vmul.f32 %v1655, %v1796
      %v2027 = vmul.f32 %v1660, %v1796
      %v2028 = vmul.f32 %v1665, %v1796
      %v2029 = vmul.f32 %v1670, %v1796
      %v2030 = vmul.f32 %v1675, %v1796
      %v2031 = vmul.f32 %v1680, %v1796
      %v2032 = vmul.f32 %v1685, %v1796
      %v2033 = vmul.f32 %v1690, %v1796
      %v2034 = vmul.f32 %v1695, %v1796
      %v2035 = vmul.f32 %v1700, %v1796
      %v2036 = vmul.f32 %v1705, %v1796
      %v2037 = vmul.f32 %v1710, %v1796
      %v2038 = vmul.f32 %v1715, %v1796
      %v2039 = vmul.f32 %v1720, %v1796
      %v2040 = vmul.f32 %v1725, %v1796
      %v2041 = vmul.f32 %v1730, %v1796
      %v2042 = vmul.f32 %v1735, %v1796
      %v2043 = vmul.f32 %v1740, %v1796
      %v2044 = vmul.f32 %v1745, %v1796
      %v2045 = vmul.f32 %v1750, %v1796
      %v2046 = vmul.f32 %v1755, %v1796
      %v2047 = vmul.f32 %v1760, %v1796
      %v2048 = vmul.f32 %v1765, %v1796
      %v2049 = vmul.f32 %v1770, %v1796
      %v2050 = vmul.f32 %v1775, %v1796
      %v2051 = vmul.f32 %v1780, %v1796
      %v2052 = vmul.f32 %v1785, %v1796
      %v2053 = vmul.f32 %v1790, %v1796
      %v2054 = vld [vmem:[%s2] sm:$0x1]
      %v2056 = vlaneseq
      %v2057 = vshrl.u32 %v2056, 7
      %v2058 = vsub.s32 0, %v2057
      %v2059 = vrot.slane %v2054, %v2058
      %v2061 = vadd.f32 %v1798, %v2059
      %v2062 = vadd.f32 %v1799, %v2059
      %v2063 = vadd.f32 %v1800, %v2059
      %v2064 = vadd.f32 %v1801, %v2059
      %v2065 = vadd.f32 %v1802, %v2059
      %v2066 = vadd.f32 %v1803, %v2059
      %v2067 = vadd.f32 %v1804, %v2059
      %v2068 = vadd.f32 %v1805, %v2059
      %v2069 = vadd.f32 %v1806, %v2059
      %v2070 = vadd.f32 %v1807, %v2059
      %v2071 = vadd.f32 %v1808, %v2059
      %v2072 = vadd.f32 %v1809, %v2059
      %v2073 = vadd.f32 %v1810, %v2059
      %v2074 = vadd.f32 %v1811, %v2059
      %v2075 = vadd.f32 %v1812, %v2059
      %v2076 = vadd.f32 %v1813, %v2059
      %v2077 = vadd.f32 %v1814, %v2059
      %v2078 = vadd.f32 %v1815, %v2059
      %v2079 = vadd.f32 %v1816, %v2059
      %v2080 = vadd.f32 %v1817, %v2059
      %v2081 = vadd.f32 %v1818, %v2059
      %v2082 = vadd.f32 %v1819, %v2059
      %v2083 = vadd.f32 %v1820, %v2059
      %v2084 = vadd.f32 %v1821, %v2059
      %v2085 = vadd.f32 %v1822, %v2059
      %v2086 = vadd.f32 %v1823, %v2059
      %v2087 = vadd.f32 %v1824, %v2059
      %v2088 = vadd.f32 %v1825, %v2059
      %v2089 = vadd.f32 %v1826, %v2059
      %v2090 = vadd.f32 %v1827, %v2059
      %v2091 = vadd.f32 %v1828, %v2059
      %v2092 = vadd.f32 %v1829, %v2059
      %v2093 = vadd.f32 %v1830, %v2059
      %v2094 = vadd.f32 %v1831, %v2059
      %v2095 = vadd.f32 %v1832, %v2059
      %v2096 = vadd.f32 %v1833, %v2059
      %v2097 = vadd.f32 %v1834, %v2059
      %v2098 = vadd.f32 %v1835, %v2059
      %v2099 = vadd.f32 %v1836, %v2059
      %v2100 = vadd.f32 %v1837, %v2059
      %v2101 = vadd.f32 %v1838, %v2059
      %v2102 = vadd.f32 %v1839, %v2059
      %v2103 = vadd.f32 %v1840, %v2059
      %v2104 = vadd.f32 %v1841, %v2059
      %v2105 = vadd.f32 %v1842, %v2059
      %v2106 = vadd.f32 %v1843, %v2059
      %v2107 = vadd.f32 %v1844, %v2059
      %v2108 = vadd.f32 %v1845, %v2059
      %v2109 = vadd.f32 %v1846, %v2059
      %v2110 = vadd.f32 %v1847, %v2059
      %v2111 = vadd.f32 %v1848, %v2059
      %v2112 = vadd.f32 %v1849, %v2059
      %v2113 = vadd.f32 %v1850, %v2059
      %v2114 = vadd.f32 %v1851, %v2059
      %v2115 = vadd.f32 %v1852, %v2059
      %v2116 = vadd.f32 %v1853, %v2059
      %v2117 = vadd.f32 %v1854, %v2059
      %v2118 = vadd.f32 %v1855, %v2059
      %v2119 = vadd.f32 %v1856, %v2059
      %v2120 = vadd.f32 %v1857, %v2059
      %v2121 = vadd.f32 %v1858, %v2059
      %v2122 = vadd.f32 %v1859, %v2059
      %v2123 = vadd.f32 %v1860, %v2059
      %v2124 = vadd.f32 %v1861, %v2059
      %v2125 = vadd.f32 %v1862, %v2059
      %v2126 = vadd.f32 %v1863, %v2059
      %v2127 = vadd.f32 %v1864, %v2059
      %v2128 = vadd.f32 %v1865, %v2059
      %v2129 = vadd.f32 %v1866, %v2059
      %v2130 = vadd.f32 %v1867, %v2059
      %v2131 = vadd.f32 %v1868, %v2059
      %v2132 = vadd.f32 %v1869, %v2059
      %v2133 = vadd.f32 %v1870, %v2059
      %v2134 = vadd.f32 %v1871, %v2059
      %v2135 = vadd.f32 %v1872, %v2059
      %v2136 = vadd.f32 %v1873, %v2059
      %v2137 = vadd.f32 %v1874, %v2059
      %v2138 = vadd.f32 %v1875, %v2059
      %v2139 = vadd.f32 %v1876, %v2059
      %v2140 = vadd.f32 %v1877, %v2059
      %v2141 = vadd.f32 %v1878, %v2059
      %v2142 = vadd.f32 %v1879, %v2059
      %v2143 = vadd.f32 %v1880, %v2059
      %v2144 = vadd.f32 %v1881, %v2059
      %v2145 = vadd.f32 %v1882, %v2059
      %v2146 = vadd.f32 %v1883, %v2059
      %v2147 = vadd.f32 %v1884, %v2059
      %v2148 = vadd.f32 %v1885, %v2059
      %v2149 = vadd.f32 %v1886, %v2059
      %v2150 = vadd.f32 %v1887, %v2059
      %v2151 = vadd.f32 %v1888, %v2059
      %v2152 = vadd.f32 %v1889, %v2059
      %v2153 = vadd.f32 %v1890, %v2059
      %v2154 = vadd.f32 %v1891, %v2059
      %v2155 = vadd.f32 %v1892, %v2059
      %v2156 = vadd.f32 %v1893, %v2059
      %v2157 = vadd.f32 %v1894, %v2059
      %v2158 = vadd.f32 %v1895, %v2059
      %v2159 = vadd.f32 %v1896, %v2059
      %v2160 = vadd.f32 %v1897, %v2059
      %v2161 = vadd.f32 %v1898, %v2059
      %v2162 = vadd.f32 %v1899, %v2059
      %v2163 = vadd.f32 %v1900, %v2059
      %v2164 = vadd.f32 %v1901, %v2059
      %v2165 = vadd.f32 %v1902, %v2059
      %v2166 = vadd.f32 %v1903, %v2059
      %v2167 = vadd.f32 %v1904, %v2059
      %v2168 = vadd.f32 %v1905, %v2059
      %v2169 = vadd.f32 %v1906, %v2059
      %v2170 = vadd.f32 %v1907, %v2059
      %v2171 = vadd.f32 %v1908, %v2059
      %v2172 = vadd.f32 %v1909, %v2059
      %v2173 = vadd.f32 %v1910, %v2059
      %v2174 = vadd.f32 %v1911, %v2059
      %v2175 = vadd.f32 %v1912, %v2059
      %v2176 = vadd.f32 %v1913, %v2059
      %v2177 = vadd.f32 %v1914, %v2059
      %v2178 = vadd.f32 %v1915, %v2059
      %v2179 = vadd.f32 %v1916, %v2059
      %v2180 = vadd.f32 %v1917, %v2059
      %v2181 = vadd.f32 %v1918, %v2059
      %v2182 = vadd.f32 %v1919, %v2059
      %v2183 = vadd.f32 %v1920, %v2059
      %v2184 = vadd.f32 %v1921, %v2059
      %v2185 = vadd.f32 %v1922, %v2059
      %v2186 = vadd.f32 %v1923, %v2059
      %v2187 = vadd.f32 %v1924, %v2059
      %v2188 = vadd.f32 %v1925, %v2059
      %v2189 = vadd.f32 %v1926, %v2059
      %v2190 = vadd.f32 %v1927, %v2059
      %v2191 = vadd.f32 %v1928, %v2059
      %v2192 = vadd.f32 %v1929, %v2059
      %v2193 = vadd.f32 %v1930, %v2059
      %v2194 = vadd.f32 %v1931, %v2059
      %v2195 = vadd.f32 %v1932, %v2059
      %v2196 = vadd.f32 %v1933, %v2059
      %v2197 = vadd.f32 %v1934, %v2059
      %v2198 = vadd.f32 %v1935, %v2059
      %v2199 = vadd.f32 %v1936, %v2059
      %v2200 = vadd.f32 %v1937, %v2059
      %v2201 = vadd.f32 %v1938, %v2059
      %v2202 = vadd.f32 %v1939, %v2059
      %v2203 = vadd.f32 %v1940, %v2059
      %v2204 = vadd.f32 %v1941, %v2059
      %v2205 = vadd.f32 %v1942, %v2059
      %v2206 = vadd.f32 %v1943, %v2059
      %v2207 = vadd.f32 %v1944, %v2059
      %v2208 = vadd.f32 %v1945, %v2059
      %v2209 = vadd.f32 %v1946, %v2059
      %v2210 = vadd.f32 %v1947, %v2059
      %v2211 = vadd.f32 %v1948, %v2059
      %v2212 = vadd.f32 %v1949, %v2059
      %v2213 = vadd.f32 %v1950, %v2059
      %v2214 = vadd.f32 %v1951, %v2059
      %v2215 = vadd.f32 %v1952, %v2059
      %v2216 = vadd.f32 %v1953, %v2059
      %v2217 = vadd.f32 %v1954, %v2059
      %v2218 = vadd.f32 %v1955, %v2059
      %v2219 = vadd.f32 %v1956, %v2059
      %v2220 = vadd.f32 %v1957, %v2059
      %v2221 = vadd.f32 %v1958, %v2059
      %v2222 = vadd.f32 %v1959, %v2059
      %v2223 = vadd.f32 %v1960, %v2059
      %v2224 = vadd.f32 %v1961, %v2059
      %v2225 = vadd.f32 %v1962, %v2059
      %v2226 = vadd.f32 %v1963, %v2059
      %v2227 = vadd.f32 %v1964, %v2059
      %v2228 = vadd.f32 %v1965, %v2059
      %v2229 = vadd.f32 %v1966, %v2059
      %v2230 = vadd.f32 %v1967, %v2059
      %v2231 = vadd.f32 %v1968, %v2059
      %v2232 = vadd.f32 %v1969, %v2059
      %v2233 = vadd.f32 %v1970, %v2059
      %v2234 = vadd.f32 %v1971, %v2059
      %v2235 = vadd.f32 %v1972, %v2059
      %v2236 = vadd.f32 %v1973, %v2059
      %v2237 = vadd.f32 %v1974, %v2059
      %v2238 = vadd.f32 %v1975, %v2059
      %v2239 = vadd.f32 %v1976, %v2059
      %v2240 = vadd.f32 %v1977, %v2059
      %v2241 = vadd.f32 %v1978, %v2059
      %v2242 = vadd.f32 %v1979, %v2059
      %v2243 = vadd.f32 %v1980, %v2059
      %v2244 = vadd.f32 %v1981, %v2059
      %v2245 = vadd.f32 %v1982, %v2059
      %v2246 = vadd.f32 %v1983, %v2059
      %v2247 = vadd.f32 %v1984, %v2059
      %v2248 = vadd.f32 %v1985, %v2059
      %v2249 = vadd.f32 %v1986, %v2059
      %v2250 = vadd.f32 %v1987, %v2059
      %v2251 = vadd.f32 %v1988, %v2059
      %v2252 = vadd.f32 %v1989, %v2059
      %v2253 = vadd.f32 %v1990, %v2059
      %v2254 = vadd.f32 %v1991, %v2059
      %v2255 = vadd.f32 %v1992, %v2059
      %v2256 = vadd.f32 %v1993, %v2059
      %v2257 = vadd.f32 %v1994, %v2059
      %v2258 = vadd.f32 %v1995, %v2059
      %v2259 = vadd.f32 %v1996, %v2059
      %v2260 = vadd.f32 %v1997, %v2059
      %v2261 = vadd.f32 %v1998, %v2059
      %v2262 = vadd.f32 %v1999, %v2059
      %v2263 = vadd.f32 %v2000, %v2059
      %v2264 = vadd.f32 %v2001, %v2059
      %v2265 = vadd.f32 %v2002, %v2059
      %v2266 = vadd.f32 %v2003, %v2059
      %v2267 = vadd.f32 %v2004, %v2059
      %v2268 = vadd.f32 %v2005, %v2059
      %v2269 = vadd.f32 %v2006, %v2059
      %v2270 = vadd.f32 %v2007, %v2059
      %v2271 = vadd.f32 %v2008, %v2059
      %v2272 = vadd.f32 %v2009, %v2059
      %v2273 = vadd.f32 %v2010, %v2059
      %v2274 = vadd.f32 %v2011, %v2059
      %v2275 = vadd.f32 %v2012, %v2059
      %v2276 = vadd.f32 %v2013, %v2059
      %v2277 = vadd.f32 %v2014, %v2059
      %v2278 = vadd.f32 %v2015, %v2059
      %v2279 = vadd.f32 %v2016, %v2059
      %v2280 = vadd.f32 %v2017, %v2059
      %v2281 = vadd.f32 %v2018, %v2059
      %v2282 = vadd.f32 %v2019, %v2059
      %v2283 = vadd.f32 %v2020, %v2059
      %v2284 = vadd.f32 %v2021, %v2059
      %v2285 = vadd.f32 %v2022, %v2059
      %v2286 = vadd.f32 %v2023, %v2059
      %v2287 = vadd.f32 %v2024, %v2059
      %v2288 = vadd.f32 %v2025, %v2059
      %v2289 = vadd.f32 %v2026, %v2059
      %v2290 = vadd.f32 %v2027, %v2059
      %v2291 = vadd.f32 %v2028, %v2059
      %v2292 = vadd.f32 %v2029, %v2059
      %v2293 = vadd.f32 %v2030, %v2059
      %v2294 = vadd.f32 %v2031, %v2059
      %v2295 = vadd.f32 %v2032, %v2059
      %v2296 = vadd.f32 %v2033, %v2059
      %v2297 = vadd.f32 %v2034, %v2059
      %v2298 = vadd.f32 %v2035, %v2059
      %v2299 = vadd.f32 %v2036, %v2059
      %v2300 = vadd.f32 %v2037, %v2059
      %v2301 = vadd.f32 %v2038, %v2059
      %v2302 = vadd.f32 %v2039, %v2059
      %v2303 = vadd.f32 %v2040, %v2059
      %v2304 = vadd.f32 %v2041, %v2059
      %v2305 = vadd.f32 %v2042, %v2059
      %v2306 = vadd.f32 %v2043, %v2059
      %v2307 = vadd.f32 %v2044, %v2059
      %v2308 = vadd.f32 %v2045, %v2059
      %v2309 = vadd.f32 %v2046, %v2059
      %v2310 = vadd.f32 %v2047, %v2059
      %v2311 = vadd.f32 %v2048, %v2059
      %v2312 = vadd.f32 %v2049, %v2059
      %v2313 = vadd.f32 %v2050, %v2059
      %v2314 = vadd.f32 %v2051, %v2059
      %v2315 = vadd.f32 %v2052, %v2059
      %v2316 = vadd.f32 %v2053, %v2059
      %v2317 = vmax.f32 %v2061, 0.0
      %v2318 = vmax.f32 %v2062, 0.0
      %v2319 = vmax.f32 %v2063, 0.0
      %v2320 = vmax.f32 %v2064, 0.0
      %v2321 = vmax.f32 %v2065, 0.0
      %v2322 = vmax.f32 %v2066, 0.0
      %v2323 = vmax.f32 %v2067, 0.0
      %v2324 = vmax.f32 %v2068, 0.0
      %v2325 = vmax.f32 %v2069, 0.0
      %v2326 = vmax.f32 %v2070, 0.0
      %v2327 = vmax.f32 %v2071, 0.0
      %v2328 = vmax.f32 %v2072, 0.0
      %v2329 = vmax.f32 %v2073, 0.0
      %v2330 = vmax.f32 %v2074, 0.0
      %v2331 = vmax.f32 %v2075, 0.0
      %v2332 = vmax.f32 %v2076, 0.0
      %v2333 = vmax.f32 %v2077, 0.0
      %v2334 = vmax.f32 %v2078, 0.0
      %v2335 = vmax.f32 %v2079, 0.0
      %v2336 = vmax.f32 %v2080, 0.0
      %v2337 = vmax.f32 %v2081, 0.0
      %v2338 = vmax.f32 %v2082, 0.0
      %v2339 = vmax.f32 %v2083, 0.0
      %v2340 = vmax.f32 %v2084, 0.0
      %v2341 = vmax.f32 %v2085, 0.0
      %v2342 = vmax.f32 %v2086, 0.0
      %v2343 = vmax.f32 %v2087, 0.0
      %v2344 = vmax.f32 %v2088, 0.0
      %v2345 = vmax.f32 %v2089, 0.0
      %v2346 = vmax.f32 %v2090, 0.0
      %v2347 = vmax.f32 %v2091, 0.0
      %v2348 = vmax.f32 %v2092, 0.0
      %v2349 = vmax.f32 %v2093, 0.0
      %v2350 = vmax.f32 %v2094, 0.0
      %v2351 = vmax.f32 %v2095, 0.0
      %v2352 = vmax.f32 %v2096, 0.0
      %v2353 = vmax.f32 %v2097, 0.0
      %v2354 = vmax.f32 %v2098, 0.0
      %v2355 = vmax.f32 %v2099, 0.0
      %v2356 = vmax.f32 %v2100, 0.0
      %v2357 = vmax.f32 %v2101, 0.0
      %v2358 = vmax.f32 %v2102, 0.0
      %v2359 = vmax.f32 %v2103, 0.0
      %v2360 = vmax.f32 %v2104, 0.0
      %v2361 = vmax.f32 %v2105, 0.0
      %v2362 = vmax.f32 %v2106, 0.0
      %v2363 = vmax.f32 %v2107, 0.0
      %v2364 = vmax.f32 %v2108, 0.0
      %v2365 = vmax.f32 %v2109, 0.0
      %v2366 = vmax.f32 %v2110, 0.0
      %v2367 = vmax.f32 %v2111, 0.0
      %v2368 = vmax.f32 %v2112, 0.0
      %v2369 = vmax.f32 %v2113, 0.0
      %v2370 = vmax.f32 %v2114, 0.0
      %v2371 = vmax.f32 %v2115, 0.0
      %v2372 = vmax.f32 %v2116, 0.0
      %v2373 = vmax.f32 %v2117, 0.0
      %v2374 = vmax.f32 %v2118, 0.0
      %v2375 = vmax.f32 %v2119, 0.0
      %v2376 = vmax.f32 %v2120, 0.0
      %v2377 = vmax.f32 %v2121, 0.0
      %v2378 = vmax.f32 %v2122, 0.0
      %v2379 = vmax.f32 %v2123, 0.0
      %v2380 = vmax.f32 %v2124, 0.0
      %v2381 = vmax.f32 %v2125, 0.0
      %v2382 = vmax.f32 %v2126, 0.0
      %v2383 = vmax.f32 %v2127, 0.0
      %v2384 = vmax.f32 %v2128, 0.0
      %v2385 = vmax.f32 %v2129, 0.0
      %v2386 = vmax.f32 %v2130, 0.0
      %v2387 = vmax.f32 %v2131, 0.0
      %v2388 = vmax.f32 %v2132, 0.0
      %v2389 = vmax.f32 %v2133, 0.0
      %v2390 = vmax.f32 %v2134, 0.0
      %v2391 = vmax.f32 %v2135, 0.0
      %v2392 = vmax.f32 %v2136, 0.0
      %v2393 = vmax.f32 %v2137, 0.0
      %v2394 = vmax.f32 %v2138, 0.0
      %v2395 = vmax.f32 %v2139, 0.0
      %v2396 = vmax.f32 %v2140, 0.0
      %v2397 = vmax.f32 %v2141, 0.0
      %v2398 = vmax.f32 %v2142, 0.0
      %v2399 = vmax.f32 %v2143, 0.0
      %v2400 = vmax.f32 %v2144, 0.0
      %v2401 = vmax.f32 %v2145, 0.0
      %v2402 = vmax.f32 %v2146, 0.0
      %v2403 = vmax.f32 %v2147, 0.0
      %v2404 = vmax.f32 %v2148, 0.0
      %v2405 = vmax.f32 %v2149, 0.0
      %v2406 = vmax.f32 %v2150, 0.0
      %v2407 = vmax.f32 %v2151, 0.0
      %v2408 = vmax.f32 %v2152, 0.0
      %v2409 = vmax.f32 %v2153, 0.0
      %v2410 = vmax.f32 %v2154, 0.0
      %v2411 = vmax.f32 %v2155, 0.0
      %v2412 = vmax.f32 %v2156, 0.0
      %v2413 = vmax.f32 %v2157, 0.0
      %v2414 = vmax.f32 %v2158, 0.0
      %v2415 = vmax.f32 %v2159, 0.0
      %v2416 = vmax.f32 %v2160, 0.0
      %v2417 = vmax.f32 %v2161, 0.0
      %v2418 = vmax.f32 %v2162, 0.0
      %v2419 = vmax.f32 %v2163, 0.0
      %v2420 = vmax.f32 %v2164, 0.0
      %v2421 = vmax.f32 %v2165, 0.0
      %v2422 = vmax.f32 %v2166, 0.0
      %v2423 = vmax.f32 %v2167, 0.0
      %v2424 = vmax.f32 %v2168, 0.0
      %v2425 = vmax.f32 %v2169, 0.0
      %v2426 = vmax.f32 %v2170, 0.0
      %v2427 = vmax.f32 %v2171, 0.0
      %v2428 = vmax.f32 %v2172, 0.0
      %v2429 = vmax.f32 %v2173, 0.0
      %v2430 = vmax.f32 %v2174, 0.0
      %v2431 = vmax.f32 %v2175, 0.0
      %v2432 = vmax.f32 %v2176, 0.0
      %v2433 = vmax.f32 %v2177, 0.0
      %v2434 = vmax.f32 %v2178, 0.0
      %v2435 = vmax.f32 %v2179, 0.0
      %v2436 = vmax.f32 %v2180, 0.0
      %v2437 = vmax.f32 %v2181, 0.0
      %v2438 = vmax.f32 %v2182, 0.0
      %v2439 = vmax.f32 %v2183, 0.0
      %v2440 = vmax.f32 %v2184, 0.0
      %v2441 = vmax.f32 %v2185, 0.0
      %v2442 = vmax.f32 %v2186, 0.0
      %v2443 = vmax.f32 %v2187, 0.0
      %v2444 = vmax.f32 %v2188, 0.0
      %v2445 = vmax.f32 %v2189, 0.0
      %v2446 = vmax.f32 %v2190, 0.0
      %v2447 = vmax.f32 %v2191, 0.0
      %v2448 = vmax.f32 %v2192, 0.0
      %v2449 = vmax.f32 %v2193, 0.0
      %v2450 = vmax.f32 %v2194, 0.0
      %v2451 = vmax.f32 %v2195, 0.0
      %v2452 = vmax.f32 %v2196, 0.0
      %v2453 = vmax.f32 %v2197, 0.0
      %v2454 = vmax.f32 %v2198, 0.0
      %v2455 = vmax.f32 %v2199, 0.0
      %v2456 = vmax.f32 %v2200, 0.0
      %v2457 = vmax.f32 %v2201, 0.0
      %v2458 = vmax.f32 %v2202, 0.0
      %v2459 = vmax.f32 %v2203, 0.0
      %v2460 = vmax.f32 %v2204, 0.0
      %v2461 = vmax.f32 %v2205, 0.0
      %v2462 = vmax.f32 %v2206, 0.0
      %v2463 = vmax.f32 %v2207, 0.0
      %v2464 = vmax.f32 %v2208, 0.0
      %v2465 = vmax.f32 %v2209, 0.0
      %v2466 = vmax.f32 %v2210, 0.0
      %v2467 = vmax.f32 %v2211, 0.0
      %v2468 = vmax.f32 %v2212, 0.0
      %v2469 = vmax.f32 %v2213, 0.0
      %v2470 = vmax.f32 %v2214, 0.0
      %v2471 = vmax.f32 %v2215, 0.0
      %v2472 = vmax.f32 %v2216, 0.0
      %v2473 = vmax.f32 %v2217, 0.0
      %v2474 = vmax.f32 %v2218, 0.0
      %v2475 = vmax.f32 %v2219, 0.0
      %v2476 = vmax.f32 %v2220, 0.0
      %v2477 = vmax.f32 %v2221, 0.0
      %v2478 = vmax.f32 %v2222, 0.0
      %v2479 = vmax.f32 %v2223, 0.0
      %v2480 = vmax.f32 %v2224, 0.0
      %v2481 = vmax.f32 %v2225, 0.0
      %v2482 = vmax.f32 %v2226, 0.0
      %v2483 = vmax.f32 %v2227, 0.0
      %v2484 = vmax.f32 %v2228, 0.0
      %v2485 = vmax.f32 %v2229, 0.0
      %v2486 = vmax.f32 %v2230, 0.0
      %v2487 = vmax.f32 %v2231, 0.0
      %v2488 = vmax.f32 %v2232, 0.0
      %v2489 = vmax.f32 %v2233, 0.0
      %v2490 = vmax.f32 %v2234, 0.0
      %v2491 = vmax.f32 %v2235, 0.0
      %v2492 = vmax.f32 %v2236, 0.0
      %v2493 = vmax.f32 %v2237, 0.0
      %v2494 = vmax.f32 %v2238, 0.0
      %v2495 = vmax.f32 %v2239, 0.0
      %v2496 = vmax.f32 %v2240, 0.0
      %v2497 = vmax.f32 %v2241, 0.0
      %v2498 = vmax.f32 %v2242, 0.0
      %v2499 = vmax.f32 %v2243, 0.0
      %v2500 = vmax.f32 %v2244, 0.0
      %v2501 = vmax.f32 %v2245, 0.0
      %v2502 = vmax.f32 %v2246, 0.0
      %v2503 = vmax.f32 %v2247, 0.0
      %v2504 = vmax.f32 %v2248, 0.0
      %v2505 = vmax.f32 %v2249, 0.0
      %v2506 = vmax.f32 %v2250, 0.0
      %v2507 = vmax.f32 %v2251, 0.0
      %v2508 = vmax.f32 %v2252, 0.0
      %v2509 = vmax.f32 %v2253, 0.0
      %v2510 = vmax.f32 %v2254, 0.0
      %v2511 = vmax.f32 %v2255, 0.0
      %v2512 = vmax.f32 %v2256, 0.0
      %v2513 = vmax.f32 %v2257, 0.0
      %v2514 = vmax.f32 %v2258, 0.0
      %v2515 = vmax.f32 %v2259, 0.0
      %v2516 = vmax.f32 %v2260, 0.0
      %v2517 = vmax.f32 %v2261, 0.0
      %v2518 = vmax.f32 %v2262, 0.0
      %v2519 = vmax.f32 %v2263, 0.0
      %v2520 = vmax.f32 %v2264, 0.0
      %v2521 = vmax.f32 %v2265, 0.0
      %v2522 = vmax.f32 %v2266, 0.0
      %v2523 = vmax.f32 %v2267, 0.0
      %v2524 = vmax.f32 %v2268, 0.0
      %v2525 = vmax.f32 %v2269, 0.0
      %v2526 = vmax.f32 %v2270, 0.0
      %v2527 = vmax.f32 %v2271, 0.0
      %v2528 = vmax.f32 %v2272, 0.0
      %v2529 = vmax.f32 %v2273, 0.0
      %v2530 = vmax.f32 %v2274, 0.0
      %v2531 = vmax.f32 %v2275, 0.0
      %v2532 = vmax.f32 %v2276, 0.0
      %v2533 = vmax.f32 %v2277, 0.0
      %v2534 = vmax.f32 %v2278, 0.0
      %v2535 = vmax.f32 %v2279, 0.0
      %v2536 = vmax.f32 %v2280, 0.0
      %v2537 = vmax.f32 %v2281, 0.0
      %v2538 = vmax.f32 %v2282, 0.0
      %v2539 = vmax.f32 %v2283, 0.0
      %v2540 = vmax.f32 %v2284, 0.0
      %v2541 = vmax.f32 %v2285, 0.0
      %v2542 = vmax.f32 %v2286, 0.0
      %v2543 = vmax.f32 %v2287, 0.0
      %v2544 = vmax.f32 %v2288, 0.0
      %v2545 = vmax.f32 %v2289, 0.0
      %v2546 = vmax.f32 %v2290, 0.0
      %v2547 = vmax.f32 %v2291, 0.0
      %v2548 = vmax.f32 %v2292, 0.0
      %v2549 = vmax.f32 %v2293, 0.0
      %v2550 = vmax.f32 %v2294, 0.0
      %v2551 = vmax.f32 %v2295, 0.0
      %v2552 = vmax.f32 %v2296, 0.0
      %v2553 = vmax.f32 %v2297, 0.0
      %v2554 = vmax.f32 %v2298, 0.0
      %v2555 = vmax.f32 %v2299, 0.0
      %v2556 = vmax.f32 %v2300, 0.0
      %v2557 = vmax.f32 %v2301, 0.0
      %v2558 = vmax.f32 %v2302, 0.0
      %v2559 = vmax.f32 %v2303, 0.0
      %v2560 = vmax.f32 %v2304, 0.0
      %v2561 = vmax.f32 %v2305, 0.0
      %v2562 = vmax.f32 %v2306, 0.0
      %v2563 = vmax.f32 %v2307, 0.0
      %v2564 = vmax.f32 %v2308, 0.0
      %v2565 = vmax.f32 %v2309, 0.0
      %v2566 = vmax.f32 %v2310, 0.0
      %v2567 = vmax.f32 %v2311, 0.0
      %v2568 = vmax.f32 %v2312, 0.0
      %v2569 = vmax.f32 %v2313, 0.0
      %v2570 = vmax.f32 %v2314, 0.0
      %v2571 = vmax.f32 %v2315, 0.0
      %v2572 = vmax.f32 %v2316, 0.0
      %v2573 = vld [vmem:[#allocation2] sm:$0x1]
      %vm2574 = vcmask 261120
      %v2575 = vsel %vm2574, %v2317, 0.0
      %v2576 = vsel %vm2574, %v2318, 0.0
      %v2577 = vadd.f32 %v2575, %v2576
      %v2578 = vsel %vm2574, %v2319, 0.0
      %v2579 = vadd.f32 %v2577, %v2578
      %v2580 = vsel %vm2574, %v2320, 0.0
      %v2581 = vadd.f32 %v2579, %v2580
      %v2582 = vsel %vm2574, %v2321, 0.0
      %v2583 = vadd.f32 %v2581, %v2582
      %v2584 = vsel %vm2574, %v2322, 0.0
      %v2585 = vadd.f32 %v2583, %v2584
      %v2586 = vsel %vm2574, %v2323, 0.0
      %v2587 = vadd.f32 %v2585, %v2586
      %v2588 = vsel %vm2574, %v2324, 0.0
      %v2589 = vadd.f32 %v2587, %v2588
      %v2590 = vsel %vm2574, %v2325, 0.0
      %v2591 = vadd.f32 %v2589, %v2590
      %v2592 = vsel %vm2574, %v2326, 0.0
      %v2593 = vadd.f32 %v2591, %v2592
      %v2594 = vsel %vm2574, %v2327, 0.0
      %v2595 = vadd.f32 %v2593, %v2594
      %v2596 = vsel %vm2574, %v2328, 0.0
      %v2597 = vadd.f32 %v2595, %v2596
      %v2598 = vsel %vm2574, %v2329, 0.0
      %v2599 = vadd.f32 %v2597, %v2598
      %v2600 = vsel %vm2574, %v2330, 0.0
      %v2601 = vadd.f32 %v2599, %v2600
      %v2602 = vsel %vm2574, %v2331, 0.0
      %v2603 = vadd.f32 %v2601, %v2602
      %v2604 = vsel %vm2574, %v2332, 0.0
      %v2605 = vadd.f32 %v2603, %v2604
      %v2606 = vsel %vm2574, %v2333, 0.0
      %v2607 = vadd.f32 %v2605, %v2606
      %v2608 = vsel %vm2574, %v2334, 0.0
      %v2609 = vadd.f32 %v2607, %v2608
      %v2610 = vsel %vm2574, %v2335, 0.0
      %v2611 = vadd.f32 %v2609, %v2610
      %v2612 = vsel %vm2574, %v2336, 0.0
      %v2613 = vadd.f32 %v2611, %v2612
      %v2614 = vsel %vm2574, %v2337, 0.0
      %v2615 = vadd.f32 %v2613, %v2614
      %v2616 = vsel %vm2574, %v2338, 0.0
      %v2617 = vadd.f32 %v2615, %v2616
      %v2618 = vsel %vm2574, %v2339, 0.0
      %v2619 = vadd.f32 %v2617, %v2618
      %v2620 = vsel %vm2574, %v2340, 0.0
      %v2621 = vadd.f32 %v2619, %v2620
      %v2622 = vsel %vm2574, %v2341, 0.0
      %v2623 = vadd.f32 %v2621, %v2622
      %v2624 = vsel %vm2574, %v2342, 0.0
      %v2625 = vadd.f32 %v2623, %v2624
      %v2626 = vsel %vm2574, %v2343, 0.0
      %v2627 = vadd.f32 %v2625, %v2626
      %v2628 = vsel %vm2574, %v2344, 0.0
      %v2629 = vadd.f32 %v2627, %v2628
      %v2630 = vsel %vm2574, %v2345, 0.0
      %v2631 = vadd.f32 %v2629, %v2630
      %v2632 = vsel %vm2574, %v2346, 0.0
      %v2633 = vadd.f32 %v2631, %v2632
      %v2634 = vsel %vm2574, %v2347, 0.0
      %v2635 = vadd.f32 %v2633, %v2634
      %v2636 = vsel %vm2574, %v2348, 0.0
      %v2637 = vadd.f32 %v2635, %v2636
      %v2638 = vsel %vm2574, %v2349, 0.0
      %v2639 = vadd.f32 %v2637, %v2638
      %v2640 = vsel %vm2574, %v2350, 0.0
      %v2641 = vadd.f32 %v2639, %v2640
      %v2642 = vsel %vm2574, %v2351, 0.0
      %v2643 = vadd.f32 %v2641, %v2642
      %v2644 = vsel %vm2574, %v2352, 0.0
      %v2645 = vadd.f32 %v2643, %v2644
      %v2646 = vsel %vm2574, %v2353, 0.0
      %v2647 = vadd.f32 %v2645, %v2646
      %v2648 = vsel %vm2574, %v2354, 0.0
      %v2649 = vadd.f32 %v2647, %v2648
      %v2650 = vsel %vm2574, %v2355, 0.0
      %v2651 = vadd.f32 %v2649, %v2650
      %v2652 = vsel %vm2574, %v2356, 0.0
      %v2653 = vadd.f32 %v2651, %v2652
      %v2654 = vsel %vm2574, %v2357, 0.0
      %v2655 = vadd.f32 %v2653, %v2654
      %v2656 = vsel %vm2574, %v2358, 0.0
      %v2657 = vadd.f32 %v2655, %v2656
      %v2658 = vsel %vm2574, %v2359, 0.0
      %v2659 = vadd.f32 %v2657, %v2658
      %v2660 = vsel %vm2574, %v2360, 0.0
      %v2661 = vadd.f32 %v2659, %v2660
      %v2662 = vsel %vm2574, %v2361, 0.0
      %v2663 = vadd.f32 %v2661, %v2662
      %v2664 = vsel %vm2574, %v2362, 0.0
      %v2665 = vadd.f32 %v2663, %v2664
      %v2666 = vsel %vm2574, %v2363, 0.0
      %v2667 = vadd.f32 %v2665, %v2666
      %v2668 = vsel %vm2574, %v2364, 0.0
      %v2669 = vadd.f32 %v2667, %v2668
      %v2670 = vsel %vm2574, %v2365, 0.0
      %v2671 = vadd.f32 %v2669, %v2670
      %v2672 = vsel %vm2574, %v2366, 0.0
      %v2673 = vadd.f32 %v2671, %v2672
      %v2674 = vsel %vm2574, %v2367, 0.0
      %v2675 = vadd.f32 %v2673, %v2674
      %v2676 = vsel %vm2574, %v2368, 0.0
      %v2677 = vadd.f32 %v2675, %v2676
      %v2678 = vsel %vm2574, %v2369, 0.0
      %v2679 = vadd.f32 %v2677, %v2678
      %v2680 = vsel %vm2574, %v2370, 0.0
      %v2681 = vadd.f32 %v2679, %v2680
      %v2682 = vsel %vm2574, %v2371, 0.0
      %v2683 = vadd.f32 %v2681, %v2682
      %v2684 = vsel %vm2574, %v2372, 0.0
      %v2685 = vadd.f32 %v2683, %v2684
      %v2686 = vsel %vm2574, %v2373, 0.0
      %v2687 = vadd.f32 %v2685, %v2686
      %v2688 = vsel %vm2574, %v2374, 0.0
      %v2689 = vadd.f32 %v2687, %v2688
      %v2690 = vsel %vm2574, %v2375, 0.0
      %v2691 = vadd.f32 %v2689, %v2690
      %v2692 = vsel %vm2574, %v2376, 0.0
      %v2693 = vadd.f32 %v2691, %v2692
      %v2694 = vsel %vm2574, %v2377, 0.0
      %v2695 = vadd.f32 %v2693, %v2694
      %v2696 = vsel %vm2574, %v2378, 0.0
      %v2697 = vadd.f32 %v2695, %v2696
      %v2698 = vsel %vm2574, %v2379, 0.0
      %v2699 = vadd.f32 %v2697, %v2698
      %v2700 = vsel %vm2574, %v2380, 0.0
      %v2701 = vadd.f32 %v2699, %v2700
      %v2702 = vsel %vm2574, %v2381, 0.0
      %v2703 = vadd.f32 %v2701, %v2702
      %v2704 = vsel %vm2574, %v2382, 0.0
      %v2705 = vadd.f32 %v2703, %v2704
      %v2706 = vsel %vm2574, %v2383, 0.0
      %v2707 = vadd.f32 %v2705, %v2706
      %v2708 = vsel %vm2574, %v2384, 0.0
      %v2709 = vadd.f32 %v2707, %v2708
      %v2710 = vsel %vm2574, %v2385, 0.0
      %v2711 = vadd.f32 %v2709, %v2710
      %v2712 = vsel %vm2574, %v2386, 0.0
      %v2713 = vadd.f32 %v2711, %v2712
      %v2714 = vsel %vm2574, %v2387, 0.0
      %v2715 = vadd.f32 %v2713, %v2714
      %v2716 = vsel %vm2574, %v2388, 0.0
      %v2717 = vadd.f32 %v2715, %v2716
      %v2718 = vsel %vm2574, %v2389, 0.0
      %v2719 = vadd.f32 %v2717, %v2718
      %v2720 = vsel %vm2574, %v2390, 0.0
      %v2721 = vadd.f32 %v2719, %v2720
      %v2722 = vsel %vm2574, %v2391, 0.0
      %v2723 = vadd.f32 %v2721, %v2722
      %v2724 = vsel %vm2574, %v2392, 0.0
      %v2725 = vadd.f32 %v2723, %v2724
      %v2726 = vsel %vm2574, %v2393, 0.0
      %v2727 = vadd.f32 %v2725, %v2726
      %v2728 = vsel %vm2574, %v2394, 0.0
      %v2729 = vadd.f32 %v2727, %v2728
      %v2730 = vsel %vm2574, %v2395, 0.0
      %v2731 = vadd.f32 %v2729, %v2730
      %v2732 = vsel %vm2574, %v2396, 0.0
      %v2733 = vadd.f32 %v2731, %v2732
      %v2734 = vsel %vm2574, %v2397, 0.0
      %v2735 = vadd.f32 %v2733, %v2734
      %v2736 = vsel %vm2574, %v2398, 0.0
      %v2737 = vadd.f32 %v2735, %v2736
      %v2738 = vsel %vm2574, %v2399, 0.0
      %v2739 = vadd.f32 %v2737, %v2738
      %v2740 = vsel %vm2574, %v2400, 0.0
      %v2741 = vadd.f32 %v2739, %v2740
      %v2742 = vsel %vm2574, %v2401, 0.0
      %v2743 = vadd.f32 %v2741, %v2742
      %v2744 = vsel %vm2574, %v2402, 0.0
      %v2745 = vadd.f32 %v2743, %v2744
      %v2746 = vsel %vm2574, %v2403, 0.0
      %v2747 = vadd.f32 %v2745, %v2746
      %v2748 = vsel %vm2574, %v2404, 0.0
      %v2749 = vadd.f32 %v2747, %v2748
      %v2750 = vsel %vm2574, %v2405, 0.0
      %v2751 = vadd.f32 %v2749, %v2750
      %v2752 = vsel %vm2574, %v2406, 0.0
      %v2753 = vadd.f32 %v2751, %v2752
      %v2754 = vsel %vm2574, %v2407, 0.0
      %v2755 = vadd.f32 %v2753, %v2754
      %v2756 = vsel %vm2574, %v2408, 0.0
      %v2757 = vadd.f32 %v2755, %v2756
      %v2758 = vsel %vm2574, %v2409, 0.0
      %v2759 = vadd.f32 %v2757, %v2758
      %v2760 = vsel %vm2574, %v2410, 0.0
      %v2761 = vadd.f32 %v2759, %v2760
      %v2762 = vsel %vm2574, %v2411, 0.0
      %v2763 = vadd.f32 %v2761, %v2762
      %v2764 = vsel %vm2574, %v2412, 0.0
      %v2765 = vadd.f32 %v2763, %v2764
      %v2766 = vsel %vm2574, %v2413, 0.0
      %v2767 = vadd.f32 %v2765, %v2766
      %v2768 = vsel %vm2574, %v2414, 0.0
      %v2769 = vadd.f32 %v2767, %v2768
      %v2770 = vsel %vm2574, %v2415, 0.0
      %v2771 = vadd.f32 %v2769, %v2770
      %v2772 = vsel %vm2574, %v2416, 0.0
      %v2773 = vadd.f32 %v2771, %v2772
      %v2774 = vsel %vm2574, %v2417, 0.0
      %v2775 = vadd.f32 %v2773, %v2774
      %v2776 = vsel %vm2574, %v2418, 0.0
      %v2777 = vadd.f32 %v2775, %v2776
      %v2778 = vsel %vm2574, %v2419, 0.0
      %v2779 = vadd.f32 %v2777, %v2778
      %v2780 = vsel %vm2574, %v2420, 0.0
      %v2781 = vadd.f32 %v2779, %v2780
      %v2782 = vsel %vm2574, %v2421, 0.0
      %v2783 = vadd.f32 %v2781, %v2782
      %v2784 = vsel %vm2574, %v2422, 0.0
      %v2785 = vadd.f32 %v2783, %v2784
      %v2786 = vsel %vm2574, %v2423, 0.0
      %v2787 = vadd.f32 %v2785, %v2786
      %v2788 = vsel %vm2574, %v2424, 0.0
      %v2789 = vadd.f32 %v2787, %v2788
      %v2790 = vsel %vm2574, %v2425, 0.0
      %v2791 = vadd.f32 %v2789, %v2790
      %v2792 = vsel %vm2574, %v2426, 0.0
      %v2793 = vadd.f32 %v2791, %v2792
      %v2794 = vsel %vm2574, %v2427, 0.0
      %v2795 = vadd.f32 %v2793, %v2794
      %v2796 = vsel %vm2574, %v2428, 0.0
      %v2797 = vadd.f32 %v2795, %v2796
      %v2798 = vsel %vm2574, %v2429, 0.0
      %v2799 = vadd.f32 %v2797, %v2798
      %v2800 = vsel %vm2574, %v2430, 0.0
      %v2801 = vadd.f32 %v2799, %v2800
      %v2802 = vsel %vm2574, %v2431, 0.0
      %v2803 = vadd.f32 %v2801, %v2802
      %v2804 = vsel %vm2574, %v2432, 0.0
      %v2805 = vadd.f32 %v2803, %v2804
      %v2806 = vsel %vm2574, %v2433, 0.0
      %v2807 = vadd.f32 %v2805, %v2806
      %v2808 = vsel %vm2574, %v2434, 0.0
      %v2809 = vadd.f32 %v2807, %v2808
      %v2810 = vsel %vm2574, %v2435, 0.0
      %v2811 = vadd.f32 %v2809, %v2810
      %v2812 = vsel %vm2574, %v2436, 0.0
      %v2813 = vadd.f32 %v2811, %v2812
      %v2814 = vsel %vm2574, %v2437, 0.0
      %v2815 = vadd.f32 %v2813, %v2814
      %v2816 = vsel %vm2574, %v2438, 0.0
      %v2817 = vadd.f32 %v2815, %v2816
      %v2818 = vsel %vm2574, %v2439, 0.0
      %v2819 = vadd.f32 %v2817, %v2818
      %v2820 = vsel %vm2574, %v2440, 0.0
      %v2821 = vadd.f32 %v2819, %v2820
      %v2822 = vsel %vm2574, %v2441, 0.0
      %v2823 = vadd.f32 %v2821, %v2822
      %v2824 = vsel %vm2574, %v2442, 0.0
      %v2825 = vadd.f32 %v2823, %v2824
      %v2826 = vsel %vm2574, %v2443, 0.0
      %v2827 = vadd.f32 %v2825, %v2826
      %v2828 = vsel %vm2574, %v2444, 0.0
      %v2829 = vadd.f32 %v2827, %v2828
      %v2830 = vsel %vm2574, %v2445, 0.0
      %v2831 = vadd.f32 %v2829, %v2830
      %v2832 = vsel %vm2574, %v2446, 0.0
      %v2833 = vadd.f32 %v2831, %v2832
      %v2834 = vsel %vm2574, %v2447, 0.0
      %v2835 = vadd.f32 %v2833, %v2834
      %v2836 = vsel %vm2574, %v2448, 0.0
      %v2837 = vadd.f32 %v2835, %v2836
      %v2838 = vsel %vm2574, %v2449, 0.0
      %v2839 = vadd.f32 %v2837, %v2838
      %v2840 = vsel %vm2574, %v2450, 0.0
      %v2841 = vadd.f32 %v2839, %v2840
      %v2842 = vsel %vm2574, %v2451, 0.0
      %v2843 = vadd.f32 %v2841, %v2842
      %v2844 = vsel %vm2574, %v2452, 0.0
      %v2845 = vadd.f32 %v2843, %v2844
      %v2846 = vsel %vm2574, %v2453, 0.0
      %v2847 = vadd.f32 %v2845, %v2846
      %v2848 = vsel %vm2574, %v2454, 0.0
      %v2849 = vadd.f32 %v2847, %v2848
      %v2850 = vsel %vm2574, %v2455, 0.0
      %v2851 = vadd.f32 %v2849, %v2850
      %v2852 = vsel %vm2574, %v2456, 0.0
      %v2853 = vadd.f32 %v2851, %v2852
      %v2854 = vsel %vm2574, %v2457, 0.0
      %v2855 = vadd.f32 %v2853, %v2854
      %v2856 = vsel %vm2574, %v2458, 0.0
      %v2857 = vadd.f32 %v2855, %v2856
      %v2858 = vsel %vm2574, %v2459, 0.0
      %v2859 = vadd.f32 %v2857, %v2858
      %v2860 = vsel %vm2574, %v2460, 0.0
      %v2861 = vadd.f32 %v2859, %v2860
      %v2862 = vsel %vm2574, %v2461, 0.0
      %v2863 = vadd.f32 %v2861, %v2862
      %v2864 = vsel %vm2574, %v2462, 0.0
      %v2865 = vadd.f32 %v2863, %v2864
      %v2866 = vsel %vm2574, %v2463, 0.0
      %v2867 = vadd.f32 %v2865, %v2866
      %v2868 = vsel %vm2574, %v2464, 0.0
      %v2869 = vadd.f32 %v2867, %v2868
      %v2870 = vsel %vm2574, %v2465, 0.0
      %v2871 = vadd.f32 %v2869, %v2870
      %v2872 = vsel %vm2574, %v2466, 0.0
      %v2873 = vadd.f32 %v2871, %v2872
      %v2874 = vsel %vm2574, %v2467, 0.0
      %v2875 = vadd.f32 %v2873, %v2874
      %v2876 = vsel %vm2574, %v2468, 0.0
      %v2877 = vadd.f32 %v2875, %v2876
      %v2878 = vsel %vm2574, %v2469, 0.0
      %v2879 = vadd.f32 %v2877, %v2878
      %v2880 = vsel %vm2574, %v2470, 0.0
      %v2881 = vadd.f32 %v2879, %v2880
      %v2882 = vsel %vm2574, %v2471, 0.0
      %v2883 = vadd.f32 %v2881, %v2882
      %v2884 = vsel %vm2574, %v2472, 0.0
      %v2885 = vadd.f32 %v2883, %v2884
      %v2886 = vsel %vm2574, %v2473, 0.0
      %v2887 = vadd.f32 %v2885, %v2886
      %v2888 = vsel %vm2574, %v2474, 0.0
      %v2889 = vadd.f32 %v2887, %v2888
      %v2890 = vsel %vm2574, %v2475, 0.0
      %v2891 = vadd.f32 %v2889, %v2890
      %v2892 = vsel %vm2574, %v2476, 0.0
      %v2893 = vadd.f32 %v2891, %v2892
      %v2894 = vsel %vm2574, %v2477, 0.0
      %v2895 = vadd.f32 %v2893, %v2894
      %v2896 = vsel %vm2574, %v2478, 0.0
      %v2897 = vadd.f32 %v2895, %v2896
      %v2898 = vsel %vm2574, %v2479, 0.0
      %v2899 = vadd.f32 %v2897, %v2898
      %v2900 = vsel %vm2574, %v2480, 0.0
      %v2901 = vadd.f32 %v2899, %v2900
      %v2902 = vsel %vm2574, %v2481, 0.0
      %v2903 = vadd.f32 %v2901, %v2902
      %v2904 = vsel %vm2574, %v2482, 0.0
      %v2905 = vadd.f32 %v2903, %v2904
      %v2906 = vsel %vm2574, %v2483, 0.0
      %v2907 = vadd.f32 %v2905, %v2906
      %v2908 = vsel %vm2574, %v2484, 0.0
      %v2909 = vadd.f32 %v2907, %v2908
      %v2910 = vsel %vm2574, %v2485, 0.0
      %v2911 = vadd.f32 %v2909, %v2910
      %v2912 = vsel %vm2574, %v2486, 0.0
      %v2913 = vadd.f32 %v2911, %v2912
      %v2914 = vsel %vm2574, %v2487, 0.0
      %v2915 = vadd.f32 %v2913, %v2914
      %v2916 = vsel %vm2574, %v2488, 0.0
      %v2917 = vadd.f32 %v2915, %v2916
      %v2918 = vsel %vm2574, %v2489, 0.0
      %v2919 = vadd.f32 %v2917, %v2918
      %v2920 = vsel %vm2574, %v2490, 0.0
      %v2921 = vadd.f32 %v2919, %v2920
      %v2922 = vsel %vm2574, %v2491, 0.0
      %v2923 = vadd.f32 %v2921, %v2922
      %v2924 = vsel %vm2574, %v2492, 0.0
      %v2925 = vadd.f32 %v2923, %v2924
      %v2926 = vsel %vm2574, %v2493, 0.0
      %v2927 = vadd.f32 %v2925, %v2926
      %v2928 = vsel %vm2574, %v2494, 0.0
      %v2929 = vadd.f32 %v2927, %v2928
      %v2930 = vsel %vm2574, %v2495, 0.0
      %v2931 = vadd.f32 %v2929, %v2930
      %v2932 = vsel %vm2574, %v2496, 0.0
      %v2933 = vadd.f32 %v2931, %v2932
      %v2934 = vsel %vm2574, %v2497, 0.0
      %v2935 = vadd.f32 %v2933, %v2934
      %v2936 = vsel %vm2574, %v2498, 0.0
      %v2937 = vadd.f32 %v2935, %v2936
      %v2938 = vsel %vm2574, %v2499, 0.0
      %v2939 = vadd.f32 %v2937, %v2938
      %v2940 = vsel %vm2574, %v2500, 0.0
      %v2941 = vadd.f32 %v2939, %v2940
      %v2942 = vsel %vm2574, %v2501, 0.0
      %v2943 = vadd.f32 %v2941, %v2942
      %v2944 = vsel %vm2574, %v2502, 0.0
      %v2945 = vadd.f32 %v2943, %v2944
      %v2946 = vsel %vm2574, %v2503, 0.0
      %v2947 = vadd.f32 %v2945, %v2946
      %v2948 = vsel %vm2574, %v2504, 0.0
      %v2949 = vadd.f32 %v2947, %v2948
      %v2950 = vsel %vm2574, %v2505, 0.0
      %v2951 = vadd.f32 %v2949, %v2950
      %v2952 = vsel %vm2574, %v2506, 0.0
      %v2953 = vadd.f32 %v2951, %v2952
      %v2954 = vsel %vm2574, %v2507, 0.0
      %v2955 = vadd.f32 %v2953, %v2954
      %v2956 = vsel %vm2574, %v2508, 0.0
      %v2957 = vadd.f32 %v2955, %v2956
      %v2958 = vsel %vm2574, %v2509, 0.0
      %v2959 = vadd.f32 %v2957, %v2958
      %v2960 = vsel %vm2574, %v2510, 0.0
      %v2961 = vadd.f32 %v2959, %v2960
      %v2962 = vsel %vm2574, %v2511, 0.0
      %v2963 = vadd.f32 %v2961, %v2962
      %v2964 = vsel %vm2574, %v2512, 0.0
      %v2965 = vadd.f32 %v2963, %v2964
      %v2966 = vsel %vm2574, %v2513, 0.0
      %v2967 = vadd.f32 %v2965, %v2966
      %v2968 = vsel %vm2574, %v2514, 0.0
      %v2969 = vadd.f32 %v2967, %v2968
      %v2970 = vsel %vm2574, %v2515, 0.0
      %v2971 = vadd.f32 %v2969, %v2970
      %v2972 = vsel %vm2574, %v2516, 0.0
      %v2973 = vadd.f32 %v2971, %v2972
      %v2974 = vsel %vm2574, %v2517, 0.0
      %v2975 = vadd.f32 %v2973, %v2974
      %v2976 = vsel %vm2574, %v2518, 0.0
      %v2977 = vadd.f32 %v2975, %v2976
      %v2978 = vsel %vm2574, %v2519, 0.0
      %v2979 = vadd.f32 %v2977, %v2978
      %v2980 = vsel %vm2574, %v2520, 0.0
      %v2981 = vadd.f32 %v2979, %v2980
      %v2982 = vsel %vm2574, %v2521, 0.0
      %v2983 = vadd.f32 %v2981, %v2982
      %v2984 = vsel %vm2574, %v2522, 0.0
      %v2985 = vadd.f32 %v2983, %v2984
      %v2986 = vsel %vm2574, %v2523, 0.0
      %v2987 = vadd.f32 %v2985, %v2986
      %v2988 = vsel %vm2574, %v2524, 0.0
      %v2989 = vadd.f32 %v2987, %v2988
      %v2990 = vsel %vm2574, %v2525, 0.0
      %v2991 = vadd.f32 %v2989, %v2990
      %v2992 = vsel %vm2574, %v2526, 0.0
      %v2993 = vadd.f32 %v2991, %v2992
      %v2994 = vsel %vm2574, %v2527, 0.0
      %v2995 = vadd.f32 %v2993, %v2994
      %v2996 = vsel %vm2574, %v2528, 0.0
      %v2997 = vadd.f32 %v2995, %v2996
      %v2998 = vsel %vm2574, %v2529, 0.0
      %v2999 = vadd.f32 %v2997, %v2998
      %v3000 = vsel %vm2574, %v2530, 0.0
      %v3001 = vadd.f32 %v2999, %v3000
      %v3002 = vsel %vm2574, %v2531, 0.0
      %v3003 = vadd.f32 %v3001, %v3002
      %v3004 = vsel %vm2574, %v2532, 0.0
      %v3005 = vadd.f32 %v3003, %v3004
      %v3006 = vsel %vm2574, %v2533, 0.0
      %v3007 = vadd.f32 %v3005, %v3006
      %v3008 = vsel %vm2574, %v2534, 0.0
      %v3009 = vadd.f32 %v3007, %v3008
      %v3010 = vsel %vm2574, %v2535, 0.0
      %v3011 = vadd.f32 %v3009, %v3010
      %v3012 = vsel %vm2574, %v2536, 0.0
      %v3013 = vadd.f32 %v3011, %v3012
      %v3014 = vsel %vm2574, %v2537, 0.0
      %v3015 = vadd.f32 %v3013, %v3014
      %v3016 = vsel %vm2574, %v2538, 0.0
      %v3017 = vadd.f32 %v3015, %v3016
      %v3018 = vsel %vm2574, %v2539, 0.0
      %v3019 = vadd.f32 %v3017, %v3018
      %v3020 = vsel %vm2574, %v2540, 0.0
      %v3021 = vadd.f32 %v3019, %v3020
      %v3022 = vsel %vm2574, %v2541, 0.0
      %v3023 = vadd.f32 %v3021, %v3022
      %v3024 = vsel %vm2574, %v2542, 0.0
      %v3025 = vadd.f32 %v3023, %v3024
      %v3026 = vsel %vm2574, %v2543, 0.0
      %v3027 = vadd.f32 %v3025, %v3026
      %v3028 = vsel %vm2574, %v2544, 0.0
      %v3029 = vadd.f32 %v3027, %v3028
      %v3030 = vsel %vm2574, %v2545, 0.0
      %v3031 = vadd.f32 %v3029, %v3030
      %v3032 = vsel %vm2574, %v2546, 0.0
      %v3033 = vadd.f32 %v3031, %v3032
      %v3034 = vsel %vm2574, %v2547, 0.0
      %v3035 = vadd.f32 %v3033, %v3034
      %v3036 = vsel %vm2574, %v2548, 0.0
      %v3037 = vadd.f32 %v3035, %v3036
      %v3038 = vsel %vm2574, %v2549, 0.0
      %v3039 = vadd.f32 %v3037, %v3038
      %v3040 = vsel %vm2574, %v2550, 0.0
      %v3041 = vadd.f32 %v3039, %v3040
      %v3042 = vsel %vm2574, %v2551, 0.0
      %v3043 = vadd.f32 %v3041, %v3042
      %v3044 = vsel %vm2574, %v2552, 0.0
      %v3045 = vadd.f32 %v3043, %v3044
      %v3046 = vsel %vm2574, %v2553, 0.0
      %v3047 = vadd.f32 %v3045, %v3046
      %v3048 = vsel %vm2574, %v2554, 0.0
      %v3049 = vadd.f32 %v3047, %v3048
      %v3050 = vsel %vm2574, %v2555, 0.0
      %v3051 = vadd.f32 %v3049, %v3050
      %v3052 = vsel %vm2574, %v2556, 0.0
      %v3053 = vadd.f32 %v3051, %v3052
      %v3054 = vsel %vm2574, %v2557, 0.0
      %v3055 = vadd.f32 %v3053, %v3054
      %v3056 = vsel %vm2574, %v2558, 0.0
      %v3057 = vadd.f32 %v3055, %v3056
      %v3058 = vsel %vm2574, %v2559, 0.0
      %v3059 = vadd.f32 %v3057, %v3058
      %v3060 = vsel %vm2574, %v2560, 0.0
      %v3061 = vadd.f32 %v3059, %v3060
      %v3062 = vsel %vm2574, %v2561, 0.0
      %v3063 = vadd.f32 %v3061, %v3062
      %v3064 = vsel %vm2574, %v2562, 0.0
      %v3065 = vadd.f32 %v3063, %v3064
      %v3066 = vsel %vm2574, %v2563, 0.0
      %v3067 = vadd.f32 %v3065, %v3066
      %v3068 = vsel %vm2574, %v2564, 0.0
      %v3069 = vadd.f32 %v3067, %v3068
      %v3070 = vsel %vm2574, %v2565, 0.0
      %v3071 = vadd.f32 %v3069, %v3070
      %v3072 = vsel %vm2574, %v2566, 0.0
      %v3073 = vadd.f32 %v3071, %v3072
      %v3074 = vsel %vm2574, %v2567, 0.0
      %v3075 = vadd.f32 %v3073, %v3074
      %v3076 = vsel %vm2574, %v2568, 0.0
      %v3077 = vadd.f32 %v3075, %v3076
      %v3078 = vsel %vm2574, %v2569, 0.0
      %v3079 = vadd.f32 %v3077, %v3078
      %v3080 = vsel %vm2574, %v2570, 0.0
      %v3081 = vadd.f32 %v3079, %v3080
      %v3082 = vsel %vm2574, %v2571, 0.0
      %v3083 = vadd.f32 %v3081, %v3082
      %v3084 = vsel %vm2574, %v2572, 0.0
      %v3085 = vadd.f32 %v3083, %v3084
      %v3086 = vrot.slane %v3085, 4
      %v3087 = vadd.f32 %v3085, %v3086
      %v3088 = vrot.slane %v3087, 2
      %v3089 = vadd.f32 %v3087, %v3088
      %v3090 = vrot.slane %v3089, 1
      %v3091 = vadd.f32 %v3089, %v3090
      %v3092 = vadd.f32 %v2573, %v3091
      %vm3093 = vcmask 253952
      %3094 = vst.msk [vmem:[#allocation2] sm:$0x1] %vm3093, %v3092
      // Predicated region
      $region45: #{madl_forward.2} parent=39 // pred_check
        %p3095 = pneg %p249
      $region46: #{madl_forward.2} parent=39 // pred_check_branch
        %3097 = sbr.rel (%p3095) target = $region48
      $region47: #{madl_forward.2} parent=39 // pred_region
        %v3098 = vld [vmem:[#allocation2] sm:$0x1]
        %v3099 = vmul.f32 %v3098, 0.00048828125
        %v3100 = vld [vmem:[%s3] sm:$0xff]
        %v3101 = vld [vmem:[%s3 + $0x8] sm:$0xff]
        %v3102 = vld [vmem:[%s3 + $0x10] sm:$0xff]
        %v3103 = vld [vmem:[%s3 + $0x18] sm:$0xff]
        %v3104 = vld [vmem:[%s4] sm:$0x1]
        %v3106 = vsel %vm2574, %v3099, 0
        %3108 = vmatprep.subr.mxu0 0.0
        %3109 = vmatpush1.msra.mxu0 %v3100
        %3110 = vmatprep.subr.mxu0 0.0
        %3111 = vmatpush1.msra.mxu0 %v3101
        %3112 = vmatprep.subr.mxu0 0.0
        %3113 = vmatpush1.msra.mxu0 %v3102
        %3114 = vmatprep.subr.mxu0 0.0
        %3115 = vmatpush1.msra.mxu0 %v3103
        %3116 = vmatprep.subr.mxu0 0.0
        %3117 = vmatpush1.msra.mxu0 0.0
        %3118 = vmatprep.subr.mxu0 0.0
        %3119 = vmatpush1.msra.mxu0 0.0
        %3120 = vmatprep.subr.mxu0 0.0
        %3121 = vmatpush1.msra.mxu0 0.0
        %3122 = vmatprep.subr.mxu0 0.0
        %3123 = vmatpush1.msra.mxu0 0.0
        %3124 = vmatprep.subr.mxu0 0.0
        %3125 = vmatpush1.msra.mxu0 0.0
        %3126 = vmatprep.subr.mxu0 0.0
        %3127 = vmatpush1.msra.mxu0 0.0
        %3128 = vmatprep.subr.mxu0 0.0
        %3129 = vmatpush1.msra.mxu0 0.0
        %3130 = vmatprep.subr.mxu0 0.0
        %3131 = vmatpush1.msra.mxu0 0.0
        %3132 = vmatprep.subr.mxu0 0.0
        %3133 = vmatpush1.msra.mxu0 0.0
        %3134 = vmatprep.subr.mxu0 0.0
        %3135 = vmatpush1.msra.mxu0 0.0
        %3136 = vmatprep.subr.mxu0 0.0
        %3137 = vmatpush1.msra.mxu0 0.0
        %3138 = vmatprep.subr.mxu0 0.0
        %3139 = vmatpush1.msra.mxu0 0.0
        %3140 = vmatprep.subr.mxu0 0.0
        %3141 = vmatpush1.msra.mxu0 0.0
        %3142 = vmatprep.subr.mxu0 0.0
        %3143 = vmatpush1.msra.mxu0 0.0
        %3144 = vmatprep.subr.mxu0 0.0
        %3145 = vmatpush1.msra.mxu0 0.0
        %3146 = vmatprep.subr.mxu0 0.0
        %3147 = vmatpush1.msra.mxu0 0.0
        %3148 = vmatprep.subr.mxu0 0.0
        %3149 = vmatpush1.msra.mxu0 0.0
        %3150 = vmatprep.subr.mxu0 0.0
        %3151 = vmatpush1.msra.mxu0 0.0
        %3152 = vmatprep.subr.mxu0 0.0
        %3153 = vmatpush1.msra.mxu0 0.0
        %3154 = vmatprep.subr.mxu0 0.0
        %3155 = vmatpush1.msra.mxu0 0.0
        %3156 = vmatprep.subr.mxu0 0.0
        %3157 = vmatpush1.msra.mxu0 0.0
        %3158 = vmatprep.subr.mxu0 0.0
        %3159 = vmatpush1.msra.mxu0 0.0
        %3160 = vmatprep.subr.mxu0 0.0
        %3161 = vmatpush1.msra.mxu0 0.0
        %3162 = vmatprep.subr.mxu0 0.0
        %3163 = vmatpush1.msra.mxu0 0.0
        %3164 = vmatprep.subr.mxu0 0.0
        %3165 = vmatpush1.msra.mxu0 0.0
        %3166 = vmatprep.subr.mxu0 0.0
        %3167 = vmatpush1.msra.mxu0 0.0
        %3168 = vmatprep.subr.mxu0 0.0
        %3169 = vmatpush1.msra.mxu0 0.0
        %3170 = vmatprep.subr.mxu0 0.0
        %3171 = vmatpush1.msra.mxu0 0.0
        %3172 = vmatprep.mubr.f32.mxu0 0.0
        %3173 = vmatmul.mubr.f32.gmra.mrb[0].mxu0 %v3106
        %v3174 = vpop.f32.mrb[0].mxu0
        %v3175 = vadd.f32 %v3104, %v3174
        %v3176 = vpop.f32.mrb[0].mxu0
        %3177 = vdwg.mxu0
        %vm3178 = vcmask 24576
        %3179 = vst.msk [vmem:[%s248] sm:$0x1] %vm3178, %v3175
      $region48: #{madl_forward.2} parent=39 // pred_fallthru
        _
      %p3180 = scmp.lt.s32.totalorder %s20, 1
      %s3181 = scalar_select %p3180, %s20, 1
      %s3182 = scalar_lea.vmem %s5, %s3181
      // Predicated region
      $region49: #{madl_forward.2} parent=39 // pred_check
        %p3183 = pneg %p158
      $region50: #{madl_forward.2} parent=39 // pred_check_branch
        %3185 = sbr.rel (%p3183) target = $region52
      $region51: #{madl_forward.2} parent=39 // pred_region
        _
      $region52: #{madl_forward.2} parent=39 // pred_fallthru
        _
    $region40: #{madl_forward.2} parent=5 // pred_fallthru
      _
    %p3186 = scmp.le.s32.totalorder 2, %s11
    // Predicated region
    $region53: #{madl_forward.2} parent=5 // pred_check
      %p3187 = pneg %p3186
    $region54: #{madl_forward.2} parent=5 // pred_check_branch
      %3189 = sbr.rel (%p3187) target = $region56
    $region55: #{madl_forward.2} parent=5 // pred_region
      %s3190 = ssub.s32 %s11, 2
      // Predicated region
      $region57: #{madl_forward.2} parent=55 // pred_check
        %p3191 = pneg %p164
      $region58: #{madl_forward.2} parent=55 // pred_check_branch
        %3193 = sbr.rel (%p3191) target = $region60
      $region59: #{madl_forward.2} parent=55 // pred_region
        %p3194 = scmp.lt.s32.totalorder %s22, 1
        %s3195 = scalar_select %p3194, %s22, 1
        %s3196 = scalar_lea.vmem %s5, %s3195
      $region60: #{madl_forward.2} parent=55 // pred_fallthru
        _
    $region56: #{madl_forward.2} parent=5 // pred_fallthru
      _
  $region6: #{madl_forward.2} parent=0 // loop_footer
    %s15 = sadd.s32 1, %s11
  $region7: #{madl_forward.2} parent=0 // loop_footer_branch
    %10 = sbr.rel target = $region3
  $region8: #{madl_forward.2} parent=0 // loop_exit
    _

// kernel: madl_forward.3
$region0: #{madl_forward.3}
  #allocation0 [shape = 'u32[]', space=smem, size = 0x4, offset = 0x4, fixed_abs, tag = 'smem constant byte address 0x4 - core index']
  #allocation1 [shape = 'u32[144,128]{1,0:T(1,128)}', space=vmem, size = 0x12000, scoped, tag = 'internal scratch']
  #allocation2 [shape = 'f32[1,1]{1,0:T(1,128)S(1)}', space=vmem, size = 0x200, scoped, tag = 'scoped memory for madl_forward.3']
  %s0 = inlined_call_operand.vmem [shape: f32[2,2048,1], index: 0, kind: input, shape index: {}]
  %s1 = inlined_call_operand.vmem [shape: f32[1,32], index: 1, kind: input, shape index: {}]
  %s2 = inlined_call_operand.vmem [shape: f32[1,32], index: 2, kind: input, shape index: {}]
  %s3 = inlined_call_operand.vmem [shape: f32[2,1,4], index: 3, kind: input, shape index: {}]
  %s4 = inlined_call_operand.vmem [shape: f32[4,32], index: 4, kind: input, shape index: {}]
  %s5 = inlined_call_operand.vmem [shape: f32[1,32], index: 5, kind: input, shape index: {}]
  %s6 = inlined_call_operand.vmem [shape: f32[32,2], index: 6, kind: input, shape index: {}]
  %s7 = inlined_call_operand.vmem [shape: f32[1,2], index: 7, kind: input, shape index: {}]
  %s8 = inlined_call_operand.vmem [shape: f32[1,32], index: 8, kind: input, shape index: {}]
  %s9 = inlined_call_operand.<no memory space> [shape: f32[1,1], index: 9, kind: input, shape index: {}]
  %s10 = inlined_call_operand.hbm [shape: f32[2,2048,32], index: 10, kind: output, shape index: {0}]
  %s11 = inlined_call_operand.vmem [shape: f32[2,2048,2], index: 11, kind: output, shape index: {1}]
  %s12 = inlined_call_operand.vmem [shape: f32[2,2048,1], index: 12, kind: output, shape index: {2}]
  %13 = xla_tuple %s10, %s11, %s12
  %s14 = sld [smem:[#allocation0]]
  $region89: #{madl_forward.3} parent=0
    _
  %s16 = ssub.s32 1, %s14
  %s17 = scalar_select 0, %s16, %s14
  %v18 = vstv %s9
  %19 = vst [vmem:[#allocation2] sm:$0x1] %v18
  $region1: #{madl_forward.3} parent=0
    #allocation3 [shape = 'u8[2097152]{0}', space=vmem, size = 0x200000, scoped, tag = 'output window, operand 0']
    #allocation4 [shape = 's32[2]{0}', space=sflag, size = 0x8, scoped, tag = 'scoped memory for madl_forward.3']
    %20 = vsyncpa [#allocation4], 0
    %s21 = scalar_lea.sflag [#allocation4], 1
    %22 = vsyncpa %s21, 0
    loop: start=0, step=1, limit=4
    $region2: #{madl_forward.3} parent=1 // loop_pre_header
      _
    $region3: #{madl_forward.3} parent=1 // loop_header
      %s24 = sphi 0, %s28
      %p25 = scmp.ge.s32.totalorder %s24, 4
      %s31 = sphi 0, %s43
      %s32 = sphi 0, %s39
      %s33 = sphi 0, %s31
      %s34 = sphi 0, %s32
      %s35 = sphi 0, %s33
      %s36 = sphi 0, %s34
      %s48 = sphi 0, %s50
      %s51 = sphi 0, %s48
      %s52 = sphi 0, %s51
      %s68 = sphi 0, %s52
      %s72 = sphi 0, %s72
      %s74 = sphi 0, %s72
      %s75 = sphi 0, %s74
      %s89 = sphi 0, %s75
      %s93 = sphi 0, %s93
      %s95 = sphi 0, %s93
      %s96 = sphi 0, %s95
      %s110 = sphi 0, %s96
      %s116 = sphi 0, %s118
      %s119 = sphi 0, %s116
      %s120 = sphi 0, %s119
      %s136 = sphi 0, %s120
      %s140 = sphi 0, %s140
      %s142 = sphi 0, %s140
      %s143 = sphi 0, %s142
      %s157 = sphi 0, %s143
      %s161 = sphi 0, %s161
      %s163 = sphi 0, %s161
      %s164 = sphi 0, %s163
      %s178 = sphi 0, %s164
      %s182 = sphi 0, %s182
      %s184 = sphi 0, %s182
      %s185 = sphi 0, %s184
      %s199 = sphi 0, %s185
      %s203 = sphi 0, %s203
      %s205 = sphi 0, %s203
      %s206 = sphi 0, %s205
      %s220 = sphi 0, %s206
      %s224 = sphi 0, %s224
      %s226 = sphi 0, %s224
      %s227 = sphi 0, %s226
      %s241 = sphi 0, %s227
      %s245 = sphi 0, %s245
      %s247 = sphi 0, %s245
      %s248 = sphi 0, %s247
      %s262 = sphi 0, %s248
      %s270 = sphi 0, %s272
      %s273 = sphi 0, %s270
      %s274 = sphi 0, %s273
      %s290 = sphi 0, %s274
      %s298 = sphi 0, %s300
      %s301 = sphi 0, %s298
      %s302 = sphi 0, %s301
      %s318 = sphi 0, %s302
      %s326 = sphi 0, %s328
      %s329 = sphi 0, %s326
      %s330 = sphi 0, %s329
      %s346 = sphi 0, %s330
    $region4: #{madl_forward.3} parent=1 // loop_header_branch
      %27 = sbr.rel (%p25) target = $region8
    $region5: #{madl_forward.3} parent=1 // loop_body
      %s29 = ssub.s32 %s24, 1
      %s30 = ssub.s32 %s24, 2
      %s37 = sadd.s32 1, %s32
      %p38 = scmp.ge.s32.totalorder %s37, 1
      %s39 = scalar_select %p38, 0, %s37
      %s40 = sadd.s32 1, %s31
      %s41 = scalar_select %p38, %s40, %s31
      %p42 = scmp.ge.s32.totalorder %s41, 2
      %s43 = scalar_select %p42, 0, %s41
      %s44 = ssub.s32 %s31, %s43
      %s45 = ssub.s32 %s32, %s39
      %s46 = sor.u32 %s44, %s45
      %p47 = scmp.eq.s32.totalorder %s46, 0
      %s49 = sadd.s32 %s48, 1
      %s50 = scalar_select %p47, %s48, %s49
      %p53 = pneg %p47
      %p54 = scmp.eq.s32.totalorder %s24, 1
      %p55 = por %p53, %p54
      %p56 = scmp.ne.s32.totalorder %s48, %s51
      %p57 = scmp.eq.s32.totalorder %s24, 0
      %p58 = por %p56, %p57
      %p59 = scmp.ne.s32.totalorder %s48, %s51
      %p60 = scmp.eq.s32.totalorder %s29, 1
      %p61 = por %p59, %p60
      %p62 = scmp.ne.s32.totalorder %s51, %s52
      %p63 = scmp.eq.s32.totalorder %s29, 0
      %p64 = por %p62, %p63
      %p65 = scmp.ne.s32.totalorder %s51, %s52
      %p66 = scmp.eq.s32.totalorder %s30, 1
      %p67 = por %p65, %p66
      %p69 = scmp.ne.s32.totalorder %s52, %s68
      %p70 = scmp.eq.s32.totalorder %s30, 0
      %p71 = por %p69, %p70
      %s73 = sadd.s32 %s72, 1
      %p76 = scmp.eq.s32.totalorder %s24, 1
      %p77 = scmp.ne.s32.totalorder %s72, %s74
      %p78 = scmp.eq.s32.totalorder %s24, 0
      %p79 = por %p77, %p78
      %p80 = scmp.ne.s32.totalorder %s72, %s74
      %p81 = scmp.eq.s32.totalorder %s29, 1
      %p82 = por %p80, %p81
      %p83 = scmp.ne.s32.totalorder %s74, %s75
      %p84 = scmp.eq.s32.totalorder %s29, 0
      %p85 = por %p83, %p84
      %p86 = scmp.ne.s32.totalorder %s74, %s75
      %p87 = scmp.eq.s32.totalorder %s30, 1
      %p88 = por %p86, %p87
      %p90 = scmp.ne.s32.totalorder %s75, %s89
      %p91 = scmp.eq.s32.totalorder %s30, 0
      %p92 = por %p90, %p91
      %s94 = sadd.s32 %s93, 1
      %p97 = scmp.eq.s32.totalorder %s24, 1
      %p98 = scmp.ne.s32.totalorder %s93, %s95
      %p99 = scmp.eq.s32.totalorder %s24, 0
      %p100 = por %p98, %p99
      %p101 = scmp.ne.s32.totalorder %s93, %s95
      %p102 = scmp.eq.s32.totalorder %s29, 1
      %p103 = por %p101, %p102
      %p104 = scmp.ne.s32.totalorder %s95, %s96
      %p105 = scmp.eq.s32.totalorder %s29, 0
      %p106 = por %p104, %p105
      %p107 = scmp.ne.s32.totalorder %s95, %s96
      %p108 = scmp.eq.s32.totalorder %s30, 1
      %p109 = por %p107, %p108
      %p111 = scmp.ne.s32.totalorder %s96, %s110
      %p112 = scmp.eq.s32.totalorder %s30, 0
      %p113 = por %p111, %p112
      %s114 = ssub.s32 %s31, %s43
      %p115 = scmp.eq.s32.totalorder %s114, 0
      %s117 = sadd.s32 %s116, 1
      %s118 = scalar_select %p115, %s116, %s117
      %p121 = pneg %p115
      %p122 = scmp.eq.s32.totalorder %s24, 1
      %p123 = por %p121, %p122
      %p124 = scmp.ne.s32.totalorder %s116, %s119
      %p125 = scmp.eq.s32.totalorder %s24, 0
      %p126 = por %p124, %p125
      %p127 = scmp.ne.s32.totalorder %s116, %s119
      %p128 = scmp.eq.s32.totalorder %s29, 1
      %p129 = por %p127, %p128
      %p130 = scmp.ne.s32.totalorder %s119, %s120
      %p131 = scmp.eq.s32.totalorder %s29, 0
      %p132 = por %p130, %p131
      %p133 = scmp.ne.s32.totalorder %s119, %s120
      %p134 = scmp.eq.s32.totalorder %s30, 1
      %p135 = por %p133, %p134
      %p137 = scmp.ne.s32.totalorder %s120, %s136
      %p138 = scmp.eq.s32.totalorder %s30, 0
      %p139 = por %p137, %p138
      %s141 = sadd.s32 %s140, 1
      %p144 = scmp.eq.s32.totalorder %s24, 1
      %p145 = scmp.ne.s32.totalorder %s140, %s142
      %p146 = scmp.eq.s32.totalorder %s24, 0
      %p147 = por %p145, %p146
      %p148 = scmp.ne.s32.totalorder %s140, %s142
      %p149 = scmp.eq.s32.totalorder %s29, 1
      %p150 = por %p148, %p149
      %p151 = scmp.ne.s32.totalorder %s142, %s143
      %p152 = scmp.eq.s32.totalorder %s29, 0
      %p153 = por %p151, %p152
      %p154 = scmp.ne.s32.totalorder %s142, %s143
      %p155 = scmp.eq.s32.totalorder %s30, 1
      %p156 = por %p154, %p155
      %p158 = scmp.ne.s32.totalorder %s143, %s157
      %p159 = scmp.eq.s32.totalorder %s30, 0
      %p160 = por %p158, %p159
      %s162 = sadd.s32 %s161, 1
      %p165 = scmp.eq.s32.totalorder %s24, 1
      %p166 = scmp.ne.s32.totalorder %s161, %s163
      %p167 = scmp.eq.s32.totalorder %s24, 0
      %p168 = por %p166, %p167
      %p169 = scmp.ne.s32.totalorder %s161, %s163
      %p170 = scmp.eq.s32.totalorder %s29, 1
      %p171 = por %p169, %p170
      %p172 = scmp.ne.s32.totalorder %s163, %s164
      %p173 = scmp.eq.s32.totalorder %s29, 0
      %p174 = por %p172, %p173
      %p175 = scmp.ne.s32.totalorder %s163, %s164
      %p176 = scmp.eq.s32.totalorder %s30, 1
      %p177 = por %p175, %p176
      %p179 = scmp.ne.s32.totalorder %s164, %s178
      %p180 = scmp.eq.s32.totalorder %s30, 0
      %p181 = por %p179, %p180
      %s183 = sadd.s32 %s182, 1
      %p186 = scmp.eq.s32.totalorder %s24, 1
      %p187 = scmp.ne.s32.totalorder %s182, %s184
      %p188 = scmp.eq.s32.totalorder %s24, 0
      %p189 = por %p187, %p188
      %p190 = scmp.ne.s32.totalorder %s182, %s184
      %p191 = scmp.eq.s32.totalorder %s29, 1
      %p192 = por %p190, %p191
      %p193 = scmp.ne.s32.totalorder %s184, %s185
      %p194 = scmp.eq.s32.totalorder %s29, 0
      %p195 = por %p193, %p194
      %p196 = scmp.ne.s32.totalorder %s184, %s185
      %p197 = scmp.eq.s32.totalorder %s30, 1
      %p198 = por %p196, %p197
      %p200 = scmp.ne.s32.totalorder %s185, %s199
      %p201 = scmp.eq.s32.totalorder %s30, 0
      %p202 = por %p200, %p201
      %s204 = sadd.s32 %s203, 1
      %p207 = scmp.eq.s32.totalorder %s24, 1
      %p208 = scmp.ne.s32.totalorder %s203, %s205
      %p209 = scmp.eq.s32.totalorder %s24, 0
      %p210 = por %p208, %p209
      %p211 = scmp.ne.s32.totalorder %s203, %s205
      %p212 = scmp.eq.s32.totalorder %s29, 1
      %p213 = por %p211, %p212
      %p214 = scmp.ne.s32.totalorder %s205, %s206
      %p215 = scmp.eq.s32.totalorder %s29, 0
      %p216 = por %p214, %p215
      %p217 = scmp.ne.s32.totalorder %s205, %s206
      %p218 = scmp.eq.s32.totalorder %s30, 1
      %p219 = por %p217, %p218
      %p221 = scmp.ne.s32.totalorder %s206, %s220
      %p222 = scmp.eq.s32.totalorder %s30, 0
      %p223 = por %p221, %p222
      %s225 = sadd.s32 %s224, 1
      %p228 = scmp.eq.s32.totalorder %s24, 1
      %p229 = scmp.ne.s32.totalorder %s224, %s226
      %p230 = scmp.eq.s32.totalorder %s24, 0
      %p231 = por %p229, %p230
      %p232 = scmp.ne.s32.totalorder %s224, %s226
      %p233 = scmp.eq.s32.totalorder %s29, 1
      %p234 = por %p232, %p233
      %p235 = scmp.ne.s32.totalorder %s226, %s227
      %p236 = scmp.eq.s32.totalorder %s29, 0
      %p237 = por %p235, %p236
      %p238 = scmp.ne.s32.totalorder %s226, %s227
      %p239 = scmp.eq.s32.totalorder %s30, 1
      %p240 = por %p238, %p239
      %p242 = scmp.ne.s32.totalorder %s227, %s241
      %p243 = scmp.eq.s32.totalorder %s30, 0
      %p244 = por %p242, %p243
      %s246 = sadd.s32 %s245, 1
      %p249 = scmp.eq.s32.totalorder %s24, 1
      %p250 = scmp.ne.s32.totalorder %s245, %s247
      %p251 = scmp.eq.s32.totalorder %s24, 0
      %p252 = por %p250, %p251
      %p253 = scmp.ne.s32.totalorder %s245, %s247
      %p254 = scmp.eq.s32.totalorder %s29, 1
      %p255 = por %p253, %p254
      %p256 = scmp.ne.s32.totalorder %s247, %s248
      %p257 = scmp.eq.s32.totalorder %s29, 0
      %p258 = por %p256, %p257
      %p259 = scmp.ne.s32.totalorder %s247, %s248
      %p260 = scmp.eq.s32.totalorder %s30, 1
      %p261 = por %p259, %p260
      %p263 = scmp.ne.s32.totalorder %s248, %s262
      %p264 = scmp.eq.s32.totalorder %s30, 0
      %p265 = por %p263, %p264
      %s266 = ssub.s32 %s31, %s43
      %s267 = ssub.s32 %s32, %s39
      %s268 = sor.u32 %s266, %s267
      %p269 = scmp.eq.s32.totalorder %s268, 0
      %s271 = sadd.s32 %s270, 1
      %s272 = scalar_select %p269, %s270, %s271
      %p275 = pneg %p269
      %p276 = scmp.eq.s32.totalorder %s24, 1
      %p277 = por %p275, %p276
      %p278 = scmp.ne.s32.totalorder %s270, %s273
      %p279 = scmp.eq.s32.totalorder %s24, 0
      %p280 = por %p278, %p279
      %p281 = scmp.ne.s32.totalorder %s270, %s273
      %p282 = scmp.eq.s32.totalorder %s29, 1
      %p283 = por %p281, %p282
      %p284 = scmp.ne.s32.totalorder %s273, %s274
      %p285 = scmp.eq.s32.totalorder %s29, 0
      %p286 = por %p284, %p285
      %p287 = scmp.ne.s32.totalorder %s273, %s274
      %p288 = scmp.eq.s32.totalorder %s30, 1
      %p289 = por %p287, %p288
      %p291 = scmp.ne.s32.totalorder %s274, %s290
      %p292 = scmp.eq.s32.totalorder %s30, 0
      %p293 = por %p291, %p292
      %s294 = ssub.s32 %s31, %s43
      %s295 = ssub.s32 %s32, %s39
      %s296 = sor.u32 %s294, %s295
      %p297 = scmp.eq.s32.totalorder %s296, 0
      %s299 = sadd.s32 %s298, 1
      %s300 = scalar_select %p297, %s298, %s299
      %p303 = pneg %p297
      %p304 = scmp.eq.s32.totalorder %s24, 1
      %p305 = por %p303, %p304
      %p306 = scmp.ne.s32.totalorder %s298, %s301
      %p307 = scmp.eq.s32.totalorder %s24, 0
      %p308 = por %p306, %p307
      %p309 = scmp.ne.s32.totalorder %s298, %s301
      %p310 = scmp.eq.s32.totalorder %s29, 1
      %p311 = por %p309, %p310
      %p312 = scmp.ne.s32.totalorder %s301, %s302
      %p313 = scmp.eq.s32.totalorder %s29, 0
      %p314 = por %p312, %p313
      %p315 = scmp.ne.s32.totalorder %s301, %s302
      %p316 = scmp.eq.s32.totalorder %s30, 1
      %p317 = por %p315, %p316
      %p319 = scmp.ne.s32.totalorder %s302, %s318
      %p320 = scmp.eq.s32.totalorder %s30, 0
      %p321 = por %p319, %p320
      %s322 = ssub.s32 %s31, %s43
      %s323 = ssub.s32 %s32, %s39
      %s324 = sor.u32 %s322, %s323
      %p325 = scmp.eq.s32.totalorder %s324, 0
      %s327 = sadd.s32 %s326, 1
      %s328 = scalar_select %p325, %s326, %s327
      %p331 = pneg %p325
      %p332 = scmp.eq.s32.totalorder %s24, 1
      %p333 = por %p331, %p332
      %p334 = scmp.ne.s32.totalorder %s326, %s329
      %p335 = scmp.eq.s32.totalorder %s24, 0
      %p336 = por %p334, %p335
      %p337 = scmp.ne.s32.totalorder %s326, %s329
      %p338 = scmp.eq.s32.totalorder %s29, 1
      %p339 = por %p337, %p338
      %p340 = scmp.ne.s32.totalorder %s329, %s330
      %p341 = scmp.eq.s32.totalorder %s29, 0
      %p342 = por %p340, %p341
      %p343 = scmp.ne.s32.totalorder %s329, %s330
      %p344 = scmp.eq.s32.totalorder %s30, 1
      %p345 = por %p343, %p344
      %p347 = scmp.ne.s32.totalorder %s330, %s346
      %p348 = scmp.eq.s32.totalorder %s30, 0
      %p349 = por %p347, %p348
      %p350 = scmp.le.s32.totalorder 1, %s24
      %p351 = scmp.lt.s32.totalorder %s24, 3
      %p352 = pnand %p350, %p351
      %p353 = pneg %p352
      // Predicated region
      $region9: #{madl_forward.3} parent=5 // pred_check
        _
      $region10: #{madl_forward.3} parent=5 // pred_check_branch
        %355 = sbr.rel (%p352) target = $region12
      $region11: #{madl_forward.3} parent=5 // pred_region
        %s356 = ssub.s32 %s24, 1
        // Predicated region
        $region13: #{madl_forward.3} parent=11 // pred_check
          %p357 = pneg %p85
        $region14: #{madl_forward.3} parent=11 // pred_check_branch
          %359 = sbr.rel (%p357) target = $region16
        $region15: #{madl_forward.3} parent=11 // pred_region
          _
        $region16: #{madl_forward.3} parent=11 // pred_fallthru
          _
        // Predicated region
        $region17: #{madl_forward.3} parent=11 // pred_check
          %p360 = pneg %p106
        $region18: #{madl_forward.3} parent=11 // pred_check_branch
          %362 = sbr.rel (%p360) target = $region20
        $region19: #{madl_forward.3} parent=11 // pred_region
          _
        $region20: #{madl_forward.3} parent=11 // pred_fallthru
          _
        // Predicated region
        $region21: #{madl_forward.3} parent=11 // pred_check
          %p363 = pneg %p153
        $region22: #{madl_forward.3} parent=11 // pred_check_branch
          %365 = sbr.rel (%p363) target = $region24
        $region23: #{madl_forward.3} parent=11 // pred_region
          _
        $region24: #{madl_forward.3} parent=11 // pred_fallthru
          _
        // Predicated region
        $region25: #{madl_forward.3} parent=11 // pred_check
          %p366 = pneg %p174
        $region26: #{madl_forward.3} parent=11 // pred_check_branch
          %368 = sbr.rel (%p366) target = $region28
        $region27: #{madl_forward.3} parent=11 // pred_region
          _
        $region28: #{madl_forward.3} parent=11 // pred_fallthru
          _
        // Predicated region
        $region29: #{madl_forward.3} parent=11 // pred_check
          %p369 = pneg %p195
        $region30: #{madl_forward.3} parent=11 // pred_check_branch
          %371 = sbr.rel (%p369) target = $region32
        $region31: #{madl_forward.3} parent=11 // pred_region
          _
        $region32: #{madl_forward.3} parent=11 // pred_fallthru
          _
        // Predicated region
        $region33: #{madl_forward.3} parent=11 // pred_check
          %p372 = pneg %p216
        $region34: #{madl_forward.3} parent=11 // pred_check_branch
          %374 = sbr.rel (%p372) target = $region36
        $region35: #{madl_forward.3} parent=11 // pred_region
          _
        $region36: #{madl_forward.3} parent=11 // pred_fallthru
          _
        // Predicated region
        $region37: #{madl_forward.3} parent=11 // pred_check
          %p375 = pneg %p237
        $region38: #{madl_forward.3} parent=11 // pred_check_branch
          %377 = sbr.rel (%p375) target = $region40
        $region39: #{madl_forward.3} parent=11 // pred_region
          _
        $region40: #{madl_forward.3} parent=11 // pred_fallthru
          _
        // Predicated region
        $region41: #{madl_forward.3} parent=11 // pred_check
          %p378 = pneg %p258
        $region42: #{madl_forward.3} parent=11 // pred_check_branch
          %380 = sbr.rel (%p378) target = $region44
        $region43: #{madl_forward.3} parent=11 // pred_region
          _
        $region44: #{madl_forward.3} parent=11 // pred_fallthru
          _
      $region12: #{madl_forward.3} parent=5 // pred_fallthru
        _
      %p381 = scmp.lt.s32.totalorder %s24, 2
      // Predicated region
      $region45: #{madl_forward.3} parent=5 // pred_check
        %p382 = pneg %p381
      $region46: #{madl_forward.3} parent=5 // pred_check_branch
        %384 = sbr.rel (%p382) target = $region48
      $region47: #{madl_forward.3} parent=5 // pred_region
        // Predicated region
        $region49: #{madl_forward.3} parent=47 // pred_check
          %p385 = pneg %p58
        $region50: #{madl_forward.3} parent=47 // pred_check_branch
          %387 = sbr.rel (%p385) target = $region52
        $region51: #{madl_forward.3} parent=47 // pred_region
          %s388 = smul.u32 256, %s32
          %p389 = scmp.lt.s32.totalorder %s31, 1
          %s390 = scalar_select %p389, %s31, 1
          %p391 = scmp.lt.s32.totalorder %s388, 255
          %s392 = scalar_select %p391, %s388, 255
          %s393 = smul.addr %s390, 256
          %s394 = sadd.s32 %s392, %s393
          %s395 = smul.addr %s394, 8
          %s396 = scalar_lea.vmem %s0, %s395
          %s397 = smul.u32 256, %s32
        $region52: #{madl_forward.3} parent=47 // pred_fallthru
          _
        // Predicated region
        $region53: #{madl_forward.3} parent=47 // pred_check
          %p398 = pneg %p126
        $region54: #{madl_forward.3} parent=47 // pred_check_branch
          %400 = sbr.rel (%p398) target = $region56
        $region55: #{madl_forward.3} parent=47 // pred_region
          %p401 = scmp.lt.s32.totalorder %s31, 1
          %s402 = scalar_select %p401, %s31, 1
          %s403 = scalar_lea.vmem %s3, %s402
        $region56: #{madl_forward.3} parent=47 // pred_fallthru
          _
      $region48: #{madl_forward.3} parent=5 // pred_fallthru
        _
      %p404 = scmp.le.s32.totalorder 1, %s24
      %p405 = scmp.lt.s32.totalorder %s24, 3
      %p406 = pnand %p404, %p405
      %p407 = pneg %p406
      // Predicated region
      $region57: #{madl_forward.3} parent=5 // pred_check
        _
      $region58: #{madl_forward.3} parent=5 // pred_check_branch
        %409 = sbr.rel (%p406) target = $region60
      $region59: #{madl_forward.3} parent=5 // pred_region
        %s410 = ssub.s32 %s24, 1
        %s411 = smul.u32 256, %s34
        %p412 = scmp.lt.s32.totalorder %s33, 1
        %s413 = scalar_select %p412, %s33, 1
        %p414 = scmp.lt.s32.totalorder %s411, 255
        %s415 = scalar_select %p414, %s411, 255
        %s416 = smul.addr %s413, 256
        %s417 = sadd.s32 %s415, %s416
        %s418 = smul.addr %s417, 8
        %s419 = scalar_lea.vmem %s0, %s418
        %p420 = pneg %p64
        %p421 = pneg %p61
        %p422 = pneg %p85
        %p423 = pneg %p82
        %p424 = pneg %p106
        %p425 = pneg %p103
        %p426 = scmp.lt.s32.totalorder %s33, 1
        %s427 = scalar_select %p426, %s33, 1
        %s428 = scalar_lea.vmem %s3, %s427
        %p429 = pneg %p132
        %p430 = pneg %p129
        %p431 = pneg %p153
        %p432 = pneg %p150
        %p433 = pneg %p174
        %p434 = pneg %p171
        %p435 = pneg %p195
        %p436 = pneg %p192
        %p437 = pneg %p216
        %p438 = pneg %p213
        %p439 = pneg %p237
        %p440 = pneg %p234
        %p441 = pneg %p258
        %p442 = pneg %p255
        %p443 = pneg %p286
        %p444 = pneg %p283
        %s445 = sand.u32 %s273, 1
        %s446 = scalar_lea.sflag [#allocation4], %s445
        %s447 = sand.u32 %s273, 1
        %s448 = smul.addr %s447, 2048
        %s449 = scalar_lea.vmem [#allocation3], %s448
        %p450 = pneg %p314
        %p451 = pneg %p311
        %s452 = smul.u32 256, %s34
        %p453 = scmp.lt.s32.totalorder %s33, 1
        %s454 = scalar_select %p453, %s33, 1
        %p455 = scmp.lt.s32.totalorder %s452, 255
        %s456 = scalar_select %p455, %s452, 255
        %s457 = smul.addr %s454, 256
        %s458 = sadd.s32 %s456, %s457
        %s459 = smul.addr %s458, 8
        %s460 = scalar_lea.vmem %s11, %s459
        %p461 = pneg %p342
        %p462 = pneg %p339
        %s463 = smul.u32 256, %s34
        %p464 = scmp.lt.s32.totalorder %s33, 1
        %s465 = scalar_select %p464, %s33, 1
        %p466 = scmp.lt.s32.totalorder %s463, 255
        %s467 = scalar_select %p466, %s463, 255
        %s468 = smul.addr %s465, 256
        %s469 = sadd.s32 %s467, %s468
        %s470 = smul.addr %s469, 8
        %s471 = scalar_lea.vmem %s12, %s470
        %s472 = smul.u32 256, %s34
        %p473 = scmp.lt.s32.totalorder %s33, 1
        %s474 = scalar_select %p473, %s33, 1
        %p475 = scmp.lt.s32.totalorder %s472, 255
        %s476 = scalar_select %p475, %s472, 255
        %s477 = smul.addr %s474, 256
        %s478 = sadd.s32 %s476, %s477
        %s479 = smul.addr %s478, 8
        %s480 = scalar_lea.vmem %s0, %s479
        %s481 = smul.u32 256, %s34
        %p482 = scmp.lt.s32.totalorder %s33, 1
        %s483 = scalar_select %p482, %s33, 1
        %s484 = scalar_lea.vmem %s3, %s483
        %s485 = smul.u32 256, %s34
        %s486 = smul.u32 256, %s34
        %p487 = scmp.lt.s32.totalorder %s33, 1
        %s488 = scalar_select %p487, %s33, 1
        %p489 = scmp.lt.s32.totalorder %s486, 255
        %s490 = scalar_select %p489, %s486, 255
        %s491 = smul.addr %s488, 256
        %s492 = sadd.s32 %s490, %s491
        %s493 = smul.addr %s492, 8
        %s494 = scalar_lea.vmem %s11, %s493
        %s495 = smul.u32 256, %s34
        %s496 = smul.u32 256, %s34
        %p497 = scmp.lt.s32.totalorder %s33, 1
        %s498 = scalar_select %p497, %s33, 1
        %p499 = scmp.lt.s32.totalorder %s496, 255
        %s500 = scalar_select %p499, %s496, 255
        %s501 = smul.addr %s498, 256
        %s502 = sadd.s32 %s500, %s501
        %s503 = smul.addr %s502, 8
        %s504 = scalar_lea.vmem %s12, %s503
        %s505 = smul.u32 256, %s34
        %v506 = vld [vmem:[%s480] sm:$0xff]
        %v507 = vld [vmem:[%s480 + $0x8] sm:$0xff]
        %v508 = vld [vmem:[%s480 + $0x10] sm:$0xff]
        %v509 = vld [vmem:[%s480 + $0x18] sm:$0xff]
        %v510 = vld [vmem:[%s480 + $0x20] sm:$0xff]
        %v511 = vld [vmem:[%s480 + $0x28] sm:$0xff]
        %v512 = vld [vmem:[%s480 + $0x30] sm:$0xff]
        %v513 = vld [vmem:[%s480 + $0x38] sm:$0xff]
        %v514 = vld [vmem:[%s480 + $0x40] sm:$0xff]
        %v515 = vld [vmem:[%s480 + $0x48] sm:$0xff]
        %v516 = vld [vmem:[%s480 + $0x50] sm:$0xff]
        %v517 = vld [vmem:[%s480 + $0x58] sm:$0xff]
        %v518 = vld [vmem:[%s480 + $0x60] sm:$0xff]
        %v519 = vld [vmem:[%s480 + $0x68] sm:$0xff]
        %v520 = vld [vmem:[%s480 + $0x70] sm:$0xff]
        %v521 = vld [vmem:[%s480 + $0x78] sm:$0xff]
        %v522 = vld [vmem:[%s480 + $0x80] sm:$0xff]
        %v523 = vld [vmem:[%s480 + $0x88] sm:$0xff]
        %v524 = vld [vmem:[%s480 + $0x90] sm:$0xff]
        %v525 = vld [vmem:[%s480 + $0x98] sm:$0xff]
        %v526 = vld [vmem:[%s480 + $0xa0] sm:$0xff]
        %v527 = vld [vmem:[%s480 + $0xa8] sm:$0xff]
        %v528 = vld [vmem:[%s480 + $0xb0] sm:$0xff]
        %v529 = vld [vmem:[%s480 + $0xb8] sm:$0xff]
        %v530 = vld [vmem:[%s480 + $0xc0] sm:$0xff]
        %v531 = vld [vmem:[%s480 + $0xc8] sm:$0xff]
        %v532 = vld [vmem:[%s480 + $0xd0] sm:$0xff]
        %v533 = vld [vmem:[%s480 + $0xd8] sm:$0xff]
        %v534 = vld [vmem:[%s480 + $0xe0] sm:$0xff]
        %v535 = vld [vmem:[%s480 + $0xe8] sm:$0xff]
        %v536 = vld [vmem:[%s480 + $0xf0] sm:$0xff]
        %v537 = vld [vmem:[%s480 + $0xf8] sm:$0xff]
        %v538 = vld [vmem:[%s480 + $0x100] sm:$0xff]
        %v539 = vld [vmem:[%s480 + $0x108] sm:$0xff]
        %v540 = vld [vmem:[%s480 + $0x110] sm:$0xff]
        %v541 = vld [vmem:[%s480 + $0x118] sm:$0xff]
        %v542 = vld [vmem:[%s480 + $0x120] sm:$0xff]
        %v543 = vld [vmem:[%s480 + $0x128] sm:$0xff]
        %v544 = vld [vmem:[%s480 + $0x130] sm:$0xff]
        %v545 = vld [vmem:[%s480 + $0x138] sm:$0xff]
        %v546 = vld [vmem:[%s480 + $0x140] sm:$0xff]
        %v547 = vld [vmem:[%s480 + $0x148] sm:$0xff]
        %v548 = vld [vmem:[%s480 + $0x150] sm:$0xff]
        %v549 = vld [vmem:[%s480 + $0x158] sm:$0xff]
        %v550 = vld [vmem:[%s480 + $0x160] sm:$0xff]
        %v551 = vld [vmem:[%s480 + $0x168] sm:$0xff]
        %v552 = vld [vmem:[%s480 + $0x170] sm:$0xff]
        %v553 = vld [vmem:[%s480 + $0x178] sm:$0xff]
        %v554 = vld [vmem:[%s480 + $0x180] sm:$0xff]
        %v555 = vld [vmem:[%s480 + $0x188] sm:$0xff]
        %v556 = vld [vmem:[%s480 + $0x190] sm:$0xff]
        %v557 = vld [vmem:[%s480 + $0x198] sm:$0xff]
        %v558 = vld [vmem:[%s480 + $0x1a0] sm:$0xff]
        %v559 = vld [vmem:[%s480 + $0x1a8] sm:$0xff]
        %v560 = vld [vmem:[%s480 + $0x1b0] sm:$0xff]
        %v561 = vld [vmem:[%s480 + $0x1b8] sm:$0xff]
        %v562 = vld [vmem:[%s480 + $0x1c0] sm:$0xff]
        %v563 = vld [vmem:[%s480 + $0x1c8] sm:$0xff]
        %v564 = vld [vmem:[%s480 + $0x1d0] sm:$0xff]
        %v565 = vld [vmem:[%s480 + $0x1d8] sm:$0xff]
        %v566 = vld [vmem:[%s480 + $0x1e0] sm:$0xff]
        %v567 = vld [vmem:[%s480 + $0x1e8] sm:$0xff]
        %v568 = vld [vmem:[%s480 + $0x1f0] sm:$0xff]
        %v569 = vld [vmem:[%s480 + $0x1f8] sm:$0xff]
        %v570 = vld [vmem:[%s480 + $0x200] sm:$0xff]
        %v571 = vld [vmem:[%s480 + $0x208] sm:$0xff]
        %v572 = vld [vmem:[%s480 + $0x210] sm:$0xff]
        %v573 = vld [vmem:[%s480 + $0x218] sm:$0xff]
        %v574 = vld [vmem:[%s480 + $0x220] sm:$0xff]
        %v575 = vld [vmem:[%s480 + $0x228] sm:$0xff]
        %v576 = vld [vmem:[%s480 + $0x230] sm:$0xff]
        %v577 = vld [vmem:[%s480 + $0x238] sm:$0xff]
        %v578 = vld [vmem:[%s480 + $0x240] sm:$0xff]
        %v579 = vld [vmem:[%s480 + $0x248] sm:$0xff]
        %v580 = vld [vmem:[%s480 + $0x250] sm:$0xff]
        %v581 = vld [vmem:[%s480 + $0x258] sm:$0xff]
        %v582 = vld [vmem:[%s480 + $0x260] sm:$0xff]
        %v583 = vld [vmem:[%s480 + $0x268] sm:$0xff]
        %v584 = vld [vmem:[%s480 + $0x270] sm:$0xff]
        %v585 = vld [vmem:[%s480 + $0x278] sm:$0xff]
        %v586 = vld [vmem:[%s480 + $0x280] sm:$0xff]
        %v587 = vld [vmem:[%s480 + $0x288] sm:$0xff]
        %v588 = vld [vmem:[%s480 + $0x290] sm:$0xff]
        %v589 = vld [vmem:[%s480 + $0x298] sm:$0xff]
        %v590 = vld [vmem:[%s480 + $0x2a0] sm:$0xff]
        %v591 = vld [vmem:[%s480 + $0x2a8] sm:$0xff]
        %v592 = vld [vmem:[%s480 + $0x2b0] sm:$0xff]
        %v593 = vld [vmem:[%s480 + $0x2b8] sm:$0xff]
        %v594 = vld [vmem:[%s480 + $0x2c0] sm:$0xff]
        %v595 = vld [vmem:[%s480 + $0x2c8] sm:$0xff]
        %v596 = vld [vmem:[%s480 + $0x2d0] sm:$0xff]
        %v597 = vld [vmem:[%s480 + $0x2d8] sm:$0xff]
        %v598 = vld [vmem:[%s480 + $0x2e0] sm:$0xff]
        %v599 = vld [vmem:[%s480 + $0x2e8] sm:$0xff]
        %v600 = vld [vmem:[%s480 + $0x2f0] sm:$0xff]
        %v601 = vld [vmem:[%s480 + $0x2f8] sm:$0xff]
        %v602 = vld [vmem:[%s480 + $0x300] sm:$0xff]
        %v603 = vld [vmem:[%s480 + $0x308] sm:$0xff]
        %v604 = vld [vmem:[%s480 + $0x310] sm:$0xff]
        %v605 = vld [vmem:[%s480 + $0x318] sm:$0xff]
        %v606 = vld [vmem:[%s480 + $0x320] sm:$0xff]
        %v607 = vld [vmem:[%s480 + $0x328] sm:$0xff]
        %v608 = vld [vmem:[%s480 + $0x330] sm:$0xff]
        %v609 = vld [vmem:[%s480 + $0x338] sm:$0xff]
        %v610 = vld [vmem:[%s480 + $0x340] sm:$0xff]
        %v611 = vld [vmem:[%s480 + $0x348] sm:$0xff]
        %v612 = vld [vmem:[%s480 + $0x350] sm:$0xff]
        %v613 = vld [vmem:[%s480 + $0x358] sm:$0xff]
        %v614 = vld [vmem:[%s480 + $0x360] sm:$0xff]
        %v615 = vld [vmem:[%s480 + $0x368] sm:$0xff]
        %v616 = vld [vmem:[%s480 + $0x370] sm:$0xff]
        %v617 = vld [vmem:[%s480 + $0x378] sm:$0xff]
        %v618 = vld [vmem:[%s480 + $0x380] sm:$0xff]
        %v619 = vld [vmem:[%s480 + $0x388] sm:$0xff]
        %v620 = vld [vmem:[%s480 + $0x390] sm:$0xff]
        %v621 = vld [vmem:[%s480 + $0x398] sm:$0xff]
        %v622 = vld [vmem:[%s480 + $0x3a0] sm:$0xff]
        %v623 = vld [vmem:[%s480 + $0x3a8] sm:$0xff]
        %v624 = vld [vmem:[%s480 + $0x3b0] sm:$0xff]
        %v625 = vld [vmem:[%s480 + $0x3b8] sm:$0xff]
        %v626 = vld [vmem:[%s480 + $0x3c0] sm:$0xff]
        %v627 = vld [vmem:[%s480 + $0x3c8] sm:$0xff]
        %v628 = vld [vmem:[%s480 + $0x3d0] sm:$0xff]
        %v629 = vld [vmem:[%s480 + $0x3d8] sm:$0xff]
        %v630 = vld [vmem:[%s480 + $0x3e0] sm:$0xff]
        %v631 = vld [vmem:[%s480 + $0x3e8] sm:$0xff]
        %v632 = vld [vmem:[%s480 + $0x3f0] sm:$0xff]
        %v633 = vld [vmem:[%s480 + $0x3f8] sm:$0xff]
        %v634 = vld [vmem:[%s480 + $0x400] sm:$0xff]
        %v635 = vld [vmem:[%s480 + $0x408] sm:$0xff]
        %v636 = vld [vmem:[%s480 + $0x410] sm:$0xff]
        %v637 = vld [vmem:[%s480 + $0x418] sm:$0xff]
        %v638 = vld [vmem:[%s480 + $0x420] sm:$0xff]
        %v639 = vld [vmem:[%s480 + $0x428] sm:$0xff]
        %v640 = vld [vmem:[%s480 + $0x430] sm:$0xff]
        %v641 = vld [vmem:[%s480 + $0x438] sm:$0xff]
        %v642 = vld [vmem:[%s480 + $0x440] sm:$0xff]
        %v643 = vld [vmem:[%s480 + $0x448] sm:$0xff]
        %v644 = vld [vmem:[%s480 + $0x450] sm:$0xff]
        %v645 = vld [vmem:[%s480 + $0x458] sm:$0xff]
        %v646 = vld [vmem:[%s480 + $0x460] sm:$0xff]
        %v647 = vld [vmem:[%s480 + $0x468] sm:$0xff]
        %v648 = vld [vmem:[%s480 + $0x470] sm:$0xff]
        %v649 = vld [vmem:[%s480 + $0x478] sm:$0xff]
        %v650 = vld [vmem:[%s480 + $0x480] sm:$0xff]
        %v651 = vld [vmem:[%s480 + $0x488] sm:$0xff]
        %v652 = vld [vmem:[%s480 + $0x490] sm:$0xff]
        %v653 = vld [vmem:[%s480 + $0x498] sm:$0xff]
        %v654 = vld [vmem:[%s480 + $0x4a0] sm:$0xff]
        %v655 = vld [vmem:[%s480 + $0x4a8] sm:$0xff]
        %v656 = vld [vmem:[%s480 + $0x4b0] sm:$0xff]
        %v657 = vld [vmem:[%s480 + $0x4b8] sm:$0xff]
        %v658 = vld [vmem:[%s480 + $0x4c0] sm:$0xff]
        %v659 = vld [vmem:[%s480 + $0x4c8] sm:$0xff]
        %v660 = vld [vmem:[%s480 + $0x4d0] sm:$0xff]
        %v661 = vld [vmem:[%s480 + $0x4d8] sm:$0xff]
        %v662 = vld [vmem:[%s480 + $0x4e0] sm:$0xff]
        %v663 = vld [vmem:[%s480 + $0x4e8] sm:$0xff]
        %v664 = vld [vmem:[%s480 + $0x4f0] sm:$0xff]
        %v665 = vld [vmem:[%s480 + $0x4f8] sm:$0xff]
        %v666 = vld [vmem:[%s480 + $0x500] sm:$0xff]
        %v667 = vld [vmem:[%s480 + $0x508] sm:$0xff]
        %v668 = vld [vmem:[%s480 + $0x510] sm:$0xff]
        %v669 = vld [vmem:[%s480 + $0x518] sm:$0xff]
        %v670 = vld [vmem:[%s480 + $0x520] sm:$0xff]
        %v671 = vld [vmem:[%s480 + $0x528] sm:$0xff]
        %v672 = vld [vmem:[%s480 + $0x530] sm:$0xff]
        %v673 = vld [vmem:[%s480 + $0x538] sm:$0xff]
        %v674 = vld [vmem:[%s480 + $0x540] sm:$0xff]
        %v675 = vld [vmem:[%s480 + $0x548] sm:$0xff]
        %v676 = vld [vmem:[%s480 + $0x550] sm:$0xff]
        %v677 = vld [vmem:[%s480 + $0x558] sm:$0xff]
        %v678 = vld [vmem:[%s480 + $0x560] sm:$0xff]
        %v679 = vld [vmem:[%s480 + $0x568] sm:$0xff]
        %v680 = vld [vmem:[%s480 + $0x570] sm:$0xff]
        %v681 = vld [vmem:[%s480 + $0x578] sm:$0xff]
        %v682 = vld [vmem:[%s480 + $0x580] sm:$0xff]
        %v683 = vld [vmem:[%s480 + $0x588] sm:$0xff]
        %v684 = vld [vmem:[%s480 + $0x590] sm:$0xff]
        %v685 = vld [vmem:[%s480 + $0x598] sm:$0xff]
        %v686 = vld [vmem:[%s480 + $0x5a0] sm:$0xff]
        %v687 = vld [vmem:[%s480 + $0x5a8] sm:$0xff]
        %v688 = vld [vmem:[%s480 + $0x5b0] sm:$0xff]
        %v689 = vld [vmem:[%s480 + $0x5b8] sm:$0xff]
        %v690 = vld [vmem:[%s480 + $0x5c0] sm:$0xff]
        %v691 = vld [vmem:[%s480 + $0x5c8] sm:$0xff]
        %v692 = vld [vmem:[%s480 + $0x5d0] sm:$0xff]
        %v693 = vld [vmem:[%s480 + $0x5d8] sm:$0xff]
        %v694 = vld [vmem:[%s480 + $0x5e0] sm:$0xff]
        %v695 = vld [vmem:[%s480 + $0x5e8] sm:$0xff]
        %v696 = vld [vmem:[%s480 + $0x5f0] sm:$0xff]
        %v697 = vld [vmem:[%s480 + $0x5f8] sm:$0xff]
        %v698 = vld [vmem:[%s480 + $0x600] sm:$0xff]
        %v699 = vld [vmem:[%s480 + $0x608] sm:$0xff]
        %v700 = vld [vmem:[%s480 + $0x610] sm:$0xff]
        %v701 = vld [vmem:[%s480 + $0x618] sm:$0xff]
        %v702 = vld [vmem:[%s480 + $0x620] sm:$0xff]
        %v703 = vld [vmem:[%s480 + $0x628] sm:$0xff]
        %v704 = vld [vmem:[%s480 + $0x630] sm:$0xff]
        %v705 = vld [vmem:[%s480 + $0x638] sm:$0xff]
        %v706 = vld [vmem:[%s480 + $0x640] sm:$0xff]
        %v707 = vld [vmem:[%s480 + $0x648] sm:$0xff]
        %v708 = vld [vmem:[%s480 + $0x650] sm:$0xff]
        %v709 = vld [vmem:[%s480 + $0x658] sm:$0xff]
        %v710 = vld [vmem:[%s480 + $0x660] sm:$0xff]
        %v711 = vld [vmem:[%s480 + $0x668] sm:$0xff]
        %v712 = vld [vmem:[%s480 + $0x670] sm:$0xff]
        %v713 = vld [vmem:[%s480 + $0x678] sm:$0xff]
        %v714 = vld [vmem:[%s480 + $0x680] sm:$0xff]
        %v715 = vld [vmem:[%s480 + $0x688] sm:$0xff]
        %v716 = vld [vmem:[%s480 + $0x690] sm:$0xff]
        %v717 = vld [vmem:[%s480 + $0x698] sm:$0xff]
        %v718 = vld [vmem:[%s480 + $0x6a0] sm:$0xff]
        %v719 = vld [vmem:[%s480 + $0x6a8] sm:$0xff]
        %v720 = vld [vmem:[%s480 + $0x6b0] sm:$0xff]
        %v721 = vld [vmem:[%s480 + $0x6b8] sm:$0xff]
        %v722 = vld [vmem:[%s480 + $0x6c0] sm:$0xff]
        %v723 = vld [vmem:[%s480 + $0x6c8] sm:$0xff]
        %v724 = vld [vmem:[%s480 + $0x6d0] sm:$0xff]
        %v725 = vld [vmem:[%s480 + $0x6d8] sm:$0xff]
        %v726 = vld [vmem:[%s480 + $0x6e0] sm:$0xff]
        %v727 = vld [vmem:[%s480 + $0x6e8] sm:$0xff]
        %v728 = vld [vmem:[%s480 + $0x6f0] sm:$0xff]
        %v729 = vld [vmem:[%s480 + $0x6f8] sm:$0xff]
        %v730 = vld [vmem:[%s480 + $0x700] sm:$0xff]
        %v731 = vld [vmem:[%s480 + $0x708] sm:$0xff]
        %v732 = vld [vmem:[%s480 + $0x710] sm:$0xff]
        %v733 = vld [vmem:[%s480 + $0x718] sm:$0xff]
        %v734 = vld [vmem:[%s480 + $0x720] sm:$0xff]
        %v735 = vld [vmem:[%s480 + $0x728] sm:$0xff]
        %v736 = vld [vmem:[%s480 + $0x730] sm:$0xff]
        %v737 = vld [vmem:[%s480 + $0x738] sm:$0xff]
        %v738 = vld [vmem:[%s480 + $0x740] sm:$0xff]
        %v739 = vld [vmem:[%s480 + $0x748] sm:$0xff]
        %v740 = vld [vmem:[%s480 + $0x750] sm:$0xff]
        %v741 = vld [vmem:[%s480 + $0x758] sm:$0xff]
        %v742 = vld [vmem:[%s480 + $0x760] sm:$0xff]
        %v743 = vld [vmem:[%s480 + $0x768] sm:$0xff]
        %v744 = vld [vmem:[%s480 + $0x770] sm:$0xff]
        %v745 = vld [vmem:[%s480 + $0x778] sm:$0xff]
        %v746 = vld [vmem:[%s480 + $0x780] sm:$0xff]
        %v747 = vld [vmem:[%s480 + $0x788] sm:$0xff]
        %v748 = vld [vmem:[%s480 + $0x790] sm:$0xff]
        %v749 = vld [vmem:[%s480 + $0x798] sm:$0xff]
        %v750 = vld [vmem:[%s480 + $0x7a0] sm:$0xff]
        %v751 = vld [vmem:[%s480 + $0x7a8] sm:$0xff]
        %v752 = vld [vmem:[%s480 + $0x7b0] sm:$0xff]
        %v753 = vld [vmem:[%s480 + $0x7b8] sm:$0xff]
        %v754 = vld [vmem:[%s480 + $0x7c0] sm:$0xff]
        %v755 = vld [vmem:[%s480 + $0x7c8] sm:$0xff]
        %v756 = vld [vmem:[%s480 + $0x7d0] sm:$0xff]
        %v757 = vld [vmem:[%s480 + $0x7d8] sm:$0xff]
        %v758 = vld [vmem:[%s480 + $0x7e0] sm:$0xff]
        %v759 = vld [vmem:[%s480 + $0x7e8] sm:$0xff]
        %v760 = vld [vmem:[%s480 + $0x7f0] sm:$0xff]
        %v761 = vld [vmem:[%s480 + $0x7f8] sm:$0xff]
        %v762 = vld [vmem:[%s1] sm:$0x1]
        %764 = vset.pattern.permute.xlu0 0
        %765 = vperm.xlu0 %764, %v506
        %v766 = vpop.permute.xlu0 %765
        %769 = vset.pattern.permute.xlu0 0
        %770 = vperm.xlu0 %769, %v507
        %v771 = vpop.permute.xlu0 %770
        %774 = vset.pattern.permute.xlu0 0
        %775 = vperm.xlu0 %774, %v508
        %v776 = vpop.permute.xlu0 %775
        %779 = vset.pattern.permute.xlu0 0
        %780 = vperm.xlu0 %779, %v509
        %v781 = vpop.permute.xlu0 %780
        %784 = vset.pattern.permute.xlu0 0
        %785 = vperm.xlu0 %784, %v510
        %v786 = vpop.permute.xlu0 %785
        %789 = vset.pattern.permute.xlu0 0
        %790 = vperm.xlu0 %789, %v511
        %v791 = vpop.permute.xlu0 %790
        %794 = vset.pattern.permute.xlu0 0
        %795 = vperm.xlu0 %794, %v512
        %v796 = vpop.permute.xlu0 %795
        %799 = vset.pattern.permute.xlu0 0
        %800 = vperm.xlu0 %799, %v513
        %v801 = vpop.permute.xlu0 %800
        %804 = vset.pattern.permute.xlu0 0
        %805 = vperm.xlu0 %804, %v514
        %v806 = vpop.permute.xlu0 %805
        %809 = vset.pattern.permute.xlu0 0
        %810 = vperm.xlu0 %809, %v515
        %v811 = vpop.permute.xlu0 %810
        %814 = vset.pattern.permute.xlu0 0
        %815 = vperm.xlu0 %814, %v516
        %v816 = vpop.permute.xlu0 %815
        %819 = vset.pattern.permute.xlu0 0
        %820 = vperm.xlu0 %819, %v517
        %v821 = vpop.permute.xlu0 %820
        %824 = vset.pattern.permute.xlu0 0
        %825 = vperm.xlu0 %824, %v518
        %v826 = vpop.permute.xlu0 %825
        %829 = vset.pattern.permute.xlu0 0
        %830 = vperm.xlu0 %829, %v519
        %v831 = vpop.permute.xlu0 %830
        %834 = vset.pattern.permute.xlu0 0
        %835 = vperm.xlu0 %834, %v520
        %v836 = vpop.permute.xlu0 %835
        %839 = vset.pattern.permute.xlu0 0
        %840 = vperm.xlu0 %839, %v521
        %v841 = vpop.permute.xlu0 %840
        %844 = vset.pattern.permute.xlu0 0
        %845 = vperm.xlu0 %844, %v522
        %v846 = vpop.permute.xlu0 %845
        %849 = vset.pattern.permute.xlu0 0
        %850 = vperm.xlu0 %849, %v523
        %v851 = vpop.permute.xlu0 %850
        %854 = vset.pattern.permute.xlu0 0
        %855 = vperm.xlu0 %854, %v524
        %v856 = vpop.permute.xlu0 %855
        %859 = vset.pattern.permute.xlu0 0
        %860 = vperm.xlu0 %859, %v525
        %v861 = vpop.permute.xlu0 %860
        %864 = vset.pattern.permute.xlu0 0
        %865 = vperm.xlu0 %864, %v526
        %v866 = vpop.permute.xlu0 %865
        %869 = vset.pattern.permute.xlu0 0
        %870 = vperm.xlu0 %869, %v527
        %v871 = vpop.permute.xlu0 %870
        %874 = vset.pattern.permute.xlu0 0
        %875 = vperm.xlu0 %874, %v528
        %v876 = vpop.permute.xlu0 %875
        %879 = vset.pattern.permute.xlu0 0
        %880 = vperm.xlu0 %879, %v529
        %v881 = vpop.permute.xlu0 %880
        %884 = vset.pattern.permute.xlu0 0
        %885 = vperm.xlu0 %884, %v530
        %v886 = vpop.permute.xlu0 %885
        %889 = vset.pattern.permute.xlu0 0
        %890 = vperm.xlu0 %889, %v531
        %v891 = vpop.permute.xlu0 %890
        %894 = vset.pattern.permute.xlu0 0
        %895 = vperm.xlu0 %894, %v532
        %v896 = vpop.permute.xlu0 %895
        %899 = vset.pattern.permute.xlu0 0
        %900 = vperm.xlu0 %899, %v533
        %v901 = vpop.permute.xlu0 %900
        %904 = vset.pattern.permute.xlu0 0
        %905 = vperm.xlu0 %904, %v534
        %v906 = vpop.permute.xlu0 %905
        %909 = vset.pattern.permute.xlu0 0
        %910 = vperm.xlu0 %909, %v535
        %v911 = vpop.permute.xlu0 %910
        %914 = vset.pattern.permute.xlu0 0
        %915 = vperm.xlu0 %914, %v536
        %v916 = vpop.permute.xlu0 %915
        %919 = vset.pattern.permute.xlu0 0
        %920 = vperm.xlu0 %919, %v537
        %v921 = vpop.permute.xlu0 %920
        %924 = vset.pattern.permute.xlu0 0
        %925 = vperm.xlu0 %924, %v538
        %v926 = vpop.permute.xlu0 %925
        %929 = vset.pattern.permute.xlu0 0
        %930 = vperm.xlu0 %929, %v539
        %v931 = vpop.permute.xlu0 %930
        %934 = vset.pattern.permute.xlu0 0
        %935 = vperm.xlu0 %934, %v540
        %v936 = vpop.permute.xlu0 %935
        %939 = vset.pattern.permute.xlu0 0
        %940 = vperm.xlu0 %939, %v541
        %v941 = vpop.permute.xlu0 %940
        %944 = vset.pattern.permute.xlu0 0
        %945 = vperm.xlu0 %944, %v542
        %v946 = vpop.permute.xlu0 %945
        %949 = vset.pattern.permute.xlu0 0
        %950 = vperm.xlu0 %949, %v543
        %v951 = vpop.permute.xlu0 %950
        %954 = vset.pattern.permute.xlu0 0
        %955 = vperm.xlu0 %954, %v544
        %v956 = vpop.permute.xlu0 %955
        %959 = vset.pattern.permute.xlu0 0
        %960 = vperm.xlu0 %959, %v545
        %v961 = vpop.permute.xlu0 %960
        %964 = vset.pattern.permute.xlu0 0
        %965 = vperm.xlu0 %964, %v546
        %v966 = vpop.permute.xlu0 %965
        %969 = vset.pattern.permute.xlu0 0
        %970 = vperm.xlu0 %969, %v547
        %v971 = vpop.permute.xlu0 %970
        %974 = vset.pattern.permute.xlu0 0
        %975 = vperm.xlu0 %974, %v548
        %v976 = vpop.permute.xlu0 %975
        %979 = vset.pattern.permute.xlu0 0
        %980 = vperm.xlu0 %979, %v549
        %v981 = vpop.permute.xlu0 %980
        %984 = vset.pattern.permute.xlu0 0
        %985 = vperm.xlu0 %984, %v550
        %v986 = vpop.permute.xlu0 %985
        %989 = vset.pattern.permute.xlu0 0
        %990 = vperm.xlu0 %989, %v551
        %v991 = vpop.permute.xlu0 %990
        %994 = vset.pattern.permute.xlu0 0
        %995 = vperm.xlu0 %994, %v552
        %v996 = vpop.permute.xlu0 %995
        %999 = vset.pattern.permute.xlu0 0
        %1000 = vperm.xlu0 %999, %v553
        %v1001 = vpop.permute.xlu0 %1000
        %1004 = vset.pattern.permute.xlu0 0
        %1005 = vperm.xlu0 %1004, %v554
        %v1006 = vpop.permute.xlu0 %1005
        %1009 = vset.pattern.permute.xlu0 0
        %1010 = vperm.xlu0 %1009, %v555
        %v1011 = vpop.permute.xlu0 %1010
        %1014 = vset.pattern.permute.xlu0 0
        %1015 = vperm.xlu0 %1014, %v556
        %v1016 = vpop.permute.xlu0 %1015
        %1019 = vset.pattern.permute.xlu0 0
        %1020 = vperm.xlu0 %1019, %v557
        %v1021 = vpop.permute.xlu0 %1020
        %1024 = vset.pattern.permute.xlu0 0
        %1025 = vperm.xlu0 %1024, %v558
        %v1026 = vpop.permute.xlu0 %1025
        %1029 = vset.pattern.permute.xlu0 0
        %1030 = vperm.xlu0 %1029, %v559
        %v1031 = vpop.permute.xlu0 %1030
        %1034 = vset.pattern.permute.xlu0 0
        %1035 = vperm.xlu0 %1034, %v560
        %v1036 = vpop.permute.xlu0 %1035
        %1039 = vset.pattern.permute.xlu0 0
        %1040 = vperm.xlu0 %1039, %v561
        %v1041 = vpop.permute.xlu0 %1040
        %1044 = vset.pattern.permute.xlu0 0
        %1045 = vperm.xlu0 %1044, %v562
        %v1046 = vpop.permute.xlu0 %1045
        %1049 = vset.pattern.permute.xlu0 0
        %1050 = vperm.xlu0 %1049, %v563
        %v1051 = vpop.permute.xlu0 %1050
        %1054 = vset.pattern.permute.xlu0 0
        %1055 = vperm.xlu0 %1054, %v564
        %v1056 = vpop.permute.xlu0 %1055
        %1059 = vset.pattern.permute.xlu0 0
        %1060 = vperm.xlu0 %1059, %v565
        %v1061 = vpop.permute.xlu0 %1060
        %1064 = vset.pattern.permute.xlu0 0
        %1065 = vperm.xlu0 %1064, %v566
        %v1066 = vpop.permute.xlu0 %1065
        %1069 = vset.pattern.permute.xlu0 0
        %1070 = vperm.xlu0 %1069, %v567
        %v1071 = vpop.permute.xlu0 %1070
        %1074 = vset.pattern.permute.xlu0 0
        %1075 = vperm.xlu0 %1074, %v568
        %v1076 = vpop.permute.xlu0 %1075
        %1079 = vset.pattern.permute.xlu0 0
        %1080 = vperm.xlu0 %1079, %v569
        %v1081 = vpop.permute.xlu0 %1080
        %1084 = vset.pattern.permute.xlu0 0
        %1085 = vperm.xlu0 %1084, %v570
        %v1086 = vpop.permute.xlu0 %1085
        %1089 = vset.pattern.permute.xlu0 0
        %1090 = vperm.xlu0 %1089, %v571
        %v1091 = vpop.permute.xlu0 %1090
        %1094 = vset.pattern.permute.xlu0 0
        %1095 = vperm.xlu0 %1094, %v572
        %v1096 = vpop.permute.xlu0 %1095
        %1099 = vset.pattern.permute.xlu0 0
        %1100 = vperm.xlu0 %1099, %v573
        %v1101 = vpop.permute.xlu0 %1100
        %1104 = vset.pattern.permute.xlu0 0
        %1105 = vperm.xlu0 %1104, %v574
        %v1106 = vpop.permute.xlu0 %1105
        %1109 = vset.pattern.permute.xlu0 0
        %1110 = vperm.xlu0 %1109, %v575
        %v1111 = vpop.permute.xlu0 %1110
        %1114 = vset.pattern.permute.xlu0 0
        %1115 = vperm.xlu0 %1114, %v576
        %v1116 = vpop.permute.xlu0 %1115
        %1119 = vset.pattern.permute.xlu0 0
        %1120 = vperm.xlu0 %1119, %v577
        %v1121 = vpop.permute.xlu0 %1120
        %1124 = vset.pattern.permute.xlu0 0
        %1125 = vperm.xlu0 %1124, %v578
        %v1126 = vpop.permute.xlu0 %1125
        %1129 = vset.pattern.permute.xlu0 0
        %1130 = vperm.xlu0 %1129, %v579
        %v1131 = vpop.permute.xlu0 %1130
        %1134 = vset.pattern.permute.xlu0 0
        %1135 = vperm.xlu0 %1134, %v580
        %v1136 = vpop.permute.xlu0 %1135
        %1139 = vset.pattern.permute.xlu0 0
        %1140 = vperm.xlu0 %1139, %v581
        %v1141 = vpop.permute.xlu0 %1140
        %1144 = vset.pattern.permute.xlu0 0
        %1145 = vperm.xlu0 %1144, %v582
        %v1146 = vpop.permute.xlu0 %1145
        %1149 = vset.pattern.permute.xlu0 0
        %1150 = vperm.xlu0 %1149, %v583
        %v1151 = vpop.permute.xlu0 %1150
        %1154 = vset.pattern.permute.xlu0 0
        %1155 = vperm.xlu0 %1154, %v584
        %v1156 = vpop.permute.xlu0 %1155
        %1159 = vset.pattern.permute.xlu0 0
        %1160 = vperm.xlu0 %1159, %v585
        %v1161 = vpop.permute.xlu0 %1160
        %1164 = vset.pattern.permute.xlu0 0
        %1165 = vperm.xlu0 %1164, %v586
        %v1166 = vpop.permute.xlu0 %1165
        %1169 = vset.pattern.permute.xlu0 0
        %1170 = vperm.xlu0 %1169, %v587
        %v1171 = vpop.permute.xlu0 %1170
        %1174 = vset.pattern.permute.xlu0 0
        %1175 = vperm.xlu0 %1174, %v588
        %v1176 = vpop.permute.xlu0 %1175
        %1179 = vset.pattern.permute.xlu0 0
        %1180 = vperm.xlu0 %1179, %v589
        %v1181 = vpop.permute.xlu0 %1180
        %1184 = vset.pattern.permute.xlu0 0
        %1185 = vperm.xlu0 %1184, %v590
        %v1186 = vpop.permute.xlu0 %1185
        %1189 = vset.pattern.permute.xlu0 0
        %1190 = vperm.xlu0 %1189, %v591
        %v1191 = vpop.permute.xlu0 %1190
        %1194 = vset.pattern.permute.xlu0 0
        %1195 = vperm.xlu0 %1194, %v592
        %v1196 = vpop.permute.xlu0 %1195
        %1199 = vset.pattern.permute.xlu0 0
        %1200 = vperm.xlu0 %1199, %v593
        %v1201 = vpop.permute.xlu0 %1200
        %1204 = vset.pattern.permute.xlu0 0
        %1205 = vperm.xlu0 %1204, %v594
        %v1206 = vpop.permute.xlu0 %1205
        %1209 = vset.pattern.permute.xlu0 0
        %1210 = vperm.xlu0 %1209, %v595
        %v1211 = vpop.permute.xlu0 %1210
        %1214 = vset.pattern.permute.xlu0 0
        %1215 = vperm.xlu0 %1214, %v596
        %v1216 = vpop.permute.xlu0 %1215
        %1219 = vset.pattern.permute.xlu0 0
        %1220 = vperm.xlu0 %1219, %v597
        %v1221 = vpop.permute.xlu0 %1220
        %1224 = vset.pattern.permute.xlu0 0
        %1225 = vperm.xlu0 %1224, %v598
        %v1226 = vpop.permute.xlu0 %1225
        %1229 = vset.pattern.permute.xlu0 0
        %1230 = vperm.xlu0 %1229, %v599
        %v1231 = vpop.permute.xlu0 %1230
        %1234 = vset.pattern.permute.xlu0 0
        %1235 = vperm.xlu0 %1234, %v600
        %v1236 = vpop.permute.xlu0 %1235
        %1239 = vset.pattern.permute.xlu0 0
        %1240 = vperm.xlu0 %1239, %v601
        %v1241 = vpop.permute.xlu0 %1240
        %1244 = vset.pattern.permute.xlu0 0
        %1245 = vperm.xlu0 %1244, %v602
        %v1246 = vpop.permute.xlu0 %1245
        %1249 = vset.pattern.permute.xlu0 0
        %1250 = vperm.xlu0 %1249, %v603
        %v1251 = vpop.permute.xlu0 %1250
        %1254 = vset.pattern.permute.xlu0 0
        %1255 = vperm.xlu0 %1254, %v604
        %v1256 = vpop.permute.xlu0 %1255
        %1259 = vset.pattern.permute.xlu0 0
        %1260 = vperm.xlu0 %1259, %v605
        %v1261 = vpop.permute.xlu0 %1260
        %1264 = vset.pattern.permute.xlu0 0
        %1265 = vperm.xlu0 %1264, %v606
        %v1266 = vpop.permute.xlu0 %1265
        %1269 = vset.pattern.permute.xlu0 0
        %1270 = vperm.xlu0 %1269, %v607
        %v1271 = vpop.permute.xlu0 %1270
        %1274 = vset.pattern.permute.xlu0 0
        %1275 = vperm.xlu0 %1274, %v608
        %v1276 = vpop.permute.xlu0 %1275
        %1279 = vset.pattern.permute.xlu0 0
        %1280 = vperm.xlu0 %1279, %v609
        %v1281 = vpop.permute.xlu0 %1280
        %1284 = vset.pattern.permute.xlu0 0
        %1285 = vperm.xlu0 %1284, %v610
        %v1286 = vpop.permute.xlu0 %1285
        %1289 = vset.pattern.permute.xlu0 0
        %1290 = vperm.xlu0 %1289, %v611
        %v1291 = vpop.permute.xlu0 %1290
        %1294 = vset.pattern.permute.xlu0 0
        %1295 = vperm.xlu0 %1294, %v612
        %v1296 = vpop.permute.xlu0 %1295
        %1299 = vset.pattern.permute.xlu0 0
        %1300 = vperm.xlu0 %1299, %v613
        %v1301 = vpop.permute.xlu0 %1300
        %1304 = vset.pattern.permute.xlu0 0
        %1305 = vperm.xlu0 %1304, %v614
        %v1306 = vpop.permute.xlu0 %1305
        %1309 = vset.pattern.permute.xlu0 0
        %1310 = vperm.xlu0 %1309, %v615
        %v1311 = vpop.permute.xlu0 %1310
        %1314 = vset.pattern.permute.xlu0 0
        %1315 = vperm.xlu0 %1314, %v616
        %v1316 = vpop.permute.xlu0 %1315
        %1319 = vset.pattern.permute.xlu0 0
        %1320 = vperm.xlu0 %1319, %v617
        %v1321 = vpop.permute.xlu0 %1320
        %1324 = vset.pattern.permute.xlu0 0
        %1325 = vperm.xlu0 %1324, %v618
        %v1326 = vpop.permute.xlu0 %1325
        %1329 = vset.pattern.permute.xlu0 0
        %1330 = vperm.xlu0 %1329, %v619
        %v1331 = vpop.permute.xlu0 %1330
        %1334 = vset.pattern.permute.xlu0 0
        %1335 = vperm.xlu0 %1334, %v620
        %v1336 = vpop.permute.xlu0 %1335
        %1339 = vset.pattern.permute.xlu0 0
        %1340 = vperm.xlu0 %1339, %v621
        %v1341 = vpop.permute.xlu0 %1340
        %1344 = vset.pattern.permute.xlu0 0
        %1345 = vperm.xlu0 %1344, %v622
        %v1346 = vpop.permute.xlu0 %1345
        %1349 = vset.pattern.permute.xlu0 0
        %1350 = vperm.xlu0 %1349, %v623
        %v1351 = vpop.permute.xlu0 %1350
        %1354 = vset.pattern.permute.xlu0 0
        %1355 = vperm.xlu0 %1354, %v624
        %v1356 = vpop.permute.xlu0 %1355
        %1359 = vset.pattern.permute.xlu0 0
        %1360 = vperm.xlu0 %1359, %v625
        %v1361 = vpop.permute.xlu0 %1360
        %1364 = vset.pattern.permute.xlu0 0
        %1365 = vperm.xlu0 %1364, %v626
        %v1366 = vpop.permute.xlu0 %1365
        %1369 = vset.pattern.permute.xlu0 0
        %1370 = vperm.xlu0 %1369, %v627
        %v1371 = vpop.permute.xlu0 %1370
        %1374 = vset.pattern.permute.xlu0 0
        %1375 = vperm.xlu0 %1374, %v628
        %v1376 = vpop.permute.xlu0 %1375
        %1379 = vset.pattern.permute.xlu0 0
        %1380 = vperm.xlu0 %1379, %v629
        %v1381 = vpop.permute.xlu0 %1380
        %1384 = vset.pattern.permute.xlu0 0
        %1385 = vperm.xlu0 %1384, %v630
        %v1386 = vpop.permute.xlu0 %1385
        %1389 = vset.pattern.permute.xlu0 0
        %1390 = vperm.xlu0 %1389, %v631
        %v1391 = vpop.permute.xlu0 %1390
        %1394 = vset.pattern.permute.xlu0 0
        %1395 = vperm.xlu0 %1394, %v632
        %v1396 = vpop.permute.xlu0 %1395
        %1399 = vset.pattern.permute.xlu0 0
        %1400 = vperm.xlu0 %1399, %v633
        %v1401 = vpop.permute.xlu0 %1400
        %1404 = vset.pattern.permute.xlu0 0
        %1405 = vperm.xlu0 %1404, %v634
        %v1406 = vpop.permute.xlu0 %1405
        %1409 = vset.pattern.permute.xlu0 0
        %1410 = vperm.xlu0 %1409, %v635
        %v1411 = vpop.permute.xlu0 %1410
        %1414 = vset.pattern.permute.xlu0 0
        %1415 = vperm.xlu0 %1414, %v636
        %v1416 = vpop.permute.xlu0 %1415
        %1419 = vset.pattern.permute.xlu0 0
        %1420 = vperm.xlu0 %1419, %v637
        %v1421 = vpop.permute.xlu0 %1420
        %1424 = vset.pattern.permute.xlu0 0
        %1425 = vperm.xlu0 %1424, %v638
        %v1426 = vpop.permute.xlu0 %1425
        %1429 = vset.pattern.permute.xlu0 0
        %1430 = vperm.xlu0 %1429, %v639
        %v1431 = vpop.permute.xlu0 %1430
        %1434 = vset.pattern.permute.xlu0 0
        %1435 = vperm.xlu0 %1434, %v640
        %v1436 = vpop.permute.xlu0 %1435
        %1439 = vset.pattern.permute.xlu0 0
        %1440 = vperm.xlu0 %1439, %v641
        %v1441 = vpop.permute.xlu0 %1440
        %1444 = vset.pattern.permute.xlu0 0
        %1445 = vperm.xlu0 %1444, %v642
        %v1446 = vpop.permute.xlu0 %1445
        %1449 = vset.pattern.permute.xlu0 0
        %1450 = vperm.xlu0 %1449, %v643
        %v1451 = vpop.permute.xlu0 %1450
        %1454 = vset.pattern.permute.xlu0 0
        %1455 = vperm.xlu0 %1454, %v644
        %v1456 = vpop.permute.xlu0 %1455
        %1459 = vset.pattern.permute.xlu0 0
        %1460 = vperm.xlu0 %1459, %v645
        %v1461 = vpop.permute.xlu0 %1460
        %1464 = vset.pattern.permute.xlu0 0
        %1465 = vperm.xlu0 %1464, %v646
        %v1466 = vpop.permute.xlu0 %1465
        %1469 = vset.pattern.permute.xlu0 0
        %1470 = vperm.xlu0 %1469, %v647
        %v1471 = vpop.permute.xlu0 %1470
        %1474 = vset.pattern.permute.xlu0 0
        %1475 = vperm.xlu0 %1474, %v648
        %v1476 = vpop.permute.xlu0 %1475
        %1479 = vset.pattern.permute.xlu0 0
        %1480 = vperm.xlu0 %1479, %v649
        %v1481 = vpop.permute.xlu0 %1480
        %1484 = vset.pattern.permute.xlu0 0
        %1485 = vperm.xlu0 %1484, %v650
        %v1486 = vpop.permute.xlu0 %1485
        %1489 = vset.pattern.permute.xlu0 0
        %1490 = vperm.xlu0 %1489, %v651
        %v1491 = vpop.permute.xlu0 %1490
        %1494 = vset.pattern.permute.xlu0 0
        %1495 = vperm.xlu0 %1494, %v652
        %v1496 = vpop.permute.xlu0 %1495
        %1499 = vset.pattern.permute.xlu0 0
        %1500 = vperm.xlu0 %1499, %v653
        %v1501 = vpop.permute.xlu0 %1500
        %1504 = vset.pattern.permute.xlu0 0
        %1505 = vperm.xlu0 %1504, %v654
        %v1506 = vpop.permute.xlu0 %1505
        %1509 = vset.pattern.permute.xlu0 0
        %1510 = vperm.xlu0 %1509, %v655
        %v1511 = vpop.permute.xlu0 %1510
        %1514 = vset.pattern.permute.xlu0 0
        %1515 = vperm.xlu0 %1514, %v656
        %v1516 = vpop.permute.xlu0 %1515
        %1519 = vset.pattern.permute.xlu0 0
        %1520 = vperm.xlu0 %1519, %v657
        %v1521 = vpop.permute.xlu0 %1520
        %1524 = vset.pattern.permute.xlu0 0
        %1525 = vperm.xlu0 %1524, %v658
        %v1526 = vpop.permute.xlu0 %1525
        %1529 = vset.pattern.permute.xlu0 0
        %1530 = vperm.xlu0 %1529, %v659
        %v1531 = vpop.permute.xlu0 %1530
        %1534 = vset.pattern.permute.xlu0 0
        %1535 = vperm.xlu0 %1534, %v660
        %v1536 = vpop.permute.xlu0 %1535
        %1539 = vset.pattern.permute.xlu0 0
        %1540 = vperm.xlu0 %1539, %v661
        %v1541 = vpop.permute.xlu0 %1540
        %1544 = vset.pattern.permute.xlu0 0
        %1545 = vperm.xlu0 %1544, %v662
        %v1546 = vpop.permute.xlu0 %1545
        %1549 = vset.pattern.permute.xlu0 0
        %1550 = vperm.xlu0 %1549, %v663
        %v1551 = vpop.permute.xlu0 %1550
        %1554 = vset.pattern.permute.xlu0 0
        %1555 = vperm.xlu0 %1554, %v664
        %v1556 = vpop.permute.xlu0 %1555
        %1559 = vset.pattern.permute.xlu0 0
        %1560 = vperm.xlu0 %1559, %v665
        %v1561 = vpop.permute.xlu0 %1560
        %1564 = vset.pattern.permute.xlu0 0
        %1565 = vperm.xlu0 %1564, %v666
        %v1566 = vpop.permute.xlu0 %1565
        %1569 = vset.pattern.permute.xlu0 0
        %1570 = vperm.xlu0 %1569, %v667
        %v1571 = vpop.permute.xlu0 %1570
        %1574 = vset.pattern.permute.xlu0 0
        %1575 = vperm.xlu0 %1574, %v668
        %v1576 = vpop.permute.xlu0 %1575
        %1579 = vset.pattern.permute.xlu0 0
        %1580 = vperm.xlu0 %1579, %v669
        %v1581 = vpop.permute.xlu0 %1580
        %1584 = vset.pattern.permute.xlu0 0
        %1585 = vperm.xlu0 %1584, %v670
        %v1586 = vpop.permute.xlu0 %1585
        %1589 = vset.pattern.permute.xlu0 0
        %1590 = vperm.xlu0 %1589, %v671
        %v1591 = vpop.permute.xlu0 %1590
        %1594 = vset.pattern.permute.xlu0 0
        %1595 = vperm.xlu0 %1594, %v672
        %v1596 = vpop.permute.xlu0 %1595
        %1599 = vset.pattern.permute.xlu0 0
        %1600 = vperm.xlu0 %1599, %v673
        %v1601 = vpop.permute.xlu0 %1600
        %1604 = vset.pattern.permute.xlu0 0
        %1605 = vperm.xlu0 %1604, %v674
        %v1606 = vpop.permute.xlu0 %1605
        %1609 = vset.pattern.permute.xlu0 0
        %1610 = vperm.xlu0 %1609, %v675
        %v1611 = vpop.permute.xlu0 %1610
        %1614 = vset.pattern.permute.xlu0 0
        %1615 = vperm.xlu0 %1614, %v676
        %v1616 = vpop.permute.xlu0 %1615
        %1619 = vset.pattern.permute.xlu0 0
        %1620 = vperm.xlu0 %1619, %v677
        %v1621 = vpop.permute.xlu0 %1620
        %1624 = vset.pattern.permute.xlu0 0
        %1625 = vperm.xlu0 %1624, %v678
        %v1626 = vpop.permute.xlu0 %1625
        %1629 = vset.pattern.permute.xlu0 0
        %1630 = vperm.xlu0 %1629, %v679
        %v1631 = vpop.permute.xlu0 %1630
        %1634 = vset.pattern.permute.xlu0 0
        %1635 = vperm.xlu0 %1634, %v680
        %v1636 = vpop.permute.xlu0 %1635
        %1639 = vset.pattern.permute.xlu0 0
        %1640 = vperm.xlu0 %1639, %v681
        %v1641 = vpop.permute.xlu0 %1640
        %1644 = vset.pattern.permute.xlu0 0
        %1645 = vperm.xlu0 %1644, %v682
        %v1646 = vpop.permute.xlu0 %1645
        %1649 = vset.pattern.permute.xlu0 0
        %1650 = vperm.xlu0 %1649, %v683
        %v1651 = vpop.permute.xlu0 %1650
        %1654 = vset.pattern.permute.xlu0 0
        %1655 = vperm.xlu0 %1654, %v684
        %v1656 = vpop.permute.xlu0 %1655
        %1659 = vset.pattern.permute.xlu0 0
        %1660 = vperm.xlu0 %1659, %v685
        %v1661 = vpop.permute.xlu0 %1660
        %1664 = vset.pattern.permute.xlu0 0
        %1665 = vperm.xlu0 %1664, %v686
        %v1666 = vpop.permute.xlu0 %1665
        %1669 = vset.pattern.permute.xlu0 0
        %1670 = vperm.xlu0 %1669, %v687
        %v1671 = vpop.permute.xlu0 %1670
        %1674 = vset.pattern.permute.xlu0 0
        %1675 = vperm.xlu0 %1674, %v688
        %v1676 = vpop.permute.xlu0 %1675
        %1679 = vset.pattern.permute.xlu0 0
        %1680 = vperm.xlu0 %1679, %v689
        %v1681 = vpop.permute.xlu0 %1680
        %1684 = vset.pattern.permute.xlu0 0
        %1685 = vperm.xlu0 %1684, %v690
        %v1686 = vpop.permute.xlu0 %1685
        %1689 = vset.pattern.permute.xlu0 0
        %1690 = vperm.xlu0 %1689, %v691
        %v1691 = vpop.permute.xlu0 %1690
        %1694 = vset.pattern.permute.xlu0 0
        %1695 = vperm.xlu0 %1694, %v692
        %v1696 = vpop.permute.xlu0 %1695
        %1699 = vset.pattern.permute.xlu0 0
        %1700 = vperm.xlu0 %1699, %v693
        %v1701 = vpop.permute.xlu0 %1700
        %1704 = vset.pattern.permute.xlu0 0
        %1705 = vperm.xlu0 %1704, %v694
        %v1706 = vpop.permute.xlu0 %1705
        %1709 = vset.pattern.permute.xlu0 0
        %1710 = vperm.xlu0 %1709, %v695
        %v1711 = vpop.permute.xlu0 %1710
        %1714 = vset.pattern.permute.xlu0 0
        %1715 = vperm.xlu0 %1714, %v696
        %v1716 = vpop.permute.xlu0 %1715
        %1719 = vset.pattern.permute.xlu0 0
        %1720 = vperm.xlu0 %1719, %v697
        %v1721 = vpop.permute.xlu0 %1720
        %1724 = vset.pattern.permute.xlu0 0
        %1725 = vperm.xlu0 %1724, %v698
        %v1726 = vpop.permute.xlu0 %1725
        %1729 = vset.pattern.permute.xlu0 0
        %1730 = vperm.xlu0 %1729, %v699
        %v1731 = vpop.permute.xlu0 %1730
        %1734 = vset.pattern.permute.xlu0 0
        %1735 = vperm.xlu0 %1734, %v700
        %v1736 = vpop.permute.xlu0 %1735
        %1739 = vset.pattern.permute.xlu0 0
        %1740 = vperm.xlu0 %1739, %v701
        %v1741 = vpop.permute.xlu0 %1740
        %1744 = vset.pattern.permute.xlu0 0
        %1745 = vperm.xlu0 %1744, %v702
        %v1746 = vpop.permute.xlu0 %1745
        %1749 = vset.pattern.permute.xlu0 0
        %1750 = vperm.xlu0 %1749, %v703
        %v1751 = vpop.permute.xlu0 %1750
        %1754 = vset.pattern.permute.xlu0 0
        %1755 = vperm.xlu0 %1754, %v704
        %v1756 = vpop.permute.xlu0 %1755
        %1759 = vset.pattern.permute.xlu0 0
        %1760 = vperm.xlu0 %1759, %v705
        %v1761 = vpop.permute.xlu0 %1760
        %1764 = vset.pattern.permute.xlu0 0
        %1765 = vperm.xlu0 %1764, %v706
        %v1766 = vpop.permute.xlu0 %1765
        %1769 = vset.pattern.permute.xlu0 0
        %1770 = vperm.xlu0 %1769, %v707
        %v1771 = vpop.permute.xlu0 %1770
        %1774 = vset.pattern.permute.xlu0 0
        %1775 = vperm.xlu0 %1774, %v708
        %v1776 = vpop.permute.xlu0 %1775
        %1779 = vset.pattern.permute.xlu0 0
        %1780 = vperm.xlu0 %1779, %v709
        %v1781 = vpop.permute.xlu0 %1780
        %1784 = vset.pattern.permute.xlu0 0
        %1785 = vperm.xlu0 %1784, %v710
        %v1786 = vpop.permute.xlu0 %1785
        %1789 = vset.pattern.permute.xlu0 0
        %1790 = vperm.xlu0 %1789, %v711
        %v1791 = vpop.permute.xlu0 %1790
        %1794 = vset.pattern.permute.xlu0 0
        %1795 = vperm.xlu0 %1794, %v712
        %v1796 = vpop.permute.xlu0 %1795
        %1799 = vset.pattern.permute.xlu0 0
        %1800 = vperm.xlu0 %1799, %v713
        %v1801 = vpop.permute.xlu0 %1800
        %1804 = vset.pattern.permute.xlu0 0
        %1805 = vperm.xlu0 %1804, %v714
        %v1806 = vpop.permute.xlu0 %1805
        %1809 = vset.pattern.permute.xlu0 0
        %1810 = vperm.xlu0 %1809, %v715
        %v1811 = vpop.permute.xlu0 %1810
        %1814 = vset.pattern.permute.xlu0 0
        %1815 = vperm.xlu0 %1814, %v716
        %v1816 = vpop.permute.xlu0 %1815
        %1819 = vset.pattern.permute.xlu0 0
        %1820 = vperm.xlu0 %1819, %v717
        %v1821 = vpop.permute.xlu0 %1820
        %1824 = vset.pattern.permute.xlu0 0
        %1825 = vperm.xlu0 %1824, %v718
        %v1826 = vpop.permute.xlu0 %1825
        %1829 = vset.pattern.permute.xlu0 0
        %1830 = vperm.xlu0 %1829, %v719
        %v1831 = vpop.permute.xlu0 %1830
        %1834 = vset.pattern.permute.xlu0 0
        %1835 = vperm.xlu0 %1834, %v720
        %v1836 = vpop.permute.xlu0 %1835
        %1839 = vset.pattern.permute.xlu0 0
        %1840 = vperm.xlu0 %1839, %v721
        %v1841 = vpop.permute.xlu0 %1840
        %1844 = vset.pattern.permute.xlu0 0
        %1845 = vperm.xlu0 %1844, %v722
        %v1846 = vpop.permute.xlu0 %1845
        %1849 = vset.pattern.permute.xlu0 0
        %1850 = vperm.xlu0 %1849, %v723
        %v1851 = vpop.permute.xlu0 %1850
        %1854 = vset.pattern.permute.xlu0 0
        %1855 = vperm.xlu0 %1854, %v724
        %v1856 = vpop.permute.xlu0 %1855
        %1859 = vset.pattern.permute.xlu0 0
        %1860 = vperm.xlu0 %1859, %v725
        %v1861 = vpop.permute.xlu0 %1860
        %1864 = vset.pattern.permute.xlu0 0
        %1865 = vperm.xlu0 %1864, %v726
        %v1866 = vpop.permute.xlu0 %1865
        %1869 = vset.pattern.permute.xlu0 0
        %1870 = vperm.xlu0 %1869, %v727
        %v1871 = vpop.permute.xlu0 %1870
        %1874 = vset.pattern.permute.xlu0 0
        %1875 = vperm.xlu0 %1874, %v728
        %v1876 = vpop.permute.xlu0 %1875
        %1879 = vset.pattern.permute.xlu0 0
        %1880 = vperm.xlu0 %1879, %v729
        %v1881 = vpop.permute.xlu0 %1880
        %1884 = vset.pattern.permute.xlu0 0
        %1885 = vperm.xlu0 %1884, %v730
        %v1886 = vpop.permute.xlu0 %1885
        %1889 = vset.pattern.permute.xlu0 0
        %1890 = vperm.xlu0 %1889, %v731
        %v1891 = vpop.permute.xlu0 %1890
        %1894 = vset.pattern.permute.xlu0 0
        %1895 = vperm.xlu0 %1894, %v732
        %v1896 = vpop.permute.xlu0 %1895
        %1899 = vset.pattern.permute.xlu0 0
        %1900 = vperm.xlu0 %1899, %v733
        %v1901 = vpop.permute.xlu0 %1900
        %1904 = vset.pattern.permute.xlu0 0
        %1905 = vperm.xlu0 %1904, %v734
        %v1906 = vpop.permute.xlu0 %1905
        %1909 = vset.pattern.permute.xlu0 0
        %1910 = vperm.xlu0 %1909, %v735
        %v1911 = vpop.permute.xlu0 %1910
        %1914 = vset.pattern.permute.xlu0 0
        %1915 = vperm.xlu0 %1914, %v736
        %v1916 = vpop.permute.xlu0 %1915
        %1919 = vset.pattern.permute.xlu0 0
        %1920 = vperm.xlu0 %1919, %v737
        %v1921 = vpop.permute.xlu0 %1920
        %1924 = vset.pattern.permute.xlu0 0
        %1925 = vperm.xlu0 %1924, %v738
        %v1926 = vpop.permute.xlu0 %1925
        %1929 = vset.pattern.permute.xlu0 0
        %1930 = vperm.xlu0 %1929, %v739
        %v1931 = vpop.permute.xlu0 %1930
        %1934 = vset.pattern.permute.xlu0 0
        %1935 = vperm.xlu0 %1934, %v740
        %v1936 = vpop.permute.xlu0 %1935
        %1939 = vset.pattern.permute.xlu0 0
        %1940 = vperm.xlu0 %1939, %v741
        %v1941 = vpop.permute.xlu0 %1940
        %1944 = vset.pattern.permute.xlu0 0
        %1945 = vperm.xlu0 %1944, %v742
        %v1946 = vpop.permute.xlu0 %1945
        %1949 = vset.pattern.permute.xlu0 0
        %1950 = vperm.xlu0 %1949, %v743
        %v1951 = vpop.permute.xlu0 %1950
        %1954 = vset.pattern.permute.xlu0 0
        %1955 = vperm.xlu0 %1954, %v744
        %v1956 = vpop.permute.xlu0 %1955
        %1959 = vset.pattern.permute.xlu0 0
        %1960 = vperm.xlu0 %1959, %v745
        %v1961 = vpop.permute.xlu0 %1960
        %1964 = vset.pattern.permute.xlu0 0
        %1965 = vperm.xlu0 %1964, %v746
        %v1966 = vpop.permute.xlu0 %1965
        %1969 = vset.pattern.permute.xlu0 0
        %1970 = vperm.xlu0 %1969, %v747
        %v1971 = vpop.permute.xlu0 %1970
        %1974 = vset.pattern.permute.xlu0 0
        %1975 = vperm.xlu0 %1974, %v748
        %v1976 = vpop.permute.xlu0 %1975
        %1979 = vset.pattern.permute.xlu0 0
        %1980 = vperm.xlu0 %1979, %v749
        %v1981 = vpop.permute.xlu0 %1980
        %1984 = vset.pattern.permute.xlu0 0
        %1985 = vperm.xlu0 %1984, %v750
        %v1986 = vpop.permute.xlu0 %1985
        %1989 = vset.pattern.permute.xlu0 0
        %1990 = vperm.xlu0 %1989, %v751
        %v1991 = vpop.permute.xlu0 %1990
        %1994 = vset.pattern.permute.xlu0 0
        %1995 = vperm.xlu0 %1994, %v752
        %v1996 = vpop.permute.xlu0 %1995
        %1999 = vset.pattern.permute.xlu0 0
        %2000 = vperm.xlu0 %1999, %v753
        %v2001 = vpop.permute.xlu0 %2000
        %2004 = vset.pattern.permute.xlu0 0
        %2005 = vperm.xlu0 %2004, %v754
        %v2006 = vpop.permute.xlu0 %2005
        %2009 = vset.pattern.permute.xlu0 0
        %2010 = vperm.xlu0 %2009, %v755
        %v2011 = vpop.permute.xlu0 %2010
        %2014 = vset.pattern.permute.xlu0 0
        %2015 = vperm.xlu0 %2014, %v756
        %v2016 = vpop.permute.xlu0 %2015
        %2019 = vset.pattern.permute.xlu0 0
        %2020 = vperm.xlu0 %2019, %v757
        %v2021 = vpop.permute.xlu0 %2020
        %2024 = vset.pattern.permute.xlu0 0
        %2025 = vperm.xlu0 %2024, %v758
        %v2026 = vpop.permute.xlu0 %2025
        %2029 = vset.pattern.permute.xlu0 0
        %2030 = vperm.xlu0 %2029, %v759
        %v2031 = vpop.permute.xlu0 %2030
        %2034 = vset.pattern.permute.xlu0 0
        %2035 = vperm.xlu0 %2034, %v760
        %v2036 = vpop.permute.xlu0 %2035
        %2039 = vset.pattern.permute.xlu0 0
        %2040 = vperm.xlu0 %2039, %v761
        %v2041 = vpop.permute.xlu0 %2040
        %v2044 = vlaneseq
        %v2045 = vshrl.u32 %v2044, 7
        %v2046 = vsub.s32 0, %v2045
        %v2047 = vrot.slane %v762, %v2046
        %v2049 = vmul.f32 %v766, %v2047
        %v2050 = vmul.f32 %v771, %v2047
        %v2051 = vmul.f32 %v776, %v2047
        %v2052 = vmul.f32 %v781, %v2047
        %v2053 = vmul.f32 %v786, %v2047
        %v2054 = vmul.f32 %v791, %v2047
        %v2055 = vmul.f32 %v796, %v2047
        %v2056 = vmul.f32 %v801, %v2047
        %v2057 = vmul.f32 %v806, %v2047
        %v2058 = vmul.f32 %v811, %v2047
        %v2059 = vmul.f32 %v816, %v2047
        %v2060 = vmul.f32 %v821, %v2047
        %v2061 = vmul.f32 %v826, %v2047
        %v2062 = vmul.f32 %v831, %v2047
        %v2063 = vmul.f32 %v836, %v2047
        %v2064 = vmul.f32 %v841, %v2047
        %v2065 = vmul.f32 %v846, %v2047
        %v2066 = vmul.f32 %v851, %v2047
        %v2067 = vmul.f32 %v856, %v2047
        %v2068 = vmul.f32 %v861, %v2047
        %v2069 = vmul.f32 %v866, %v2047
        %v2070 = vmul.f32 %v871, %v2047
        %v2071 = vmul.f32 %v876, %v2047
        %v2072 = vmul.f32 %v881, %v2047
        %v2073 = vmul.f32 %v886, %v2047
        %v2074 = vmul.f32 %v891, %v2047
        %v2075 = vmul.f32 %v896, %v2047
        %v2076 = vmul.f32 %v901, %v2047
        %v2077 = vmul.f32 %v906, %v2047
        %v2078 = vmul.f32 %v911, %v2047
        %v2079 = vmul.f32 %v916, %v2047
        %v2080 = vmul.f32 %v921, %v2047
        %v2081 = vmul.f32 %v926, %v2047
        %v2082 = vmul.f32 %v931, %v2047
        %v2083 = vmul.f32 %v936, %v2047
        %v2084 = vmul.f32 %v941, %v2047
        %v2085 = vmul.f32 %v946, %v2047
        %v2086 = vmul.f32 %v951, %v2047
        %v2087 = vmul.f32 %v956, %v2047
        %v2088 = vmul.f32 %v961, %v2047
        %v2089 = vmul.f32 %v966, %v2047
        %v2090 = vmul.f32 %v971, %v2047
        %v2091 = vmul.f32 %v976, %v2047
        %v2092 = vmul.f32 %v981, %v2047
        %v2093 = vmul.f32 %v986, %v2047
        %v2094 = vmul.f32 %v991, %v2047
        %v2095 = vmul.f32 %v996, %v2047
        %v2096 = vmul.f32 %v1001, %v2047
        %v2097 = vmul.f32 %v1006, %v2047
        %v2098 = vmul.f32 %v1011, %v2047
        %v2099 = vmul.f32 %v1016, %v2047
        %v2100 = vmul.f32 %v1021, %v2047
        %v2101 = vmul.f32 %v1026, %v2047
        %v2102 = vmul.f32 %v1031, %v2047
        %v2103 = vmul.f32 %v1036, %v2047
        %v2104 = vmul.f32 %v1041, %v2047
        %v2105 = vmul.f32 %v1046, %v2047
        %v2106 = vmul.f32 %v1051, %v2047
        %v2107 = vmul.f32 %v1056, %v2047
        %v2108 = vmul.f32 %v1061, %v2047
        %v2109 = vmul.f32 %v1066, %v2047
        %v2110 = vmul.f32 %v1071, %v2047
        %v2111 = vmul.f32 %v1076, %v2047
        %v2112 = vmul.f32 %v1081, %v2047
        %v2113 = vmul.f32 %v1086, %v2047
        %v2114 = vmul.f32 %v1091, %v2047
        %v2115 = vmul.f32 %v1096, %v2047
        %v2116 = vmul.f32 %v1101, %v2047
        %v2117 = vmul.f32 %v1106, %v2047
        %v2118 = vmul.f32 %v1111, %v2047
        %v2119 = vmul.f32 %v1116, %v2047
        %v2120 = vmul.f32 %v1121, %v2047
        %v2121 = vmul.f32 %v1126, %v2047
        %v2122 = vmul.f32 %v1131, %v2047
        %v2123 = vmul.f32 %v1136, %v2047
        %v2124 = vmul.f32 %v1141, %v2047
        %v2125 = vmul.f32 %v1146, %v2047
        %v2126 = vmul.f32 %v1151, %v2047
        %v2127 = vmul.f32 %v1156, %v2047
        %v2128 = vmul.f32 %v1161, %v2047
        %v2129 = vmul.f32 %v1166, %v2047
        %v2130 = vmul.f32 %v1171, %v2047
        %v2131 = vmul.f32 %v1176, %v2047
        %v2132 = vmul.f32 %v1181, %v2047
        %v2133 = vmul.f32 %v1186, %v2047
        %v2134 = vmul.f32 %v1191, %v2047
        %v2135 = vmul.f32 %v1196, %v2047
        %v2136 = vmul.f32 %v1201, %v2047
        %v2137 = vmul.f32 %v1206, %v2047
        %v2138 = vmul.f32 %v1211, %v2047
        %v2139 = vmul.f32 %v1216, %v2047
        %v2140 = vmul.f32 %v1221, %v2047
        %v2141 = vmul.f32 %v1226, %v2047
        %v2142 = vmul.f32 %v1231, %v2047
        %v2143 = vmul.f32 %v1236, %v2047
        %v2144 = vmul.f32 %v1241, %v2047
        %v2145 = vmul.f32 %v1246, %v2047
        %v2146 = vmul.f32 %v1251, %v2047
        %v2147 = vmul.f32 %v1256, %v2047
        %v2148 = vmul.f32 %v1261, %v2047
        %v2149 = vmul.f32 %v1266, %v2047
        %v2150 = vmul.f32 %v1271, %v2047
        %v2151 = vmul.f32 %v1276, %v2047
        %v2152 = vmul.f32 %v1281, %v2047
        %v2153 = vmul.f32 %v1286, %v2047
        %v2154 = vmul.f32 %v1291, %v2047
        %v2155 = vmul.f32 %v1296, %v2047
        %v2156 = vmul.f32 %v1301, %v2047
        %v2157 = vmul.f32 %v1306, %v2047
        %v2158 = vmul.f32 %v1311, %v2047
        %v2159 = vmul.f32 %v1316, %v2047
        %v2160 = vmul.f32 %v1321, %v2047
        %v2161 = vmul.f32 %v1326, %v2047
        %v2162 = vmul.f32 %v1331, %v2047
        %v2163 = vmul.f32 %v1336, %v2047
        %v2164 = vmul.f32 %v1341, %v2047
        %v2165 = vmul.f32 %v1346, %v2047
        %v2166 = vmul.f32 %v1351, %v2047
        %v2167 = vmul.f32 %v1356, %v2047
        %v2168 = vmul.f32 %v1361, %v2047
        %v2169 = vmul.f32 %v1366, %v2047
        %v2170 = vmul.f32 %v1371, %v2047
        %v2171 = vmul.f32 %v1376, %v2047
        %v2172 = vmul.f32 %v1381, %v2047
        %v2173 = vmul.f32 %v1386, %v2047
        %v2174 = vmul.f32 %v1391, %v2047
        %v2175 = vmul.f32 %v1396, %v2047
        %v2176 = vmul.f32 %v1401, %v2047
        %v2177 = vmul.f32 %v1406, %v2047
        %v2178 = vmul.f32 %v1411, %v2047
        %v2179 = vmul.f32 %v1416, %v2047
        %v2180 = vmul.f32 %v1421, %v2047
        %v2181 = vmul.f32 %v1426, %v2047
        %v2182 = vmul.f32 %v1431, %v2047
        %v2183 = vmul.f32 %v1436, %v2047
        %v2184 = vmul.f32 %v1441, %v2047
        %v2185 = vmul.f32 %v1446, %v2047
        %v2186 = vmul.f32 %v1451, %v2047
        %v2187 = vmul.f32 %v1456, %v2047
        %v2188 = vmul.f32 %v1461, %v2047
        %v2189 = vmul.f32 %v1466, %v2047
        %v2190 = vmul.f32 %v1471, %v2047
        %v2191 = vmul.f32 %v1476, %v2047
        %v2192 = vmul.f32 %v1481, %v2047
        %v2193 = vmul.f32 %v1486, %v2047
        %v2194 = vmul.f32 %v1491, %v2047
        %v2195 = vmul.f32 %v1496, %v2047
        %v2196 = vmul.f32 %v1501, %v2047
        %v2197 = vmul.f32 %v1506, %v2047
        %v2198 = vmul.f32 %v1511, %v2047
        %v2199 = vmul.f32 %v1516, %v2047
        %v2200 = vmul.f32 %v1521, %v2047
        %v2201 = vmul.f32 %v1526, %v2047
        %v2202 = vmul.f32 %v1531, %v2047
        %v2203 = vmul.f32 %v1536, %v2047
        %v2204 = vmul.f32 %v1541, %v2047
        %v2205 = vmul.f32 %v1546, %v2047
        %v2206 = vmul.f32 %v1551, %v2047
        %v2207 = vmul.f32 %v1556, %v2047
        %v2208 = vmul.f32 %v1561, %v2047
        %v2209 = vmul.f32 %v1566, %v2047
        %v2210 = vmul.f32 %v1571, %v2047
        %v2211 = vmul.f32 %v1576, %v2047
        %v2212 = vmul.f32 %v1581, %v2047
        %v2213 = vmul.f32 %v1586, %v2047
        %v2214 = vmul.f32 %v1591, %v2047
        %v2215 = vmul.f32 %v1596, %v2047
        %v2216 = vmul.f32 %v1601, %v2047
        %v2217 = vmul.f32 %v1606, %v2047
        %v2218 = vmul.f32 %v1611, %v2047
        %v2219 = vmul.f32 %v1616, %v2047
        %v2220 = vmul.f32 %v1621, %v2047
        %v2221 = vmul.f32 %v1626, %v2047
        %v2222 = vmul.f32 %v1631, %v2047
        %v2223 = vmul.f32 %v1636, %v2047
        %v2224 = vmul.f32 %v1641, %v2047
        %v2225 = vmul.f32 %v1646, %v2047
        %v2226 = vmul.f32 %v1651, %v2047
        %v2227 = vmul.f32 %v1656, %v2047
        %v2228 = vmul.f32 %v1661, %v2047
        %v2229 = vmul.f32 %v1666, %v2047
        %v2230 = vmul.f32 %v1671, %v2047
        %v2231 = vmul.f32 %v1676, %v2047
        %v2232 = vmul.f32 %v1681, %v2047
        %v2233 = vmul.f32 %v1686, %v2047
        %v2234 = vmul.f32 %v1691, %v2047
        %v2235 = vmul.f32 %v1696, %v2047
        %v2236 = vmul.f32 %v1701, %v2047
        %v2237 = vmul.f32 %v1706, %v2047
        %v2238 = vmul.f32 %v1711, %v2047
        %v2239 = vmul.f32 %v1716, %v2047
        %v2240 = vmul.f32 %v1721, %v2047
        %v2241 = vmul.f32 %v1726, %v2047
        %v2242 = vmul.f32 %v1731, %v2047
        %v2243 = vmul.f32 %v1736, %v2047
        %v2244 = vmul.f32 %v1741, %v2047
        %v2245 = vmul.f32 %v1746, %v2047
        %v2246 = vmul.f32 %v1751, %v2047
        %v2247 = vmul.f32 %v1756, %v2047
        %v2248 = vmul.f32 %v1761, %v2047
        %v2249 = vmul.f32 %v1766, %v2047
        %v2250 = vmul.f32 %v1771, %v2047
        %v2251 = vmul.f32 %v1776, %v2047
        %v2252 = vmul.f32 %v1781, %v2047
        %v2253 = vmul.f32 %v1786, %v2047
        %v2254 = vmul.f32 %v1791, %v2047
        %v2255 = vmul.f32 %v1796, %v2047
        %v2256 = vmul.f32 %v1801, %v2047
        %v2257 = vmul.f32 %v1806, %v2047
        %v2258 = vmul.f32 %v1811, %v2047
        %v2259 = vmul.f32 %v1816, %v2047
        %v2260 = vmul.f32 %v1821, %v2047
        %v2261 = vmul.f32 %v1826, %v2047
        %v2262 = vmul.f32 %v1831, %v2047
        %v2263 = vmul.f32 %v1836, %v2047
        %v2264 = vmul.f32 %v1841, %v2047
        %v2265 = vmul.f32 %v1846, %v2047
        %v2266 = vmul.f32 %v1851, %v2047
        %v2267 = vmul.f32 %v1856, %v2047
        %v2268 = vmul.f32 %v1861, %v2047
        %v2269 = vmul.f32 %v1866, %v2047
        %v2270 = vmul.f32 %v1871, %v2047
        %v2271 = vmul.f32 %v1876, %v2047
        %v2272 = vmul.f32 %v1881, %v2047
        %v2273 = vmul.f32 %v1886, %v2047
        %v2274 = vmul.f32 %v1891, %v2047
        %v2275 = vmul.f32 %v1896, %v2047
        %v2276 = vmul.f32 %v1901, %v2047
        %v2277 = vmul.f32 %v1906, %v2047
        %v2278 = vmul.f32 %v1911, %v2047
        %v2279 = vmul.f32 %v1916, %v2047
        %v2280 = vmul.f32 %v1921, %v2047
        %v2281 = vmul.f32 %v1926, %v2047
        %v2282 = vmul.f32 %v1931, %v2047
        %v2283 = vmul.f32 %v1936, %v2047
        %v2284 = vmul.f32 %v1941, %v2047
        %v2285 = vmul.f32 %v1946, %v2047
        %v2286 = vmul.f32 %v1951, %v2047
        %v2287 = vmul.f32 %v1956, %v2047
        %v2288 = vmul.f32 %v1961, %v2047
        %v2289 = vmul.f32 %v1966, %v2047
        %v2290 = vmul.f32 %v1971, %v2047
        %v2291 = vmul.f32 %v1976, %v2047
        %v2292 = vmul.f32 %v1981, %v2047
        %v2293 = vmul.f32 %v1986, %v2047
        %v2294 = vmul.f32 %v1991, %v2047
        %v2295 = vmul.f32 %v1996, %v2047
        %v2296 = vmul.f32 %v2001, %v2047
        %v2297 = vmul.f32 %v2006, %v2047
        %v2298 = vmul.f32 %v2011, %v2047
        %v2299 = vmul.f32 %v2016, %v2047
        %v2300 = vmul.f32 %v2021, %v2047
        %v2301 = vmul.f32 %v2026, %v2047
        %v2302 = vmul.f32 %v2031, %v2047
        %v2303 = vmul.f32 %v2036, %v2047
        %v2304 = vmul.f32 %v2041, %v2047
        %v2305 = vld [vmem:[%s2] sm:$0x1]
        %v2307 = vlaneseq
        %v2308 = vshrl.u32 %v2307, 7
        %v2309 = vsub.s32 0, %v2308
        %v2310 = vrot.slane %v2305, %v2309
        %v2312 = vadd.f32 %v2049, %v2310
        %v2313 = vadd.f32 %v2050, %v2310
        %v2314 = vadd.f32 %v2051, %v2310
        %v2315 = vadd.f32 %v2052, %v2310
        %v2316 = vadd.f32 %v2053, %v2310
        %v2317 = vadd.f32 %v2054, %v2310
        %v2318 = vadd.f32 %v2055, %v2310
        %v2319 = vadd.f32 %v2056, %v2310
        %v2320 = vadd.f32 %v2057, %v2310
        %v2321 = vadd.f32 %v2058, %v2310
        %v2322 = vadd.f32 %v2059, %v2310
        %v2323 = vadd.f32 %v2060, %v2310
        %v2324 = vadd.f32 %v2061, %v2310
        %v2325 = vadd.f32 %v2062, %v2310
        %v2326 = vadd.f32 %v2063, %v2310
        %v2327 = vadd.f32 %v2064, %v2310
        %v2328 = vadd.f32 %v2065, %v2310
        %v2329 = vadd.f32 %v2066, %v2310
        %v2330 = vadd.f32 %v2067, %v2310
        %v2331 = vadd.f32 %v2068, %v2310
        %v2332 = vadd.f32 %v2069, %v2310
        %v2333 = vadd.f32 %v2070, %v2310
        %v2334 = vadd.f32 %v2071, %v2310
        %v2335 = vadd.f32 %v2072, %v2310
        %v2336 = vadd.f32 %v2073, %v2310
        %v2337 = vadd.f32 %v2074, %v2310
        %v2338 = vadd.f32 %v2075, %v2310
        %v2339 = vadd.f32 %v2076, %v2310
        %v2340 = vadd.f32 %v2077, %v2310
        %v2341 = vadd.f32 %v2078, %v2310
        %v2342 = vadd.f32 %v2079, %v2310
        %v2343 = vadd.f32 %v2080, %v2310
        %v2344 = vadd.f32 %v2081, %v2310
        %v2345 = vadd.f32 %v2082, %v2310
        %v2346 = vadd.f32 %v2083, %v2310
        %v2347 = vadd.f32 %v2084, %v2310
        %v2348 = vadd.f32 %v2085, %v2310
        %v2349 = vadd.f32 %v2086, %v2310
        %v2350 = vadd.f32 %v2087, %v2310
        %v2351 = vadd.f32 %v2088, %v2310
        %v2352 = vadd.f32 %v2089, %v2310
        %v2353 = vadd.f32 %v2090, %v2310
        %v2354 = vadd.f32 %v2091, %v2310
        %v2355 = vadd.f32 %v2092, %v2310
        %v2356 = vadd.f32 %v2093, %v2310
        %v2357 = vadd.f32 %v2094, %v2310
        %v2358 = vadd.f32 %v2095, %v2310
        %v2359 = vadd.f32 %v2096, %v2310
        %v2360 = vadd.f32 %v2097, %v2310
        %v2361 = vadd.f32 %v2098, %v2310
        %v2362 = vadd.f32 %v2099, %v2310
        %v2363 = vadd.f32 %v2100, %v2310
        %v2364 = vadd.f32 %v2101, %v2310
        %v2365 = vadd.f32 %v2102, %v2310
        %v2366 = vadd.f32 %v2103, %v2310
        %v2367 = vadd.f32 %v2104, %v2310
        %v2368 = vadd.f32 %v2105, %v2310
        %v2369 = vadd.f32 %v2106, %v2310
        %v2370 = vadd.f32 %v2107, %v2310
        %v2371 = vadd.f32 %v2108, %v2310
        %v2372 = vadd.f32 %v2109, %v2310
        %v2373 = vadd.f32 %v2110, %v2310
        %v2374 = vadd.f32 %v2111, %v2310
        %v2375 = vadd.f32 %v2112, %v2310
        %v2376 = vadd.f32 %v2113, %v2310
        %v2377 = vadd.f32 %v2114, %v2310
        %v2378 = vadd.f32 %v2115, %v2310
        %v2379 = vadd.f32 %v2116, %v2310
        %v2380 = vadd.f32 %v2117, %v2310
        %v2381 = vadd.f32 %v2118, %v2310
        %v2382 = vadd.f32 %v2119, %v2310
        %v2383 = vadd.f32 %v2120, %v2310
        %v2384 = vadd.f32 %v2121, %v2310
        %v2385 = vadd.f32 %v2122, %v2310
        %v2386 = vadd.f32 %v2123, %v2310
        %v2387 = vadd.f32 %v2124, %v2310
        %v2388 = vadd.f32 %v2125, %v2310
        %v2389 = vadd.f32 %v2126, %v2310
        %v2390 = vadd.f32 %v2127, %v2310
        %v2391 = vadd.f32 %v2128, %v2310
        %v2392 = vadd.f32 %v2129, %v2310
        %v2393 = vadd.f32 %v2130, %v2310
        %v2394 = vadd.f32 %v2131, %v2310
        %v2395 = vadd.f32 %v2132, %v2310
        %v2396 = vadd.f32 %v2133, %v2310
        %v2397 = vadd.f32 %v2134, %v2310
        %v2398 = vadd.f32 %v2135, %v2310
        %v2399 = vadd.f32 %v2136, %v2310
        %v2400 = vadd.f32 %v2137, %v2310
        %v2401 = vadd.f32 %v2138, %v2310
        %v2402 = vadd.f32 %v2139, %v2310
        %v2403 = vadd.f32 %v2140, %v2310
        %v2404 = vadd.f32 %v2141, %v2310
        %v2405 = vadd.f32 %v2142, %v2310
        %v2406 = vadd.f32 %v2143, %v2310
        %v2407 = vadd.f32 %v2144, %v2310
        %v2408 = vadd.f32 %v2145, %v2310
        %v2409 = vadd.f32 %v2146, %v2310
        %v2410 = vadd.f32 %v2147, %v2310
        %v2411 = vadd.f32 %v2148, %v2310
        %v2412 = vadd.f32 %v2149, %v2310
        %v2413 = vadd.f32 %v2150, %v2310
        %v2414 = vadd.f32 %v2151, %v2310
        %v2415 = vadd.f32 %v2152, %v2310
        %v2416 = vadd.f32 %v2153, %v2310
        %v2417 = vadd.f32 %v2154, %v2310
        %v2418 = vadd.f32 %v2155, %v2310
        %v2419 = vadd.f32 %v2156, %v2310
        %v2420 = vadd.f32 %v2157, %v2310
        %v2421 = vadd.f32 %v2158, %v2310
        %v2422 = vadd.f32 %v2159, %v2310
        %v2423 = vadd.f32 %v2160, %v2310
        %v2424 = vadd.f32 %v2161, %v2310
        %v2425 = vadd.f32 %v2162, %v2310
        %v2426 = vadd.f32 %v2163, %v2310
        %v2427 = vadd.f32 %v2164, %v2310
        %v2428 = vadd.f32 %v2165, %v2310
        %v2429 = vadd.f32 %v2166, %v2310
        %v2430 = vadd.f32 %v2167, %v2310
        %v2431 = vadd.f32 %v2168, %v2310
        %v2432 = vadd.f32 %v2169, %v2310
        %v2433 = vadd.f32 %v2170, %v2310
        %v2434 = vadd.f32 %v2171, %v2310
        %v2435 = vadd.f32 %v2172, %v2310
        %v2436 = vadd.f32 %v2173, %v2310
        %v2437 = vadd.f32 %v2174, %v2310
        %v2438 = vadd.f32 %v2175, %v2310
        %v2439 = vadd.f32 %v2176, %v2310
        %v2440 = vadd.f32 %v2177, %v2310
        %v2441 = vadd.f32 %v2178, %v2310
        %v2442 = vadd.f32 %v2179, %v2310
        %v2443 = vadd.f32 %v2180, %v2310
        %v2444 = vadd.f32 %v2181, %v2310
        %v2445 = vadd.f32 %v2182, %v2310
        %v2446 = vadd.f32 %v2183, %v2310
        %v2447 = vadd.f32 %v2184, %v2310
        %v2448 = vadd.f32 %v2185, %v2310
        %v2449 = vadd.f32 %v2186, %v2310
        %v2450 = vadd.f32 %v2187, %v2310
        %v2451 = vadd.f32 %v2188, %v2310
        %v2452 = vadd.f32 %v2189, %v2310
        %v2453 = vadd.f32 %v2190, %v2310
        %v2454 = vadd.f32 %v2191, %v2310
        %v2455 = vadd.f32 %v2192, %v2310
        %v2456 = vadd.f32 %v2193, %v2310
        %v2457 = vadd.f32 %v2194, %v2310
        %v2458 = vadd.f32 %v2195, %v2310
        %v2459 = vadd.f32 %v2196, %v2310
        %v2460 = vadd.f32 %v2197, %v2310
        %v2461 = vadd.f32 %v2198, %v2310
        %v2462 = vadd.f32 %v2199, %v2310
        %v2463 = vadd.f32 %v2200, %v2310
        %v2464 = vadd.f32 %v2201, %v2310
        %v2465 = vadd.f32 %v2202, %v2310
        %v2466 = vadd.f32 %v2203, %v2310
        %v2467 = vadd.f32 %v2204, %v2310
        %v2468 = vadd.f32 %v2205, %v2310
        %v2469 = vadd.f32 %v2206, %v2310
        %v2470 = vadd.f32 %v2207, %v2310
        %v2471 = vadd.f32 %v2208, %v2310
        %v2472 = vadd.f32 %v2209, %v2310
        %v2473 = vadd.f32 %v2210, %v2310
        %v2474 = vadd.f32 %v2211, %v2310
        %v2475 = vadd.f32 %v2212, %v2310
        %v2476 = vadd.f32 %v2213, %v2310
        %v2477 = vadd.f32 %v2214, %v2310
        %v2478 = vadd.f32 %v2215, %v2310
        %v2479 = vadd.f32 %v2216, %v2310
        %v2480 = vadd.f32 %v2217, %v2310
        %v2481 = vadd.f32 %v2218, %v2310
        %v2482 = vadd.f32 %v2219, %v2310
        %v2483 = vadd.f32 %v2220, %v2310
        %v2484 = vadd.f32 %v2221, %v2310
        %v2485 = vadd.f32 %v2222, %v2310
        %v2486 = vadd.f32 %v2223, %v2310
        %v2487 = vadd.f32 %v2224, %v2310
        %v2488 = vadd.f32 %v2225, %v2310
        %v2489 = vadd.f32 %v2226, %v2310
        %v2490 = vadd.f32 %v2227, %v2310
        %v2491 = vadd.f32 %v2228, %v2310
        %v2492 = vadd.f32 %v2229, %v2310
        %v2493 = vadd.f32 %v2230, %v2310
        %v2494 = vadd.f32 %v2231, %v2310
        %v2495 = vadd.f32 %v2232, %v2310
        %v2496 = vadd.f32 %v2233, %v2310
        %v2497 = vadd.f32 %v2234, %v2310
        %v2498 = vadd.f32 %v2235, %v2310
        %v2499 = vadd.f32 %v2236, %v2310
        %v2500 = vadd.f32 %v2237, %v2310
        %v2501 = vadd.f32 %v2238, %v2310
        %v2502 = vadd.f32 %v2239, %v2310
        %v2503 = vadd.f32 %v2240, %v2310
        %v2504 = vadd.f32 %v2241, %v2310
        %v2505 = vadd.f32 %v2242, %v2310
        %v2506 = vadd.f32 %v2243, %v2310
        %v2507 = vadd.f32 %v2244, %v2310
        %v2508 = vadd.f32 %v2245, %v2310
        %v2509 = vadd.f32 %v2246, %v2310
        %v2510 = vadd.f32 %v2247, %v2310
        %v2511 = vadd.f32 %v2248, %v2310
        %v2512 = vadd.f32 %v2249, %v2310
        %v2513 = vadd.f32 %v2250, %v2310
        %v2514 = vadd.f32 %v2251, %v2310
        %v2515 = vadd.f32 %v2252, %v2310
        %v2516 = vadd.f32 %v2253, %v2310
        %v2517 = vadd.f32 %v2254, %v2310
        %v2518 = vadd.f32 %v2255, %v2310
        %v2519 = vadd.f32 %v2256, %v2310
        %v2520 = vadd.f32 %v2257, %v2310
        %v2521 = vadd.f32 %v2258, %v2310
        %v2522 = vadd.f32 %v2259, %v2310
        %v2523 = vadd.f32 %v2260, %v2310
        %v2524 = vadd.f32 %v2261, %v2310
        %v2525 = vadd.f32 %v2262, %v2310
        %v2526 = vadd.f32 %v2263, %v2310
        %v2527 = vadd.f32 %v2264, %v2310
        %v2528 = vadd.f32 %v2265, %v2310
        %v2529 = vadd.f32 %v2266, %v2310
        %v2530 = vadd.f32 %v2267, %v2310
        %v2531 = vadd.f32 %v2268, %v2310
        %v2532 = vadd.f32 %v2269, %v2310
        %v2533 = vadd.f32 %v2270, %v2310
        %v2534 = vadd.f32 %v2271, %v2310
        %v2535 = vadd.f32 %v2272, %v2310
        %v2536 = vadd.f32 %v2273, %v2310
        %v2537 = vadd.f32 %v2274, %v2310
        %v2538 = vadd.f32 %v2275, %v2310
        %v2539 = vadd.f32 %v2276, %v2310
        %v2540 = vadd.f32 %v2277, %v2310
        %v2541 = vadd.f32 %v2278, %v2310
        %v2542 = vadd.f32 %v2279, %v2310
        %v2543 = vadd.f32 %v2280, %v2310
        %v2544 = vadd.f32 %v2281, %v2310
        %v2545 = vadd.f32 %v2282, %v2310
        %v2546 = vadd.f32 %v2283, %v2310
        %v2547 = vadd.f32 %v2284, %v2310
        %v2548 = vadd.f32 %v2285, %v2310
        %v2549 = vadd.f32 %v2286, %v2310
        %v2550 = vadd.f32 %v2287, %v2310
        %v2551 = vadd.f32 %v2288, %v2310
        %v2552 = vadd.f32 %v2289, %v2310
        %v2553 = vadd.f32 %v2290, %v2310
        %v2554 = vadd.f32 %v2291, %v2310
        %v2555 = vadd.f32 %v2292, %v2310
        %v2556 = vadd.f32 %v2293, %v2310
        %v2557 = vadd.f32 %v2294, %v2310
        %v2558 = vadd.f32 %v2295, %v2310
        %v2559 = vadd.f32 %v2296, %v2310
        %v2560 = vadd.f32 %v2297, %v2310
        %v2561 = vadd.f32 %v2298, %v2310
        %v2562 = vadd.f32 %v2299, %v2310
        %v2563 = vadd.f32 %v2300, %v2310
        %v2564 = vadd.f32 %v2301, %v2310
        %v2565 = vadd.f32 %v2302, %v2310
        %v2566 = vadd.f32 %v2303, %v2310
        %v2567 = vadd.f32 %v2304, %v2310
        %v2568 = vmax.f32 %v2312, 0.0
        %v2569 = vmax.f32 %v2313, 0.0
        %v2570 = vmax.f32 %v2314, 0.0
        %v2571 = vmax.f32 %v2315, 0.0
        %v2572 = vmax.f32 %v2316, 0.0
        %v2573 = vmax.f32 %v2317, 0.0
        %v2574 = vmax.f32 %v2318, 0.0
        %v2575 = vmax.f32 %v2319, 0.0
        %v2576 = vmax.f32 %v2320, 0.0
        %v2577 = vmax.f32 %v2321, 0.0
        %v2578 = vmax.f32 %v2322, 0.0
        %v2579 = vmax.f32 %v2323, 0.0
        %v2580 = vmax.f32 %v2324, 0.0
        %v2581 = vmax.f32 %v2325, 0.0
        %v2582 = vmax.f32 %v2326, 0.0
        %v2583 = vmax.f32 %v2327, 0.0
        %v2584 = vmax.f32 %v2328, 0.0
        %v2585 = vmax.f32 %v2329, 0.0
        %v2586 = vmax.f32 %v2330, 0.0
        %v2587 = vmax.f32 %v2331, 0.0
        %v2588 = vmax.f32 %v2332, 0.0
        %v2589 = vmax.f32 %v2333, 0.0
        %v2590 = vmax.f32 %v2334, 0.0
        %v2591 = vmax.f32 %v2335, 0.0
        %v2592 = vmax.f32 %v2336, 0.0
        %v2593 = vmax.f32 %v2337, 0.0
        %v2594 = vmax.f32 %v2338, 0.0
        %v2595 = vmax.f32 %v2339, 0.0
        %v2596 = vmax.f32 %v2340, 0.0
        %v2597 = vmax.f32 %v2341, 0.0
        %v2598 = vmax.f32 %v2342, 0.0
        %v2599 = vmax.f32 %v2343, 0.0
        %v2600 = vmax.f32 %v2344, 0.0
        %v2601 = vmax.f32 %v2345, 0.0
        %v2602 = vmax.f32 %v2346, 0.0
        %v2603 = vmax.f32 %v2347, 0.0
        %v2604 = vmax.f32 %v2348, 0.0
        %v2605 = vmax.f32 %v2349, 0.0
        %v2606 = vmax.f32 %v2350, 0.0
        %v2607 = vmax.f32 %v2351, 0.0
        %v2608 = vmax.f32 %v2352, 0.0
        %v2609 = vmax.f32 %v2353, 0.0
        %v2610 = vmax.f32 %v2354, 0.0
        %v2611 = vmax.f32 %v2355, 0.0
        %v2612 = vmax.f32 %v2356, 0.0
        %v2613 = vmax.f32 %v2357, 0.0
        %v2614 = vmax.f32 %v2358, 0.0
        %v2615 = vmax.f32 %v2359, 0.0
        %v2616 = vmax.f32 %v2360, 0.0
        %v2617 = vmax.f32 %v2361, 0.0
        %v2618 = vmax.f32 %v2362, 0.0
        %v2619 = vmax.f32 %v2363, 0.0
        %v2620 = vmax.f32 %v2364, 0.0
        %v2621 = vmax.f32 %v2365, 0.0
        %v2622 = vmax.f32 %v2366, 0.0
        %v2623 = vmax.f32 %v2367, 0.0
        %v2624 = vmax.f32 %v2368, 0.0
        %v2625 = vmax.f32 %v2369, 0.0
        %v2626 = vmax.f32 %v2370, 0.0
        %v2627 = vmax.f32 %v2371, 0.0
        %v2628 = vmax.f32 %v2372, 0.0
        %v2629 = vmax.f32 %v2373, 0.0
        %v2630 = vmax.f32 %v2374, 0.0
        %v2631 = vmax.f32 %v2375, 0.0
        %v2632 = vmax.f32 %v2376, 0.0
        %v2633 = vmax.f32 %v2377, 0.0
        %v2634 = vmax.f32 %v2378, 0.0
        %v2635 = vmax.f32 %v2379, 0.0
        %v2636 = vmax.f32 %v2380, 0.0
        %v2637 = vmax.f32 %v2381, 0.0
        %v2638 = vmax.f32 %v2382, 0.0
        %v2639 = vmax.f32 %v2383, 0.0
        %v2640 = vmax.f32 %v2384, 0.0
        %v2641 = vmax.f32 %v2385, 0.0
        %v2642 = vmax.f32 %v2386, 0.0
        %v2643 = vmax.f32 %v2387, 0.0
        %v2644 = vmax.f32 %v2388, 0.0
        %v2645 = vmax.f32 %v2389, 0.0
        %v2646 = vmax.f32 %v2390, 0.0
        %v2647 = vmax.f32 %v2391, 0.0
        %v2648 = vmax.f32 %v2392, 0.0
        %v2649 = vmax.f32 %v2393, 0.0
        %v2650 = vmax.f32 %v2394, 0.0
        %v2651 = vmax.f32 %v2395, 0.0
        %v2652 = vmax.f32 %v2396, 0.0
        %v2653 = vmax.f32 %v2397, 0.0
        %v2654 = vmax.f32 %v2398, 0.0
        %v2655 = vmax.f32 %v2399, 0.0
        %v2656 = vmax.f32 %v2400, 0.0
        %v2657 = vmax.f32 %v2401, 0.0
        %v2658 = vmax.f32 %v2402, 0.0
        %v2659 = vmax.f32 %v2403, 0.0
        %v2660 = vmax.f32 %v2404, 0.0
        %v2661 = vmax.f32 %v2405, 0.0
        %v2662 = vmax.f32 %v2406, 0.0
        %v2663 = vmax.f32 %v2407, 0.0
        %v2664 = vmax.f32 %v2408, 0.0
        %v2665 = vmax.f32 %v2409, 0.0
        %v2666 = vmax.f32 %v2410, 0.0
        %v2667 = vmax.f32 %v2411, 0.0
        %v2668 = vmax.f32 %v2412, 0.0
        %v2669 = vmax.f32 %v2413, 0.0
        %v2670 = vmax.f32 %v2414, 0.0
        %v2671 = vmax.f32 %v2415, 0.0
        %v2672 = vmax.f32 %v2416, 0.0
        %v2673 = vmax.f32 %v2417, 0.0
        %v2674 = vmax.f32 %v2418, 0.0
        %v2675 = vmax.f32 %v2419, 0.0
        %v2676 = vmax.f32 %v2420, 0.0
        %v2677 = vmax.f32 %v2421, 0.0
        %v2678 = vmax.f32 %v2422, 0.0
        %v2679 = vmax.f32 %v2423, 0.0
        %v2680 = vmax.f32 %v2424, 0.0
        %v2681 = vmax.f32 %v2425, 0.0
        %v2682 = vmax.f32 %v2426, 0.0
        %v2683 = vmax.f32 %v2427, 0.0
        %v2684 = vmax.f32 %v2428, 0.0
        %v2685 = vmax.f32 %v2429, 0.0
        %v2686 = vmax.f32 %v2430, 0.0
        %v2687 = vmax.f32 %v2431, 0.0
        %v2688 = vmax.f32 %v2432, 0.0
        %v2689 = vmax.f32 %v2433, 0.0
        %v2690 = vmax.f32 %v2434, 0.0
        %v2691 = vmax.f32 %v2435, 0.0
        %v2692 = vmax.f32 %v2436, 0.0
        %v2693 = vmax.f32 %v2437, 0.0
        %v2694 = vmax.f32 %v2438, 0.0
        %v2695 = vmax.f32 %v2439, 0.0
        %v2696 = vmax.f32 %v2440, 0.0
        %v2697 = vmax.f32 %v2441, 0.0
        %v2698 = vmax.f32 %v2442, 0.0
        %v2699 = vmax.f32 %v2443, 0.0
        %v2700 = vmax.f32 %v2444, 0.0
        %v2701 = vmax.f32 %v2445, 0.0
        %v2702 = vmax.f32 %v2446, 0.0
        %v2703 = vmax.f32 %v2447, 0.0
        %v2704 = vmax.f32 %v2448, 0.0
        %v2705 = vmax.f32 %v2449, 0.0
        %v2706 = vmax.f32 %v2450, 0.0
        %v2707 = vmax.f32 %v2451, 0.0
        %v2708 = vmax.f32 %v2452, 0.0
        %v2709 = vmax.f32 %v2453, 0.0
        %v2710 = vmax.f32 %v2454, 0.0
        %v2711 = vmax.f32 %v2455, 0.0
        %v2712 = vmax.f32 %v2456, 0.0
        %v2713 = vmax.f32 %v2457, 0.0
        %v2714 = vmax.f32 %v2458, 0.0
        %v2715 = vmax.f32 %v2459, 0.0
        %v2716 = vmax.f32 %v2460, 0.0
        %v2717 = vmax.f32 %v2461, 0.0
        %v2718 = vmax.f32 %v2462, 0.0
        %v2719 = vmax.f32 %v2463, 0.0
        %v2720 = vmax.f32 %v2464, 0.0
        %v2721 = vmax.f32 %v2465, 0.0
        %v2722 = vmax.f32 %v2466, 0.0
        %v2723 = vmax.f32 %v2467, 0.0
        %v2724 = vmax.f32 %v2468, 0.0
        %v2725 = vmax.f32 %v2469, 0.0
        %v2726 = vmax.f32 %v2470, 0.0
        %v2727 = vmax.f32 %v2471, 0.0
        %v2728 = vmax.f32 %v2472, 0.0
        %v2729 = vmax.f32 %v2473, 0.0
        %v2730 = vmax.f32 %v2474, 0.0
        %v2731 = vmax.f32 %v2475, 0.0
        %v2732 = vmax.f32 %v2476, 0.0
        %v2733 = vmax.f32 %v2477, 0.0
        %v2734 = vmax.f32 %v2478, 0.0
        %v2735 = vmax.f32 %v2479, 0.0
        %v2736 = vmax.f32 %v2480, 0.0
        %v2737 = vmax.f32 %v2481, 0.0
        %v2738 = vmax.f32 %v2482, 0.0
        %v2739 = vmax.f32 %v2483, 0.0
        %v2740 = vmax.f32 %v2484, 0.0
        %v2741 = vmax.f32 %v2485, 0.0
        %v2742 = vmax.f32 %v2486, 0.0
        %v2743 = vmax.f32 %v2487, 0.0
        %v2744 = vmax.f32 %v2488, 0.0
        %v2745 = vmax.f32 %v2489, 0.0
        %v2746 = vmax.f32 %v2490, 0.0
        %v2747 = vmax.f32 %v2491, 0.0
        %v2748 = vmax.f32 %v2492, 0.0
        %v2749 = vmax.f32 %v2493, 0.0
        %v2750 = vmax.f32 %v2494, 0.0
        %v2751 = vmax.f32 %v2495, 0.0
        %v2752 = vmax.f32 %v2496, 0.0
        %v2753 = vmax.f32 %v2497, 0.0
        %v2754 = vmax.f32 %v2498, 0.0
        %v2755 = vmax.f32 %v2499, 0.0
        %v2756 = vmax.f32 %v2500, 0.0
        %v2757 = vmax.f32 %v2501, 0.0
        %v2758 = vmax.f32 %v2502, 0.0
        %v2759 = vmax.f32 %v2503, 0.0
        %v2760 = vmax.f32 %v2504, 0.0
        %v2761 = vmax.f32 %v2505, 0.0
        %v2762 = vmax.f32 %v2506, 0.0
        %v2763 = vmax.f32 %v2507, 0.0
        %v2764 = vmax.f32 %v2508, 0.0
        %v2765 = vmax.f32 %v2509, 0.0
        %v2766 = vmax.f32 %v2510, 0.0
        %v2767 = vmax.f32 %v2511, 0.0
        %v2768 = vmax.f32 %v2512, 0.0
        %v2769 = vmax.f32 %v2513, 0.0
        %v2770 = vmax.f32 %v2514, 0.0
        %v2771 = vmax.f32 %v2515, 0.0
        %v2772 = vmax.f32 %v2516, 0.0
        %v2773 = vmax.f32 %v2517, 0.0
        %v2774 = vmax.f32 %v2518, 0.0
        %v2775 = vmax.f32 %v2519, 0.0
        %v2776 = vmax.f32 %v2520, 0.0
        %v2777 = vmax.f32 %v2521, 0.0
        %v2778 = vmax.f32 %v2522, 0.0
        %v2779 = vmax.f32 %v2523, 0.0
        %v2780 = vmax.f32 %v2524, 0.0
        %v2781 = vmax.f32 %v2525, 0.0
        %v2782 = vmax.f32 %v2526, 0.0
        %v2783 = vmax.f32 %v2527, 0.0
        %v2784 = vmax.f32 %v2528, 0.0
        %v2785 = vmax.f32 %v2529, 0.0
        %v2786 = vmax.f32 %v2530, 0.0
        %v2787 = vmax.f32 %v2531, 0.0
        %v2788 = vmax.f32 %v2532, 0.0
        %v2789 = vmax.f32 %v2533, 0.0
        %v2790 = vmax.f32 %v2534, 0.0
        %v2791 = vmax.f32 %v2535, 0.0
        %v2792 = vmax.f32 %v2536, 0.0
        %v2793 = vmax.f32 %v2537, 0.0
        %v2794 = vmax.f32 %v2538, 0.0
        %v2795 = vmax.f32 %v2539, 0.0
        %v2796 = vmax.f32 %v2540, 0.0
        %v2797 = vmax.f32 %v2541, 0.0
        %v2798 = vmax.f32 %v2542, 0.0
        %v2799 = vmax.f32 %v2543, 0.0
        %v2800 = vmax.f32 %v2544, 0.0
        %v2801 = vmax.f32 %v2545, 0.0
        %v2802 = vmax.f32 %v2546, 0.0
        %v2803 = vmax.f32 %v2547, 0.0
        %v2804 = vmax.f32 %v2548, 0.0
        %v2805 = vmax.f32 %v2549, 0.0
        %v2806 = vmax.f32 %v2550, 0.0
        %v2807 = vmax.f32 %v2551, 0.0
        %v2808 = vmax.f32 %v2552, 0.0
        %v2809 = vmax.f32 %v2553, 0.0
        %v2810 = vmax.f32 %v2554, 0.0
        %v2811 = vmax.f32 %v2555, 0.0
        %v2812 = vmax.f32 %v2556, 0.0
        %v2813 = vmax.f32 %v2557, 0.0
        %v2814 = vmax.f32 %v2558, 0.0
        %v2815 = vmax.f32 %v2559, 0.0
        %v2816 = vmax.f32 %v2560, 0.0
        %v2817 = vmax.f32 %v2561, 0.0
        %v2818 = vmax.f32 %v2562, 0.0
        %v2819 = vmax.f32 %v2563, 0.0
        %v2820 = vmax.f32 %v2564, 0.0
        %v2821 = vmax.f32 %v2565, 0.0
        %v2822 = vmax.f32 %v2566, 0.0
        %v2823 = vmax.f32 %v2567, 0.0
        %v2824 = vld [vmem:[%s484] sm:$0x1]
        %v2825 = vld [vmem:[%s4] sm:$0xf]
        %v2826 = vld [vmem:[%s5] sm:$0x1]
        %vm2827 = vcmask 31744
        %v2829 = vsel %vm2827, %v2824, 0
        %vm2831 = vcmask 1043456
        %v2833 = vsel %vm2831, %v2825, 0
        %2835 = vmatprep.subr.mxu0 0.0
        %2836 = vmatpush1.msra.mxu0 %v2833
        %2837 = vmatprep.subr.mxu0 0.0
        %2838 = vmatpush1.msra.mxu0 0.0
        %2839 = vmatprep.subr.mxu0 0.0
        %2840 = vmatpush1.msra.mxu0 0.0
        %2841 = vmatprep.subr.mxu0 0.0
        %2842 = vmatpush1.msra.mxu0 0.0
        %2843 = vmatprep.subr.mxu0 0.0
        %2844 = vmatpush1.msra.mxu0 0.0
        %2845 = vmatprep.subr.mxu0 0.0
        %2846 = vmatpush1.msra.mxu0 0.0
        %2847 = vmatprep.subr.mxu0 0.0
        %2848 = vmatpush1.msra.mxu0 0.0
        %2849 = vmatprep.subr.mxu0 0.0
        %2850 = vmatpush1.msra.mxu0 0.0
        %2851 = vmatprep.subr.mxu0 0.0
        %2852 = vmatpush1.msra.mxu0 0.0
        %2853 = vmatprep.subr.mxu0 0.0
        %2854 = vmatpush1.msra.mxu0 0.0
        %2855 = vmatprep.subr.mxu0 0.0
        %2856 = vmatpush1.msra.mxu0 0.0
        %2857 = vmatprep.subr.mxu0 0.0
        %2858 = vmatpush1.msra.mxu0 0.0
        %2859 = vmatprep.subr.mxu0 0.0
        %2860 = vmatpush1.msra.mxu0 0.0
        %2861 = vmatprep.subr.mxu0 0.0
        %2862 = vmatpush1.msra.mxu0 0.0
        %2863 = vmatprep.subr.mxu0 0.0
        %2864 = vmatpush1.msra.mxu0 0.0
        %2865 = vmatprep.subr.mxu0 0.0
        %2866 = vmatpush1.msra.mxu0 0.0
        %2867 = vmatprep.subr.mxu0 0.0
        %2868 = vmatpush1.msra.mxu0 0.0
        %2869 = vmatprep.subr.mxu0 0.0
        %2870 = vmatpush1.msra.mxu0 0.0
        %2871 = vmatprep.subr.mxu0 0.0
        %2872 = vmatpush1.msra.mxu0 0.0
        %2873 = vmatprep.subr.mxu0 0.0
        %2874 = vmatpush1.msra.mxu0 0.0
        %2875 = vmatprep.subr.mxu0 0.0
        %2876 = vmatpush1.msra.mxu0 0.0
        %2877 = vmatprep.subr.mxu0 0.0
        %2878 = vmatpush1.msra.mxu0 0.0
        %2879 = vmatprep.subr.mxu0 0.0
        %2880 = vmatpush1.msra.mxu0 0.0
        %2881 = vmatprep.subr.mxu0 0.0
        %2882 = vmatpush1.msra.mxu0 0.0
        %2883 = vmatprep.subr.mxu0 0.0
        %2884 = vmatpush1.msra.mxu0 0.0
        %2885 = vmatprep.subr.mxu0 0.0
        %2886 = vmatpush1.msra.mxu0 0.0
        %2887 = vmatprep.subr.mxu0 0.0
        %2888 = vmatpush1.msra.mxu0 0.0
        %2889 = vmatprep.subr.mxu0 0.0
        %2890 = vmatpush1.msra.mxu0 0.0
        %2891 = vmatprep.subr.mxu0 0.0
        %2892 = vmatpush1.msra.mxu0 0.0
        %2893 = vmatprep.subr.mxu0 0.0
        %2894 = vmatpush1.msra.mxu0 0.0
        %2895 = vmatprep.subr.mxu0 0.0
        %2896 = vmatpush1.msra.mxu0 0.0
        %2897 = vmatprep.subr.mxu0 0.0
        %2898 = vmatpush1.msra.mxu0 0.0
        %2899 = vmatprep.mubr.f32.mxu0 0.0
        %2900 = vmatmul.mubr.f32.gmra.mrb[0].mxu0 %v2829
        %v2901 = vpop.f32.mrb[0].mxu0
        %v2902 = vadd.f32 %v2826, %v2901
        %v2903 = vpop.f32.mrb[0].mxu0
        %2904 = vdwg.mxu0
        %v2905 = vlaneseq
        %v2906 = vshrl.u32 %v2905, 7
        %v2907 = vsub.s32 0, %v2906
        %v2908 = vrot.slane %v2902, %v2907
        %v2909 = vadd.f32 %v2568, %v2908
        %v2910 = vadd.f32 %v2569, %v2908
        %v2911 = vadd.f32 %v2570, %v2908
        %v2912 = vadd.f32 %v2571, %v2908
        %v2913 = vadd.f32 %v2572, %v2908
        %v2914 = vadd.f32 %v2573, %v2908
        %v2915 = vadd.f32 %v2574, %v2908
        %v2916 = vadd.f32 %v2575, %v2908
        %v2917 = vadd.f32 %v2576, %v2908
        %v2918 = vadd.f32 %v2577, %v2908
        %v2919 = vadd.f32 %v2578, %v2908
        %v2920 = vadd.f32 %v2579, %v2908
        %v2921 = vadd.f32 %v2580, %v2908
        %v2922 = vadd.f32 %v2581, %v2908
        %v2923 = vadd.f32 %v2582, %v2908
        %v2924 = vadd.f32 %v2583, %v2908
        %v2925 = vadd.f32 %v2584, %v2908
        %v2926 = vadd.f32 %v2585, %v2908
        %v2927 = vadd.f32 %v2586, %v2908
        %v2928 = vadd.f32 %v2587, %v2908
        %v2929 = vadd.f32 %v2588, %v2908
        %v2930 = vadd.f32 %v2589, %v2908
        %v2931 = vadd.f32 %v2590, %v2908
        %v2932 = vadd.f32 %v2591, %v2908
        %v2933 = vadd.f32 %v2592, %v2908
        %v2934 = vadd.f32 %v2593, %v2908
        %v2935 = vadd.f32 %v2594, %v2908
        %v2936 = vadd.f32 %v2595, %v2908
        %v2937 = vadd.f32 %v2596, %v2908
        %v2938 = vadd.f32 %v2597, %v2908
        %v2939 = vadd.f32 %v2598, %v2908
        %v2940 = vadd.f32 %v2599, %v2908
        %v2941 = vadd.f32 %v2600, %v2908
        %v2942 = vadd.f32 %v2601, %v2908
        %v2943 = vadd.f32 %v2602, %v2908
        %v2944 = vadd.f32 %v2603, %v2908
        %v2945 = vadd.f32 %v2604, %v2908
        %v2946 = vadd.f32 %v2605, %v2908
        %v2947 = vadd.f32 %v2606, %v2908
        %v2948 = vadd.f32 %v2607, %v2908
        %v2949 = vadd.f32 %v2608, %v2908
        %v2950 = vadd.f32 %v2609, %v2908
        %v2951 = vadd.f32 %v2610, %v2908
        %v2952 = vadd.f32 %v2611, %v2908
        %v2953 = vadd.f32 %v2612, %v2908
        %v2954 = vadd.f32 %v2613, %v2908
        %v2955 = vadd.f32 %v2614, %v2908
        %v2956 = vadd.f32 %v2615, %v2908
        %v2957 = vadd.f32 %v2616, %v2908
        %v2958 = vadd.f32 %v2617, %v2908
        %v2959 = vadd.f32 %v2618, %v2908
        %v2960 = vadd.f32 %v2619, %v2908
        %v2961 = vadd.f32 %v2620, %v2908
        %v2962 = vadd.f32 %v2621, %v2908
        %v2963 = vadd.f32 %v2622, %v2908
        %v2964 = vadd.f32 %v2623, %v2908
        %v2965 = vadd.f32 %v2624, %v2908
        %v2966 = vadd.f32 %v2625, %v2908
        %v2967 = vadd.f32 %v2626, %v2908
        %v2968 = vadd.f32 %v2627, %v2908
        %v2969 = vadd.f32 %v2628, %v2908
        %v2970 = vadd.f32 %v2629, %v2908
        %v2971 = vadd.f32 %v2630, %v2908
        %v2972 = vadd.f32 %v2631, %v2908
        %v2973 = vadd.f32 %v2632, %v2908
        %v2974 = vadd.f32 %v2633, %v2908
        %v2975 = vadd.f32 %v2634, %v2908
        %v2976 = vadd.f32 %v2635, %v2908
        %v2977 = vadd.f32 %v2636, %v2908
        %v2978 = vadd.f32 %v2637, %v2908
        %v2979 = vadd.f32 %v2638, %v2908
        %v2980 = vadd.f32 %v2639, %v2908
        %v2981 = vadd.f32 %v2640, %v2908
        %v2982 = vadd.f32 %v2641, %v2908
        %v2983 = vadd.f32 %v2642, %v2908
        %v2984 = vadd.f32 %v2643, %v2908
        %v2985 = vadd.f32 %v2644, %v2908
        %v2986 = vadd.f32 %v2645, %v2908
        %v2987 = vadd.f32 %v2646, %v2908
        %v2988 = vadd.f32 %v2647, %v2908
        %v2989 = vadd.f32 %v2648, %v2908
        %v2990 = vadd.f32 %v2649, %v2908
        %v2991 = vadd.f32 %v2650, %v2908
        %v2992 = vadd.f32 %v2651, %v2908
        %v2993 = vadd.f32 %v2652, %v2908
        %v2994 = vadd.f32 %v2653, %v2908
        %v2995 = vadd.f32 %v2654, %v2908
        %v2996 = vadd.f32 %v2655, %v2908
        %v2997 = vadd.f32 %v2656, %v2908
        %v2998 = vadd.f32 %v2657, %v2908
        %v2999 = vadd.f32 %v2658, %v2908
        %v3000 = vadd.f32 %v2659, %v2908
        %v3001 = vadd.f32 %v2660, %v2908
        %v3002 = vadd.f32 %v2661, %v2908
        %v3003 = vadd.f32 %v2662, %v2908
        %v3004 = vadd.f32 %v2663, %v2908
        %v3005 = vadd.f32 %v2664, %v2908
        %v3006 = vadd.f32 %v2665, %v2908
        %v3007 = vadd.f32 %v2666, %v2908
        %v3008 = vadd.f32 %v2667, %v2908
        %v3009 = vadd.f32 %v2668, %v2908
        %v3010 = vadd.f32 %v2669, %v2908
        %v3011 = vadd.f32 %v2670, %v2908
        %v3012 = vadd.f32 %v2671, %v2908
        %v3013 = vadd.f32 %v2672, %v2908
        %v3014 = vadd.f32 %v2673, %v2908
        %v3015 = vadd.f32 %v2674, %v2908
        %v3016 = vadd.f32 %v2675, %v2908
        %v3017 = vadd.f32 %v2676, %v2908
        %v3018 = vadd.f32 %v2677, %v2908
        %v3019 = vadd.f32 %v2678, %v2908
        %v3020 = vadd.f32 %v2679, %v2908
        %v3021 = vadd.f32 %v2680, %v2908
        %v3022 = vadd.f32 %v2681, %v2908
        %v3023 = vadd.f32 %v2682, %v2908
        %v3024 = vadd.f32 %v2683, %v2908
        %v3025 = vadd.f32 %v2684, %v2908
        %v3026 = vadd.f32 %v2685, %v2908
        %v3027 = vadd.f32 %v2686, %v2908
        %v3028 = vadd.f32 %v2687, %v2908
        %v3029 = vadd.f32 %v2688, %v2908
        %v3030 = vadd.f32 %v2689, %v2908
        %v3031 = vadd.f32 %v2690, %v2908
        %v3032 = vadd.f32 %v2691, %v2908
        %v3033 = vadd.f32 %v2692, %v2908
        %v3034 = vadd.f32 %v2693, %v2908
        %v3035 = vadd.f32 %v2694, %v2908
        %v3036 = vadd.f32 %v2695, %v2908
        %v3037 = vadd.f32 %v2696, %v2908
        %v3038 = vadd.f32 %v2697, %v2908
        %v3039 = vadd.f32 %v2698, %v2908
        %v3040 = vadd.f32 %v2699, %v2908
        %v3041 = vadd.f32 %v2700, %v2908
        %v3042 = vadd.f32 %v2701, %v2908
        %v3043 = vadd.f32 %v2702, %v2908
        %v3044 = vadd.f32 %v2703, %v2908
        %v3045 = vadd.f32 %v2704, %v2908
        %v3046 = vadd.f32 %v2705, %v2908
        %v3047 = vadd.f32 %v2706, %v2908
        %v3048 = vadd.f32 %v2707, %v2908
        %v3049 = vadd.f32 %v2708, %v2908
        %v3050 = vadd.f32 %v2709, %v2908
        %v3051 = vadd.f32 %v2710, %v2908
        %v3052 = vadd.f32 %v2711, %v2908
        %v3053 = vadd.f32 %v2712, %v2908
        %v3054 = vadd.f32 %v2713, %v2908
        %v3055 = vadd.f32 %v2714, %v2908
        %v3056 = vadd.f32 %v2715, %v2908
        %v3057 = vadd.f32 %v2716, %v2908
        %v3058 = vadd.f32 %v2717, %v2908
        %v3059 = vadd.f32 %v2718, %v2908
        %v3060 = vadd.f32 %v2719, %v2908
        %v3061 = vadd.f32 %v2720, %v2908
        %v3062 = vadd.f32 %v2721, %v2908
        %v3063 = vadd.f32 %v2722, %v2908
        %v3064 = vadd.f32 %v2723, %v2908
        %v3065 = vadd.f32 %v2724, %v2908
        %v3066 = vadd.f32 %v2725, %v2908
        %v3067 = vadd.f32 %v2726, %v2908
        %v3068 = vadd.f32 %v2727, %v2908
        %v3069 = vadd.f32 %v2728, %v2908
        %v3070 = vadd.f32 %v2729, %v2908
        %v3071 = vadd.f32 %v2730, %v2908
        %v3072 = vadd.f32 %v2731, %v2908
        %v3073 = vadd.f32 %v2732, %v2908
        %v3074 = vadd.f32 %v2733, %v2908
        %v3075 = vadd.f32 %v2734, %v2908
        %v3076 = vadd.f32 %v2735, %v2908
        %v3077 = vadd.f32 %v2736, %v2908
        %v3078 = vadd.f32 %v2737, %v2908
        %v3079 = vadd.f32 %v2738, %v2908
        %v3080 = vadd.f32 %v2739, %v2908
        %v3081 = vadd.f32 %v2740, %v2908
        %v3082 = vadd.f32 %v2741, %v2908
        %v3083 = vadd.f32 %v2742, %v2908
        %v3084 = vadd.f32 %v2743, %v2908
        %v3085 = vadd.f32 %v2744, %v2908
        %v3086 = vadd.f32 %v2745, %v2908
        %v3087 = vadd.f32 %v2746, %v2908
        %v3088 = vadd.f32 %v2747, %v2908
        %v3089 = vadd.f32 %v2748, %v2908
        %v3090 = vadd.f32 %v2749, %v2908
        %v3091 = vadd.f32 %v2750, %v2908
        %v3092 = vadd.f32 %v2751, %v2908
        %v3093 = vadd.f32 %v2752, %v2908
        %v3094 = vadd.f32 %v2753, %v2908
        %v3095 = vadd.f32 %v2754, %v2908
        %v3096 = vadd.f32 %v2755, %v2908
        %v3097 = vadd.f32 %v2756, %v2908
        %v3098 = vadd.f32 %v2757, %v2908
        %v3099 = vadd.f32 %v2758, %v2908
        %v3100 = vadd.f32 %v2759, %v2908
        %v3101 = vadd.f32 %v2760, %v2908
        %v3102 = vadd.f32 %v2761, %v2908
        %v3103 = vadd.f32 %v2762, %v2908
        %v3104 = vadd.f32 %v2763, %v2908
        %v3105 = vadd.f32 %v2764, %v2908
        %v3106 = vadd.f32 %v2765, %v2908
        %v3107 = vadd.f32 %v2766, %v2908
        %v3108 = vadd.f32 %v2767, %v2908
        %v3109 = vadd.f32 %v2768, %v2908
        %v3110 = vadd.f32 %v2769, %v2908
        %v3111 = vadd.f32 %v2770, %v2908
        %v3112 = vadd.f32 %v2771, %v2908
        %v3113 = vadd.f32 %v2772, %v2908
        %v3114 = vadd.f32 %v2773, %v2908
        %v3115 = vadd.f32 %v2774, %v2908
        %v3116 = vadd.f32 %v2775, %v2908
        %v3117 = vadd.f32 %v2776, %v2908
        %v3118 = vadd.f32 %v2777, %v2908
        %v3119 = vadd.f32 %v2778, %v2908
        %v3120 = vadd.f32 %v2779, %v2908
        %v3121 = vadd.f32 %v2780, %v2908
        %v3122 = vadd.f32 %v2781, %v2908
        %v3123 = vadd.f32 %v2782, %v2908
        %v3124 = vadd.f32 %v2783, %v2908
        %v3125 = vadd.f32 %v2784, %v2908
        %v3126 = vadd.f32 %v2785, %v2908
        %v3127 = vadd.f32 %v2786, %v2908
        %v3128 = vadd.f32 %v2787, %v2908
        %v3129 = vadd.f32 %v2788, %v2908
        %v3130 = vadd.f32 %v2789, %v2908
        %v3131 = vadd.f32 %v2790, %v2908
        %v3132 = vadd.f32 %v2791, %v2908
        %v3133 = vadd.f32 %v2792, %v2908
        %v3134 = vadd.f32 %v2793, %v2908
        %v3135 = vadd.f32 %v2794, %v2908
        %v3136 = vadd.f32 %v2795, %v2908
        %v3137 = vadd.f32 %v2796, %v2908
        %v3138 = vadd.f32 %v2797, %v2908
        %v3139 = vadd.f32 %v2798, %v2908
        %v3140 = vadd.f32 %v2799, %v2908
        %v3141 = vadd.f32 %v2800, %v2908
        %v3142 = vadd.f32 %v2801, %v2908
        %v3143 = vadd.f32 %v2802, %v2908
        %v3144 = vadd.f32 %v2803, %v2908
        %v3145 = vadd.f32 %v2804, %v2908
        %v3146 = vadd.f32 %v2805, %v2908
        %v3147 = vadd.f32 %v2806, %v2908
        %v3148 = vadd.f32 %v2807, %v2908
        %v3149 = vadd.f32 %v2808, %v2908
        %v3150 = vadd.f32 %v2809, %v2908
        %v3151 = vadd.f32 %v2810, %v2908
        %v3152 = vadd.f32 %v2811, %v2908
        %v3153 = vadd.f32 %v2812, %v2908
        %v3154 = vadd.f32 %v2813, %v2908
        %v3155 = vadd.f32 %v2814, %v2908
        %v3156 = vadd.f32 %v2815, %v2908
        %v3157 = vadd.f32 %v2816, %v2908
        %v3158 = vadd.f32 %v2817, %v2908
        %v3159 = vadd.f32 %v2818, %v2908
        %v3160 = vadd.f32 %v2819, %v2908
        %v3161 = vadd.f32 %v2820, %v2908
        %v3162 = vadd.f32 %v2821, %v2908
        %v3163 = vadd.f32 %v2822, %v2908
        %v3164 = vadd.f32 %v2823, %v2908
        %v3165 = vld [vmem:[%s6] sm:$0xff]
        %v3166 = vld [vmem:[%s6 + $0x8] sm:$0xff]
        %v3167 = vld [vmem:[%s6 + $0x10] sm:$0xff]
        %v3168 = vld [vmem:[%s6 + $0x18] sm:$0xff]
        %v3169 = vld [vmem:[%s7] sm:$0x1]
        %v3171 = vlaneseq
        %v3172 = vshrl.u32 %v3171, 7
        %v3173 = vsub.s32 0, %v3172
        %v3174 = vrot.slane %v3169, %v3173
        %vm3176 = vcmask 261120
        %v3178 = vsel %vm3176, %v2909, 0
        %v3181 = vsel %vm3176, %v2910, 0
        %v3184 = vsel %vm3176, %v2911, 0
        %v3187 = vsel %vm3176, %v2912, 0
        %v3190 = vsel %vm3176, %v2913, 0
        %v3193 = vsel %vm3176, %v2914, 0
        %v3196 = vsel %vm3176, %v2915, 0
        %v3199 = vsel %vm3176, %v2916, 0
        %v3202 = vsel %vm3176, %v2917, 0
        %v3205 = vsel %vm3176, %v2918, 0
        %v3208 = vsel %vm3176, %v2919, 0
        %v3211 = vsel %vm3176, %v2920, 0
        %v3214 = vsel %vm3176, %v2921, 0
        %v3217 = vsel %vm3176, %v2922, 0
        %v3220 = vsel %vm3176, %v2923, 0
        %v3223 = vsel %vm3176, %v2924, 0
        %v3226 = vsel %vm3176, %v2925, 0
        %v3229 = vsel %vm3176, %v2926, 0
        %v3232 = vsel %vm3176, %v2927, 0
        %v3235 = vsel %vm3176, %v2928, 0
        %v3238 = vsel %vm3176, %v2929, 0
        %v3241 = vsel %vm3176, %v2930, 0
        %v3244 = vsel %vm3176, %v2931, 0
        %v3247 = vsel %vm3176, %v2932, 0
        %v3250 = vsel %vm3176, %v2933, 0
        %v3253 = vsel %vm3176, %v2934, 0
        %v3256 = vsel %vm3176, %v2935, 0
        %v3259 = vsel %vm3176, %v2936, 0
        %v3262 = vsel %vm3176, %v2937, 0
        %v3265 = vsel %vm3176, %v2938, 0
        %v3268 = vsel %vm3176, %v2939, 0
        %v3271 = vsel %vm3176, %v2940, 0
        %v3274 = vsel %vm3176, %v2941, 0
        %v3277 = vsel %vm3176, %v2942, 0
        %v3280 = vsel %vm3176, %v2943, 0
        %v3283 = vsel %vm3176, %v2944, 0
        %v3286 = vsel %vm3176, %v2945, 0
        %v3289 = vsel %vm3176, %v2946, 0
        %v3292 = vsel %vm3176, %v2947, 0
        %v3295 = vsel %vm3176, %v2948, 0
        %v3298 = vsel %vm3176, %v2949, 0
        %v3301 = vsel %vm3176, %v2950, 0
        %v3304 = vsel %vm3176, %v2951, 0
        %v3307 = vsel %vm3176, %v2952, 0
        %v3310 = vsel %vm3176, %v2953, 0
        %v3313 = vsel %vm3176, %v2954, 0
        %v3316 = vsel %vm3176, %v2955, 0
        %v3319 = vsel %vm3176, %v2956, 0
        %v3322 = vsel %vm3176, %v2957, 0
        %v3325 = vsel %vm3176, %v2958, 0
        %v3328 = vsel %vm3176, %v2959, 0
        %v3331 = vsel %vm3176, %v2960, 0
        %v3334 = vsel %vm3176, %v2961, 0
        %v3337 = vsel %vm3176, %v2962, 0
        %v3340 = vsel %vm3176, %v2963, 0
        %v3343 = vsel %vm3176, %v2964, 0
        %v3346 = vsel %vm3176, %v2965, 0
        %v3349 = vsel %vm3176, %v2966, 0
        %v3352 = vsel %vm3176, %v2967, 0
        %v3355 = vsel %vm3176, %v2968, 0
        %v3358 = vsel %vm3176, %v2969, 0
        %v3361 = vsel %vm3176, %v2970, 0
        %v3364 = vsel %vm3176, %v2971, 0
        %v3367 = vsel %vm3176, %v2972, 0
        %v3370 = vsel %vm3176, %v2973, 0
        %v3373 = vsel %vm3176, %v2974, 0
        %v3376 = vsel %vm3176, %v2975, 0
        %v3379 = vsel %vm3176, %v2976, 0
        %v3382 = vsel %vm3176, %v2977, 0
        %v3385 = vsel %vm3176, %v2978, 0
        %v3388 = vsel %vm3176, %v2979, 0
        %v3391 = vsel %vm3176, %v2980, 0
        %v3394 = vsel %vm3176, %v2981, 0
        %v3397 = vsel %vm3176, %v2982, 0
        %v3400 = vsel %vm3176, %v2983, 0
        %v3403 = vsel %vm3176, %v2984, 0
        %v3406 = vsel %vm3176, %v2985, 0
        %v3409 = vsel %vm3176, %v2986, 0
        %v3412 = vsel %vm3176, %v2987, 0
        %v3415 = vsel %vm3176, %v2988, 0
        %v3418 = vsel %vm3176, %v2989, 0
        %v3421 = vsel %vm3176, %v2990, 0
        %v3424 = vsel %vm3176, %v2991, 0
        %v3427 = vsel %vm3176, %v2992, 0
        %v3430 = vsel %vm3176, %v2993, 0
        %v3433 = vsel %vm3176, %v2994, 0
        %v3436 = vsel %vm3176, %v2995, 0
        %v3439 = vsel %vm3176, %v2996, 0
        %v3442 = vsel %vm3176, %v2997, 0
        %v3445 = vsel %vm3176, %v2998, 0
        %v3448 = vsel %vm3176, %v2999, 0
        %v3451 = vsel %vm3176, %v3000, 0
        %v3454 = vsel %vm3176, %v3001, 0
        %v3457 = vsel %vm3176, %v3002, 0
        %v3460 = vsel %vm3176, %v3003, 0
        %v3463 = vsel %vm3176, %v3004, 0
        %v3466 = vsel %vm3176, %v3005, 0
        %v3469 = vsel %vm3176, %v3006, 0
        %v3472 = vsel %vm3176, %v3007, 0
        %v3475 = vsel %vm3176, %v3008, 0
        %v3478 = vsel %vm3176, %v3009, 0
        %v3481 = vsel %vm3176, %v3010, 0
        %v3484 = vsel %vm3176, %v3011, 0
        %v3487 = vsel %vm3176, %v3012, 0
        %v3490 = vsel %vm3176, %v3013, 0
        %v3493 = vsel %vm3176, %v3014, 0
        %v3496 = vsel %vm3176, %v3015, 0
        %v3499 = vsel %vm3176, %v3016, 0
        %v3502 = vsel %vm3176, %v3017, 0
        %v3505 = vsel %vm3176, %v3018, 0
        %v3508 = vsel %vm3176, %v3019, 0
        %v3511 = vsel %vm3176, %v3020, 0
        %v3514 = vsel %vm3176, %v3021, 0
        %v3517 = vsel %vm3176, %v3022, 0
        %v3520 = vsel %vm3176, %v3023, 0
        %v3523 = vsel %vm3176, %v3024, 0
        %v3526 = vsel %vm3176, %v3025, 0
        %v3529 = vsel %vm3176, %v3026, 0
        %v3532 = vsel %vm3176, %v3027, 0
        %v3535 = vsel %vm3176, %v3028, 0
        %v3538 = vsel %vm3176, %v3029, 0
        %v3541 = vsel %vm3176, %v3030, 0
        %v3544 = vsel %vm3176, %v3031, 0
        %v3547 = vsel %vm3176, %v3032, 0
        %v3550 = vsel %vm3176, %v3033, 0
        %v3553 = vsel %vm3176, %v3034, 0
        %v3556 = vsel %vm3176, %v3035, 0
        %v3559 = vsel %vm3176, %v3036, 0
        %v3562 = vsel %vm3176, %v3037, 0
        %v3565 = vsel %vm3176, %v3038, 0
        %v3568 = vsel %vm3176, %v3039, 0
        %v3571 = vsel %vm3176, %v3040, 0
        %v3574 = vsel %vm3176, %v3041, 0
        %v3577 = vsel %vm3176, %v3042, 0
        %v3580 = vsel %vm3176, %v3043, 0
        %v3583 = vsel %vm3176, %v3044, 0
        %v3586 = vsel %vm3176, %v3045, 0
        %v3589 = vsel %vm3176, %v3046, 0
        %v3592 = vsel %vm3176, %v3047, 0
        %v3595 = vsel %vm3176, %v3048, 0
        %v3598 = vsel %vm3176, %v3049, 0
        %v3601 = vsel %vm3176, %v3050, 0
        %v3604 = vsel %vm3176, %v3051, 0
        %v3607 = vsel %vm3176, %v3052, 0
        %v3610 = vsel %vm3176, %v3053, 0
        %v3613 = vsel %vm3176, %v3054, 0
        %v3616 = vsel %vm3176, %v3055, 0
        %v3619 = vsel %vm3176, %v3056, 0
        %v3622 = vsel %vm3176, %v3057, 0
        %v3625 = vsel %vm3176, %v3058, 0
        %v3628 = vsel %vm3176, %v3059, 0
        %v3631 = vsel %vm3176, %v3060, 0
        %v3634 = vsel %vm3176, %v3061, 0
        %v3637 = vsel %vm3176, %v3062, 0
        %v3640 = vsel %vm3176, %v3063, 0
        %v3643 = vsel %vm3176, %v3064, 0
        %v3646 = vsel %vm3176, %v3065, 0
        %v3649 = vsel %vm3176, %v3066, 0
        %v3652 = vsel %vm3176, %v3067, 0
        %v3655 = vsel %vm3176, %v3068, 0
        %v3658 = vsel %vm3176, %v3069, 0
        %v3661 = vsel %vm3176, %v3070, 0
        %v3664 = vsel %vm3176, %v3071, 0
        %v3667 = vsel %vm3176, %v3072, 0
        %v3670 = vsel %vm3176, %v3073, 0
        %v3673 = vsel %vm3176, %v3074, 0
        %v3676 = vsel %vm3176, %v3075, 0
        %v3679 = vsel %vm3176, %v3076, 0
        %v3682 = vsel %vm3176, %v3077, 0
        %v3685 = vsel %vm3176, %v3078, 0
        %v3688 = vsel %vm3176, %v3079, 0
        %v3691 = vsel %vm3176, %v3080, 0
        %v3694 = vsel %vm3176, %v3081, 0
        %v3697 = vsel %vm3176, %v3082, 0
        %v3700 = vsel %vm3176, %v3083, 0
        %v3703 = vsel %vm3176, %v3084, 0
        %v3706 = vsel %vm3176, %v3085, 0
        %v3709 = vsel %vm3176, %v3086, 0
        %v3712 = vsel %vm3176, %v3087, 0
        %v3715 = vsel %vm3176, %v3088, 0
        %v3718 = vsel %vm3176, %v3089, 0
        %v3721 = vsel %vm3176, %v3090, 0
        %v3724 = vsel %vm3176, %v3091, 0
        %v3727 = vsel %vm3176, %v3092, 0
        %v3730 = vsel %vm3176, %v3093, 0
        %v3733 = vsel %vm3176, %v3094, 0
        %v3736 = vsel %vm3176, %v3095, 0
        %v3739 = vsel %vm3176, %v3096, 0
        %v3742 = vsel %vm3176, %v3097, 0
        %v3745 = vsel %vm3176, %v3098, 0
        %v3748 = vsel %vm3176, %v3099, 0
        %v3751 = vsel %vm3176, %v3100, 0
        %v3754 = vsel %vm3176, %v3101, 0
        %v3757 = vsel %vm3176, %v3102, 0
        %v3760 = vsel %vm3176, %v3103, 0
        %v3763 = vsel %vm3176, %v3104, 0
        %v3766 = vsel %vm3176, %v3105, 0
        %v3769 = vsel %vm3176, %v3106, 0
        %v3772 = vsel %vm3176, %v3107, 0
        %v3775 = vsel %vm3176, %v3108, 0
        %v3778 = vsel %vm3176, %v3109, 0
        %v3781 = vsel %vm3176, %v3110, 0
        %v3784 = vsel %vm3176, %v3111, 0
        %v3787 = vsel %vm3176, %v3112, 0
        %v3790 = vsel %vm3176, %v3113, 0
        %v3793 = vsel %vm3176, %v3114, 0
        %v3796 = vsel %vm3176, %v3115, 0
        %v3799 = vsel %vm3176, %v3116, 0
        %v3802 = vsel %vm3176, %v3117, 0
        %v3805 = vsel %vm3176, %v3118, 0
        %v3808 = vsel %vm3176, %v3119, 0
        %v3811 = vsel %vm3176, %v3120, 0
        %v3814 = vsel %vm3176, %v3121, 0
        %v3817 = vsel %vm3176, %v3122, 0
        %v3820 = vsel %vm3176, %v3123, 0
        %v3823 = vsel %vm3176, %v3124, 0
        %v3826 = vsel %vm3176, %v3125, 0
        %v3829 = vsel %vm3176, %v3126, 0
        %v3832 = vsel %vm3176, %v3127, 0
        %v3835 = vsel %vm3176, %v3128, 0
        %v3838 = vsel %vm3176, %v3129, 0
        %v3841 = vsel %vm3176, %v3130, 0
        %v3844 = vsel %vm3176, %v3131, 0
        %v3847 = vsel %vm3176, %v3132, 0
        %v3850 = vsel %vm3176, %v3133, 0
        %v3853 = vsel %vm3176, %v3134, 0
        %v3856 = vsel %vm3176, %v3135, 0
        %v3859 = vsel %vm3176, %v3136, 0
        %v3862 = vsel %vm3176, %v3137, 0
        %v3865 = vsel %vm3176, %v3138, 0
        %v3868 = vsel %vm3176, %v3139, 0
        %v3871 = vsel %vm3176, %v3140, 0
        %v3874 = vsel %vm3176, %v3141, 0
        %v3877 = vsel %vm3176, %v3142, 0
        %v3880 = vsel %vm3176, %v3143, 0
        %v3883 = vsel %vm3176, %v3144, 0
        %v3886 = vsel %vm3176, %v3145, 0
        %v3889 = vsel %vm3176, %v3146, 0
        %v3892 = vsel %vm3176, %v3147, 0
        %v3895 = vsel %vm3176, %v3148, 0
        %v3898 = vsel %vm3176, %v3149, 0
        %v3901 = vsel %vm3176, %v3150, 0
        %v3904 = vsel %vm3176, %v3151, 0
        %v3907 = vsel %vm3176, %v3152, 0
        %v3910 = vsel %vm3176, %v3153, 0
        %v3913 = vsel %vm3176, %v3154, 0
        %v3916 = vsel %vm3176, %v3155, 0
        %v3919 = vsel %vm3176, %v3156, 0
        %v3922 = vsel %vm3176, %v3157, 0
        %v3925 = vsel %vm3176, %v3158, 0
        %v3928 = vsel %vm3176, %v3159, 0
        %v3931 = vsel %vm3176, %v3160, 0
        %v3934 = vsel %vm3176, %v3161, 0
        %v3937 = vsel %vm3176, %v3162, 0
        %v3940 = vsel %vm3176, %v3163, 0
        %v3943 = vsel %vm3176, %v3164, 0
        %3945 = vmatprep.subr.mxu0 0.0
        %3946 = vmatpush1.msra.mxu0 %v3165
        %3947 = vmatprep.subr.mxu0 0.0
        %3948 = vmatpush1.msra.mxu0 %v3166
        %3949 = vmatprep.subr.mxu0 0.0
        %3950 = vmatpush1.msra.mxu0 %v3167
        %3951 = vmatprep.subr.mxu0 0.0
        %3952 = vmatpush1.msra.mxu0 %v3168
        %3953 = vmatprep.subr.mxu0 0.0
        %3954 = vmatpush1.msra.mxu0 0.0
        %3955 = vmatprep.subr.mxu0 0.0
        %3956 = vmatpush1.msra.mxu0 0.0
        %3957 = vmatprep.subr.mxu0 0.0
        %3958 = vmatpush1.msra.mxu0 0.0
        %3959 = vmatprep.subr.mxu0 0.0
        %3960 = vmatpush1.msra.mxu0 0.0
        %3961 = vmatprep.subr.mxu0 0.0
        %3962 = vmatpush1.msra.mxu0 0.0
        %3963 = vmatprep.subr.mxu0 0.0
        %3964 = vmatpush1.msra.mxu0 0.0
        %3965 = vmatprep.subr.mxu0 0.0
        %3966 = vmatpush1.msra.mxu0 0.0
        %3967 = vmatprep.subr.mxu0 0.0
        %3968 = vmatpush1.msra.mxu0 0.0
        %3969 = vmatprep.subr.mxu0 0.0
        %3970 = vmatpush1.msra.mxu0 0.0
        %3971 = vmatprep.subr.mxu0 0.0
        %3972 = vmatpush1.msra.mxu0 0.0
        %3973 = vmatprep.subr.mxu0 0.0
        %3974 = vmatpush1.msra.mxu0 0.0
        %3975 = vmatprep.subr.mxu0 0.0
        %3976 = vmatpush1.msra.mxu0 0.0
        %3977 = vmatprep.subr.mxu0 0.0
        %3978 = vmatpush1.msra.mxu0 0.0
        %3979 = vmatprep.subr.mxu0 0.0
        %3980 = vmatpush1.msra.mxu0 0.0
        %3981 = vmatprep.subr.mxu0 0.0
        %3982 = vmatpush1.msra.mxu0 0.0
        %3983 = vmatprep.subr.mxu0 0.0
        %3984 = vmatpush1.msra.mxu0 0.0
        %3985 = vmatprep.subr.mxu0 0.0
        %3986 = vmatpush1.msra.mxu0 0.0
        %3987 = vmatprep.subr.mxu0 0.0
        %3988 = vmatpush1.msra.mxu0 0.0
        %3989 = vmatprep.subr.mxu0 0.0
        %3990 = vmatpush1.msra.mxu0 0.0
        %3991 = vmatprep.subr.mxu0 0.0
        %3992 = vmatpush1.msra.mxu0 0.0
        %3993 = vmatprep.subr.mxu0 0.0
        %3994 = vmatpush1.msra.mxu0 0.0
        %3995 = vmatprep.subr.mxu0 0.0
        %3996 = vmatpush1.msra.mxu0 0.0
        %3997 = vmatprep.subr.mxu0 0.0
        %3998 = vmatpush1.msra.mxu0 0.0
        %3999 = vmatprep.subr.mxu0 0.0
        %4000 = vmatpush1.msra.mxu0 0.0
        %4001 = vmatprep.subr.mxu0 0.0
        %4002 = vmatpush1.msra.mxu0 0.0
        %4003 = vmatprep.subr.mxu0 0.0
        %4004 = vmatpush1.msra.mxu0 0.0
        %4005 = vmatprep.subr.mxu0 0.0
        %4006 = vmatpush1.msra.mxu0 0.0
        %4007 = vmatprep.subr.mxu0 0.0
        %4008 = vmatpush1.msra.mxu0 0.0
        %4009 = vmatprep.mubr.f32.mxu0 0.0
        %4010 = vmatmul.mubr.f32.gmra.mrb[0].mxu0 %v3178
        %v4011 = vpop.f32.mrb[0].mxu0
        %v4012 = vadd.f32 %v3174, %v4011
        %v4013 = vpop.f32.mrb[0].mxu0
        %4014 = vmatprep.mubr.f32.mxu0 0.0
        %4015 = vmatmul.mubr.f32.gmra.mrb[0].mxu0 %v3181
        %v4016 = vpop.f32.mrb[0].mxu0
        %v4017 = vadd.f32 %v3174, %v4016
        %v4018 = vpop.f32.mrb[0].mxu0
        %4019 = vmatprep.mubr.f32.mxu0 0.0
        %4020 = vmatmul.mubr.f32.gmra.mrb[0].mxu0 %v3184
        %v4021 = vpop.f32.mrb[0].mxu0
        %v4022 = vadd.f32 %v3174, %v4021
        %v4023 = vpop.f32.mrb[0].mxu0
        %4024 = vmatprep.mubr.f32.mxu0 0.0
        %4025 = vmatmul.mubr.f32.gmra.mrb[0].mxu0 %v3187
        %v4026 = vpop.f32.mrb[0].mxu0
        %v4027 = vadd.f32 %v3174, %v4026
        %v4028 = vpop.f32.mrb[0].mxu0
        %4029 = vmatprep.mubr.f32.mxu0 0.0
        %4030 = vmatmul.mubr.f32.gmra.mrb[0].mxu0 %v3190
        %v4031 = vpop.f32.mrb[0].mxu0
        %v4032 = vadd.f32 %v3174, %v4031
        %v4033 = vpop.f32.mrb[0].mxu0
        %4034 = vmatprep.mubr.f32.mxu0 0.0
        %4035 = vmatmul.mubr.f32.gmra.mrb[0].mxu0 %v3193
        %v4036 = vpop.f32.mrb[0].mxu0
        %v4037 = vadd.f32 %v3174, %v4036
        %v4038 = vpop.f32.mrb[0].mxu0
        %4039 = vmatprep.mubr.f32.mxu0 0.0
        %4040 = vmatmul.mubr.f32.gmra.mrb[0].mxu0 %v3196
        %v4041 = vpop.f32.mrb[0].mxu0
        %v4042 = vadd.f32 %v3174, %v4041
        %v4043 = vpop.f32.mrb[0].mxu0
        %4044 = vmatprep.mubr.f32.mxu0 0.0
        %4045 = vmatmul.mubr.f32.gmra.mrb[0].mxu0 %v3199
        %v4046 = vpop.f32.mrb[0].mxu0
        %v4047 = vadd.f32 %v3174, %v4046
        %v4048 = vpop.f32.mrb[0].mxu0
        %4049 = vmatprep.mubr.f32.mxu0 0.0
        %4050 = vmatmul.mubr.f32.gmra.mrb[0].mxu0 %v3202
        %v4051 = vpop.f32.mrb[0].mxu0
        %v4052 = vadd.f32 %v3174, %v4051
        %v4053 = vpop.f32.mrb[0].mxu0
        %4054 = vmatprep.mubr.f32.mxu0 0.0
        %4055 = vmatmul.mubr.f32.gmra.mrb[0].mxu0 %v3205
        %v4056 = vpop.f32.mrb[0].mxu0
        %v4057 = vadd.f32 %v3174, %v4056
        %v4058 = vpop.f32.mrb[0].mxu0
        %4059 = vmatprep.mubr.f32.mxu0 0.0
        %4060 = vmatmul.mubr.f32.gmra.mrb[0].mxu0 %v3208
        %v4061 = vpop.f32.mrb[0].mxu0
        %v4062 = vadd.f32 %v3174, %v4061
        %v4063 = vpop.f32.mrb[0].mxu0
        %4064 = vmatprep.mubr.f32.mxu0 0.0
        %4065 = vmatmul.mubr.f32.gmra.mrb[0].mxu0 %v3211
        %v4066 = vpop.f32.mrb[0].mxu0
        %v4067 = vadd.f32 %v3174, %v4066
        %v4068 = vpop.f32.mrb[0].mxu0
        %4069 = vmatprep.mubr.f32.mxu0 0.0
        %4070 = vmatmul.mubr.f32.gmra.mrb[0].mxu0 %v3214
        %v4071 = vpop.f32.mrb[0].mxu0
        %v4072 = vadd.f32 %v3174, %v4071
        %v4073 = vpop.f32.mrb[0].mxu0
        %4074 = vmatprep.mubr.f32.mxu0 0.0
        %4075 = vmatmul.mubr.f32.gmra.mrb[0].mxu0 %v3217
        %v4076 = vpop.f32.mrb[0].mxu0
        %v4077 = vadd.f32 %v3174, %v4076
        %v4078 = vpop.f32.mrb[0].mxu0
        %4079 = vmatprep.mubr.f32.mxu0 0.0
        %4080 = vmatmul.mubr.f32.gmra.mrb[0].mxu0 %v3220
        %v4081 = vpop.f32.mrb[0].mxu0
        %v4082 = vadd.f32 %v3174, %v4081
        %v4083 = vpop.f32.mrb[0].mxu0
        %4084 = vmatprep.mubr.f32.mxu0 0.0
        %4085 = vmatmul.mubr.f32.gmra.mrb[0].mxu0 %v3223
        %v4086 = vpop.f32.mrb[0].mxu0
        %v4087 = vadd.f32 %v3174, %v4086
        %v4088 = vpop.f32.mrb[0].mxu0
        %4089 = vmatprep.mubr.f32.mxu0 0.0
        %4090 = vmatmul.mubr.f32.gmra.mrb[0].mxu0 %v3226
        %v4091 = vpop.f32.mrb[0].mxu0
        %v4092 = vadd.f32 %v3174, %v4091
        %v4093 = vpop.f32.mrb[0].mxu0
        %4094 = vmatprep.mubr.f32.mxu0 0.0
        %4095 = vmatmul.mubr.f32.gmra.mrb[0].mxu0 %v3229
        %v4096 = vpop.f32.mrb[0].mxu0
        %v4097 = vadd.f32 %v3174, %v4096
        %v4098 = vpop.f32.mrb[0].mxu0
        %4099 = vmatprep.mubr.f32.mxu0 0.0
        %4100 = vmatmul.mubr.f32.gmra.mrb[0].mxu0 %v3232
        %v4101 = vpop.f32.mrb[0].mxu0
        %v4102 = vadd.f32 %v3174, %v4101
        %v4103 = vpop.f32.mrb[0].mxu0
        %4104 = vmatprep.mubr.f32.mxu0 0.0
        %4105 = vmatmul.mubr.f32.gmra.mrb[0].mxu0 %v3235
        %v4106 = vpop.f32.mrb[0].mxu0
        %v4107 = vadd.f32 %v3174, %v4106
        %v4108 = vpop.f32.mrb[0].mxu0
        %4109 = vmatprep.mubr.f32.mxu0 0.0
        %4110 = vmatmul.mubr.f32.gmra.mrb[0].mxu0 %v3238
        %v4111 = vpop.f32.mrb[0].mxu0
        %v4112 = vadd.f32 %v3174, %v4111
        %v4113 = vpop.f32.mrb[0].mxu0
        %4114 = vmatprep.mubr.f32.mxu0 0.0
        %4115 = vmatmul.mubr.f32.gmra.mrb[0].mxu0 %v3241
        %v4116 = vpop.f32.mrb[0].mxu0
        %v4117 = vadd.f32 %v3174, %v4116
        %v4118 = vpop.f32.mrb[0].mxu0
        %4119 = vmatprep.mubr.f32.mxu0 0.0
        %4120 = vmatmul.mubr.f32.gmra.mrb[0].mxu0 %v3244
        %v4121 = vpop.f32.mrb[0].mxu0
        %v4122 = vadd.f32 %v3174, %v4121
        %v4123 = vpop.f32.mrb[0].mxu0
        %4124 = vmatprep.mubr.f32.mxu0 0.0
        %4125 = vmatmul.mubr.f32.gmra.mrb[0].mxu0 %v3247
        %v4126 = vpop.f32.mrb[0].mxu0
        %v4127 = vadd.f32 %v3174, %v4126
        %v4128 = vpop.f32.mrb[0].mxu0
        %4129 = vmatprep.mubr.f32.mxu0 0.0
        %4130 = vmatmul.mubr.f32.gmra.mrb[0].mxu0 %v3250
        %v4131 = vpop.f32.mrb[0].mxu0
        %v4132 = vadd.f32 %v3174, %v4131
        %v4133 = vpop.f32.mrb[0].mxu0
        %4134 = vmatprep.mubr.f32.mxu0 0.0
        %4135 = vmatmul.mubr.f32.gmra.mrb[0].mxu0 %v3253
        %v4136 = vpop.f32.mrb[0].mxu0
        %v4137 = vadd.f32 %v3174, %v4136
        %v4138 = vpop.f32.mrb[0].mxu0
        %4139 = vmatprep.mubr.f32.mxu0 0.0
        %4140 = vmatmul.mubr.f32.gmra.mrb[0].mxu0 %v3256
        %v4141 = vpop.f32.mrb[0].mxu0
        %v4142 = vadd.f32 %v3174, %v4141
        %v4143 = vpop.f32.mrb[0].mxu0
        %4144 = vmatprep.mubr.f32.mxu0 0.0
        %4145 = vmatmul.mubr.f32.gmra.mrb[0].mxu0 %v3259
        %v4146 = vpop.f32.mrb[0].mxu0
        %v4147 = vadd.f32 %v3174, %v4146
        %v4148 = vpop.f32.mrb[0].mxu0
        %4149 = vmatprep.mubr.f32.mxu0 0.0
        %4150 = vmatmul.mubr.f32.gmra.mrb[0].mxu0 %v3262
        %v4151 = vpop.f32.mrb[0].mxu0
        %v4152 = vadd.f32 %v3174, %v4151
        %v4153 = vpop.f32.mrb[0].mxu0
        %4154 = vmatprep.mubr.f32.mxu0 0.0
        %4155 = vmatmul.mubr.f32.gmra.mrb[0].mxu0 %v3265
        %v4156 = vpop.f32.mrb[0].mxu0
        %v4157 = vadd.f32 %v3174, %v4156
        %v4158 = vpop.f32.mrb[0].mxu0
        %4159 = vmatprep.mubr.f32.mxu0 0.0
        %4160 = vmatmul.mubr.f32.gmra.mrb[0].mxu0 %v3268
        %v4161 = vpop.f32.mrb[0].mxu0
        %v4162 = vadd.f32 %v3174, %v4161
        %v4163 = vpop.f32.mrb[0].mxu0
        %4164 = vmatprep.mubr.f32.mxu0 0.0
        %4165 = vmatmul.mubr.f32.gmra.mrb[0].mxu0 %v3271
        %v4166 = vpop.f32.mrb[0].mxu0
        %v4167 = vadd.f32 %v3174, %v4166
        %v4168 = vpop.f32.mrb[0].mxu0
        %4169 = vmatprep.mubr.f32.mxu0 0.0
        %4170 = vmatmul.mubr.f32.gmra.mrb[0].mxu0 %v3274
        %v4171 = vpop.f32.mrb[0].mxu0
        %v4172 = vadd.f32 %v3174, %v4171
        %v4173 = vpop.f32.mrb[0].mxu0
        %4174 = vmatprep.mubr.f32.mxu0 0.0
        %4175 = vmatmul.mubr.f32.gmra.mrb[0].mxu0 %v3277
        %v4176 = vpop.f32.mrb[0].mxu0
        %v4177 = vadd.f32 %v3174, %v4176
        %v4178 = vpop.f32.mrb[0].mxu0
        %4179 = vmatprep.mubr.f32.mxu0 0.0
        %4180 = vmatmul.mubr.f32.gmra.mrb[0].mxu0 %v3280
        %v4181 = vpop.f32.mrb[0].mxu0
        %v4182 = vadd.f32 %v3174, %v4181
        %v4183 = vpop.f32.mrb[0].mxu0
        %4184 = vmatprep.mubr.f32.mxu0 0.0
        %4185 = vmatmul.mubr.f32.gmra.mrb[0].mxu0 %v3283
        %v4186 = vpop.f32.mrb[0].mxu0
        %v4187 = vadd.f32 %v3174, %v4186
        %v4188 = vpop.f32.mrb[0].mxu0
        %4189 = vmatprep.mubr.f32.mxu0 0.0
        %4190 = vmatmul.mubr.f32.gmra.mrb[0].mxu0 %v3286
        %v4191 = vpop.f32.mrb[0].mxu0
        %v4192 = vadd.f32 %v3174, %v4191
        %v4193 = vpop.f32.mrb[0].mxu0
        %4194 = vmatprep.mubr.f32.mxu0 0.0
        %4195 = vmatmul.mubr.f32.gmra.mrb[0].mxu0 %v3289
        %v4196 = vpop.f32.mrb[0].mxu0
        %v4197 = vadd.f32 %v3174, %v4196
        %v4198 = vpop.f32.mrb[0].mxu0
        %4199 = vmatprep.mubr.f32.mxu0 0.0
        %4200 = vmatmul.mubr.f32.gmra.mrb[0].mxu0 %v3292
        %v4201 = vpop.f32.mrb[0].mxu0
        %v4202 = vadd.f32 %v3174, %v4201
        %v4203 = vpop.f32.mrb[0].mxu0
        %4204 = vmatprep.mubr.f32.mxu0 0.0
        %4205 = vmatmul.mubr.f32.gmra.mrb[0].mxu0 %v3295
        %v4206 = vpop.f32.mrb[0].mxu0
        %v4207 = vadd.f32 %v3174, %v4206
        %v4208 = vpop.f32.mrb[0].mxu0
        %4209 = vmatprep.mubr.f32.mxu0 0.0
        %4210 = vmatmul.mubr.f32.gmra.mrb[0].mxu0 %v3298
        %v4211 = vpop.f32.mrb[0].mxu0
        %v4212 = vadd.f32 %v3174, %v4211
        %v4213 = vpop.f32.mrb[0].mxu0
        %4214 = vmatprep.mubr.f32.mxu0 0.0
        %4215 = vmatmul.mubr.f32.gmra.mrb[0].mxu0 %v3301
        %v4216 = vpop.f32.mrb[0].mxu0
        %v4217 = vadd.f32 %v3174, %v4216
        %v4218 = vpop.f32.mrb[0].mxu0
        %4219 = vmatprep.mubr.f32.mxu0 0.0
        %4220 = vmatmul.mubr.f32.gmra.mrb[0].mxu0 %v3304
        %v4221 = vpop.f32.mrb[0].mxu0
        %v4222 = vadd.f32 %v3174, %v4221
        %v4223 = vpop.f32.mrb[0].mxu0
        %4224 = vmatprep.mubr.f32.mxu0 0.0
        %4225 = vmatmul.mubr.f32.gmra.mrb[0].mxu0 %v3307
        %v4226 = vpop.f32.mrb[0].mxu0
        %v4227 = vadd.f32 %v3174, %v4226
        %v4228 = vpop.f32.mrb[0].mxu0
        %4229 = vmatprep.mubr.f32.mxu0 0.0
        %4230 = vmatmul.mubr.f32.gmra.mrb[0].mxu0 %v3310
        %v4231 = vpop.f32.mrb[0].mxu0
        %v4232 = vadd.f32 %v3174, %v4231
        %v4233 = vpop.f32.mrb[0].mxu0
        %4234 = vmatprep.mubr.f32.mxu0 0.0
        %4235 = vmatmul.mubr.f32.gmra.mrb[0].mxu0 %v3313
        %v4236 = vpop.f32.mrb[0].mxu0
        %v4237 = vadd.f32 %v3174, %v4236
        %v4238 = vpop.f32.mrb[0].mxu0
        %4239 = vmatprep.mubr.f32.mxu0 0.0
        %4240 = vmatmul.mubr.f32.gmra.mrb[0].mxu0 %v3316
        %v4241 = vpop.f32.mrb[0].mxu0
        %v4242 = vadd.f32 %v3174, %v4241
        %v4243 = vpop.f32.mrb[0].mxu0
        %4244 = vmatprep.mubr.f32.mxu0 0.0
        %4245 = vmatmul.mubr.f32.gmra.mrb[0].mxu0 %v3319
        %v4246 = vpop.f32.mrb[0].mxu0
        %v4247 = vadd.f32 %v3174, %v4246
        %v4248 = vpop.f32.mrb[0].mxu0
        %4249 = vmatprep.mubr.f32.mxu0 0.0
        %4250 = vmatmul.mubr.f32.gmra.mrb[0].mxu0 %v3322
        %v4251 = vpop.f32.mrb[0].mxu0
        %v4252 = vadd.f32 %v3174, %v4251
        %v4253 = vpop.f32.mrb[0].mxu0
        %4254 = vmatprep.mubr.f32.mxu0 0.0
        %4255 = vmatmul.mubr.f32.gmra.mrb[0].mxu0 %v3325
        %v4256 = vpop.f32.mrb[0].mxu0
        %v4257 = vadd.f32 %v3174, %v4256
        %v4258 = vpop.f32.mrb[0].mxu0
        %4259 = vmatprep.mubr.f32.mxu0 0.0
        %4260 = vmatmul.mubr.f32.gmra.mrb[0].mxu0 %v3328
        %v4261 = vpop.f32.mrb[0].mxu0
        %v4262 = vadd.f32 %v3174, %v4261
        %v4263 = vpop.f32.mrb[0].mxu0
        %4264 = vmatprep.mubr.f32.mxu0 0.0
        %4265 = vmatmul.mubr.f32.gmra.mrb[0].mxu0 %v3331
        %v4266 = vpop.f32.mrb[0].mxu0
        %v4267 = vadd.f32 %v3174, %v4266
        %v4268 = vpop.f32.mrb[0].mxu0
        %4269 = vmatprep.mubr.f32.mxu0 0.0
        %4270 = vmatmul.mubr.f32.gmra.mrb[0].mxu0 %v3334
        %v4271 = vpop.f32.mrb[0].mxu0
        %v4272 = vadd.f32 %v3174, %v4271
        %v4273 = vpop.f32.mrb[0].mxu0
        %4274 = vmatprep.mubr.f32.mxu0 0.0
        %4275 = vmatmul.mubr.f32.gmra.mrb[0].mxu0 %v3337
        %v4276 = vpop.f32.mrb[0].mxu0
        %v4277 = vadd.f32 %v3174, %v4276
        %v4278 = vpop.f32.mrb[0].mxu0
        %4279 = vmatprep.mubr.f32.mxu0 0.0
        %4280 = vmatmul.mubr.f32.gmra.mrb[0].mxu0 %v3340
        %v4281 = vpop.f32.mrb[0].mxu0
        %v4282 = vadd.f32 %v3174, %v4281
        %v4283 = vpop.f32.mrb[0].mxu0
        %4284 = vmatprep.mubr.f32.mxu0 0.0
        %4285 = vmatmul.mubr.f32.gmra.mrb[0].mxu0 %v3343
        %v4286 = vpop.f32.mrb[0].mxu0
        %v4287 = vadd.f32 %v3174, %v4286
        %v4288 = vpop.f32.mrb[0].mxu0
        %4289 = vmatprep.mubr.f32.mxu0 0.0
        %4290 = vmatmul.mubr.f32.gmra.mrb[0].mxu0 %v3346
        %v4291 = vpop.f32.mrb[0].mxu0
        %v4292 = vadd.f32 %v3174, %v4291
        %v4293 = vpop.f32.mrb[0].mxu0
        %4294 = vmatprep.mubr.f32.mxu0 0.0
        %4295 = vmatmul.mubr.f32.gmra.mrb[0].mxu0 %v3349
        %v4296 = vpop.f32.mrb[0].mxu0
        %v4297 = vadd.f32 %v3174, %v4296
        %v4298 = vpop.f32.mrb[0].mxu0
        %4299 = vmatprep.mubr.f32.mxu0 0.0
        %4300 = vmatmul.mubr.f32.gmra.mrb[0].mxu0 %v3352
        %v4301 = vpop.f32.mrb[0].mxu0
        %v4302 = vadd.f32 %v3174, %v4301
        %v4303 = vpop.f32.mrb[0].mxu0
        %4304 = vmatprep.mubr.f32.mxu0 0.0
        %4305 = vmatmul.mubr.f32.gmra.mrb[0].mxu0 %v3355
        %v4306 = vpop.f32.mrb[0].mxu0
        %v4307 = vadd.f32 %v3174, %v4306
        %v4308 = vpop.f32.mrb[0].mxu0
        %4309 = vmatprep.mubr.f32.mxu0 0.0
        %4310 = vmatmul.mubr.f32.gmra.mrb[0].mxu0 %v3358
        %v4311 = vpop.f32.mrb[0].mxu0
        %v4312 = vadd.f32 %v3174, %v4311
        %v4313 = vpop.f32.mrb[0].mxu0
        %4314 = vmatprep.mubr.f32.mxu0 0.0
        %4315 = vmatmul.mubr.f32.gmra.mrb[0].mxu0 %v3361
        %v4316 = vpop.f32.mrb[0].mxu0
        %v4317 = vadd.f32 %v3174, %v4316
        %v4318 = vpop.f32.mrb[0].mxu0
        %4319 = vmatprep.mubr.f32.mxu0 0.0
        %4320 = vmatmul.mubr.f32.gmra.mrb[0].mxu0 %v3364
        %v4321 = vpop.f32.mrb[0].mxu0
        %v4322 = vadd.f32 %v3174, %v4321
        %v4323 = vpop.f32.mrb[0].mxu0
        %4324 = vmatprep.mubr.f32.mxu0 0.0
        %4325 = vmatmul.mubr.f32.gmra.mrb[0].mxu0 %v3367
        %v4326 = vpop.f32.mrb[0].mxu0
        %v4327 = vadd.f32 %v3174, %v4326
        %v4328 = vpop.f32.mrb[0].mxu0
        %4329 = vmatprep.mubr.f32.mxu0 0.0
        %4330 = vmatmul.mubr.f32.gmra.mrb[0].mxu0 %v3370
        %v4331 = vpop.f32.mrb[0].mxu0
        %v4332 = vadd.f32 %v3174, %v4331
        %v4333 = vpop.f32.mrb[0].mxu0
        %4334 = vmatprep.mubr.f32.mxu0 0.0
        %4335 = vmatmul.mubr.f32.gmra.mrb[0].mxu0 %v3373
        %v4336 = vpop.f32.mrb[0].mxu0
        %v4337 = vadd.f32 %v3174, %v4336
        %v4338 = vpop.f32.mrb[0].mxu0
        %4339 = vmatprep.mubr.f32.mxu0 0.0
        %4340 = vmatmul.mubr.f32.gmra.mrb[0].mxu0 %v3376
        %v4341 = vpop.f32.mrb[0].mxu0
        %v4342 = vadd.f32 %v3174, %v4341
        %v4343 = vpop.f32.mrb[0].mxu0
        %4344 = vmatprep.mubr.f32.mxu0 0.0
        %4345 = vmatmul.mubr.f32.gmra.mrb[0].mxu0 %v3379
        %v4346 = vpop.f32.mrb[0].mxu0
        %v4347 = vadd.f32 %v3174, %v4346
        %v4348 = vpop.f32.mrb[0].mxu0
        %4349 = vmatprep.mubr.f32.mxu0 0.0
        %4350 = vmatmul.mubr.f32.gmra.mrb[0].mxu0 %v3382
        %v4351 = vpop.f32.mrb[0].mxu0
        %v4352 = vadd.f32 %v3174, %v4351
        %v4353 = vpop.f32.mrb[0].mxu0
        %4354 = vmatprep.mubr.f32.mxu0 0.0
        %4355 = vmatmul.mubr.f32.gmra.mrb[0].mxu0 %v3385
        %v4356 = vpop.f32.mrb[0].mxu0
        %v4357 = vadd.f32 %v3174, %v4356
        %v4358 = vpop.f32.mrb[0].mxu0
        %4359 = vmatprep.mubr.f32.mxu0 0.0
        %4360 = vmatmul.mubr.f32.gmra.mrb[0].mxu0 %v3388
        %v4361 = vpop.f32.mrb[0].mxu0
        %v4362 = vadd.f32 %v3174, %v4361
        %v4363 = vpop.f32.mrb[0].mxu0
        %4364 = vmatprep.mubr.f32.mxu0 0.0
        %4365 = vmatmul.mubr.f32.gmra.mrb[0].mxu0 %v3391
        %v4366 = vpop.f32.mrb[0].mxu0
        %v4367 = vadd.f32 %v3174, %v4366
        %v4368 = vpop.f32.mrb[0].mxu0
        %4369 = vmatprep.mubr.f32.mxu0 0.0
        %4370 = vmatmul.mubr.f32.gmra.mrb[0].mxu0 %v3394
        %v4371 = vpop.f32.mrb[0].mxu0
        %v4372 = vadd.f32 %v3174, %v4371
        %v4373 = vpop.f32.mrb[0].mxu0
        %4374 = vmatprep.mubr.f32.mxu0 0.0
        %4375 = vmatmul.mubr.f32.gmra.mrb[0].mxu0 %v3397
        %v4376 = vpop.f32.mrb[0].mxu0
        %v4377 = vadd.f32 %v3174, %v4376
        %v4378 = vpop.f32.mrb[0].mxu0
        %4379 = vmatprep.mubr.f32.mxu0 0.0
        %4380 = vmatmul.mubr.f32.gmra.mrb[0].mxu0 %v3400
        %v4381 = vpop.f32.mrb[0].mxu0
        %v4382 = vadd.f32 %v3174, %v4381
        %v4383 = vpop.f32.mrb[0].mxu0
        %4384 = vmatprep.mubr.f32.mxu0 0.0
        %4385 = vmatmul.mubr.f32.gmra.mrb[0].mxu0 %v3403
        %v4386 = vpop.f32.mrb[0].mxu0
        %v4387 = vadd.f32 %v3174, %v4386
        %v4388 = vpop.f32.mrb[0].mxu0
        %4389 = vmatprep.mubr.f32.mxu0 0.0
        %4390 = vmatmul.mubr.f32.gmra.mrb[0].mxu0 %v3406
        %v4391 = vpop.f32.mrb[0].mxu0
        %v4392 = vadd.f32 %v3174, %v4391
        %v4393 = vpop.f32.mrb[0].mxu0
        %4394 = vmatprep.mubr.f32.mxu0 0.0
        %4395 = vmatmul.mubr.f32.gmra.mrb[0].mxu0 %v3409
        %v4396 = vpop.f32.mrb[0].mxu0
        %v4397 = vadd.f32 %v3174, %v4396
        %v4398 = vpop.f32.mrb[0].mxu0
        %4399 = vmatprep.mubr.f32.mxu0 0.0
        %4400 = vmatmul.mubr.f32.gmra.mrb[0].mxu0 %v3412
        %v4401 = vpop.f32.mrb[0].mxu0
        %v4402 = vadd.f32 %v3174, %v4401
        %v4403 = vpop.f32.mrb[0].mxu0
        %4404 = vmatprep.mubr.f32.mxu0 0.0
        %4405 = vmatmul.mubr.f32.gmra.mrb[0].mxu0 %v3415
        %v4406 = vpop.f32.mrb[0].mxu0
        %v4407 = vadd.f32 %v3174, %v4406
        %v4408 = vpop.f32.mrb[0].mxu0
        %4409 = vmatprep.mubr.f32.mxu0 0.0
        %4410 = vmatmul.mubr.f32.gmra.mrb[0].mxu0 %v3418
        %v4411 = vpop.f32.mrb[0].mxu0
        %v4412 = vadd.f32 %v3174, %v4411
        %v4413 = vpop.f32.mrb[0].mxu0
        %4414 = vmatprep.mubr.f32.mxu0 0.0
        %4415 = vmatmul.mubr.f32.gmra.mrb[0].mxu0 %v3421
        %v4416 = vpop.f32.mrb[0].mxu0
        %v4417 = vadd.f32 %v3174, %v4416
        %v4418 = vpop.f32.mrb[0].mxu0
        %4419 = vmatprep.mubr.f32.mxu0 0.0
        %4420 = vmatmul.mubr.f32.gmra.mrb[0].mxu0 %v3424
        %v4421 = vpop.f32.mrb[0].mxu0
        %v4422 = vadd.f32 %v3174, %v4421
        %v4423 = vpop.f32.mrb[0].mxu0
        %4424 = vmatprep.mubr.f32.mxu0 0.0
        %4425 = vmatmul.mubr.f32.gmra.mrb[0].mxu0 %v3427
        %v4426 = vpop.f32.mrb[0].mxu0
        %v4427 = vadd.f32 %v3174, %v4426
        %v4428 = vpop.f32.mrb[0].mxu0
        %4429 = vmatprep.mubr.f32.mxu0 0.0
        %4430 = vmatmul.mubr.f32.gmra.mrb[0].mxu0 %v3430
        %v4431 = vpop.f32.mrb[0].mxu0
        %v4432 = vadd.f32 %v3174, %v4431
        %v4433 = vpop.f32.mrb[0].mxu0
        %4434 = vmatprep.mubr.f32.mxu0 0.0
        %4435 = vmatmul.mubr.f32.gmra.mrb[0].mxu0 %v3433
        %v4436 = vpop.f32.mrb[0].mxu0
        %v4437 = vadd.f32 %v3174, %v4436
        %v4438 = vpop.f32.mrb[0].mxu0
        %4439 = vmatprep.mubr.f32.mxu0 0.0
        %4440 = vmatmul.mubr.f32.gmra.mrb[0].mxu0 %v3436
        %v4441 = vpop.f32.mrb[0].mxu0
        %v4442 = vadd.f32 %v3174, %v4441
        %v4443 = vpop.f32.mrb[0].mxu0
        %4444 = vmatprep.mubr.f32.mxu0 0.0
        %4445 = vmatmul.mubr.f32.gmra.mrb[0].mxu0 %v3439
        %v4446 = vpop.f32.mrb[0].mxu0
        %v4447 = vadd.f32 %v3174, %v4446
        %v4448 = vpop.f32.mrb[0].mxu0
        %4449 = vmatprep.mubr.f32.mxu0 0.0
        %4450 = vmatmul.mubr.f32.gmra.mrb[0].mxu0 %v3442
        %v4451 = vpop.f32.mrb[0].mxu0
        %v4452 = vadd.f32 %v3174, %v4451
        %v4453 = vpop.f32.mrb[0].mxu0
        %4454 = vmatprep.mubr.f32.mxu0 0.0
        %4455 = vmatmul.mubr.f32.gmra.mrb[0].mxu0 %v3445
        %v4456 = vpop.f32.mrb[0].mxu0
        %v4457 = vadd.f32 %v3174, %v4456
        %v4458 = vpop.f32.mrb[0].mxu0
        %4459 = vmatprep.mubr.f32.mxu0 0.0
        %4460 = vmatmul.mubr.f32.gmra.mrb[0].mxu0 %v3448
        %v4461 = vpop.f32.mrb[0].mxu0
        %v4462 = vadd.f32 %v3174, %v4461
        %v4463 = vpop.f32.mrb[0].mxu0
        %4464 = vmatprep.mubr.f32.mxu0 0.0
        %4465 = vmatmul.mubr.f32.gmra.mrb[0].mxu0 %v3451
        %v4466 = vpop.f32.mrb[0].mxu0
        %v4467 = vadd.f32 %v3174, %v4466
        %v4468 = vpop.f32.mrb[0].mxu0
        %4469 = vmatprep.mubr.f32.mxu0 0.0
        %4470 = vmatmul.mubr.f32.gmra.mrb[0].mxu0 %v3454
        %v4471 = vpop.f32.mrb[0].mxu0
        %v4472 = vadd.f32 %v3174, %v4471
        %v4473 = vpop.f32.mrb[0].mxu0
        %4474 = vmatprep.mubr.f32.mxu0 0.0
        %4475 = vmatmul.mubr.f32.gmra.mrb[0].mxu0 %v3457
        %v4476 = vpop.f32.mrb[0].mxu0
        %v4477 = vadd.f32 %v3174, %v4476
        %v4478 = vpop.f32.mrb[0].mxu0
        %4479 = vmatprep.mubr.f32.mxu0 0.0
        %4480 = vmatmul.mubr.f32.gmra.mrb[0].mxu0 %v3460
        %v4481 = vpop.f32.mrb[0].mxu0
        %v4482 = vadd.f32 %v3174, %v4481
        %v4483 = vpop.f32.mrb[0].mxu0
        %4484 = vmatprep.mubr.f32.mxu0 0.0
        %4485 = vmatmul.mubr.f32.gmra.mrb[0].mxu0 %v3463
        %v4486 = vpop.f32.mrb[0].mxu0
        %v4487 = vadd.f32 %v3174, %v4486
        %v4488 = vpop.f32.mrb[0].mxu0
        %4489 = vmatprep.mubr.f32.mxu0 0.0
        %4490 = vmatmul.mubr.f32.gmra.mrb[0].mxu0 %v3466
        %v4491 = vpop.f32.mrb[0].mxu0
        %v4492 = vadd.f32 %v3174, %v4491
        %v4493 = vpop.f32.mrb[0].mxu0
        %4494 = vmatprep.mubr.f32.mxu0 0.0
        %4495 = vmatmul.mubr.f32.gmra.mrb[0].mxu0 %v3469
        %v4496 = vpop.f32.mrb[0].mxu0
        %v4497 = vadd.f32 %v3174, %v4496
        %v4498 = vpop.f32.mrb[0].mxu0
        %4499 = vmatprep.mubr.f32.mxu0 0.0
        %4500 = vmatmul.mubr.f32.gmra.mrb[0].mxu0 %v3472
        %v4501 = vpop.f32.mrb[0].mxu0
        %v4502 = vadd.f32 %v3174, %v4501
        %v4503 = vpop.f32.mrb[0].mxu0
        %4504 = vmatprep.mubr.f32.mxu0 0.0
        %4505 = vmatmul.mubr.f32.gmra.mrb[0].mxu0 %v3475
        %v4506 = vpop.f32.mrb[0].mxu0
        %v4507 = vadd.f32 %v3174, %v4506
        %v4508 = vpop.f32.mrb[0].mxu0
        %4509 = vmatprep.mubr.f32.mxu0 0.0
        %4510 = vmatmul.mubr.f32.gmra.mrb[0].mxu0 %v3478
        %v4511 = vpop.f32.mrb[0].mxu0
        %v4512 = vadd.f32 %v3174, %v4511
        %v4513 = vpop.f32.mrb[0].mxu0
        %4514 = vmatprep.mubr.f32.mxu0 0.0
        %4515 = vmatmul.mubr.f32.gmra.mrb[0].mxu0 %v3481
        %v4516 = vpop.f32.mrb[0].mxu0
        %v4517 = vadd.f32 %v3174, %v4516
        %v4518 = vpop.f32.mrb[0].mxu0
        %4519 = vmatprep.mubr.f32.mxu0 0.0
        %4520 = vmatmul.mubr.f32.gmra.mrb[0].mxu0 %v3484
        %v4521 = vpop.f32.mrb[0].mxu0
        %v4522 = vadd.f32 %v3174, %v4521
        %v4523 = vpop.f32.mrb[0].mxu0
        %4524 = vmatprep.mubr.f32.mxu0 0.0
        %4525 = vmatmul.mubr.f32.gmra.mrb[0].mxu0 %v3487
        %v4526 = vpop.f32.mrb[0].mxu0
        %v4527 = vadd.f32 %v3174, %v4526
        %v4528 = vpop.f32.mrb[0].mxu0
        %4529 = vmatprep.mubr.f32.mxu0 0.0
        %4530 = vmatmul.mubr.f32.gmra.mrb[0].mxu0 %v3490
        %v4531 = vpop.f32.mrb[0].mxu0
        %v4532 = vadd.f32 %v3174, %v4531
        %v4533 = vpop.f32.mrb[0].mxu0
        %4534 = vmatprep.mubr.f32.mxu0 0.0
        %4535 = vmatmul.mubr.f32.gmra.mrb[0].mxu0 %v3493
        %v4536 = vpop.f32.mrb[0].mxu0
        %v4537 = vadd.f32 %v3174, %v4536
        %v4538 = vpop.f32.mrb[0].mxu0
        %4539 = vmatprep.mubr.f32.mxu0 0.0
        %4540 = vmatmul.mubr.f32.gmra.mrb[0].mxu0 %v3496
        %v4541 = vpop.f32.mrb[0].mxu0
        %v4542 = vadd.f32 %v3174, %v4541
        %v4543 = vpop.f32.mrb[0].mxu0
        %4544 = vmatprep.mubr.f32.mxu0 0.0
        %4545 = vmatmul.mubr.f32.gmra.mrb[0].mxu0 %v3499
        %v4546 = vpop.f32.mrb[0].mxu0
        %v4547 = vadd.f32 %v3174, %v4546
        %v4548 = vpop.f32.mrb[0].mxu0
        %4549 = vmatprep.mubr.f32.mxu0 0.0
        %4550 = vmatmul.mubr.f32.gmra.mrb[0].mxu0 %v3502
        %v4551 = vpop.f32.mrb[0].mxu0
        %v4552 = vadd.f32 %v3174, %v4551
        %v4553 = vpop.f32.mrb[0].mxu0
        %4554 = vmatprep.mubr.f32.mxu0 0.0
        %4555 = vmatmul.mubr.f32.gmra.mrb[0].mxu0 %v3505
        %v4556 = vpop.f32.mrb[0].mxu0
        %v4557 = vadd.f32 %v3174, %v4556
        %v4558 = vpop.f32.mrb[0].mxu0
        %4559 = vmatprep.mubr.f32.mxu0 0.0
        %4560 = vmatmul.mubr.f32.gmra.mrb[0].mxu0 %v3508
        %v4561 = vpop.f32.mrb[0].mxu0
        %v4562 = vadd.f32 %v3174, %v4561
        %v4563 = vpop.f32.mrb[0].mxu0
        %4564 = vmatprep.mubr.f32.mxu0 0.0
        %4565 = vmatmul.mubr.f32.gmra.mrb[0].mxu0 %v3511
        %v4566 = vpop.f32.mrb[0].mxu0
        %v4567 = vadd.f32 %v3174, %v4566
        %v4568 = vpop.f32.mrb[0].mxu0
        %4569 = vmatprep.mubr.f32.mxu0 0.0
        %4570 = vmatmul.mubr.f32.gmra.mrb[0].mxu0 %v3514
        %v4571 = vpop.f32.mrb[0].mxu0
        %v4572 = vadd.f32 %v3174, %v4571
        %v4573 = vpop.f32.mrb[0].mxu0
        %4574 = vmatprep.mubr.f32.mxu0 0.0
        %4575 = vmatmul.mubr.f32.gmra.mrb[0].mxu0 %v3517
        %v4576 = vpop.f32.mrb[0].mxu0
        %v4577 = vadd.f32 %v3174, %v4576
        %v4578 = vpop.f32.mrb[0].mxu0
        %4579 = vmatprep.mubr.f32.mxu0 0.0
        %4580 = vmatmul.mubr.f32.gmra.mrb[0].mxu0 %v3520
        %v4581 = vpop.f32.mrb[0].mxu0
        %v4582 = vadd.f32 %v3174, %v4581
        %v4583 = vpop.f32.mrb[0].mxu0
        %4584 = vmatprep.mubr.f32.mxu0 0.0
        %4585 = vmatmul.mubr.f32.gmra.mrb[0].mxu0 %v3523
        %v4586 = vpop.f32.mrb[0].mxu0
        %v4587 = vadd.f32 %v3174, %v4586
        %v4588 = vpop.f32.mrb[0].mxu0
        %4589 = vmatprep.mubr.f32.mxu0 0.0
        %4590 = vmatmul.mubr.f32.gmra.mrb[0].mxu0 %v3526
        %v4591 = vpop.f32.mrb[0].mxu0
        %v4592 = vadd.f32 %v3174, %v4591
        %v4593 = vpop.f32.mrb[0].mxu0
        %4594 = vmatprep.mubr.f32.mxu0 0.0
        %4595 = vmatmul.mubr.f32.gmra.mrb[0].mxu0 %v3529
        %v4596 = vpop.f32.mrb[0].mxu0
        %v4597 = vadd.f32 %v3174, %v4596
        %v4598 = vpop.f32.mrb[0].mxu0
        %4599 = vmatprep.mubr.f32.mxu0 0.0
        %4600 = vmatmul.mubr.f32.gmra.mrb[0].mxu0 %v3532
        %v4601 = vpop.f32.mrb[0].mxu0
        %v4602 = vadd.f32 %v3174, %v4601
        %v4603 = vpop.f32.mrb[0].mxu0
        %4604 = vmatprep.mubr.f32.mxu0 0.0
        %4605 = vmatmul.mubr.f32.gmra.mrb[0].mxu0 %v3535
        %v4606 = vpop.f32.mrb[0].mxu0
        %v4607 = vadd.f32 %v3174, %v4606
        %v4608 = vpop.f32.mrb[0].mxu0
        %4609 = vmatprep.mubr.f32.mxu0 0.0
        %4610 = vmatmul.mubr.f32.gmra.mrb[0].mxu0 %v3538
        %v4611 = vpop.f32.mrb[0].mxu0
        %v4612 = vadd.f32 %v3174, %v4611
        %v4613 = vpop.f32.mrb[0].mxu0
        %4614 = vmatprep.mubr.f32.mxu0 0.0
        %4615 = vmatmul.mubr.f32.gmra.mrb[0].mxu0 %v3541
        %v4616 = vpop.f32.mrb[0].mxu0
        %v4617 = vadd.f32 %v3174, %v4616
        %v4618 = vpop.f32.mrb[0].mxu0
        %4619 = vmatprep.mubr.f32.mxu0 0.0
        %4620 = vmatmul.mubr.f32.gmra.mrb[0].mxu0 %v3544
        %v4621 = vpop.f32.mrb[0].mxu0
        %v4622 = vadd.f32 %v3174, %v4621
        %v4623 = vpop.f32.mrb[0].mxu0
        %4624 = vmatprep.mubr.f32.mxu0 0.0
        %4625 = vmatmul.mubr.f32.gmra.mrb[0].mxu0 %v3547
        %v4626 = vpop.f32.mrb[0].mxu0
        %v4627 = vadd.f32 %v3174, %v4626
        %v4628 = vpop.f32.mrb[0].mxu0
        %4629 = vmatprep.mubr.f32.mxu0 0.0
        %4630 = vmatmul.mubr.f32.gmra.mrb[0].mxu0 %v3550
        %v4631 = vpop.f32.mrb[0].mxu0
        %v4632 = vadd.f32 %v3174, %v4631
        %v4633 = vpop.f32.mrb[0].mxu0
        %4634 = vmatprep.mubr.f32.mxu0 0.0
        %4635 = vmatmul.mubr.f32.gmra.mrb[0].mxu0 %v3553
        %v4636 = vpop.f32.mrb[0].mxu0
        %v4637 = vadd.f32 %v3174, %v4636
        %v4638 = vpop.f32.mrb[0].mxu0
        %4639 = vmatprep.mubr.f32.mxu0 0.0
        %4640 = vmatmul.mubr.f32.gmra.mrb[0].mxu0 %v3556
        %v4641 = vpop.f32.mrb[0].mxu0
        %v4642 = vadd.f32 %v3174, %v4641
        %v4643 = vpop.f32.mrb[0].mxu0
        %4644 = vmatprep.mubr.f32.mxu0 0.0
        %4645 = vmatmul.mubr.f32.gmra.mrb[0].mxu0 %v3559
        %v4646 = vpop.f32.mrb[0].mxu0
        %v4647 = vadd.f32 %v3174, %v4646
        %v4648 = vpop.f32.mrb[0].mxu0
        %4649 = vmatprep.mubr.f32.mxu0 0.0
        %4650 = vmatmul.mubr.f32.gmra.mrb[0].mxu0 %v3562
        %v4651 = vpop.f32.mrb[0].mxu0
        %v4652 = vadd.f32 %v3174, %v4651
        %v4653 = vpop.f32.mrb[0].mxu0
        %4654 = vmatprep.mubr.f32.mxu0 0.0
        %4655 = vmatmul.mubr.f32.gmra.mrb[0].mxu0 %v3565
        %v4656 = vpop.f32.mrb[0].mxu0
        %v4657 = vadd.f32 %v3174, %v4656
        %v4658 = vpop.f32.mrb[0].mxu0
        %4659 = vmatprep.mubr.f32.mxu0 0.0
        %4660 = vmatmul.mubr.f32.gmra.mrb[0].mxu0 %v3568
        %v4661 = vpop.f32.mrb[0].mxu0
        %v4662 = vadd.f32 %v3174, %v4661
        %v4663 = vpop.f32.mrb[0].mxu0
        %4664 = vmatprep.mubr.f32.mxu0 0.0
        %4665 = vmatmul.mubr.f32.gmra.mrb[0].mxu0 %v3571
        %v4666 = vpop.f32.mrb[0].mxu0
        %v4667 = vadd.f32 %v3174, %v4666
        %v4668 = vpop.f32.mrb[0].mxu0
        %4669 = vmatprep.mubr.f32.mxu0 0.0
        %4670 = vmatmul.mubr.f32.gmra.mrb[0].mxu0 %v3574
        %v4671 = vpop.f32.mrb[0].mxu0
        %v4672 = vadd.f32 %v3174, %v4671
        %v4673 = vpop.f32.mrb[0].mxu0
        %4674 = vmatprep.mubr.f32.mxu0 0.0
        %4675 = vmatmul.mubr.f32.gmra.mrb[0].mxu0 %v3577
        %v4676 = vpop.f32.mrb[0].mxu0
        %v4677 = vadd.f32 %v3174, %v4676
        %v4678 = vpop.f32.mrb[0].mxu0
        %4679 = vmatprep.mubr.f32.mxu0 0.0
        %4680 = vmatmul.mubr.f32.gmra.mrb[0].mxu0 %v3580
        %v4681 = vpop.f32.mrb[0].mxu0
        %v4682 = vadd.f32 %v3174, %v4681
        %v4683 = vpop.f32.mrb[0].mxu0
        %4684 = vmatprep.mubr.f32.mxu0 0.0
        %4685 = vmatmul.mubr.f32.gmra.mrb[0].mxu0 %v3583
        %v4686 = vpop.f32.mrb[0].mxu0
        %v4687 = vadd.f32 %v3174, %v4686
        %v4688 = vpop.f32.mrb[0].mxu0
        %4689 = vmatprep.mubr.f32.mxu0 0.0
        %4690 = vmatmul.mubr.f32.gmra.mrb[0].mxu0 %v3586
        %v4691 = vpop.f32.mrb[0].mxu0
        %v4692 = vadd.f32 %v3174, %v4691
        %v4693 = vpop.f32.mrb[0].mxu0
        %4694 = vmatprep.mubr.f32.mxu0 0.0
        %4695 = vmatmul.mubr.f32.gmra.mrb[0].mxu0 %v3589
        %v4696 = vpop.f32.mrb[0].mxu0
        %v4697 = vadd.f32 %v3174, %v4696
        %v4698 = vpop.f32.mrb[0].mxu0
        %4699 = vmatprep.mubr.f32.mxu0 0.0
        %4700 = vmatmul.mubr.f32.gmra.mrb[0].mxu0 %v3592
        %v4701 = vpop.f32.mrb[0].mxu0
        %v4702 = vadd.f32 %v3174, %v4701
        %v4703 = vpop.f32.mrb[0].mxu0
        %4704 = vmatprep.mubr.f32.mxu0 0.0
        %4705 = vmatmul.mubr.f32.gmra.mrb[0].mxu0 %v3595
        %v4706 = vpop.f32.mrb[0].mxu0
        %v4707 = vadd.f32 %v3174, %v4706
        %v4708 = vpop.f32.mrb[0].mxu0
        %4709 = vmatprep.mubr.f32.mxu0 0.0
        %4710 = vmatmul.mubr.f32.gmra.mrb[0].mxu0 %v3598
        %v4711 = vpop.f32.mrb[0].mxu0
        %v4712 = vadd.f32 %v3174, %v4711
        %v4713 = vpop.f32.mrb[0].mxu0
        %4714 = vmatprep.mubr.f32.mxu0 0.0
        %4715 = vmatmul.mubr.f32.gmra.mrb[0].mxu0 %v3601
        %v4716 = vpop.f32.mrb[0].mxu0
        %v4717 = vadd.f32 %v3174, %v4716
        %v4718 = vpop.f32.mrb[0].mxu0
        %4719 = vmatprep.mubr.f32.mxu0 0.0
        %4720 = vmatmul.mubr.f32.gmra.mrb[0].mxu0 %v3604
        %v4721 = vpop.f32.mrb[0].mxu0
        %v4722 = vadd.f32 %v3174, %v4721
        %v4723 = vpop.f32.mrb[0].mxu0
        %4724 = vmatprep.mubr.f32.mxu0 0.0
        %4725 = vmatmul.mubr.f32.gmra.mrb[0].mxu0 %v3607
        %v4726 = vpop.f32.mrb[0].mxu0
        %v4727 = vadd.f32 %v3174, %v4726
        %v4728 = vpop.f32.mrb[0].mxu0
        %4729 = vmatprep.mubr.f32.mxu0 0.0
        %4730 = vmatmul.mubr.f32.gmra.mrb[0].mxu0 %v3610
        %v4731 = vpop.f32.mrb[0].mxu0
        %v4732 = vadd.f32 %v3174, %v4731
        %v4733 = vpop.f32.mrb[0].mxu0
        %4734 = vmatprep.mubr.f32.mxu0 0.0
        %4735 = vmatmul.mubr.f32.gmra.mrb[0].mxu0 %v3613
        %v4736 = vpop.f32.mrb[0].mxu0
        %v4737 = vadd.f32 %v3174, %v4736
        %v4738 = vpop.f32.mrb[0].mxu0
        %4739 = vmatprep.mubr.f32.mxu0 0.0
        %4740 = vmatmul.mubr.f32.gmra.mrb[0].mxu0 %v3616
        %v4741 = vpop.f32.mrb[0].mxu0
        %v4742 = vadd.f32 %v3174, %v4741
        %v4743 = vpop.f32.mrb[0].mxu0
        %4744 = vmatprep.mubr.f32.mxu0 0.0
        %4745 = vmatmul.mubr.f32.gmra.mrb[0].mxu0 %v3619
        %v4746 = vpop.f32.mrb[0].mxu0
        %v4747 = vadd.f32 %v3174, %v4746
        %v4748 = vpop.f32.mrb[0].mxu0
        %4749 = vmatprep.mubr.f32.mxu0 0.0
        %4750 = vmatmul.mubr.f32.gmra.mrb[0].mxu0 %v3622
        %v4751 = vpop.f32.mrb[0].mxu0
        %v4752 = vadd.f32 %v3174, %v4751
        %v4753 = vpop.f32.mrb[0].mxu0
        %4754 = vmatprep.mubr.f32.mxu0 0.0
        %4755 = vmatmul.mubr.f32.gmra.mrb[0].mxu0 %v3625
        %v4756 = vpop.f32.mrb[0].mxu0
        %v4757 = vadd.f32 %v3174, %v4756
        %v4758 = vpop.f32.mrb[0].mxu0
        %4759 = vmatprep.mubr.f32.mxu0 0.0
        %4760 = vmatmul.mubr.f32.gmra.mrb[0].mxu0 %v3628
        %v4761 = vpop.f32.mrb[0].mxu0
        %v4762 = vadd.f32 %v3174, %v4761
        %v4763 = vpop.f32.mrb[0].mxu0
        %4764 = vmatprep.mubr.f32.mxu0 0.0
        %4765 = vmatmul.mubr.f32.gmra.mrb[0].mxu0 %v3631
        %v4766 = vpop.f32.mrb[0].mxu0
        %v4767 = vadd.f32 %v3174, %v4766
        %v4768 = vpop.f32.mrb[0].mxu0
        %4769 = vmatprep.mubr.f32.mxu0 0.0
        %4770 = vmatmul.mubr.f32.gmra.mrb[0].mxu0 %v3634
        %v4771 = vpop.f32.mrb[0].mxu0
        %v4772 = vadd.f32 %v3174, %v4771
        %v4773 = vpop.f32.mrb[0].mxu0
        %4774 = vmatprep.mubr.f32.mxu0 0.0
        %4775 = vmatmul.mubr.f32.gmra.mrb[0].mxu0 %v3637
        %v4776 = vpop.f32.mrb[0].mxu0
        %v4777 = vadd.f32 %v3174, %v4776
        %v4778 = vpop.f32.mrb[0].mxu0
        %4779 = vmatprep.mubr.f32.mxu0 0.0
        %4780 = vmatmul.mubr.f32.gmra.mrb[0].mxu0 %v3640
        %v4781 = vpop.f32.mrb[0].mxu0
        %v4782 = vadd.f32 %v3174, %v4781
        %v4783 = vpop.f32.mrb[0].mxu0
        %4784 = vmatprep.mubr.f32.mxu0 0.0
        %4785 = vmatmul.mubr.f32.gmra.mrb[0].mxu0 %v3643
        %v4786 = vpop.f32.mrb[0].mxu0
        %v4787 = vadd.f32 %v3174, %v4786
        %v4788 = vpop.f32.mrb[0].mxu0
        %4789 = vmatprep.mubr.f32.mxu0 0.0
        %4790 = vmatmul.mubr.f32.gmra.mrb[0].mxu0 %v3646
        %v4791 = vpop.f32.mrb[0].mxu0
        %v4792 = vadd.f32 %v3174, %v4791
        %v4793 = vpop.f32.mrb[0].mxu0
        %4794 = vmatprep.mubr.f32.mxu0 0.0
        %4795 = vmatmul.mubr.f32.gmra.mrb[0].mxu0 %v3649
        %v4796 = vpop.f32.mrb[0].mxu0
        %v4797 = vadd.f32 %v3174, %v4796
        %v4798 = vpop.f32.mrb[0].mxu0
        %4799 = vmatprep.mubr.f32.mxu0 0.0
        %4800 = vmatmul.mubr.f32.gmra.mrb[0].mxu0 %v3652
        %v4801 = vpop.f32.mrb[0].mxu0
        %v4802 = vadd.f32 %v3174, %v4801
        %v4803 = vpop.f32.mrb[0].mxu0
        %4804 = vmatprep.mubr.f32.mxu0 0.0
        %4805 = vmatmul.mubr.f32.gmra.mrb[0].mxu0 %v3655
        %v4806 = vpop.f32.mrb[0].mxu0
        %v4807 = vadd.f32 %v3174, %v4806
        %v4808 = vpop.f32.mrb[0].mxu0
        %4809 = vmatprep.mubr.f32.mxu0 0.0
        %4810 = vmatmul.mubr.f32.gmra.mrb[0].mxu0 %v3658
        %v4811 = vpop.f32.mrb[0].mxu0
        %v4812 = vadd.f32 %v3174, %v4811
        %v4813 = vpop.f32.mrb[0].mxu0
        %4814 = vmatprep.mubr.f32.mxu0 0.0
        %4815 = vmatmul.mubr.f32.gmra.mrb[0].mxu0 %v3661
        %v4816 = vpop.f32.mrb[0].mxu0
        %v4817 = vadd.f32 %v3174, %v4816
        %v4818 = vpop.f32.mrb[0].mxu0
        %4819 = vmatprep.mubr.f32.mxu0 0.0
        %4820 = vmatmul.mubr.f32.gmra.mrb[0].mxu0 %v3664
        %v4821 = vpop.f32.mrb[0].mxu0
        %v4822 = vadd.f32 %v3174, %v4821
        %v4823 = vpop.f32.mrb[0].mxu0
        %4824 = vmatprep.mubr.f32.mxu0 0.0
        %4825 = vmatmul.mubr.f32.gmra.mrb[0].mxu0 %v3667
        %v4826 = vpop.f32.mrb[0].mxu0
        %v4827 = vadd.f32 %v3174, %v4826
        %v4828 = vpop.f32.mrb[0].mxu0
        %4829 = vmatprep.mubr.f32.mxu0 0.0
        %4830 = vmatmul.mubr.f32.gmra.mrb[0].mxu0 %v3670
        %v4831 = vpop.f32.mrb[0].mxu0
        %v4832 = vadd.f32 %v3174, %v4831
        %v4833 = vpop.f32.mrb[0].mxu0
        %4834 = vmatprep.mubr.f32.mxu0 0.0
        %4835 = vmatmul.mubr.f32.gmra.mrb[0].mxu0 %v3673
        %v4836 = vpop.f32.mrb[0].mxu0
        %v4837 = vadd.f32 %v3174, %v4836
        %v4838 = vpop.f32.mrb[0].mxu0
        %4839 = vmatprep.mubr.f32.mxu0 0.0
        %4840 = vmatmul.mubr.f32.gmra.mrb[0].mxu0 %v3676
        %v4841 = vpop.f32.mrb[0].mxu0
        %v4842 = vadd.f32 %v3174, %v4841
        %v4843 = vpop.f32.mrb[0].mxu0
        %4844 = vmatprep.mubr.f32.mxu0 0.0
        %4845 = vmatmul.mubr.f32.gmra.mrb[0].mxu0 %v3679
        %v4846 = vpop.f32.mrb[0].mxu0
        %v4847 = vadd.f32 %v3174, %v4846
        %v4848 = vpop.f32.mrb[0].mxu0
        %4849 = vmatprep.mubr.f32.mxu0 0.0
        %4850 = vmatmul.mubr.f32.gmra.mrb[0].mxu0 %v3682
        %v4851 = vpop.f32.mrb[0].mxu0
        %v4852 = vadd.f32 %v3174, %v4851
        %v4853 = vpop.f32.mrb[0].mxu0
        %4854 = vmatprep.mubr.f32.mxu0 0.0
        %4855 = vmatmul.mubr.f32.gmra.mrb[0].mxu0 %v3685
        %v4856 = vpop.f32.mrb[0].mxu0
        %v4857 = vadd.f32 %v3174, %v4856
        %v4858 = vpop.f32.mrb[0].mxu0
        %4859 = vmatprep.mubr.f32.mxu0 0.0
        %4860 = vmatmul.mubr.f32.gmra.mrb[0].mxu0 %v3688
        %v4861 = vpop.f32.mrb[0].mxu0
        %v4862 = vadd.f32 %v3174, %v4861
        %v4863 = vpop.f32.mrb[0].mxu0
        %4864 = vmatprep.mubr.f32.mxu0 0.0
        %4865 = vmatmul.mubr.f32.gmra.mrb[0].mxu0 %v3691
        %v4866 = vpop.f32.mrb[0].mxu0
        %v4867 = vadd.f32 %v3174, %v4866
        %v4868 = vpop.f32.mrb[0].mxu0
        %4869 = vmatprep.mubr.f32.mxu0 0.0
        %4870 = vmatmul.mubr.f32.gmra.mrb[0].mxu0 %v3694
        %v4871 = vpop.f32.mrb[0].mxu0
        %v4872 = vadd.f32 %v3174, %v4871
        %v4873 = vpop.f32.mrb[0].mxu0
        %4874 = vmatprep.mubr.f32.mxu0 0.0
        %4875 = vmatmul.mubr.f32.gmra.mrb[0].mxu0 %v3697
        %v4876 = vpop.f32.mrb[0].mxu0
        %v4877 = vadd.f32 %v3174, %v4876
        %v4878 = vpop.f32.mrb[0].mxu0
        %4879 = vmatprep.mubr.f32.mxu0 0.0
        %4880 = vmatmul.mubr.f32.gmra.mrb[0].mxu0 %v3700
        %v4881 = vpop.f32.mrb[0].mxu0
        %v4882 = vadd.f32 %v3174, %v4881
        %v4883 = vpop.f32.mrb[0].mxu0
        %4884 = vmatprep.mubr.f32.mxu0 0.0
        %4885 = vmatmul.mubr.f32.gmra.mrb[0].mxu0 %v3703
        %v4886 = vpop.f32.mrb[0].mxu0
        %v4887 = vadd.f32 %v3174, %v4886
        %v4888 = vpop.f32.mrb[0].mxu0
        %4889 = vmatprep.mubr.f32.mxu0 0.0
        %4890 = vmatmul.mubr.f32.gmra.mrb[0].mxu0 %v3706
        %v4891 = vpop.f32.mrb[0].mxu0
        %v4892 = vadd.f32 %v3174, %v4891
        %v4893 = vpop.f32.mrb[0].mxu0
        %4894 = vmatprep.mubr.f32.mxu0 0.0
        %4895 = vmatmul.mubr.f32.gmra.mrb[0].mxu0 %v3709
        %v4896 = vpop.f32.mrb[0].mxu0
        %v4897 = vadd.f32 %v3174, %v4896
        %v4898 = vpop.f32.mrb[0].mxu0
        %4899 = vmatprep.mubr.f32.mxu0 0.0
        %4900 = vmatmul.mubr.f32.gmra.mrb[0].mxu0 %v3712
        %v4901 = vpop.f32.mrb[0].mxu0
        %v4902 = vadd.f32 %v3174, %v4901
        %v4903 = vpop.f32.mrb[0].mxu0
        %4904 = vmatprep.mubr.f32.mxu0 0.0
        %4905 = vmatmul.mubr.f32.gmra.mrb[0].mxu0 %v3715
        %v4906 = vpop.f32.mrb[0].mxu0
        %v4907 = vadd.f32 %v3174, %v4906
        %v4908 = vpop.f32.mrb[0].mxu0
        %4909 = vmatprep.mubr.f32.mxu0 0.0
        %4910 = vmatmul.mubr.f32.gmra.mrb[0].mxu0 %v3718
        %v4911 = vpop.f32.mrb[0].mxu0
        %v4912 = vadd.f32 %v3174, %v4911
        %v4913 = vpop.f32.mrb[0].mxu0
        %4914 = vmatprep.mubr.f32.mxu0 0.0
        %4915 = vmatmul.mubr.f32.gmra.mrb[0].mxu0 %v3721
        %v4916 = vpop.f32.mrb[0].mxu0
        %v4917 = vadd.f32 %v3174, %v4916
        %v4918 = vpop.f32.mrb[0].mxu0
        %4919 = vmatprep.mubr.f32.mxu0 0.0
        %4920 = vmatmul.mubr.f32.gmra.mrb[0].mxu0 %v3724
        %v4921 = vpop.f32.mrb[0].mxu0
        %v4922 = vadd.f32 %v3174, %v4921
        %v4923 = vpop.f32.mrb[0].mxu0
        %4924 = vmatprep.mubr.f32.mxu0 0.0
        %4925 = vmatmul.mubr.f32.gmra.mrb[0].mxu0 %v3727
        %v4926 = vpop.f32.mrb[0].mxu0
        %v4927 = vadd.f32 %v3174, %v4926
        %v4928 = vpop.f32.mrb[0].mxu0
        %4929 = vmatprep.mubr.f32.mxu0 0.0
        %4930 = vmatmul.mubr.f32.gmra.mrb[0].mxu0 %v3730
        %v4931 = vpop.f32.mrb[0].mxu0
        %v4932 = vadd.f32 %v3174, %v4931
        %v4933 = vpop.f32.mrb[0].mxu0
        %4934 = vmatprep.mubr.f32.mxu0 0.0
        %4935 = vmatmul.mubr.f32.gmra.mrb[0].mxu0 %v3733
        %v4936 = vpop.f32.mrb[0].mxu0
        %v4937 = vadd.f32 %v3174, %v4936
        %v4938 = vpop.f32.mrb[0].mxu0
        %4939 = vmatprep.mubr.f32.mxu0 0.0
        %4940 = vmatmul.mubr.f32.gmra.mrb[0].mxu0 %v3736
        %v4941 = vpop.f32.mrb[0].mxu0
        %v4942 = vadd.f32 %v3174, %v4941
        %v4943 = vpop.f32.mrb[0].mxu0
        %4944 = vmatprep.mubr.f32.mxu0 0.0
        %4945 = vmatmul.mubr.f32.gmra.mrb[0].mxu0 %v3739
        %v4946 = vpop.f32.mrb[0].mxu0
        %v4947 = vadd.f32 %v3174, %v4946
        %v4948 = vpop.f32.mrb[0].mxu0
        %4949 = vmatprep.mubr.f32.mxu0 0.0
        %4950 = vmatmul.mubr.f32.gmra.mrb[0].mxu0 %v3742
        %v4951 = vpop.f32.mrb[0].mxu0
        %v4952 = vadd.f32 %v3174, %v4951
        %v4953 = vpop.f32.mrb[0].mxu0
        %4954 = vmatprep.mubr.f32.mxu0 0.0
        %4955 = vmatmul.mubr.f32.gmra.mrb[0].mxu0 %v3745
        %v4956 = vpop.f32.mrb[0].mxu0
        %v4957 = vadd.f32 %v3174, %v4956
        %v4958 = vpop.f32.mrb[0].mxu0
        %4959 = vmatprep.mubr.f32.mxu0 0.0
        %4960 = vmatmul.mubr.f32.gmra.mrb[0].mxu0 %v3748
        %v4961 = vpop.f32.mrb[0].mxu0
        %v4962 = vadd.f32 %v3174, %v4961
        %v4963 = vpop.f32.mrb[0].mxu0
        %4964 = vmatprep.mubr.f32.mxu0 0.0
        %4965 = vmatmul.mubr.f32.gmra.mrb[0].mxu0 %v3751
        %v4966 = vpop.f32.mrb[0].mxu0
        %v4967 = vadd.f32 %v3174, %v4966
        %v4968 = vpop.f32.mrb[0].mxu0
        %4969 = vmatprep.mubr.f32.mxu0 0.0
        %4970 = vmatmul.mubr.f32.gmra.mrb[0].mxu0 %v3754
        %v4971 = vpop.f32.mrb[0].mxu0
        %v4972 = vadd.f32 %v3174, %v4971
        %v4973 = vpop.f32.mrb[0].mxu0
        %4974 = vmatprep.mubr.f32.mxu0 0.0
        %4975 = vmatmul.mubr.f32.gmra.mrb[0].mxu0 %v3757
        %v4976 = vpop.f32.mrb[0].mxu0
        %v4977 = vadd.f32 %v3174, %v4976
        %v4978 = vpop.f32.mrb[0].mxu0
        %4979 = vmatprep.mubr.f32.mxu0 0.0
        %4980 = vmatmul.mubr.f32.gmra.mrb[0].mxu0 %v3760
        %v4981 = vpop.f32.mrb[0].mxu0
        %v4982 = vadd.f32 %v3174, %v4981
        %v4983 = vpop.f32.mrb[0].mxu0
        %4984 = vmatprep.mubr.f32.mxu0 0.0
        %4985 = vmatmul.mubr.f32.gmra.mrb[0].mxu0 %v3763
        %v4986 = vpop.f32.mrb[0].mxu0
        %v4987 = vadd.f32 %v3174, %v4986
        %v4988 = vpop.f32.mrb[0].mxu0
        %4989 = vmatprep.mubr.f32.mxu0 0.0
        %4990 = vmatmul.mubr.f32.gmra.mrb[0].mxu0 %v3766
        %v4991 = vpop.f32.mrb[0].mxu0
        %v4992 = vadd.f32 %v3174, %v4991
        %v4993 = vpop.f32.mrb[0].mxu0
        %4994 = vmatprep.mubr.f32.mxu0 0.0
        %4995 = vmatmul.mubr.f32.gmra.mrb[0].mxu0 %v3769
        %v4996 = vpop.f32.mrb[0].mxu0
        %v4997 = vadd.f32 %v3174, %v4996
        %v4998 = vpop.f32.mrb[0].mxu0
        %4999 = vmatprep.mubr.f32.mxu0 0.0
        %5000 = vmatmul.mubr.f32.gmra.mrb[0].mxu0 %v3772
        %v5001 = vpop.f32.mrb[0].mxu0
        %v5002 = vadd.f32 %v3174, %v5001
        %v5003 = vpop.f32.mrb[0].mxu0
        %5004 = vmatprep.mubr.f32.mxu0 0.0
        %5005 = vmatmul.mubr.f32.gmra.mrb[0].mxu0 %v3775
        %v5006 = vpop.f32.mrb[0].mxu0
        %v5007 = vadd.f32 %v3174, %v5006
        %v5008 = vpop.f32.mrb[0].mxu0
        %5009 = vmatprep.mubr.f32.mxu0 0.0
        %5010 = vmatmul.mubr.f32.gmra.mrb[0].mxu0 %v3778
        %v5011 = vpop.f32.mrb[0].mxu0
        %v5012 = vadd.f32 %v3174, %v5011
        %v5013 = vpop.f32.mrb[0].mxu0
        %5014 = vmatprep.mubr.f32.mxu0 0.0
        %5015 = vmatmul.mubr.f32.gmra.mrb[0].mxu0 %v3781
        %v5016 = vpop.f32.mrb[0].mxu0
        %v5017 = vadd.f32 %v3174, %v5016
        %v5018 = vpop.f32.mrb[0].mxu0
        %5019 = vmatprep.mubr.f32.mxu0 0.0
        %5020 = vmatmul.mubr.f32.gmra.mrb[0].mxu0 %v3784
        %v5021 = vpop.f32.mrb[0].mxu0
        %v5022 = vadd.f32 %v3174, %v5021
        %v5023 = vpop.f32.mrb[0].mxu0
        %5024 = vmatprep.mubr.f32.mxu0 0.0
        %5025 = vmatmul.mubr.f32.gmra.mrb[0].mxu0 %v3787
        %v5026 = vpop.f32.mrb[0].mxu0
        %v5027 = vadd.f32 %v3174, %v5026
        %v5028 = vpop.f32.mrb[0].mxu0
        %5029 = vmatprep.mubr.f32.mxu0 0.0
        %5030 = vmatmul.mubr.f32.gmra.mrb[0].mxu0 %v3790
        %v5031 = vpop.f32.mrb[0].mxu0
        %v5032 = vadd.f32 %v3174, %v5031
        %v5033 = vpop.f32.mrb[0].mxu0
        %5034 = vmatprep.mubr.f32.mxu0 0.0
        %5035 = vmatmul.mubr.f32.gmra.mrb[0].mxu0 %v3793
        %v5036 = vpop.f32.mrb[0].mxu0
        %v5037 = vadd.f32 %v3174, %v5036
        %v5038 = vpop.f32.mrb[0].mxu0
        %5039 = vmatprep.mubr.f32.mxu0 0.0
        %5040 = vmatmul.mubr.f32.gmra.mrb[0].mxu0 %v3796
        %v5041 = vpop.f32.mrb[0].mxu0
        %v5042 = vadd.f32 %v3174, %v5041
        %v5043 = vpop.f32.mrb[0].mxu0
        %5044 = vmatprep.mubr.f32.mxu0 0.0
        %5045 = vmatmul.mubr.f32.gmra.mrb[0].mxu0 %v3799
        %v5046 = vpop.f32.mrb[0].mxu0
        %v5047 = vadd.f32 %v3174, %v5046
        %v5048 = vpop.f32.mrb[0].mxu0
        %5049 = vmatprep.mubr.f32.mxu0 0.0
        %5050 = vmatmul.mubr.f32.gmra.mrb[0].mxu0 %v3802
        %v5051 = vpop.f32.mrb[0].mxu0
        %v5052 = vadd.f32 %v3174, %v5051
        %v5053 = vpop.f32.mrb[0].mxu0
        %5054 = vmatprep.mubr.f32.mxu0 0.0
        %5055 = vmatmul.mubr.f32.gmra.mrb[0].mxu0 %v3805
        %v5056 = vpop.f32.mrb[0].mxu0
        %v5057 = vadd.f32 %v3174, %v5056
        %v5058 = vpop.f32.mrb[0].mxu0
        %5059 = vmatprep.mubr.f32.mxu0 0.0
        %5060 = vmatmul.mubr.f32.gmra.mrb[0].mxu0 %v3808
        %v5061 = vpop.f32.mrb[0].mxu0
        %v5062 = vadd.f32 %v3174, %v5061
        %v5063 = vpop.f32.mrb[0].mxu0
        %5064 = vmatprep.mubr.f32.mxu0 0.0
        %5065 = vmatmul.mubr.f32.gmra.mrb[0].mxu0 %v3811
        %v5066 = vpop.f32.mrb[0].mxu0
        %v5067 = vadd.f32 %v3174, %v5066
        %v5068 = vpop.f32.mrb[0].mxu0
        %5069 = vmatprep.mubr.f32.mxu0 0.0
        %5070 = vmatmul.mubr.f32.gmra.mrb[0].mxu0 %v3814
        %v5071 = vpop.f32.mrb[0].mxu0
        %v5072 = vadd.f32 %v3174, %v5071
        %v5073 = vpop.f32.mrb[0].mxu0
        %5074 = vmatprep.mubr.f32.mxu0 0.0
        %5075 = vmatmul.mubr.f32.gmra.mrb[0].mxu0 %v3817
        %v5076 = vpop.f32.mrb[0].mxu0
        %v5077 = vadd.f32 %v3174, %v5076
        %v5078 = vpop.f32.mrb[0].mxu0
        %5079 = vmatprep.mubr.f32.mxu0 0.0
        %5080 = vmatmul.mubr.f32.gmra.mrb[0].mxu0 %v3820
        %v5081 = vpop.f32.mrb[0].mxu0
        %v5082 = vadd.f32 %v3174, %v5081
        %v5083 = vpop.f32.mrb[0].mxu0
        %5084 = vmatprep.mubr.f32.mxu0 0.0
        %5085 = vmatmul.mubr.f32.gmra.mrb[0].mxu0 %v3823
        %v5086 = vpop.f32.mrb[0].mxu0
        %v5087 = vadd.f32 %v3174, %v5086
        %v5088 = vpop.f32.mrb[0].mxu0
        %5089 = vmatprep.mubr.f32.mxu0 0.0
        %5090 = vmatmul.mubr.f32.gmra.mrb[0].mxu0 %v3826
        %v5091 = vpop.f32.mrb[0].mxu0
        %v5092 = vadd.f32 %v3174, %v5091
        %v5093 = vpop.f32.mrb[0].mxu0
        %5094 = vmatprep.mubr.f32.mxu0 0.0
        %5095 = vmatmul.mubr.f32.gmra.mrb[0].mxu0 %v3829
        %v5096 = vpop.f32.mrb[0].mxu0
        %v5097 = vadd.f32 %v3174, %v5096
        %v5098 = vpop.f32.mrb[0].mxu0
        %5099 = vmatprep.mubr.f32.mxu0 0.0
        %5100 = vmatmul.mubr.f32.gmra.mrb[0].mxu0 %v3832
        %v5101 = vpop.f32.mrb[0].mxu0
        %v5102 = vadd.f32 %v3174, %v5101
        %v5103 = vpop.f32.mrb[0].mxu0
        %5104 = vmatprep.mubr.f32.mxu0 0.0
        %5105 = vmatmul.mubr.f32.gmra.mrb[0].mxu0 %v3835
        %v5106 = vpop.f32.mrb[0].mxu0
        %v5107 = vadd.f32 %v3174, %v5106
        %v5108 = vpop.f32.mrb[0].mxu0
        %5109 = vmatprep.mubr.f32.mxu0 0.0
        %5110 = vmatmul.mubr.f32.gmra.mrb[0].mxu0 %v3838
        %v5111 = vpop.f32.mrb[0].mxu0
        %v5112 = vadd.f32 %v3174, %v5111
        %v5113 = vpop.f32.mrb[0].mxu0
        %5114 = vmatprep.mubr.f32.mxu0 0.0
        %5115 = vmatmul.mubr.f32.gmra.mrb[0].mxu0 %v3841
        %v5116 = vpop.f32.mrb[0].mxu0
        %v5117 = vadd.f32 %v3174, %v5116
        %v5118 = vpop.f32.mrb[0].mxu0
        %5119 = vmatprep.mubr.f32.mxu0 0.0
        %5120 = vmatmul.mubr.f32.gmra.mrb[0].mxu0 %v3844
        %v5121 = vpop.f32.mrb[0].mxu0
        %v5122 = vadd.f32 %v3174, %v5121
        %v5123 = vpop.f32.mrb[0].mxu0
        %5124 = vmatprep.mubr.f32.mxu0 0.0
        %5125 = vmatmul.mubr.f32.gmra.mrb[0].mxu0 %v3847
        %v5126 = vpop.f32.mrb[0].mxu0
        %v5127 = vadd.f32 %v3174, %v5126
        %v5128 = vpop.f32.mrb[0].mxu0
        %5129 = vmatprep.mubr.f32.mxu0 0.0
        %5130 = vmatmul.mubr.f32.gmra.mrb[0].mxu0 %v3850
        %v5131 = vpop.f32.mrb[0].mxu0
        %v5132 = vadd.f32 %v3174, %v5131
        %v5133 = vpop.f32.mrb[0].mxu0
        %5134 = vmatprep.mubr.f32.mxu0 0.0
        %5135 = vmatmul.mubr.f32.gmra.mrb[0].mxu0 %v3853
        %v5136 = vpop.f32.mrb[0].mxu0
        %v5137 = vadd.f32 %v3174, %v5136
        %v5138 = vpop.f32.mrb[0].mxu0
        %5139 = vmatprep.mubr.f32.mxu0 0.0
        %5140 = vmatmul.mubr.f32.gmra.mrb[0].mxu0 %v3856
        %v5141 = vpop.f32.mrb[0].mxu0
        %v5142 = vadd.f32 %v3174, %v5141
        %v5143 = vpop.f32.mrb[0].mxu0
        %5144 = vmatprep.mubr.f32.mxu0 0.0
        %5145 = vmatmul.mubr.f32.gmra.mrb[0].mxu0 %v3859
        %v5146 = vpop.f32.mrb[0].mxu0
        %v5147 = vadd.f32 %v3174, %v5146
        %v5148 = vpop.f32.mrb[0].mxu0
        %5149 = vmatprep.mubr.f32.mxu0 0.0
        %5150 = vmatmul.mubr.f32.gmra.mrb[0].mxu0 %v3862
        %v5151 = vpop.f32.mrb[0].mxu0
        %v5152 = vadd.f32 %v3174, %v5151
        %v5153 = vpop.f32.mrb[0].mxu0
        %5154 = vmatprep.mubr.f32.mxu0 0.0
        %5155 = vmatmul.mubr.f32.gmra.mrb[0].mxu0 %v3865
        %v5156 = vpop.f32.mrb[0].mxu0
        %v5157 = vadd.f32 %v3174, %v5156
        %v5158 = vpop.f32.mrb[0].mxu0
        %5159 = vmatprep.mubr.f32.mxu0 0.0
        %5160 = vmatmul.mubr.f32.gmra.mrb[0].mxu0 %v3868
        %v5161 = vpop.f32.mrb[0].mxu0
        %v5162 = vadd.f32 %v3174, %v5161
        %v5163 = vpop.f32.mrb[0].mxu0
        %5164 = vmatprep.mubr.f32.mxu0 0.0
        %5165 = vmatmul.mubr.f32.gmra.mrb[0].mxu0 %v3871
        %v5166 = vpop.f32.mrb[0].mxu0
        %v5167 = vadd.f32 %v3174, %v5166
        %v5168 = vpop.f32.mrb[0].mxu0
        %5169 = vmatprep.mubr.f32.mxu0 0.0
        %5170 = vmatmul.mubr.f32.gmra.mrb[0].mxu0 %v3874
        %v5171 = vpop.f32.mrb[0].mxu0
        %v5172 = vadd.f32 %v3174, %v5171
        %v5173 = vpop.f32.mrb[0].mxu0
        %5174 = vmatprep.mubr.f32.mxu0 0.0
        %5175 = vmatmul.mubr.f32.gmra.mrb[0].mxu0 %v3877
        %v5176 = vpop.f32.mrb[0].mxu0
        %v5177 = vadd.f32 %v3174, %v5176
        %v5178 = vpop.f32.mrb[0].mxu0
        %5179 = vmatprep.mubr.f32.mxu0 0.0
        %5180 = vmatmul.mubr.f32.gmra.mrb[0].mxu0 %v3880
        %v5181 = vpop.f32.mrb[0].mxu0
        %v5182 = vadd.f32 %v3174, %v5181
        %v5183 = vpop.f32.mrb[0].mxu0
        %5184 = vmatprep.mubr.f32.mxu0 0.0
        %5185 = vmatmul.mubr.f32.gmra.mrb[0].mxu0 %v3883
        %v5186 = vpop.f32.mrb[0].mxu0
        %v5187 = vadd.f32 %v3174, %v5186
        %v5188 = vpop.f32.mrb[0].mxu0
        %5189 = vmatprep.mubr.f32.mxu0 0.0
        %5190 = vmatmul.mubr.f32.gmra.mrb[0].mxu0 %v3886
        %v5191 = vpop.f32.mrb[0].mxu0
        %v5192 = vadd.f32 %v3174, %v5191
        %v5193 = vpop.f32.mrb[0].mxu0
        %5194 = vmatprep.mubr.f32.mxu0 0.0
        %5195 = vmatmul.mubr.f32.gmra.mrb[0].mxu0 %v3889
        %v5196 = vpop.f32.mrb[0].mxu0
        %v5197 = vadd.f32 %v3174, %v5196
        %v5198 = vpop.f32.mrb[0].mxu0
        %5199 = vmatprep.mubr.f32.mxu0 0.0
        %5200 = vmatmul.mubr.f32.gmra.mrb[0].mxu0 %v3892
        %v5201 = vpop.f32.mrb[0].mxu0
        %v5202 = vadd.f32 %v3174, %v5201
        %v5203 = vpop.f32.mrb[0].mxu0
        %5204 = vmatprep.mubr.f32.mxu0 0.0
        %5205 = vmatmul.mubr.f32.gmra.mrb[0].mxu0 %v3895
        %v5206 = vpop.f32.mrb[0].mxu0
        %v5207 = vadd.f32 %v3174, %v5206
        %v5208 = vpop.f32.mrb[0].mxu0
        %5209 = vmatprep.mubr.f32.mxu0 0.0
        %5210 = vmatmul.mubr.f32.gmra.mrb[0].mxu0 %v3898
        %v5211 = vpop.f32.mrb[0].mxu0
        %v5212 = vadd.f32 %v3174, %v5211
        %v5213 = vpop.f32.mrb[0].mxu0
        %5214 = vmatprep.mubr.f32.mxu0 0.0
        %5215 = vmatmul.mubr.f32.gmra.mrb[0].mxu0 %v3901
        %v5216 = vpop.f32.mrb[0].mxu0
        %v5217 = vadd.f32 %v3174, %v5216
        %v5218 = vpop.f32.mrb[0].mxu0
        %5219 = vmatprep.mubr.f32.mxu0 0.0
        %5220 = vmatmul.mubr.f32.gmra.mrb[0].mxu0 %v3904
        %v5221 = vpop.f32.mrb[0].mxu0
        %v5222 = vadd.f32 %v3174, %v5221
        %v5223 = vpop.f32.mrb[0].mxu0
        %5224 = vmatprep.mubr.f32.mxu0 0.0
        %5225 = vmatmul.mubr.f32.gmra.mrb[0].mxu0 %v3907
        %v5226 = vpop.f32.mrb[0].mxu0
        %v5227 = vadd.f32 %v3174, %v5226
        %v5228 = vpop.f32.mrb[0].mxu0
        %5229 = vmatprep.mubr.f32.mxu0 0.0
        %5230 = vmatmul.mubr.f32.gmra.mrb[0].mxu0 %v3910
        %v5231 = vpop.f32.mrb[0].mxu0
        %v5232 = vadd.f32 %v3174, %v5231
        %v5233 = vpop.f32.mrb[0].mxu0
        %5234 = vmatprep.mubr.f32.mxu0 0.0
        %5235 = vmatmul.mubr.f32.gmra.mrb[0].mxu0 %v3913
        %v5236 = vpop.f32.mrb[0].mxu0
        %v5237 = vadd.f32 %v3174, %v5236
        %v5238 = vpop.f32.mrb[0].mxu0
        %5239 = vmatprep.mubr.f32.mxu0 0.0
        %5240 = vmatmul.mubr.f32.gmra.mrb[0].mxu0 %v3916
        %v5241 = vpop.f32.mrb[0].mxu0
        %v5242 = vadd.f32 %v3174, %v5241
        %v5243 = vpop.f32.mrb[0].mxu0
        %5244 = vmatprep.mubr.f32.mxu0 0.0
        %5245 = vmatmul.mubr.f32.gmra.mrb[0].mxu0 %v3919
        %v5246 = vpop.f32.mrb[0].mxu0
        %v5247 = vadd.f32 %v3174, %v5246
        %v5248 = vpop.f32.mrb[0].mxu0
        %5249 = vmatprep.mubr.f32.mxu0 0.0
        %5250 = vmatmul.mubr.f32.gmra.mrb[0].mxu0 %v3922
        %v5251 = vpop.f32.mrb[0].mxu0
        %v5252 = vadd.f32 %v3174, %v5251
        %v5253 = vpop.f32.mrb[0].mxu0
        %5254 = vmatprep.mubr.f32.mxu0 0.0
        %5255 = vmatmul.mubr.f32.gmra.mrb[0].mxu0 %v3925
        %v5256 = vpop.f32.mrb[0].mxu0
        %v5257 = vadd.f32 %v3174, %v5256
        %v5258 = vpop.f32.mrb[0].mxu0
        %5259 = vmatprep.mubr.f32.mxu0 0.0
        %5260 = vmatmul.mubr.f32.gmra.mrb[0].mxu0 %v3928
        %v5261 = vpop.f32.mrb[0].mxu0
        %v5262 = vadd.f32 %v3174, %v5261
        %v5263 = vpop.f32.mrb[0].mxu0
        %5264 = vmatprep.mubr.f32.mxu0 0.0
        %5265 = vmatmul.mubr.f32.gmra.mrb[0].mxu0 %v3931
        %v5266 = vpop.f32.mrb[0].mxu0
        %v5267 = vadd.f32 %v3174, %v5266
        %v5268 = vpop.f32.mrb[0].mxu0
        %5269 = vmatprep.mubr.f32.mxu0 0.0
        %5270 = vmatmul.mubr.f32.gmra.mrb[0].mxu0 %v3934
        %v5271 = vpop.f32.mrb[0].mxu0
        %v5272 = vadd.f32 %v3174, %v5271
        %v5273 = vpop.f32.mrb[0].mxu0
        %5274 = vmatprep.mubr.f32.mxu0 0.0
        %5275 = vmatmul.mubr.f32.gmra.mrb[0].mxu0 %v3937
        %v5276 = vpop.f32.mrb[0].mxu0
        %v5277 = vadd.f32 %v3174, %v5276
        %v5278 = vpop.f32.mrb[0].mxu0
        %5279 = vmatprep.mubr.f32.mxu0 0.0
        %5280 = vmatmul.mubr.f32.gmra.mrb[0].mxu0 %v3940
        %v5281 = vpop.f32.mrb[0].mxu0
        %v5282 = vadd.f32 %v3174, %v5281
        %v5283 = vpop.f32.mrb[0].mxu0
        %5284 = vmatprep.mubr.f32.mxu0 0.0
        %5285 = vmatmul.mubr.f32.gmra.mrb[0].mxu0 %v3943
        %v5286 = vpop.f32.mrb[0].mxu0
        %v5287 = vadd.f32 %v3174, %v5286
        %v5288 = vpop.f32.mrb[0].mxu0
        %5289 = vdwg.mxu0
        %v5290 = vld [vmem:[%s8] sm:$0x1]
        %v5292 = vlaneseq
        %v5293 = vshrl.u32 %v5292, 7
        %v5294 = vsub.s32 0, %v5293
        %v5295 = vrot.slane %v5290, %v5294
        %v5297 = vmul.f32 %v2909, %v5295
        %v5298 = vmul.f32 %v2910, %v5295
        %v5299 = vmul.f32 %v2911, %v5295
        %v5300 = vmul.f32 %v2912, %v5295
        %v5301 = vmul.f32 %v2913, %v5295
        %v5302 = vmul.f32 %v2914, %v5295
        %v5303 = vmul.f32 %v2915, %v5295
        %v5304 = vmul.f32 %v2916, %v5295
        %v5305 = vmul.f32 %v2917, %v5295
        %v5306 = vmul.f32 %v2918, %v5295
        %v5307 = vmul.f32 %v2919, %v5295
        %v5308 = vmul.f32 %v2920, %v5295
        %v5309 = vmul.f32 %v2921, %v5295
        %v5310 = vmul.f32 %v2922, %v5295
        %v5311 = vmul.f32 %v2923, %v5295
        %v5312 = vmul.f32 %v2924, %v5295
        %v5313 = vmul.f32 %v2925, %v5295
        %v5314 = vmul.f32 %v2926, %v5295
        %v5315 = vmul.f32 %v2927, %v5295
        %v5316 = vmul.f32 %v2928, %v5295
        %v5317 = vmul.f32 %v2929, %v5295
        %v5318 = vmul.f32 %v2930, %v5295
        %v5319 = vmul.f32 %v2931, %v5295
        %v5320 = vmul.f32 %v2932, %v5295
        %v5321 = vmul.f32 %v2933, %v5295
        %v5322 = vmul.f32 %v2934, %v5295
        %v5323 = vmul.f32 %v2935, %v5295
        %v5324 = vmul.f32 %v2936, %v5295
        %v5325 = vmul.f32 %v2937, %v5295
        %v5326 = vmul.f32 %v2938, %v5295
        %v5327 = vmul.f32 %v2939, %v5295
        %v5328 = vmul.f32 %v2940, %v5295
        %v5329 = vmul.f32 %v2941, %v5295
        %v5330 = vmul.f32 %v2942, %v5295
        %v5331 = vmul.f32 %v2943, %v5295
        %v5332 = vmul.f32 %v2944, %v5295
        %v5333 = vmul.f32 %v2945, %v5295
        %v5334 = vmul.f32 %v2946, %v5295
        %v5335 = vmul.f32 %v2947, %v5295
        %v5336 = vmul.f32 %v2948, %v5295
        %v5337 = vmul.f32 %v2949, %v5295
        %v5338 = vmul.f32 %v2950, %v5295
        %v5339 = vmul.f32 %v2951, %v5295
        %v5340 = vmul.f32 %v2952, %v5295
        %v5341 = vmul.f32 %v2953, %v5295
        %v5342 = vmul.f32 %v2954, %v5295
        %v5343 = vmul.f32 %v2955, %v5295
        %v5344 = vmul.f32 %v2956, %v5295
        %v5345 = vmul.f32 %v2957, %v5295
        %v5346 = vmul.f32 %v2958, %v5295
        %v5347 = vmul.f32 %v2959, %v5295
        %v5348 = vmul.f32 %v2960, %v5295
        %v5349 = vmul.f32 %v2961, %v5295
        %v5350 = vmul.f32 %v2962, %v5295
        %v5351 = vmul.f32 %v2963, %v5295
        %v5352 = vmul.f32 %v2964, %v5295
        %v5353 = vmul.f32 %v2965, %v5295
        %v5354 = vmul.f32 %v2966, %v5295
        %v5355 = vmul.f32 %v2967, %v5295
        %v5356 = vmul.f32 %v2968, %v5295
        %v5357 = vmul.f32 %v2969, %v5295
        %v5358 = vmul.f32 %v2970, %v5295
        %v5359 = vmul.f32 %v2971, %v5295
        %v5360 = vmul.f32 %v2972, %v5295
        %v5361 = vmul.f32 %v2973, %v5295
        %v5362 = vmul.f32 %v2974, %v5295
        %v5363 = vmul.f32 %v2975, %v5295
        %v5364 = vmul.f32 %v2976, %v5295
        %v5365 = vmul.f32 %v2977, %v5295
        %v5366 = vmul.f32 %v2978, %v5295
        %v5367 = vmul.f32 %v2979, %v5295
        %v5368 = vmul.f32 %v2980, %v5295
        %v5369 = vmul.f32 %v2981, %v5295
        %v5370 = vmul.f32 %v2982, %v5295
        %v5371 = vmul.f32 %v2983, %v5295
        %v5372 = vmul.f32 %v2984, %v5295
        %v5373 = vmul.f32 %v2985, %v5295
        %v5374 = vmul.f32 %v2986, %v5295
        %v5375 = vmul.f32 %v2987, %v5295
        %v5376 = vmul.f32 %v2988, %v5295
        %v5377 = vmul.f32 %v2989, %v5295
        %v5378 = vmul.f32 %v2990, %v5295
        %v5379 = vmul.f32 %v2991, %v5295
        %v5380 = vmul.f32 %v2992, %v5295
        %v5381 = vmul.f32 %v2993, %v5295
        %v5382 = vmul.f32 %v2994, %v5295
        %v5383 = vmul.f32 %v2995, %v5295
        %v5384 = vmul.f32 %v2996, %v5295
        %v5385 = vmul.f32 %v2997, %v5295
        %v5386 = vmul.f32 %v2998, %v5295
        %v5387 = vmul.f32 %v2999, %v5295
        %v5388 = vmul.f32 %v3000, %v5295
        %v5389 = vmul.f32 %v3001, %v5295
        %v5390 = vmul.f32 %v3002, %v5295
        %v5391 = vmul.f32 %v3003, %v5295
        %v5392 = vmul.f32 %v3004, %v5295
        %v5393 = vmul.f32 %v3005, %v5295
        %v5394 = vmul.f32 %v3006, %v5295
        %v5395 = vmul.f32 %v3007, %v5295
        %v5396 = vmul.f32 %v3008, %v5295
        %v5397 = vmul.f32 %v3009, %v5295
        %v5398 = vmul.f32 %v3010, %v5295
        %v5399 = vmul.f32 %v3011, %v5295
        %v5400 = vmul.f32 %v3012, %v5295
        %v5401 = vmul.f32 %v3013, %v5295
        %v5402 = vmul.f32 %v3014, %v5295
        %v5403 = vmul.f32 %v3015, %v5295
        %v5404 = vmul.f32 %v3016, %v5295
        %v5405 = vmul.f32 %v3017, %v5295
        %v5406 = vmul.f32 %v3018, %v5295
        %v5407 = vmul.f32 %v3019, %v5295
        %v5408 = vmul.f32 %v3020, %v5295
        %v5409 = vmul.f32 %v3021, %v5295
        %v5410 = vmul.f32 %v3022, %v5295
        %v5411 = vmul.f32 %v3023, %v5295
        %v5412 = vmul.f32 %v3024, %v5295
        %v5413 = vmul.f32 %v3025, %v5295
        %v5414 = vmul.f32 %v3026, %v5295
        %v5415 = vmul.f32 %v3027, %v5295
        %v5416 = vmul.f32 %v3028, %v5295
        %v5417 = vmul.f32 %v3029, %v5295
        %v5418 = vmul.f32 %v3030, %v5295
        %v5419 = vmul.f32 %v3031, %v5295
        %v5420 = vmul.f32 %v3032, %v5295
        %v5421 = vmul.f32 %v3033, %v5295
        %v5422 = vmul.f32 %v3034, %v5295
        %v5423 = vmul.f32 %v3035, %v5295
        %v5424 = vmul.f32 %v3036, %v5295
        %v5425 = vmul.f32 %v3037, %v5295
        %v5426 = vmul.f32 %v3038, %v5295
        %v5427 = vmul.f32 %v3039, %v5295
        %v5428 = vmul.f32 %v3040, %v5295
        %v5429 = vmul.f32 %v3041, %v5295
        %v5430 = vmul.f32 %v3042, %v5295
        %v5431 = vmul.f32 %v3043, %v5295
        %v5432 = vmul.f32 %v3044, %v5295
        %v5433 = vmul.f32 %v3045, %v5295
        %v5434 = vmul.f32 %v3046, %v5295
        %v5435 = vmul.f32 %v3047, %v5295
        %v5436 = vmul.f32 %v3048, %v5295
        %v5437 = vmul.f32 %v3049, %v5295
        %v5438 = vmul.f32 %v3050, %v5295
        %v5439 = vmul.f32 %v3051, %v5295
        %v5440 = vmul.f32 %v3052, %v5295
        %v5441 = vmul.f32 %v3053, %v5295
        %v5442 = vmul.f32 %v3054, %v5295
        %v5443 = vmul.f32 %v3055, %v5295
        %v5444 = vmul.f32 %v3056, %v5295
        %v5445 = vmul.f32 %v3057, %v5295
        %v5446 = vmul.f32 %v3058, %v5295
        %v5447 = vmul.f32 %v3059, %v5295
        %v5448 = vmul.f32 %v3060, %v5295
        %v5449 = vmul.f32 %v3061, %v5295
        %v5450 = vmul.f32 %v3062, %v5295
        %v5451 = vmul.f32 %v3063, %v5295
        %v5452 = vmul.f32 %v3064, %v5295
        %v5453 = vmul.f32 %v3065, %v5295
        %v5454 = vmul.f32 %v3066, %v5295
        %v5455 = vmul.f32 %v3067, %v5295
        %v5456 = vmul.f32 %v3068, %v5295
        %v5457 = vmul.f32 %v3069, %v5295
        %v5458 = vmul.f32 %v3070, %v5295
        %v5459 = vmul.f32 %v3071, %v5295
        %v5460 = vmul.f32 %v3072, %v5295
        %v5461 = vmul.f32 %v3073, %v5295
        %v5462 = vmul.f32 %v3074, %v5295
        %v5463 = vmul.f32 %v3075, %v5295
        %v5464 = vmul.f32 %v3076, %v5295
        %v5465 = vmul.f32 %v3077, %v5295
        %v5466 = vmul.f32 %v3078, %v5295
        %v5467 = vmul.f32 %v3079, %v5295
        %v5468 = vmul.f32 %v3080, %v5295
        %v5469 = vmul.f32 %v3081, %v5295
        %v5470 = vmul.f32 %v3082, %v5295
        %v5471 = vmul.f32 %v3083, %v5295
        %v5472 = vmul.f32 %v3084, %v5295
        %v5473 = vmul.f32 %v3085, %v5295
        %v5474 = vmul.f32 %v3086, %v5295
        %v5475 = vmul.f32 %v3087, %v5295
        %v5476 = vmul.f32 %v3088, %v5295
        %v5477 = vmul.f32 %v3089, %v5295
        %v5478 = vmul.f32 %v3090, %v5295
        %v5479 = vmul.f32 %v3091, %v5295
        %v5480 = vmul.f32 %v3092, %v5295
        %v5481 = vmul.f32 %v3093, %v5295
        %v5482 = vmul.f32 %v3094, %v5295
        %v5483 = vmul.f32 %v3095, %v5295
        %v5484 = vmul.f32 %v3096, %v5295
        %v5485 = vmul.f32 %v3097, %v5295
        %v5486 = vmul.f32 %v3098, %v5295
        %v5487 = vmul.f32 %v3099, %v5295
        %v5488 = vmul.f32 %v3100, %v5295
        %v5489 = vmul.f32 %v3101, %v5295
        %v5490 = vmul.f32 %v3102, %v5295
        %v5491 = vmul.f32 %v3103, %v5295
        %v5492 = vmul.f32 %v3104, %v5295
        %v5493 = vmul.f32 %v3105, %v5295
        %v5494 = vmul.f32 %v3106, %v5295
        %v5495 = vmul.f32 %v3107, %v5295
        %v5496 = vmul.f32 %v3108, %v5295
        %v5497 = vmul.f32 %v3109, %v5295
        %v5498 = vmul.f32 %v3110, %v5295
        %v5499 = vmul.f32 %v3111, %v5295
        %v5500 = vmul.f32 %v3112, %v5295
        %v5501 = vmul.f32 %v3113, %v5295
        %v5502 = vmul.f32 %v3114, %v5295
        %v5503 = vmul.f32 %v3115, %v5295
        %v5504 = vmul.f32 %v3116, %v5295
        %v5505 = vmul.f32 %v3117, %v5295
        %v5506 = vmul.f32 %v3118, %v5295
        %v5507 = vmul.f32 %v3119, %v5295
        %v5508 = vmul.f32 %v3120, %v5295
        %v5509 = vmul.f32 %v3121, %v5295
        %v5510 = vmul.f32 %v3122, %v5295
        %v5511 = vmul.f32 %v3123, %v5295
        %v5512 = vmul.f32 %v3124, %v5295
        %v5513 = vmul.f32 %v3125, %v5295
        %v5514 = vmul.f32 %v3126, %v5295
        %v5515 = vmul.f32 %v3127, %v5295
        %v5516 = vmul.f32 %v3128, %v5295
        %v5517 = vmul.f32 %v3129, %v5295
        %v5518 = vmul.f32 %v3130, %v5295
        %v5519 = vmul.f32 %v3131, %v5295
        %v5520 = vmul.f32 %v3132, %v5295
        %v5521 = vmul.f32 %v3133, %v5295
        %v5522 = vmul.f32 %v3134, %v5295
        %v5523 = vmul.f32 %v3135, %v5295
        %v5524 = vmul.f32 %v3136, %v5295
        %v5525 = vmul.f32 %v3137, %v5295
        %v5526 = vmul.f32 %v3138, %v5295
        %v5527 = vmul.f32 %v3139, %v5295
        %v5528 = vmul.f32 %v3140, %v5295
        %v5529 = vmul.f32 %v3141, %v5295
        %v5530 = vmul.f32 %v3142, %v5295
        %v5531 = vmul.f32 %v3143, %v5295
        %v5532 = vmul.f32 %v3144, %v5295
        %v5533 = vmul.f32 %v3145, %v5295
        %v5534 = vmul.f32 %v3146, %v5295
        %v5535 = vmul.f32 %v3147, %v5295
        %v5536 = vmul.f32 %v3148, %v5295
        %v5537 = vmul.f32 %v3149, %v5295
        %v5538 = vmul.f32 %v3150, %v5295
        %v5539 = vmul.f32 %v3151, %v5295
        %v5540 = vmul.f32 %v3152, %v5295
        %v5541 = vmul.f32 %v3153, %v5295
        %v5542 = vmul.f32 %v3154, %v5295
        %v5543 = vmul.f32 %v3155, %v5295
        %v5544 = vmul.f32 %v3156, %v5295
        %v5545 = vmul.f32 %v3157, %v5295
        %v5546 = vmul.f32 %v3158, %v5295
        %v5547 = vmul.f32 %v3159, %v5295
        %v5548 = vmul.f32 %v3160, %v5295
        %v5549 = vmul.f32 %v3161, %v5295
        %v5550 = vmul.f32 %v3162, %v5295
        %v5551 = vmul.f32 %v3163, %v5295
        %v5552 = vmul.f32 %v3164, %v5295
        %v5553 = vsel %vm3176, %v5297, 0.0
        %5554 = vadd.xlane.f32.xlu0 %v5553
        %v5555 = vpop.xlane.xlu0 %5554
        %v5556 = vsel %vm3176, %v5298, 0.0
        %5557 = vadd.xlane.f32.xlu0 %v5556
        %v5558 = vpop.xlane.xlu0 %5557
        %v5559 = vsel %vm3176, %v5299, 0.0
        %5560 = vadd.xlane.f32.xlu0 %v5559
        %v5561 = vpop.xlane.xlu0 %5560
        %v5562 = vsel %vm3176, %v5300, 0.0
        %5563 = vadd.xlane.f32.xlu0 %v5562
        %v5564 = vpop.xlane.xlu0 %5563
        %v5565 = vsel %vm3176, %v5301, 0.0
        %5566 = vadd.xlane.f32.xlu0 %v5565
        %v5567 = vpop.xlane.xlu0 %5566
        %v5568 = vsel %vm3176, %v5302, 0.0
        %5569 = vadd.xlane.f32.xlu0 %v5568
        %v5570 = vpop.xlane.xlu0 %5569
        %v5571 = vsel %vm3176, %v5303, 0.0
        %5572 = vadd.xlane.f32.xlu0 %v5571
        %v5573 = vpop.xlane.xlu0 %5572
        %v5574 = vsel %vm3176, %v5304, 0.0
        %5575 = vadd.xlane.f32.xlu0 %v5574
        %v5576 = vpop.xlane.xlu0 %5575
        %v5577 = vsel %vm3176, %v5305, 0.0
        %5578 = vadd.xlane.f32.xlu0 %v5577
        %v5579 = vpop.xlane.xlu0 %5578
        %v5580 = vsel %vm3176, %v5306, 0.0
        %5581 = vadd.xlane.f32.xlu0 %v5580
        %v5582 = vpop.xlane.xlu0 %5581
        %v5583 = vsel %vm3176, %v5307, 0.0
        %5584 = vadd.xlane.f32.xlu0 %v5583
        %v5585 = vpop.xlane.xlu0 %5584
        %v5586 = vsel %vm3176, %v5308, 0.0
        %5587 = vadd.xlane.f32.xlu0 %v5586
        %v5588 = vpop.xlane.xlu0 %5587
        %v5589 = vsel %vm3176, %v5309, 0.0
        %5590 = vadd.xlane.f32.xlu0 %v5589
        %v5591 = vpop.xlane.xlu0 %5590
        %v5592 = vsel %vm3176, %v5310, 0.0
        %5593 = vadd.xlane.f32.xlu0 %v5592
        %v5594 = vpop.xlane.xlu0 %5593
        %v5595 = vsel %vm3176, %v5311, 0.0
        %5596 = vadd.xlane.f32.xlu0 %v5595
        %v5597 = vpop.xlane.xlu0 %5596
        %v5598 = vsel %vm3176, %v5312, 0.0
        %5599 = vadd.xlane.f32.xlu0 %v5598
        %v5600 = vpop.xlane.xlu0 %5599
        %v5601 = vsel %vm3176, %v5313, 0.0
        %5602 = vadd.xlane.f32.xlu0 %v5601
        %v5603 = vpop.xlane.xlu0 %5602
        %v5604 = vsel %vm3176, %v5314, 0.0
        %5605 = vadd.xlane.f32.xlu0 %v5604
        %v5606 = vpop.xlane.xlu0 %5605
        %v5607 = vsel %vm3176, %v5315, 0.0
        %5608 = vadd.xlane.f32.xlu0 %v5607
        %v5609 = vpop.xlane.xlu0 %5608
        %v5610 = vsel %vm3176, %v5316, 0.0
        %5611 = vadd.xlane.f32.xlu0 %v5610
        %v5612 = vpop.xlane.xlu0 %5611
        %v5613 = vsel %vm3176, %v5317, 0.0
        %5614 = vadd.xlane.f32.xlu0 %v5613
        %v5615 = vpop.xlane.xlu0 %5614
        %v5616 = vsel %vm3176, %v5318, 0.0
        %5617 = vadd.xlane.f32.xlu0 %v5616
        %v5618 = vpop.xlane.xlu0 %5617
        %v5619 = vsel %vm3176, %v5319, 0.0
        %5620 = vadd.xlane.f32.xlu0 %v5619
        %v5621 = vpop.xlane.xlu0 %5620
        %v5622 = vsel %vm3176, %v5320, 0.0
        %5623 = vadd.xlane.f32.xlu0 %v5622
        %v5624 = vpop.xlane.xlu0 %5623
        %v5625 = vsel %vm3176, %v5321, 0.0
        %5626 = vadd.xlane.f32.xlu0 %v5625
        %v5627 = vpop.xlane.xlu0 %5626
        %v5628 = vsel %vm3176, %v5322, 0.0
        %5629 = vadd.xlane.f32.xlu0 %v5628
        %v5630 = vpop.xlane.xlu0 %5629
        %v5631 = vsel %vm3176, %v5323, 0.0
        %5632 = vadd.xlane.f32.xlu0 %v5631
        %v5633 = vpop.xlane.xlu0 %5632
        %v5634 = vsel %vm3176, %v5324, 0.0
        %5635 = vadd.xlane.f32.xlu0 %v5634
        %v5636 = vpop.xlane.xlu0 %5635
        %v5637 = vsel %vm3176, %v5325, 0.0
        %5638 = vadd.xlane.f32.xlu0 %v5637
        %v5639 = vpop.xlane.xlu0 %5638
        %v5640 = vsel %vm3176, %v5326, 0.0
        %5641 = vadd.xlane.f32.xlu0 %v5640
        %v5642 = vpop.xlane.xlu0 %5641
        %v5643 = vsel %vm3176, %v5327, 0.0
        %5644 = vadd.xlane.f32.xlu0 %v5643
        %v5645 = vpop.xlane.xlu0 %5644
        %v5646 = vsel %vm3176, %v5328, 0.0
        %5647 = vadd.xlane.f32.xlu0 %v5646
        %v5648 = vpop.xlane.xlu0 %5647
        %v5649 = vsel %vm3176, %v5329, 0.0
        %5650 = vadd.xlane.f32.xlu0 %v5649
        %v5651 = vpop.xlane.xlu0 %5650
        %v5652 = vsel %vm3176, %v5330, 0.0
        %5653 = vadd.xlane.f32.xlu0 %v5652
        %v5654 = vpop.xlane.xlu0 %5653
        %v5655 = vsel %vm3176, %v5331, 0.0
        %5656 = vadd.xlane.f32.xlu0 %v5655
        %v5657 = vpop.xlane.xlu0 %5656
        %v5658 = vsel %vm3176, %v5332, 0.0
        %5659 = vadd.xlane.f32.xlu0 %v5658
        %v5660 = vpop.xlane.xlu0 %5659
        %v5661 = vsel %vm3176, %v5333, 0.0
        %5662 = vadd.xlane.f32.xlu0 %v5661
        %v5663 = vpop.xlane.xlu0 %5662
        %v5664 = vsel %vm3176, %v5334, 0.0
        %5665 = vadd.xlane.f32.xlu0 %v5664
        %v5666 = vpop.xlane.xlu0 %5665
        %v5667 = vsel %vm3176, %v5335, 0.0
        %5668 = vadd.xlane.f32.xlu0 %v5667
        %v5669 = vpop.xlane.xlu0 %5668
        %v5670 = vsel %vm3176, %v5336, 0.0
        %5671 = vadd.xlane.f32.xlu0 %v5670
        %v5672 = vpop.xlane.xlu0 %5671
        %v5673 = vsel %vm3176, %v5337, 0.0
        %5674 = vadd.xlane.f32.xlu0 %v5673
        %v5675 = vpop.xlane.xlu0 %5674
        %v5676 = vsel %vm3176, %v5338, 0.0
        %5677 = vadd.xlane.f32.xlu0 %v5676
        %v5678 = vpop.xlane.xlu0 %5677
        %v5679 = vsel %vm3176, %v5339, 0.0
        %5680 = vadd.xlane.f32.xlu0 %v5679
        %v5681 = vpop.xlane.xlu0 %5680
        %v5682 = vsel %vm3176, %v5340, 0.0
        %5683 = vadd.xlane.f32.xlu0 %v5682
        %v5684 = vpop.xlane.xlu0 %5683
        %v5685 = vsel %vm3176, %v5341, 0.0
        %5686 = vadd.xlane.f32.xlu0 %v5685
        %v5687 = vpop.xlane.xlu0 %5686
        %v5688 = vsel %vm3176, %v5342, 0.0
        %5689 = vadd.xlane.f32.xlu0 %v5688
        %v5690 = vpop.xlane.xlu0 %5689
        %v5691 = vsel %vm3176, %v5343, 0.0
        %5692 = vadd.xlane.f32.xlu0 %v5691
        %v5693 = vpop.xlane.xlu0 %5692
        %v5694 = vsel %vm3176, %v5344, 0.0
        %5695 = vadd.xlane.f32.xlu0 %v5694
        %v5696 = vpop.xlane.xlu0 %5695
        %v5697 = vsel %vm3176, %v5345, 0.0
        %5698 = vadd.xlane.f32.xlu0 %v5697
        %v5699 = vpop.xlane.xlu0 %5698
        %v5700 = vsel %vm3176, %v5346, 0.0
        %5701 = vadd.xlane.f32.xlu0 %v5700
        %v5702 = vpop.xlane.xlu0 %5701
        %v5703 = vsel %vm3176, %v5347, 0.0
        %5704 = vadd.xlane.f32.xlu0 %v5703
        %v5705 = vpop.xlane.xlu0 %5704
        %v5706 = vsel %vm3176, %v5348, 0.0
        %5707 = vadd.xlane.f32.xlu0 %v5706
        %v5708 = vpop.xlane.xlu0 %5707
        %v5709 = vsel %vm3176, %v5349, 0.0
        %5710 = vadd.xlane.f32.xlu0 %v5709
        %v5711 = vpop.xlane.xlu0 %5710
        %v5712 = vsel %vm3176, %v5350, 0.0
        %5713 = vadd.xlane.f32.xlu0 %v5712
        %v5714 = vpop.xlane.xlu0 %5713
        %v5715 = vsel %vm3176, %v5351, 0.0
        %5716 = vadd.xlane.f32.xlu0 %v5715
        %v5717 = vpop.xlane.xlu0 %5716
        %v5718 = vsel %vm3176, %v5352, 0.0
        %5719 = vadd.xlane.f32.xlu0 %v5718
        %v5720 = vpop.xlane.xlu0 %5719
        %v5721 = vsel %vm3176, %v5353, 0.0
        %5722 = vadd.xlane.f32.xlu0 %v5721
        %v5723 = vpop.xlane.xlu0 %5722
        %v5724 = vsel %vm3176, %v5354, 0.0
        %5725 = vadd.xlane.f32.xlu0 %v5724
        %v5726 = vpop.xlane.xlu0 %5725
        %v5727 = vsel %vm3176, %v5355, 0.0
        %5728 = vadd.xlane.f32.xlu0 %v5727
        %v5729 = vpop.xlane.xlu0 %5728
        %v5730 = vsel %vm3176, %v5356, 0.0
        %5731 = vadd.xlane.f32.xlu0 %v5730
        %v5732 = vpop.xlane.xlu0 %5731
        %v5733 = vsel %vm3176, %v5357, 0.0
        %5734 = vadd.xlane.f32.xlu0 %v5733
        %v5735 = vpop.xlane.xlu0 %5734
        %v5736 = vsel %vm3176, %v5358, 0.0
        %5737 = vadd.xlane.f32.xlu0 %v5736
        %v5738 = vpop.xlane.xlu0 %5737
        %v5739 = vsel %vm3176, %v5359, 0.0
        %5740 = vadd.xlane.f32.xlu0 %v5739
        %v5741 = vpop.xlane.xlu0 %5740
        %v5742 = vsel %vm3176, %v5360, 0.0
        %5743 = vadd.xlane.f32.xlu0 %v5742
        %v5744 = vpop.xlane.xlu0 %5743
        %v5745 = vsel %vm3176, %v5361, 0.0
        %5746 = vadd.xlane.f32.xlu0 %v5745
        %v5747 = vpop.xlane.xlu0 %5746
        %v5748 = vsel %vm3176, %v5362, 0.0
        %5749 = vadd.xlane.f32.xlu0 %v5748
        %v5750 = vpop.xlane.xlu0 %5749
        %v5751 = vsel %vm3176, %v5363, 0.0
        %5752 = vadd.xlane.f32.xlu0 %v5751
        %v5753 = vpop.xlane.xlu0 %5752
        %v5754 = vsel %vm3176, %v5364, 0.0
        %5755 = vadd.xlane.f32.xlu0 %v5754
        %v5756 = vpop.xlane.xlu0 %5755
        %v5757 = vsel %vm3176, %v5365, 0.0
        %5758 = vadd.xlane.f32.xlu0 %v5757
        %v5759 = vpop.xlane.xlu0 %5758
        %v5760 = vsel %vm3176, %v5366, 0.0
        %5761 = vadd.xlane.f32.xlu0 %v5760
        %v5762 = vpop.xlane.xlu0 %5761
        %v5763 = vsel %vm3176, %v5367, 0.0
        %5764 = vadd.xlane.f32.xlu0 %v5763
        %v5765 = vpop.xlane.xlu0 %5764
        %v5766 = vsel %vm3176, %v5368, 0.0
        %5767 = vadd.xlane.f32.xlu0 %v5766
        %v5768 = vpop.xlane.xlu0 %5767
        %v5769 = vsel %vm3176, %v5369, 0.0
        %5770 = vadd.xlane.f32.xlu0 %v5769
        %v5771 = vpop.xlane.xlu0 %5770
        %v5772 = vsel %vm3176, %v5370, 0.0
        %5773 = vadd.xlane.f32.xlu0 %v5772
        %v5774 = vpop.xlane.xlu0 %5773
        %v5775 = vsel %vm3176, %v5371, 0.0
        %5776 = vadd.xlane.f32.xlu0 %v5775
        %v5777 = vpop.xlane.xlu0 %5776
        %v5778 = vsel %vm3176, %v5372, 0.0
        %5779 = vadd.xlane.f32.xlu0 %v5778
        %v5780 = vpop.xlane.xlu0 %5779
        %v5781 = vsel %vm3176, %v5373, 0.0
        %5782 = vadd.xlane.f32.xlu0 %v5781
        %v5783 = vpop.xlane.xlu0 %5782
        %v5784 = vsel %vm3176, %v5374, 0.0
        %5785 = vadd.xlane.f32.xlu0 %v5784
        %v5786 = vpop.xlane.xlu0 %5785
        %v5787 = vsel %vm3176, %v5375, 0.0
        %5788 = vadd.xlane.f32.xlu0 %v5787
        %v5789 = vpop.xlane.xlu0 %5788
        %v5790 = vsel %vm3176, %v5376, 0.0
        %5791 = vadd.xlane.f32.xlu0 %v5790
        %v5792 = vpop.xlane.xlu0 %5791
        %v5793 = vsel %vm3176, %v5377, 0.0
        %5794 = vadd.xlane.f32.xlu0 %v5793
        %v5795 = vpop.xlane.xlu0 %5794
        %v5796 = vsel %vm3176, %v5378, 0.0
        %5797 = vadd.xlane.f32.xlu0 %v5796
        %v5798 = vpop.xlane.xlu0 %5797
        %v5799 = vsel %vm3176, %v5379, 0.0
        %5800 = vadd.xlane.f32.xlu0 %v5799
        %v5801 = vpop.xlane.xlu0 %5800
        %v5802 = vsel %vm3176, %v5380, 0.0
        %5803 = vadd.xlane.f32.xlu0 %v5802
        %v5804 = vpop.xlane.xlu0 %5803
        %v5805 = vsel %vm3176, %v5381, 0.0
        %5806 = vadd.xlane.f32.xlu0 %v5805
        %v5807 = vpop.xlane.xlu0 %5806
        %v5808 = vsel %vm3176, %v5382, 0.0
        %5809 = vadd.xlane.f32.xlu0 %v5808
        %v5810 = vpop.xlane.xlu0 %5809
        %v5811 = vsel %vm3176, %v5383, 0.0
        %5812 = vadd.xlane.f32.xlu0 %v5811
        %v5813 = vpop.xlane.xlu0 %5812
        %v5814 = vsel %vm3176, %v5384, 0.0
        %5815 = vadd.xlane.f32.xlu0 %v5814
        %v5816 = vpop.xlane.xlu0 %5815
        %v5817 = vsel %vm3176, %v5385, 0.0
        %5818 = vadd.xlane.f32.xlu0 %v5817
        %v5819 = vpop.xlane.xlu0 %5818
        %v5820 = vsel %vm3176, %v5386, 0.0
        %5821 = vadd.xlane.f32.xlu0 %v5820
        %v5822 = vpop.xlane.xlu0 %5821
        %v5823 = vsel %vm3176, %v5387, 0.0
        %5824 = vadd.xlane.f32.xlu0 %v5823
        %v5825 = vpop.xlane.xlu0 %5824
        %v5826 = vsel %vm3176, %v5388, 0.0
        %5827 = vadd.xlane.f32.xlu0 %v5826
        %v5828 = vpop.xlane.xlu0 %5827
        %v5829 = vsel %vm3176, %v5389, 0.0
        %5830 = vadd.xlane.f32.xlu0 %v5829
        %v5831 = vpop.xlane.xlu0 %5830
        %v5832 = vsel %vm3176, %v5390, 0.0
        %5833 = vadd.xlane.f32.xlu0 %v5832
        %v5834 = vpop.xlane.xlu0 %5833
        %v5835 = vsel %vm3176, %v5391, 0.0
        %5836 = vadd.xlane.f32.xlu0 %v5835
        %v5837 = vpop.xlane.xlu0 %5836
        %v5838 = vsel %vm3176, %v5392, 0.0
        %5839 = vadd.xlane.f32.xlu0 %v5838
        %v5840 = vpop.xlane.xlu0 %5839
        %v5841 = vsel %vm3176, %v5393, 0.0
        %5842 = vadd.xlane.f32.xlu0 %v5841
        %v5843 = vpop.xlane.xlu0 %5842
        %v5844 = vsel %vm3176, %v5394, 0.0
        %5845 = vadd.xlane.f32.xlu0 %v5844
        %v5846 = vpop.xlane.xlu0 %5845
        %v5847 = vsel %vm3176, %v5395, 0.0
        %5848 = vadd.xlane.f32.xlu0 %v5847
        %v5849 = vpop.xlane.xlu0 %5848
        %v5850 = vsel %vm3176, %v5396, 0.0
        %5851 = vadd.xlane.f32.xlu0 %v5850
        %v5852 = vpop.xlane.xlu0 %5851
        %v5853 = vsel %vm3176, %v5397, 0.0
        %5854 = vadd.xlane.f32.xlu0 %v5853
        %v5855 = vpop.xlane.xlu0 %5854
        %v5856 = vsel %vm3176, %v5398, 0.0
        %5857 = vadd.xlane.f32.xlu0 %v5856
        %v5858 = vpop.xlane.xlu0 %5857
        %v5859 = vsel %vm3176, %v5399, 0.0
        %5860 = vadd.xlane.f32.xlu0 %v5859
        %v5861 = vpop.xlane.xlu0 %5860
        %v5862 = vsel %vm3176, %v5400, 0.0
        %5863 = vadd.xlane.f32.xlu0 %v5862
        %v5864 = vpop.xlane.xlu0 %5863
        %v5865 = vsel %vm3176, %v5401, 0.0
        %5866 = vadd.xlane.f32.xlu0 %v5865
        %v5867 = vpop.xlane.xlu0 %5866
        %v5868 = vsel %vm3176, %v5402, 0.0
        %5869 = vadd.xlane.f32.xlu0 %v5868
        %v5870 = vpop.xlane.xlu0 %5869
        %v5871 = vsel %vm3176, %v5403, 0.0
        %5872 = vadd.xlane.f32.xlu0 %v5871
        %v5873 = vpop.xlane.xlu0 %5872
        %v5874 = vsel %vm3176, %v5404, 0.0
        %5875 = vadd.xlane.f32.xlu0 %v5874
        %v5876 = vpop.xlane.xlu0 %5875
        %v5877 = vsel %vm3176, %v5405, 0.0
        %5878 = vadd.xlane.f32.xlu0 %v5877
        %v5879 = vpop.xlane.xlu0 %5878
        %v5880 = vsel %vm3176, %v5406, 0.0
        %5881 = vadd.xlane.f32.xlu0 %v5880
        %v5882 = vpop.xlane.xlu0 %5881
        %v5883 = vsel %vm3176, %v5407, 0.0
        %5884 = vadd.xlane.f32.xlu0 %v5883
        %v5885 = vpop.xlane.xlu0 %5884
        %v5886 = vsel %vm3176, %v5408, 0.0
        %5887 = vadd.xlane.f32.xlu0 %v5886
        %v5888 = vpop.xlane.xlu0 %5887
        %v5889 = vsel %vm3176, %v5409, 0.0
        %5890 = vadd.xlane.f32.xlu0 %v5889
        %v5891 = vpop.xlane.xlu0 %5890
        %v5892 = vsel %vm3176, %v5410, 0.0
        %5893 = vadd.xlane.f32.xlu0 %v5892
        %v5894 = vpop.xlane.xlu0 %5893
        %v5895 = vsel %vm3176, %v5411, 0.0
        %5896 = vadd.xlane.f32.xlu0 %v5895
        %v5897 = vpop.xlane.xlu0 %5896
        %v5898 = vsel %vm3176, %v5412, 0.0
        %5899 = vadd.xlane.f32.xlu0 %v5898
        %v5900 = vpop.xlane.xlu0 %5899
        %v5901 = vsel %vm3176, %v5413, 0.0
        %5902 = vadd.xlane.f32.xlu0 %v5901
        %v5903 = vpop.xlane.xlu0 %5902
        %v5904 = vsel %vm3176, %v5414, 0.0
        %5905 = vadd.xlane.f32.xlu0 %v5904
        %v5906 = vpop.xlane.xlu0 %5905
        %v5907 = vsel %vm3176, %v5415, 0.0
        %5908 = vadd.xlane.f32.xlu0 %v5907
        %v5909 = vpop.xlane.xlu0 %5908
        %v5910 = vsel %vm3176, %v5416, 0.0
        %5911 = vadd.xlane.f32.xlu0 %v5910
        %v5912 = vpop.xlane.xlu0 %5911
        %v5913 = vsel %vm3176, %v5417, 0.0
        %5914 = vadd.xlane.f32.xlu0 %v5913
        %v5915 = vpop.xlane.xlu0 %5914
        %v5916 = vsel %vm3176, %v5418, 0.0
        %5917 = vadd.xlane.f32.xlu0 %v5916
        %v5918 = vpop.xlane.xlu0 %5917
        %v5919 = vsel %vm3176, %v5419, 0.0
        %5920 = vadd.xlane.f32.xlu0 %v5919
        %v5921 = vpop.xlane.xlu0 %5920
        %v5922 = vsel %vm3176, %v5420, 0.0
        %5923 = vadd.xlane.f32.xlu0 %v5922
        %v5924 = vpop.xlane.xlu0 %5923
        %v5925 = vsel %vm3176, %v5421, 0.0
        %5926 = vadd.xlane.f32.xlu0 %v5925
        %v5927 = vpop.xlane.xlu0 %5926
        %v5928 = vsel %vm3176, %v5422, 0.0
        %5929 = vadd.xlane.f32.xlu0 %v5928
        %v5930 = vpop.xlane.xlu0 %5929
        %v5931 = vsel %vm3176, %v5423, 0.0
        %5932 = vadd.xlane.f32.xlu0 %v5931
        %v5933 = vpop.xlane.xlu0 %5932
        %v5934 = vsel %vm3176, %v5424, 0.0
        %5935 = vadd.xlane.f32.xlu0 %v5934
        %v5936 = vpop.xlane.xlu0 %5935
        %v5937 = vsel %vm3176, %v5425, 0.0
        %5938 = vadd.xlane.f32.xlu0 %v5937
        %v5939 = vpop.xlane.xlu0 %5938
        %v5940 = vsel %vm3176, %v5426, 0.0
        %5941 = vadd.xlane.f32.xlu0 %v5940
        %v5942 = vpop.xlane.xlu0 %5941
        %v5943 = vsel %vm3176, %v5427, 0.0
        %5944 = vadd.xlane.f32.xlu0 %v5943
        %v5945 = vpop.xlane.xlu0 %5944
        %v5946 = vsel %vm3176, %v5428, 0.0
        %5947 = vadd.xlane.f32.xlu0 %v5946
        %v5948 = vpop.xlane.xlu0 %5947
        %v5949 = vsel %vm3176, %v5429, 0.0
        %5950 = vadd.xlane.f32.xlu0 %v5949
        %v5951 = vpop.xlane.xlu0 %5950
        %v5952 = vsel %vm3176, %v5430, 0.0
        %5953 = vadd.xlane.f32.xlu0 %v5952
        %v5954 = vpop.xlane.xlu0 %5953
        %v5955 = vsel %vm3176, %v5431, 0.0
        %5956 = vadd.xlane.f32.xlu0 %v5955
        %v5957 = vpop.xlane.xlu0 %5956
        %v5958 = vsel %vm3176, %v5432, 0.0
        %5959 = vadd.xlane.f32.xlu0 %v5958
        %v5960 = vpop.xlane.xlu0 %5959
        %v5961 = vsel %vm3176, %v5433, 0.0
        %5962 = vadd.xlane.f32.xlu0 %v5961
        %v5963 = vpop.xlane.xlu0 %5962
        %v5964 = vsel %vm3176, %v5434, 0.0
        %5965 = vadd.xlane.f32.xlu0 %v5964
        %v5966 = vpop.xlane.xlu0 %5965
        %v5967 = vsel %vm3176, %v5435, 0.0
        %5968 = vadd.xlane.f32.xlu0 %v5967
        %v5969 = vpop.xlane.xlu0 %5968
        %v5970 = vsel %vm3176, %v5436, 0.0
        %5971 = vadd.xlane.f32.xlu0 %v5970
        %v5972 = vpop.xlane.xlu0 %5971
        %v5973 = vsel %vm3176, %v5437, 0.0
        %5974 = vadd.xlane.f32.xlu0 %v5973
        %v5975 = vpop.xlane.xlu0 %5974
        %v5976 = vsel %vm3176, %v5438, 0.0
        %5977 = vadd.xlane.f32.xlu0 %v5976
        %v5978 = vpop.xlane.xlu0 %5977
        %v5979 = vsel %vm3176, %v5439, 0.0
        %5980 = vadd.xlane.f32.xlu0 %v5979
        %v5981 = vpop.xlane.xlu0 %5980
        %v5982 = vsel %vm3176, %v5440, 0.0
        %5983 = vadd.xlane.f32.xlu0 %v5982
        %v5984 = vpop.xlane.xlu0 %5983
        %v5985 = vsel %vm3176, %v5441, 0.0
        %5986 = vadd.xlane.f32.xlu0 %v5985
        %v5987 = vpop.xlane.xlu0 %5986
        %v5988 = vsel %vm3176, %v5442, 0.0
        %5989 = vadd.xlane.f32.xlu0 %v5988
        %v5990 = vpop.xlane.xlu0 %5989
        %v5991 = vsel %vm3176, %v5443, 0.0
        %5992 = vadd.xlane.f32.xlu0 %v5991
        %v5993 = vpop.xlane.xlu0 %5992
        %v5994 = vsel %vm3176, %v5444, 0.0
        %5995 = vadd.xlane.f32.xlu0 %v5994
        %v5996 = vpop.xlane.xlu0 %5995
        %v5997 = vsel %vm3176, %v5445, 0.0
        %5998 = vadd.xlane.f32.xlu0 %v5997
        %v5999 = vpop.xlane.xlu0 %5998
        %v6000 = vsel %vm3176, %v5446, 0.0
        %6001 = vadd.xlane.f32.xlu0 %v6000
        %v6002 = vpop.xlane.xlu0 %6001
        %v6003 = vsel %vm3176, %v5447, 0.0
        %6004 = vadd.xlane.f32.xlu0 %v6003
        %v6005 = vpop.xlane.xlu0 %6004
        %v6006 = vsel %vm3176, %v5448, 0.0
        %6007 = vadd.xlane.f32.xlu0 %v6006
        %v6008 = vpop.xlane.xlu0 %6007
        %v6009 = vsel %vm3176, %v5449, 0.0
        %6010 = vadd.xlane.f32.xlu0 %v6009
        %v6011 = vpop.xlane.xlu0 %6010
        %v6012 = vsel %vm3176, %v5450, 0.0
        %6013 = vadd.xlane.f32.xlu0 %v6012
        %v6014 = vpop.xlane.xlu0 %6013
        %v6015 = vsel %vm3176, %v5451, 0.0
        %6016 = vadd.xlane.f32.xlu0 %v6015
        %v6017 = vpop.xlane.xlu0 %6016
        %v6018 = vsel %vm3176, %v5452, 0.0
        %6019 = vadd.xlane.f32.xlu0 %v6018
        %v6020 = vpop.xlane.xlu0 %6019
        %v6021 = vsel %vm3176, %v5453, 0.0
        %6022 = vadd.xlane.f32.xlu0 %v6021
        %v6023 = vpop.xlane.xlu0 %6022
        %v6024 = vsel %vm3176, %v5454, 0.0
        %6025 = vadd.xlane.f32.xlu0 %v6024
        %v6026 = vpop.xlane.xlu0 %6025
        %v6027 = vsel %vm3176, %v5455, 0.0
        %6028 = vadd.xlane.f32.xlu0 %v6027
        %v6029 = vpop.xlane.xlu0 %6028
        %v6030 = vsel %vm3176, %v5456, 0.0
        %6031 = vadd.xlane.f32.xlu0 %v6030
        %v6032 = vpop.xlane.xlu0 %6031
        %v6033 = vsel %vm3176, %v5457, 0.0
        %6034 = vadd.xlane.f32.xlu0 %v6033
        %v6035 = vpop.xlane.xlu0 %6034
        %v6036 = vsel %vm3176, %v5458, 0.0
        %6037 = vadd.xlane.f32.xlu0 %v6036
        %v6038 = vpop.xlane.xlu0 %6037
        %v6039 = vsel %vm3176, %v5459, 0.0
        %6040 = vadd.xlane.f32.xlu0 %v6039
        %v6041 = vpop.xlane.xlu0 %6040
        %v6042 = vsel %vm3176, %v5460, 0.0
        %6043 = vadd.xlane.f32.xlu0 %v6042
        %v6044 = vpop.xlane.xlu0 %6043
        %v6045 = vsel %vm3176, %v5461, 0.0
        %6046 = vadd.xlane.f32.xlu0 %v6045
        %v6047 = vpop.xlane.xlu0 %6046
        %v6048 = vsel %vm3176, %v5462, 0.0
        %6049 = vadd.xlane.f32.xlu0 %v6048
        %v6050 = vpop.xlane.xlu0 %6049
        %v6051 = vsel %vm3176, %v5463, 0.0
        %6052 = vadd.xlane.f32.xlu0 %v6051
        %v6053 = vpop.xlane.xlu0 %6052
        %v6054 = vsel %vm3176, %v5464, 0.0
        %6055 = vadd.xlane.f32.xlu0 %v6054
        %v6056 = vpop.xlane.xlu0 %6055
        %v6057 = vsel %vm3176, %v5465, 0.0
        %6058 = vadd.xlane.f32.xlu0 %v6057
        %v6059 = vpop.xlane.xlu0 %6058
        %v6060 = vsel %vm3176, %v5466, 0.0
        %6061 = vadd.xlane.f32.xlu0 %v6060
        %v6062 = vpop.xlane.xlu0 %6061
        %v6063 = vsel %vm3176, %v5467, 0.0
        %6064 = vadd.xlane.f32.xlu0 %v6063
        %v6065 = vpop.xlane.xlu0 %6064
        %v6066 = vsel %vm3176, %v5468, 0.0
        %6067 = vadd.xlane.f32.xlu0 %v6066
        %v6068 = vpop.xlane.xlu0 %6067
        %v6069 = vsel %vm3176, %v5469, 0.0
        %6070 = vadd.xlane.f32.xlu0 %v6069
        %v6071 = vpop.xlane.xlu0 %6070
        %v6072 = vsel %vm3176, %v5470, 0.0
        %6073 = vadd.xlane.f32.xlu0 %v6072
        %v6074 = vpop.xlane.xlu0 %6073
        %v6075 = vsel %vm3176, %v5471, 0.0
        %6076 = vadd.xlane.f32.xlu0 %v6075
        %v6077 = vpop.xlane.xlu0 %6076
        %v6078 = vsel %vm3176, %v5472, 0.0
        %6079 = vadd.xlane.f32.xlu0 %v6078
        %v6080 = vpop.xlane.xlu0 %6079
        %v6081 = vsel %vm3176, %v5473, 0.0
        %6082 = vadd.xlane.f32.xlu0 %v6081
        %v6083 = vpop.xlane.xlu0 %6082
        %v6084 = vsel %vm3176, %v5474, 0.0
        %6085 = vadd.xlane.f32.xlu0 %v6084
        %v6086 = vpop.xlane.xlu0 %6085
        %v6087 = vsel %vm3176, %v5475, 0.0
        %6088 = vadd.xlane.f32.xlu0 %v6087
        %v6089 = vpop.xlane.xlu0 %6088
        %v6090 = vsel %vm3176, %v5476, 0.0
        %6091 = vadd.xlane.f32.xlu0 %v6090
        %v6092 = vpop.xlane.xlu0 %6091
        %v6093 = vsel %vm3176, %v5477, 0.0
        %6094 = vadd.xlane.f32.xlu0 %v6093
        %v6095 = vpop.xlane.xlu0 %6094
        %v6096 = vsel %vm3176, %v5478, 0.0
        %6097 = vadd.xlane.f32.xlu0 %v6096
        %v6098 = vpop.xlane.xlu0 %6097
        %v6099 = vsel %vm3176, %v5479, 0.0
        %6100 = vadd.xlane.f32.xlu0 %v6099
        %v6101 = vpop.xlane.xlu0 %6100
        %v6102 = vsel %vm3176, %v5480, 0.0
        %6103 = vadd.xlane.f32.xlu0 %v6102
        %v6104 = vpop.xlane.xlu0 %6103
        %v6105 = vsel %vm3176, %v5481, 0.0
        %6106 = vadd.xlane.f32.xlu0 %v6105
        %v6107 = vpop.xlane.xlu0 %6106
        %v6108 = vsel %vm3176, %v5482, 0.0
        %6109 = vadd.xlane.f32.xlu0 %v6108
        %v6110 = vpop.xlane.xlu0 %6109
        %v6111 = vsel %vm3176, %v5483, 0.0
        %6112 = vadd.xlane.f32.xlu0 %v6111
        %v6113 = vpop.xlane.xlu0 %6112
        %v6114 = vsel %vm3176, %v5484, 0.0
        %6115 = vadd.xlane.f32.xlu0 %v6114
        %v6116 = vpop.xlane.xlu0 %6115
        %v6117 = vsel %vm3176, %v5485, 0.0
        %6118 = vadd.xlane.f32.xlu0 %v6117
        %v6119 = vpop.xlane.xlu0 %6118
        %v6120 = vsel %vm3176, %v5486, 0.0
        %6121 = vadd.xlane.f32.xlu0 %v6120
        %v6122 = vpop.xlane.xlu0 %6121
        %v6123 = vsel %vm3176, %v5487, 0.0
        %6124 = vadd.xlane.f32.xlu0 %v6123
        %v6125 = vpop.xlane.xlu0 %6124
        %v6126 = vsel %vm3176, %v5488, 0.0
        %6127 = vadd.xlane.f32.xlu0 %v6126
        %v6128 = vpop.xlane.xlu0 %6127
        %v6129 = vsel %vm3176, %v5489, 0.0
        %6130 = vadd.xlane.f32.xlu0 %v6129
        %v6131 = vpop.xlane.xlu0 %6130
        %v6132 = vsel %vm3176, %v5490, 0.0
        %6133 = vadd.xlane.f32.xlu0 %v6132
        %v6134 = vpop.xlane.xlu0 %6133
        %v6135 = vsel %vm3176, %v5491, 0.0
        %6136 = vadd.xlane.f32.xlu0 %v6135
        %v6137 = vpop.xlane.xlu0 %6136
        %v6138 = vsel %vm3176, %v5492, 0.0
        %6139 = vadd.xlane.f32.xlu0 %v6138
        %v6140 = vpop.xlane.xlu0 %6139
        %v6141 = vsel %vm3176, %v5493, 0.0
        %6142 = vadd.xlane.f32.xlu0 %v6141
        %v6143 = vpop.xlane.xlu0 %6142
        %v6144 = vsel %vm3176, %v5494, 0.0
        %6145 = vadd.xlane.f32.xlu0 %v6144
        %v6146 = vpop.xlane.xlu0 %6145
        %v6147 = vsel %vm3176, %v5495, 0.0
        %6148 = vadd.xlane.f32.xlu0 %v6147
        %v6149 = vpop.xlane.xlu0 %6148
        %v6150 = vsel %vm3176, %v5496, 0.0
        %6151 = vadd.xlane.f32.xlu0 %v6150
        %v6152 = vpop.xlane.xlu0 %6151
        %v6153 = vsel %vm3176, %v5497, 0.0
        %6154 = vadd.xlane.f32.xlu0 %v6153
        %v6155 = vpop.xlane.xlu0 %6154
        %v6156 = vsel %vm3176, %v5498, 0.0
        %6157 = vadd.xlane.f32.xlu0 %v6156
        %v6158 = vpop.xlane.xlu0 %6157
        %v6159 = vsel %vm3176, %v5499, 0.0
        %6160 = vadd.xlane.f32.xlu0 %v6159
        %v6161 = vpop.xlane.xlu0 %6160
        %v6162 = vsel %vm3176, %v5500, 0.0
        %6163 = vadd.xlane.f32.xlu0 %v6162
        %v6164 = vpop.xlane.xlu0 %6163
        %v6165 = vsel %vm3176, %v5501, 0.0
        %6166 = vadd.xlane.f32.xlu0 %v6165
        %v6167 = vpop.xlane.xlu0 %6166
        %v6168 = vsel %vm3176, %v5502, 0.0
        %6169 = vadd.xlane.f32.xlu0 %v6168
        %v6170 = vpop.xlane.xlu0 %6169
        %v6171 = vsel %vm3176, %v5503, 0.0
        %6172 = vadd.xlane.f32.xlu0 %v6171
        %v6173 = vpop.xlane.xlu0 %6172
        %v6174 = vsel %vm3176, %v5504, 0.0
        %6175 = vadd.xlane.f32.xlu0 %v6174
        %v6176 = vpop.xlane.xlu0 %6175
        %v6177 = vsel %vm3176, %v5505, 0.0
        %6178 = vadd.xlane.f32.xlu0 %v6177
        %v6179 = vpop.xlane.xlu0 %6178
        %v6180 = vsel %vm3176, %v5506, 0.0
        %6181 = vadd.xlane.f32.xlu0 %v6180
        %v6182 = vpop.xlane.xlu0 %6181
        %v6183 = vsel %vm3176, %v5507, 0.0
        %6184 = vadd.xlane.f32.xlu0 %v6183
        %v6185 = vpop.xlane.xlu0 %6184
        %v6186 = vsel %vm3176, %v5508, 0.0
        %6187 = vadd.xlane.f32.xlu0 %v6186
        %v6188 = vpop.xlane.xlu0 %6187
        %v6189 = vsel %vm3176, %v5509, 0.0
        %6190 = vadd.xlane.f32.xlu0 %v6189
        %v6191 = vpop.xlane.xlu0 %6190
        %v6192 = vsel %vm3176, %v5510, 0.0
        %6193 = vadd.xlane.f32.xlu0 %v6192
        %v6194 = vpop.xlane.xlu0 %6193
        %v6195 = vsel %vm3176, %v5511, 0.0
        %6196 = vadd.xlane.f32.xlu0 %v6195
        %v6197 = vpop.xlane.xlu0 %6196
        %v6198 = vsel %vm3176, %v5512, 0.0
        %6199 = vadd.xlane.f32.xlu0 %v6198
        %v6200 = vpop.xlane.xlu0 %6199
        %v6201 = vsel %vm3176, %v5513, 0.0
        %6202 = vadd.xlane.f32.xlu0 %v6201
        %v6203 = vpop.xlane.xlu0 %6202
        %v6204 = vsel %vm3176, %v5514, 0.0
        %6205 = vadd.xlane.f32.xlu0 %v6204
        %v6206 = vpop.xlane.xlu0 %6205
        %v6207 = vsel %vm3176, %v5515, 0.0
        %6208 = vadd.xlane.f32.xlu0 %v6207
        %v6209 = vpop.xlane.xlu0 %6208
        %v6210 = vsel %vm3176, %v5516, 0.0
        %6211 = vadd.xlane.f32.xlu0 %v6210
        %v6212 = vpop.xlane.xlu0 %6211
        %v6213 = vsel %vm3176, %v5517, 0.0
        %6214 = vadd.xlane.f32.xlu0 %v6213
        %v6215 = vpop.xlane.xlu0 %6214
        %v6216 = vsel %vm3176, %v5518, 0.0
        %6217 = vadd.xlane.f32.xlu0 %v6216
        %v6218 = vpop.xlane.xlu0 %6217
        %v6219 = vsel %vm3176, %v5519, 0.0
        %6220 = vadd.xlane.f32.xlu0 %v6219
        %v6221 = vpop.xlane.xlu0 %6220
        %v6222 = vsel %vm3176, %v5520, 0.0
        %6223 = vadd.xlane.f32.xlu0 %v6222
        %v6224 = vpop.xlane.xlu0 %6223
        %v6225 = vsel %vm3176, %v5521, 0.0
        %6226 = vadd.xlane.f32.xlu0 %v6225
        %v6227 = vpop.xlane.xlu0 %6226
        %v6228 = vsel %vm3176, %v5522, 0.0
        %6229 = vadd.xlane.f32.xlu0 %v6228
        %v6230 = vpop.xlane.xlu0 %6229
        %v6231 = vsel %vm3176, %v5523, 0.0
        %6232 = vadd.xlane.f32.xlu0 %v6231
        %v6233 = vpop.xlane.xlu0 %6232
        %v6234 = vsel %vm3176, %v5524, 0.0
        %6235 = vadd.xlane.f32.xlu0 %v6234
        %v6236 = vpop.xlane.xlu0 %6235
        %v6237 = vsel %vm3176, %v5525, 0.0
        %6238 = vadd.xlane.f32.xlu0 %v6237
        %v6239 = vpop.xlane.xlu0 %6238
        %v6240 = vsel %vm3176, %v5526, 0.0
        %6241 = vadd.xlane.f32.xlu0 %v6240
        %v6242 = vpop.xlane.xlu0 %6241
        %v6243 = vsel %vm3176, %v5527, 0.0
        %6244 = vadd.xlane.f32.xlu0 %v6243
        %v6245 = vpop.xlane.xlu0 %6244
        %v6246 = vsel %vm3176, %v5528, 0.0
        %6247 = vadd.xlane.f32.xlu0 %v6246
        %v6248 = vpop.xlane.xlu0 %6247
        %v6249 = vsel %vm3176, %v5529, 0.0
        %6250 = vadd.xlane.f32.xlu0 %v6249
        %v6251 = vpop.xlane.xlu0 %6250
        %v6252 = vsel %vm3176, %v5530, 0.0
        %6253 = vadd.xlane.f32.xlu0 %v6252
        %v6254 = vpop.xlane.xlu0 %6253
        %v6255 = vsel %vm3176, %v5531, 0.0
        %6256 = vadd.xlane.f32.xlu0 %v6255
        %v6257 = vpop.xlane.xlu0 %6256
        %v6258 = vsel %vm3176, %v5532, 0.0
        %6259 = vadd.xlane.f32.xlu0 %v6258
        %v6260 = vpop.xlane.xlu0 %6259
        %v6261 = vsel %vm3176, %v5533, 0.0
        %6262 = vadd.xlane.f32.xlu0 %v6261
        %v6263 = vpop.xlane.xlu0 %6262
        %v6264 = vsel %vm3176, %v5534, 0.0
        %6265 = vadd.xlane.f32.xlu0 %v6264
        %v6266 = vpop.xlane.xlu0 %6265
        %v6267 = vsel %vm3176, %v5535, 0.0
        %6268 = vadd.xlane.f32.xlu0 %v6267
        %v6269 = vpop.xlane.xlu0 %6268
        %v6270 = vsel %vm3176, %v5536, 0.0
        %6271 = vadd.xlane.f32.xlu0 %v6270
        %v6272 = vpop.xlane.xlu0 %6271
        %v6273 = vsel %vm3176, %v5537, 0.0
        %6274 = vadd.xlane.f32.xlu0 %v6273
        %v6275 = vpop.xlane.xlu0 %6274
        %v6276 = vsel %vm3176, %v5538, 0.0
        %6277 = vadd.xlane.f32.xlu0 %v6276
        %v6278 = vpop.xlane.xlu0 %6277
        %v6279 = vsel %vm3176, %v5539, 0.0
        %6280 = vadd.xlane.f32.xlu0 %v6279
        %v6281 = vpop.xlane.xlu0 %6280
        %v6282 = vsel %vm3176, %v5540, 0.0
        %6283 = vadd.xlane.f32.xlu0 %v6282
        %v6284 = vpop.xlane.xlu0 %6283
        %v6285 = vsel %vm3176, %v5541, 0.0
        %6286 = vadd.xlane.f32.xlu0 %v6285
        %v6287 = vpop.xlane.xlu0 %6286
        %v6288 = vsel %vm3176, %v5542, 0.0
        %6289 = vadd.xlane.f32.xlu0 %v6288
        %v6290 = vpop.xlane.xlu0 %6289
        %v6291 = vsel %vm3176, %v5543, 0.0
        %6292 = vadd.xlane.f32.xlu0 %v6291
        %v6293 = vpop.xlane.xlu0 %6292
        %v6294 = vsel %vm3176, %v5544, 0.0
        %6295 = vadd.xlane.f32.xlu0 %v6294
        %v6296 = vpop.xlane.xlu0 %6295
        %v6297 = vsel %vm3176, %v5545, 0.0
        %6298 = vadd.xlane.f32.xlu0 %v6297
        %v6299 = vpop.xlane.xlu0 %6298
        %v6300 = vsel %vm3176, %v5546, 0.0
        %6301 = vadd.xlane.f32.xlu0 %v6300
        %v6302 = vpop.xlane.xlu0 %6301
        %v6303 = vsel %vm3176, %v5547, 0.0
        %6304 = vadd.xlane.f32.xlu0 %v6303
        %v6305 = vpop.xlane.xlu0 %6304
        %v6306 = vsel %vm3176, %v5548, 0.0
        %6307 = vadd.xlane.f32.xlu0 %v6306
        %v6308 = vpop.xlane.xlu0 %6307
        %v6309 = vsel %vm3176, %v5549, 0.0
        %6310 = vadd.xlane.f32.xlu0 %v6309
        %v6311 = vpop.xlane.xlu0 %6310
        %v6312 = vsel %vm3176, %v5550, 0.0
        %6313 = vadd.xlane.f32.xlu0 %v6312
        %v6314 = vpop.xlane.xlu0 %6313
        %v6315 = vsel %vm3176, %v5551, 0.0
        %6316 = vadd.xlane.f32.xlu0 %v6315
        %v6317 = vpop.xlane.xlu0 %6316
        %v6318 = vsel %vm3176, %v5552, 0.0
        %6319 = vadd.xlane.f32.xlu0 %v6318
        %v6320 = vpop.xlane.xlu0 %6319
        %v6321 = vld [vmem:[#allocation2] sm:$0x1]
        %v6323 = vlaneseq
        %v6324 = vshrl.u32 %v6323, 7
        %v6325 = vsub.s32 0, %v6324
        %v6326 = vrot.slane %v6321, %v6325
        %v6328 = vadd.f32 %v5555, %v6326
        %v6329 = vadd.f32 %v5558, %v6326
        %v6330 = vadd.f32 %v5561, %v6326
        %v6331 = vadd.f32 %v5564, %v6326
        %v6332 = vadd.f32 %v5567, %v6326
        %v6333 = vadd.f32 %v5570, %v6326
        %v6334 = vadd.f32 %v5573, %v6326
        %v6335 = vadd.f32 %v5576, %v6326
        %v6336 = vadd.f32 %v5579, %v6326
        %v6337 = vadd.f32 %v5582, %v6326
        %v6338 = vadd.f32 %v5585, %v6326
        %v6339 = vadd.f32 %v5588, %v6326
        %v6340 = vadd.f32 %v5591, %v6326
        %v6341 = vadd.f32 %v5594, %v6326
        %v6342 = vadd.f32 %v5597, %v6326
        %v6343 = vadd.f32 %v5600, %v6326
        %v6344 = vadd.f32 %v5603, %v6326
        %v6345 = vadd.f32 %v5606, %v6326
        %v6346 = vadd.f32 %v5609, %v6326
        %v6347 = vadd.f32 %v5612, %v6326
        %v6348 = vadd.f32 %v5615, %v6326
        %v6349 = vadd.f32 %v5618, %v6326
        %v6350 = vadd.f32 %v5621, %v6326
        %v6351 = vadd.f32 %v5624, %v6326
        %v6352 = vadd.f32 %v5627, %v6326
        %v6353 = vadd.f32 %v5630, %v6326
        %v6354 = vadd.f32 %v5633, %v6326
        %v6355 = vadd.f32 %v5636, %v6326
        %v6356 = vadd.f32 %v5639, %v6326
        %v6357 = vadd.f32 %v5642, %v6326
        %v6358 = vadd.f32 %v5645, %v6326
        %v6359 = vadd.f32 %v5648, %v6326
        %v6360 = vadd.f32 %v5651, %v6326
        %v6361 = vadd.f32 %v5654, %v6326
        %v6362 = vadd.f32 %v5657, %v6326
        %v6363 = vadd.f32 %v5660, %v6326
        %v6364 = vadd.f32 %v5663, %v6326
        %v6365 = vadd.f32 %v5666, %v6326
        %v6366 = vadd.f32 %v5669, %v6326
        %v6367 = vadd.f32 %v5672, %v6326
        %v6368 = vadd.f32 %v5675, %v6326
        %v6369 = vadd.f32 %v5678, %v6326
        %v6370 = vadd.f32 %v5681, %v6326
        %v6371 = vadd.f32 %v5684, %v6326
        %v6372 = vadd.f32 %v5687, %v6326
        %v6373 = vadd.f32 %v5690, %v6326
        %v6374 = vadd.f32 %v5693, %v6326
        %v6375 = vadd.f32 %v5696, %v6326
        %v6376 = vadd.f32 %v5699, %v6326
        %v6377 = vadd.f32 %v5702, %v6326
        %v6378 = vadd.f32 %v5705, %v6326
        %v6379 = vadd.f32 %v5708, %v6326
        %v6380 = vadd.f32 %v5711, %v6326
        %v6381 = vadd.f32 %v5714, %v6326
        %v6382 = vadd.f32 %v5717, %v6326
        %v6383 = vadd.f32 %v5720, %v6326
        %v6384 = vadd.f32 %v5723, %v6326
        %v6385 = vadd.f32 %v5726, %v6326
        %v6386 = vadd.f32 %v5729, %v6326
        %v6387 = vadd.f32 %v5732, %v6326
        %v6388 = vadd.f32 %v5735, %v6326
        %v6389 = vadd.f32 %v5738, %v6326
        %v6390 = vadd.f32 %v5741, %v6326
        %v6391 = vadd.f32 %v5744, %v6326
        %v6392 = vadd.f32 %v5747, %v6326
        %v6393 = vadd.f32 %v5750, %v6326
        %v6394 = vadd.f32 %v5753, %v6326
        %v6395 = vadd.f32 %v5756, %v6326
        %v6396 = vadd.f32 %v5759, %v6326
        %v6397 = vadd.f32 %v5762, %v6326
        %v6398 = vadd.f32 %v5765, %v6326
        %v6399 = vadd.f32 %v5768, %v6326
        %v6400 = vadd.f32 %v5771, %v6326
        %v6401 = vadd.f32 %v5774, %v6326
        %v6402 = vadd.f32 %v5777, %v6326
        %v6403 = vadd.f32 %v5780, %v6326
        %v6404 = vadd.f32 %v5783, %v6326
        %v6405 = vadd.f32 %v5786, %v6326
        %v6406 = vadd.f32 %v5789, %v6326
        %v6407 = vadd.f32 %v5792, %v6326
        %v6408 = vadd.f32 %v5795, %v6326
        %v6409 = vadd.f32 %v5798, %v6326
        %v6410 = vadd.f32 %v5801, %v6326
        %v6411 = vadd.f32 %v5804, %v6326
        %v6412 = vadd.f32 %v5807, %v6326
        %v6413 = vadd.f32 %v5810, %v6326
        %v6414 = vadd.f32 %v5813, %v6326
        %v6415 = vadd.f32 %v5816, %v6326
        %v6416 = vadd.f32 %v5819, %v6326
        %v6417 = vadd.f32 %v5822, %v6326
        %v6418 = vadd.f32 %v5825, %v6326
        %v6419 = vadd.f32 %v5828, %v6326
        %v6420 = vadd.f32 %v5831, %v6326
        %v6421 = vadd.f32 %v5834, %v6326
        %v6422 = vadd.f32 %v5837, %v6326
        %v6423 = vadd.f32 %v5840, %v6326
        %v6424 = vadd.f32 %v5843, %v6326
        %v6425 = vadd.f32 %v5846, %v6326
        %v6426 = vadd.f32 %v5849, %v6326
        %v6427 = vadd.f32 %v5852, %v6326
        %v6428 = vadd.f32 %v5855, %v6326
        %v6429 = vadd.f32 %v5858, %v6326
        %v6430 = vadd.f32 %v5861, %v6326
        %v6431 = vadd.f32 %v5864, %v6326
        %v6432 = vadd.f32 %v5867, %v6326
        %v6433 = vadd.f32 %v5870, %v6326
        %v6434 = vadd.f32 %v5873, %v6326
        %v6435 = vadd.f32 %v5876, %v6326
        %v6436 = vadd.f32 %v5879, %v6326
        %v6437 = vadd.f32 %v5882, %v6326
        %v6438 = vadd.f32 %v5885, %v6326
        %v6439 = vadd.f32 %v5888, %v6326
        %v6440 = vadd.f32 %v5891, %v6326
        %v6441 = vadd.f32 %v5894, %v6326
        %v6442 = vadd.f32 %v5897, %v6326
        %v6443 = vadd.f32 %v5900, %v6326
        %v6444 = vadd.f32 %v5903, %v6326
        %v6445 = vadd.f32 %v5906, %v6326
        %v6446 = vadd.f32 %v5909, %v6326
        %v6447 = vadd.f32 %v5912, %v6326
        %v6448 = vadd.f32 %v5915, %v6326
        %v6449 = vadd.f32 %v5918, %v6326
        %v6450 = vadd.f32 %v5921, %v6326
        %v6451 = vadd.f32 %v5924, %v6326
        %v6452 = vadd.f32 %v5927, %v6326
        %v6453 = vadd.f32 %v5930, %v6326
        %v6454 = vadd.f32 %v5933, %v6326
        %v6455 = vadd.f32 %v5936, %v6326
        %v6456 = vadd.f32 %v5939, %v6326
        %v6457 = vadd.f32 %v5942, %v6326
        %v6458 = vadd.f32 %v5945, %v6326
        %v6459 = vadd.f32 %v5948, %v6326
        %v6460 = vadd.f32 %v5951, %v6326
        %v6461 = vadd.f32 %v5954, %v6326
        %v6462 = vadd.f32 %v5957, %v6326
        %v6463 = vadd.f32 %v5960, %v6326
        %v6464 = vadd.f32 %v5963, %v6326
        %v6465 = vadd.f32 %v5966, %v6326
        %v6466 = vadd.f32 %v5969, %v6326
        %v6467 = vadd.f32 %v5972, %v6326
        %v6468 = vadd.f32 %v5975, %v6326
        %v6469 = vadd.f32 %v5978, %v6326
        %v6470 = vadd.f32 %v5981, %v6326
        %v6471 = vadd.f32 %v5984, %v6326
        %v6472 = vadd.f32 %v5987, %v6326
        %v6473 = vadd.f32 %v5990, %v6326
        %v6474 = vadd.f32 %v5993, %v6326
        %v6475 = vadd.f32 %v5996, %v6326
        %v6476 = vadd.f32 %v5999, %v6326
        %v6477 = vadd.f32 %v6002, %v6326
        %v6478 = vadd.f32 %v6005, %v6326
        %v6479 = vadd.f32 %v6008, %v6326
        %v6480 = vadd.f32 %v6011, %v6326
        %v6481 = vadd.f32 %v6014, %v6326
        %v6482 = vadd.f32 %v6017, %v6326
        %v6483 = vadd.f32 %v6020, %v6326
        %v6484 = vadd.f32 %v6023, %v6326
        %v6485 = vadd.f32 %v6026, %v6326
        %v6486 = vadd.f32 %v6029, %v6326
        %v6487 = vadd.f32 %v6032, %v6326
        %v6488 = vadd.f32 %v6035, %v6326
        %v6489 = vadd.f32 %v6038, %v6326
        %v6490 = vadd.f32 %v6041, %v6326
        %v6491 = vadd.f32 %v6044, %v6326
        %v6492 = vadd.f32 %v6047, %v6326
        %v6493 = vadd.f32 %v6050, %v6326
        %v6494 = vadd.f32 %v6053, %v6326
        %v6495 = vadd.f32 %v6056, %v6326
        %v6496 = vadd.f32 %v6059, %v6326
        %v6497 = vadd.f32 %v6062, %v6326
        %v6498 = vadd.f32 %v6065, %v6326
        %v6499 = vadd.f32 %v6068, %v6326
        %v6500 = vadd.f32 %v6071, %v6326
        %v6501 = vadd.f32 %v6074, %v6326
        %v6502 = vadd.f32 %v6077, %v6326
        %v6503 = vadd.f32 %v6080, %v6326
        %v6504 = vadd.f32 %v6083, %v6326
        %v6505 = vadd.f32 %v6086, %v6326
        %v6506 = vadd.f32 %v6089, %v6326
        %v6507 = vadd.f32 %v6092, %v6326
        %v6508 = vadd.f32 %v6095, %v6326
        %v6509 = vadd.f32 %v6098, %v6326
        %v6510 = vadd.f32 %v6101, %v6326
        %v6511 = vadd.f32 %v6104, %v6326
        %v6512 = vadd.f32 %v6107, %v6326
        %v6513 = vadd.f32 %v6110, %v6326
        %v6514 = vadd.f32 %v6113, %v6326
        %v6515 = vadd.f32 %v6116, %v6326
        %v6516 = vadd.f32 %v6119, %v6326
        %v6517 = vadd.f32 %v6122, %v6326
        %v6518 = vadd.f32 %v6125, %v6326
        %v6519 = vadd.f32 %v6128, %v6326
        %v6520 = vadd.f32 %v6131, %v6326
        %v6521 = vadd.f32 %v6134, %v6326
        %v6522 = vadd.f32 %v6137, %v6326
        %v6523 = vadd.f32 %v6140, %v6326
        %v6524 = vadd.f32 %v6143, %v6326
        %v6525 = vadd.f32 %v6146, %v6326
        %v6526 = vadd.f32 %v6149, %v6326
        %v6527 = vadd.f32 %v6152, %v6326
        %v6528 = vadd.f32 %v6155, %v6326
        %v6529 = vadd.f32 %v6158, %v6326
        %v6530 = vadd.f32 %v6161, %v6326
        %v6531 = vadd.f32 %v6164, %v6326
        %v6532 = vadd.f32 %v6167, %v6326
        %v6533 = vadd.f32 %v6170, %v6326
        %v6534 = vadd.f32 %v6173, %v6326
        %v6535 = vadd.f32 %v6176, %v6326
        %v6536 = vadd.f32 %v6179, %v6326
        %v6537 = vadd.f32 %v6182, %v6326
        %v6538 = vadd.f32 %v6185, %v6326
        %v6539 = vadd.f32 %v6188, %v6326
        %v6540 = vadd.f32 %v6191, %v6326
        %v6541 = vadd.f32 %v6194, %v6326
        %v6542 = vadd.f32 %v6197, %v6326
        %v6543 = vadd.f32 %v6200, %v6326
        %v6544 = vadd.f32 %v6203, %v6326
        %v6545 = vadd.f32 %v6206, %v6326
        %v6546 = vadd.f32 %v6209, %v6326
        %v6547 = vadd.f32 %v6212, %v6326
        %v6548 = vadd.f32 %v6215, %v6326
        %v6549 = vadd.f32 %v6218, %v6326
        %v6550 = vadd.f32 %v6221, %v6326
        %v6551 = vadd.f32 %v6224, %v6326
        %v6552 = vadd.f32 %v6227, %v6326
        %v6553 = vadd.f32 %v6230, %v6326
        %v6554 = vadd.f32 %v6233, %v6326
        %v6555 = vadd.f32 %v6236, %v6326
        %v6556 = vadd.f32 %v6239, %v6326
        %v6557 = vadd.f32 %v6242, %v6326
        %v6558 = vadd.f32 %v6245, %v6326
        %v6559 = vadd.f32 %v6248, %v6326
        %v6560 = vadd.f32 %v6251, %v6326
        %v6561 = vadd.f32 %v6254, %v6326
        %v6562 = vadd.f32 %v6257, %v6326
        %v6563 = vadd.f32 %v6260, %v6326
        %v6564 = vadd.f32 %v6263, %v6326
        %v6565 = vadd.f32 %v6266, %v6326
        %v6566 = vadd.f32 %v6269, %v6326
        %v6567 = vadd.f32 %v6272, %v6326
        %v6568 = vadd.f32 %v6275, %v6326
        %v6569 = vadd.f32 %v6278, %v6326
        %v6570 = vadd.f32 %v6281, %v6326
        %v6571 = vadd.f32 %v6284, %v6326
        %v6572 = vadd.f32 %v6287, %v6326
        %v6573 = vadd.f32 %v6290, %v6326
        %v6574 = vadd.f32 %v6293, %v6326
        %v6575 = vadd.f32 %v6296, %v6326
        %v6576 = vadd.f32 %v6299, %v6326
        %v6577 = vadd.f32 %v6302, %v6326
        %v6578 = vadd.f32 %v6305, %v6326
        %v6579 = vadd.f32 %v6308, %v6326
        %v6580 = vadd.f32 %v6311, %v6326
        %v6581 = vadd.f32 %v6314, %v6326
        %v6582 = vadd.f32 %v6317, %v6326
        %v6583 = vadd.f32 %v6320, %v6326
        %v6584 = vtanh.pop %v6328
        %v6585 = vtanh.pop %v6329
        %v6586 = vtanh.pop %v6330
        %v6587 = vtanh.pop %v6331
        %v6588 = vtanh.pop %v6332
        %v6589 = vtanh.pop %v6333
        %v6590 = vtanh.pop %v6334
        %v6591 = vtanh.pop %v6335
        %v6592 = vtanh.pop %v6336
        %v6593 = vtanh.pop %v6337
        %v6594 = vtanh.pop %v6338
        %v6595 = vtanh.pop %v6339
        %v6596 = vtanh.pop %v6340
        %v6597 = vtanh.pop %v6341
        %v6598 = vtanh.pop %v6342
        %v6599 = vtanh.pop %v6343
        %v6600 = vtanh.pop %v6344
        %v6601 = vtanh.pop %v6345
        %v6602 = vtanh.pop %v6346
        %v6603 = vtanh.pop %v6347
        %v6604 = vtanh.pop %v6348
        %v6605 = vtanh.pop %v6349
        %v6606 = vtanh.pop %v6350
        %v6607 = vtanh.pop %v6351
        %v6608 = vtanh.pop %v6352
        %v6609 = vtanh.pop %v6353
        %v6610 = vtanh.pop %v6354
        %v6611 = vtanh.pop %v6355
        %v6612 = vtanh.pop %v6356
        %v6613 = vtanh.pop %v6357
        %v6614 = vtanh.pop %v6358
        %v6615 = vtanh.pop %v6359
        %v6616 = vtanh.pop %v6360
        %v6617 = vtanh.pop %v6361
        %v6618 = vtanh.pop %v6362
        %v6619 = vtanh.pop %v6363
        %v6620 = vtanh.pop %v6364
        %v6621 = vtanh.pop %v6365
        %v6622 = vtanh.pop %v6366
        %v6623 = vtanh.pop %v6367
        %v6624 = vtanh.pop %v6368
        %v6625 = vtanh.pop %v6369
        %v6626 = vtanh.pop %v6370
        %v6627 = vtanh.pop %v6371
        %v6628 = vtanh.pop %v6372
        %v6629 = vtanh.pop %v6373
        %v6630 = vtanh.pop %v6374
        %v6631 = vtanh.pop %v6375
        %v6632 = vtanh.pop %v6376
        %v6633 = vtanh.pop %v6377
        %v6634 = vtanh.pop %v6378
        %v6635 = vtanh.pop %v6379
        %v6636 = vtanh.pop %v6380
        %v6637 = vtanh.pop %v6381
        %v6638 = vtanh.pop %v6382
        %v6639 = vtanh.pop %v6383
        %v6640 = vtanh.pop %v6384
        %v6641 = vtanh.pop %v6385
        %v6642 = vtanh.pop %v6386
        %v6643 = vtanh.pop %v6387
        %v6644 = vtanh.pop %v6388
        %v6645 = vtanh.pop %v6389
        %v6646 = vtanh.pop %v6390
        %v6647 = vtanh.pop %v6391
        %v6648 = vtanh.pop %v6392
        %v6649 = vtanh.pop %v6393
        %v6650 = vtanh.pop %v6394
        %v6651 = vtanh.pop %v6395
        %v6652 = vtanh.pop %v6396
        %v6653 = vtanh.pop %v6397
        %v6654 = vtanh.pop %v6398
        %v6655 = vtanh.pop %v6399
        %v6656 = vtanh.pop %v6400
        %v6657 = vtanh.pop %v6401
        %v6658 = vtanh.pop %v6402
        %v6659 = vtanh.pop %v6403
        %v6660 = vtanh.pop %v6404
        %v6661 = vtanh.pop %v6405
        %v6662 = vtanh.pop %v6406
        %v6663 = vtanh.pop %v6407
        %v6664 = vtanh.pop %v6408
        %v6665 = vtanh.pop %v6409
        %v6666 = vtanh.pop %v6410
        %v6667 = vtanh.pop %v6411
        %v6668 = vtanh.pop %v6412
        %v6669 = vtanh.pop %v6413
        %v6670 = vtanh.pop %v6414
        %v6671 = vtanh.pop %v6415
        %v6672 = vtanh.pop %v6416
        %v6673 = vtanh.pop %v6417
        %v6674 = vtanh.pop %v6418
        %v6675 = vtanh.pop %v6419
        %v6676 = vtanh.pop %v6420
        %v6677 = vtanh.pop %v6421
        %v6678 = vtanh.pop %v6422
        %v6679 = vtanh.pop %v6423
        %v6680 = vtanh.pop %v6424
        %v6681 = vtanh.pop %v6425
        %v6682 = vtanh.pop %v6426
        %v6683 = vtanh.pop %v6427
        %v6684 = vtanh.pop %v6428
        %v6685 = vtanh.pop %v6429
        %v6686 = vtanh.pop %v6430
        %v6687 = vtanh.pop %v6431
        %v6688 = vtanh.pop %v6432
        %v6689 = vtanh.pop %v6433
        %v6690 = vtanh.pop %v6434
        %v6691 = vtanh.pop %v6435
        %v6692 = vtanh.pop %v6436
        %v6693 = vtanh.pop %v6437
        %v6694 = vtanh.pop %v6438
        %v6695 = vtanh.pop %v6439
        %v6696 = vtanh.pop %v6440
        %v6697 = vtanh.pop %v6441
        %v6698 = vtanh.pop %v6442
        %v6699 = vtanh.pop %v6443
        %v6700 = vtanh.pop %v6444
        %v6701 = vtanh.pop %v6445
        %v6702 = vtanh.pop %v6446
        %v6703 = vtanh.pop %v6447
        %v6704 = vtanh.pop %v6448
        %v6705 = vtanh.pop %v6449
        %v6706 = vtanh.pop %v6450
        %v6707 = vtanh.pop %v6451
        %v6708 = vtanh.pop %v6452
        %v6709 = vtanh.pop %v6453
        %v6710 = vtanh.pop %v6454
        %v6711 = vtanh.pop %v6455
        %v6712 = vtanh.pop %v6456
        %v6713 = vtanh.pop %v6457
        %v6714 = vtanh.pop %v6458
        %v6715 = vtanh.pop %v6459
        %v6716 = vtanh.pop %v6460
        %v6717 = vtanh.pop %v6461
        %v6718 = vtanh.pop %v6462
        %v6719 = vtanh.pop %v6463
        %v6720 = vtanh.pop %v6464
        %v6721 = vtanh.pop %v6465
        %v6722 = vtanh.pop %v6466
        %v6723 = vtanh.pop %v6467
        %v6724 = vtanh.pop %v6468
        %v6725 = vtanh.pop %v6469
        %v6726 = vtanh.pop %v6470
        %v6727 = vtanh.pop %v6471
        %v6728 = vtanh.pop %v6472
        %v6729 = vtanh.pop %v6473
        %v6730 = vtanh.pop %v6474
        %v6731 = vtanh.pop %v6475
        %v6732 = vtanh.pop %v6476
        %v6733 = vtanh.pop %v6477
        %v6734 = vtanh.pop %v6478
        %v6735 = vtanh.pop %v6479
        %v6736 = vtanh.pop %v6480
        %v6737 = vtanh.pop %v6481
        %v6738 = vtanh.pop %v6482
        %v6739 = vtanh.pop %v6483
        %v6740 = vtanh.pop %v6484
        %v6741 = vtanh.pop %v6485
        %v6742 = vtanh.pop %v6486
        %v6743 = vtanh.pop %v6487
        %v6744 = vtanh.pop %v6488
        %v6745 = vtanh.pop %v6489
        %v6746 = vtanh.pop %v6490
        %v6747 = vtanh.pop %v6491
        %v6748 = vtanh.pop %v6492
        %v6749 = vtanh.pop %v6493
        %v6750 = vtanh.pop %v6494
        %v6751 = vtanh.pop %v6495
        %v6752 = vtanh.pop %v6496
        %v6753 = vtanh.pop %v6497
        %v6754 = vtanh.pop %v6498
        %v6755 = vtanh.pop %v6499
        %v6756 = vtanh.pop %v6500
        %v6757 = vtanh.pop %v6501
        %v6758 = vtanh.pop %v6502
        %v6759 = vtanh.pop %v6503
        %v6760 = vtanh.pop %v6504
        %v6761 = vtanh.pop %v6505
        %v6762 = vtanh.pop %v6506
        %v6763 = vtanh.pop %v6507
        %v6764 = vtanh.pop %v6508
        %v6765 = vtanh.pop %v6509
        %v6766 = vtanh.pop %v6510
        %v6767 = vtanh.pop %v6511
        %v6768 = vtanh.pop %v6512
        %v6769 = vtanh.pop %v6513
        %v6770 = vtanh.pop %v6514
        %v6771 = vtanh.pop %v6515
        %v6772 = vtanh.pop %v6516
        %v6773 = vtanh.pop %v6517
        %v6774 = vtanh.pop %v6518
        %v6775 = vtanh.pop %v6519
        %v6776 = vtanh.pop %v6520
        %v6777 = vtanh.pop %v6521
        %v6778 = vtanh.pop %v6522
        %v6779 = vtanh.pop %v6523
        %v6780 = vtanh.pop %v6524
        %v6781 = vtanh.pop %v6525
        %v6782 = vtanh.pop %v6526
        %v6783 = vtanh.pop %v6527
        %v6784 = vtanh.pop %v6528
        %v6785 = vtanh.pop %v6529
        %v6786 = vtanh.pop %v6530
        %v6787 = vtanh.pop %v6531
        %v6788 = vtanh.pop %v6532
        %v6789 = vtanh.pop %v6533
        %v6790 = vtanh.pop %v6534
        %v6791 = vtanh.pop %v6535
        %v6792 = vtanh.pop %v6536
        %v6793 = vtanh.pop %v6537
        %v6794 = vtanh.pop %v6538
        %v6795 = vtanh.pop %v6539
        %v6796 = vtanh.pop %v6540
        %v6797 = vtanh.pop %v6541
        %v6798 = vtanh.pop %v6542
        %v6799 = vtanh.pop %v6543
        %v6800 = vtanh.pop %v6544
        %v6801 = vtanh.pop %v6545
        %v6802 = vtanh.pop %v6546
        %v6803 = vtanh.pop %v6547
        %v6804 = vtanh.pop %v6548
        %v6805 = vtanh.pop %v6549
        %v6806 = vtanh.pop %v6550
        %v6807 = vtanh.pop %v6551
        %v6808 = vtanh.pop %v6552
        %v6809 = vtanh.pop %v6553
        %v6810 = vtanh.pop %v6554
        %v6811 = vtanh.pop %v6555
        %v6812 = vtanh.pop %v6556
        %v6813 = vtanh.pop %v6557
        %v6814 = vtanh.pop %v6558
        %v6815 = vtanh.pop %v6559
        %v6816 = vtanh.pop %v6560
        %v6817 = vtanh.pop %v6561
        %v6818 = vtanh.pop %v6562
        %v6819 = vtanh.pop %v6563
        %v6820 = vtanh.pop %v6564
        %v6821 = vtanh.pop %v6565
        %v6822 = vtanh.pop %v6566
        %v6823 = vtanh.pop %v6567
        %v6824 = vtanh.pop %v6568
        %v6825 = vtanh.pop %v6569
        %v6826 = vtanh.pop %v6570
        %v6827 = vtanh.pop %v6571
        %v6828 = vtanh.pop %v6572
        %v6829 = vtanh.pop %v6573
        %v6830 = vtanh.pop %v6574
        %v6831 = vtanh.pop %v6575
        %v6832 = vtanh.pop %v6576
        %v6833 = vtanh.pop %v6577
        %v6834 = vtanh.pop %v6578
        %v6835 = vtanh.pop %v6579
        %v6836 = vtanh.pop %v6580
        %v6837 = vtanh.pop %v6581
        %v6838 = vtanh.pop %v6582
        %v6839 = vtanh.pop %v6583
        %6840 = vst.msk [vmem:[%s449] sm:$0xff] %vm3176, %v2909
        %6841 = vst.msk [vmem:[%s449 + $0x8] sm:$0xff] %vm3176, %v2910
        %6842 = vst.msk [vmem:[%s449 + $0x10] sm:$0xff] %vm3176, %v2911
        %6843 = vst.msk [vmem:[%s449 + $0x18] sm:$0xff] %vm3176, %v2912
        %6844 = vst.msk [vmem:[%s449 + $0x20] sm:$0xff] %vm3176, %v2913
        %6845 = vst.msk [vmem:[%s449 + $0x28] sm:$0xff] %vm3176, %v2914
        %6846 = vst.msk [vmem:[%s449 + $0x30] sm:$0xff] %vm3176, %v2915
        %6847 = vst.msk [vmem:[%s449 + $0x38] sm:$0xff] %vm3176, %v2916
        %6848 = vst.msk [vmem:[%s449 + $0x40] sm:$0xff] %vm3176, %v2917
        %6849 = vst.msk [vmem:[%s449 + $0x48] sm:$0xff] %vm3176, %v2918
        %6850 = vst.msk [vmem:[%s449 + $0x50] sm:$0xff] %vm3176, %v2919
        %6851 = vst.msk [vmem:[%s449 + $0x58] sm:$0xff] %vm3176, %v2920
        %6852 = vst.msk [vmem:[%s449 + $0x60] sm:$0xff] %vm3176, %v2921
        %6853 = vst.msk [vmem:[%s449 + $0x68] sm:$0xff] %vm3176, %v2922
        %6854 = vst.msk [vmem:[%s449 + $0x70] sm:$0xff] %vm3176, %v2923
        %6855 = vst.msk [vmem:[%s449 + $0x78] sm:$0xff] %vm3176, %v2924
        %6856 = vst.msk [vmem:[%s449 + $0x80] sm:$0xff] %vm3176, %v2925
        %6857 = vst.msk [vmem:[%s449 + $0x88] sm:$0xff] %vm3176, %v2926
        %6858 = vst.msk [vmem:[%s449 + $0x90] sm:$0xff] %vm3176, %v2927
        %6859 = vst.msk [vmem:[%s449 + $0x98] sm:$0xff] %vm3176, %v2928
        %6860 = vst.msk [vmem:[%s449 + $0xa0] sm:$0xff] %vm3176, %v2929
        %6861 = vst.msk [vmem:[%s449 + $0xa8] sm:$0xff] %vm3176, %v2930
        %6862 = vst.msk [vmem:[%s449 + $0xb0] sm:$0xff] %vm3176, %v2931
        %6863 = vst.msk [vmem:[%s449 + $0xb8] sm:$0xff] %vm3176, %v2932
        %6864 = vst.msk [vmem:[%s449 + $0xc0] sm:$0xff] %vm3176, %v2933
        %6865 = vst.msk [vmem:[%s449 + $0xc8] sm:$0xff] %vm3176, %v2934
        %6866 = vst.msk [vmem:[%s449 + $0xd0] sm:$0xff] %vm3176, %v2935
        %6867 = vst.msk [vmem:[%s449 + $0xd8] sm:$0xff] %vm3176, %v2936
        %6868 = vst.msk [vmem:[%s449 + $0xe0] sm:$0xff] %vm3176, %v2937
        %6869 = vst.msk [vmem:[%s449 + $0xe8] sm:$0xff] %vm3176, %v2938
        %6870 = vst.msk [vmem:[%s449 + $0xf0] sm:$0xff] %vm3176, %v2939
        %6871 = vst.msk [vmem:[%s449 + $0xf8] sm:$0xff] %vm3176, %v2940
        %6872 = vst.msk [vmem:[%s449 + $0x100] sm:$0xff] %vm3176, %v2941
        %6873 = vst.msk [vmem:[%s449 + $0x108] sm:$0xff] %vm3176, %v2942
        %6874 = vst.msk [vmem:[%s449 + $0x110] sm:$0xff] %vm3176, %v2943
        %6875 = vst.msk [vmem:[%s449 + $0x118] sm:$0xff] %vm3176, %v2944
        %6876 = vst.msk [vmem:[%s449 + $0x120] sm:$0xff] %vm3176, %v2945
        %6877 = vst.msk [vmem:[%s449 + $0x128] sm:$0xff] %vm3176, %v2946
        %6878 = vst.msk [vmem:[%s449 + $0x130] sm:$0xff] %vm3176, %v2947
        %6879 = vst.msk [vmem:[%s449 + $0x138] sm:$0xff] %vm3176, %v2948
        %6880 = vst.msk [vmem:[%s449 + $0x140] sm:$0xff] %vm3176, %v2949
        %6881 = vst.msk [vmem:[%s449 + $0x148] sm:$0xff] %vm3176, %v2950
        %6882 = vst.msk [vmem:[%s449 + $0x150] sm:$0xff] %vm3176, %v2951
        %6883 = vst.msk [vmem:[%s449 + $0x158] sm:$0xff] %vm3176, %v2952
        %6884 = vst.msk [vmem:[%s449 + $0x160] sm:$0xff] %vm3176, %v2953
        %6885 = vst.msk [vmem:[%s449 + $0x168] sm:$0xff] %vm3176, %v2954
        %6886 = vst.msk [vmem:[%s449 + $0x170] sm:$0xff] %vm3176, %v2955
        %6887 = vst.msk [vmem:[%s449 + $0x178] sm:$0xff] %vm3176, %v2956
        %6888 = vst.msk [vmem:[%s449 + $0x180] sm:$0xff] %vm3176, %v2957
        %6889 = vst.msk [vmem:[%s449 + $0x188] sm:$0xff] %vm3176, %v2958
        %6890 = vst.msk [vmem:[%s449 + $0x190] sm:$0xff] %vm3176, %v2959
        %6891 = vst.msk [vmem:[%s449 + $0x198] sm:$0xff] %vm3176, %v2960
        %6892 = vst.msk [vmem:[%s449 + $0x1a0] sm:$0xff] %vm3176, %v2961
        %6893 = vst.msk [vmem:[%s449 + $0x1a8] sm:$0xff] %vm3176, %v2962
        %6894 = vst.msk [vmem:[%s449 + $0x1b0] sm:$0xff] %vm3176, %v2963
        %6895 = vst.msk [vmem:[%s449 + $0x1b8] sm:$0xff] %vm3176, %v2964
        %6896 = vst.msk [vmem:[%s449 + $0x1c0] sm:$0xff] %vm3176, %v2965
        %6897 = vst.msk [vmem:[%s449 + $0x1c8] sm:$0xff] %vm3176, %v2966
        %6898 = vst.msk [vmem:[%s449 + $0x1d0] sm:$0xff] %vm3176, %v2967
        %6899 = vst.msk [vmem:[%s449 + $0x1d8] sm:$0xff] %vm3176, %v2968
        %6900 = vst.msk [vmem:[%s449 + $0x1e0] sm:$0xff] %vm3176, %v2969
        %6901 = vst.msk [vmem:[%s449 + $0x1e8] sm:$0xff] %vm3176, %v2970
        %6902 = vst.msk [vmem:[%s449 + $0x1f0] sm:$0xff] %vm3176, %v2971
        %6903 = vst.msk [vmem:[%s449 + $0x1f8] sm:$0xff] %vm3176, %v2972
        %6904 = vst.msk [vmem:[%s449 + $0x200] sm:$0xff] %vm3176, %v2973
        %6905 = vst.msk [vmem:[%s449 + $0x208] sm:$0xff] %vm3176, %v2974
        %6906 = vst.msk [vmem:[%s449 + $0x210] sm:$0xff] %vm3176, %v2975
        %6907 = vst.msk [vmem:[%s449 + $0x218] sm:$0xff] %vm3176, %v2976
        %6908 = vst.msk [vmem:[%s449 + $0x220] sm:$0xff] %vm3176, %v2977
        %6909 = vst.msk [vmem:[%s449 + $0x228] sm:$0xff] %vm3176, %v2978
        %6910 = vst.msk [vmem:[%s449 + $0x230] sm:$0xff] %vm3176, %v2979
        %6911 = vst.msk [vmem:[%s449 + $0x238] sm:$0xff] %vm3176, %v2980
        %6912 = vst.msk [vmem:[%s449 + $0x240] sm:$0xff] %vm3176, %v2981
        %6913 = vst.msk [vmem:[%s449 + $0x248] sm:$0xff] %vm3176, %v2982
        %6914 = vst.msk [vmem:[%s449 + $0x250] sm:$0xff] %vm3176, %v2983
        %6915 = vst.msk [vmem:[%s449 + $0x258] sm:$0xff] %vm3176, %v2984
        %6916 = vst.msk [vmem:[%s449 + $0x260] sm:$0xff] %vm3176, %v2985
        %6917 = vst.msk [vmem:[%s449 + $0x268] sm:$0xff] %vm3176, %v2986
        %6918 = vst.msk [vmem:[%s449 + $0x270] sm:$0xff] %vm3176, %v2987
        %6919 = vst.msk [vmem:[%s449 + $0x278] sm:$0xff] %vm3176, %v2988
        %6920 = vst.msk [vmem:[%s449 + $0x280] sm:$0xff] %vm3176, %v2989
        %6921 = vst.msk [vmem:[%s449 + $0x288] sm:$0xff] %vm3176, %v2990
        %6922 = vst.msk [vmem:[%s449 + $0x290] sm:$0xff] %vm3176, %v2991
        %6923 = vst.msk [vmem:[%s449 + $0x298] sm:$0xff] %vm3176, %v2992
        %6924 = vst.msk [vmem:[%s449 + $0x2a0] sm:$0xff] %vm3176, %v2993
        %6925 = vst.msk [vmem:[%s449 + $0x2a8] sm:$0xff] %vm3176, %v2994
        %6926 = vst.msk [vmem:[%s449 + $0x2b0] sm:$0xff] %vm3176, %v2995
        %6927 = vst.msk [vmem:[%s449 + $0x2b8] sm:$0xff] %vm3176, %v2996
        %6928 = vst.msk [vmem:[%s449 + $0x2c0] sm:$0xff] %vm3176, %v2997
        %6929 = vst.msk [vmem:[%s449 + $0x2c8] sm:$0xff] %vm3176, %v2998
        %6930 = vst.msk [vmem:[%s449 + $0x2d0] sm:$0xff] %vm3176, %v2999
        %6931 = vst.msk [vmem:[%s449 + $0x2d8] sm:$0xff] %vm3176, %v3000
        %6932 = vst.msk [vmem:[%s449 + $0x2e0] sm:$0xff] %vm3176, %v3001
        %6933 = vst.msk [vmem:[%s449 + $0x2e8] sm:$0xff] %vm3176, %v3002
        %6934 = vst.msk [vmem:[%s449 + $0x2f0] sm:$0xff] %vm3176, %v3003
        %6935 = vst.msk [vmem:[%s449 + $0x2f8] sm:$0xff] %vm3176, %v3004
        %6936 = vst.msk [vmem:[%s449 + $0x300] sm:$0xff] %vm3176, %v3005
        %6937 = vst.msk [vmem:[%s449 + $0x308] sm:$0xff] %vm3176, %v3006
        %6938 = vst.msk [vmem:[%s449 + $0x310] sm:$0xff] %vm3176, %v3007
        %6939 = vst.msk [vmem:[%s449 + $0x318] sm:$0xff] %vm3176, %v3008
        %6940 = vst.msk [vmem:[%s449 + $0x320] sm:$0xff] %vm3176, %v3009
        %6941 = vst.msk [vmem:[%s449 + $0x328] sm:$0xff] %vm3176, %v3010
        %6942 = vst.msk [vmem:[%s449 + $0x330] sm:$0xff] %vm3176, %v3011
        %6943 = vst.msk [vmem:[%s449 + $0x338] sm:$0xff] %vm3176, %v3012
        %6944 = vst.msk [vmem:[%s449 + $0x340] sm:$0xff] %vm3176, %v3013
        %6945 = vst.msk [vmem:[%s449 + $0x348] sm:$0xff] %vm3176, %v3014
        %6946 = vst.msk [vmem:[%s449 + $0x350] sm:$0xff] %vm3176, %v3015
        %6947 = vst.msk [vmem:[%s449 + $0x358] sm:$0xff] %vm3176, %v3016
        %6948 = vst.msk [vmem:[%s449 + $0x360] sm:$0xff] %vm3176, %v3017
        %6949 = vst.msk [vmem:[%s449 + $0x368] sm:$0xff] %vm3176, %v3018
        %6950 = vst.msk [vmem:[%s449 + $0x370] sm:$0xff] %vm3176, %v3019
        %6951 = vst.msk [vmem:[%s449 + $0x378] sm:$0xff] %vm3176, %v3020
        %6952 = vst.msk [vmem:[%s449 + $0x380] sm:$0xff] %vm3176, %v3021
        %6953 = vst.msk [vmem:[%s449 + $0x388] sm:$0xff] %vm3176, %v3022
        %6954 = vst.msk [vmem:[%s449 + $0x390] sm:$0xff] %vm3176, %v3023
        %6955 = vst.msk [vmem:[%s449 + $0x398] sm:$0xff] %vm3176, %v3024
        %6956 = vst.msk [vmem:[%s449 + $0x3a0] sm:$0xff] %vm3176, %v3025
        %6957 = vst.msk [vmem:[%s449 + $0x3a8] sm:$0xff] %vm3176, %v3026
        %6958 = vst.msk [vmem:[%s449 + $0x3b0] sm:$0xff] %vm3176, %v3027
        %6959 = vst.msk [vmem:[%s449 + $0x3b8] sm:$0xff] %vm3176, %v3028
        %6960 = vst.msk [vmem:[%s449 + $0x3c0] sm:$0xff] %vm3176, %v3029
        %6961 = vst.msk [vmem:[%s449 + $0x3c8] sm:$0xff] %vm3176, %v3030
        %6962 = vst.msk [vmem:[%s449 + $0x3d0] sm:$0xff] %vm3176, %v3031
        %6963 = vst.msk [vmem:[%s449 + $0x3d8] sm:$0xff] %vm3176, %v3032
        %6964 = vst.msk [vmem:[%s449 + $0x3e0] sm:$0xff] %vm3176, %v3033
        %6965 = vst.msk [vmem:[%s449 + $0x3e8] sm:$0xff] %vm3176, %v3034
        %6966 = vst.msk [vmem:[%s449 + $0x3f0] sm:$0xff] %vm3176, %v3035
        %6967 = vst.msk [vmem:[%s449 + $0x3f8] sm:$0xff] %vm3176, %v3036
        %6968 = vst.msk [vmem:[%s449 + $0x400] sm:$0xff] %vm3176, %v3037
        %6969 = vst.msk [vmem:[%s449 + $0x408] sm:$0xff] %vm3176, %v3038
        %6970 = vst.msk [vmem:[%s449 + $0x410] sm:$0xff] %vm3176, %v3039
        %6971 = vst.msk [vmem:[%s449 + $0x418] sm:$0xff] %vm3176, %v3040
        %6972 = vst.msk [vmem:[%s449 + $0x420] sm:$0xff] %vm3176, %v3041
        %6973 = vst.msk [vmem:[%s449 + $0x428] sm:$0xff] %vm3176, %v3042
        %6974 = vst.msk [vmem:[%s449 + $0x430] sm:$0xff] %vm3176, %v3043
        %6975 = vst.msk [vmem:[%s449 + $0x438] sm:$0xff] %vm3176, %v3044
        %6976 = vst.msk [vmem:[%s449 + $0x440] sm:$0xff] %vm3176, %v3045
        %6977 = vst.msk [vmem:[%s449 + $0x448] sm:$0xff] %vm3176, %v3046
        %6978 = vst.msk [vmem:[%s449 + $0x450] sm:$0xff] %vm3176, %v3047
        %6979 = vst.msk [vmem:[%s449 + $0x458] sm:$0xff] %vm3176, %v3048
        %6980 = vst.msk [vmem:[%s449 + $0x460] sm:$0xff] %vm3176, %v3049
        %6981 = vst.msk [vmem:[%s449 + $0x468] sm:$0xff] %vm3176, %v3050
        %6982 = vst.msk [vmem:[%s449 + $0x470] sm:$0xff] %vm3176, %v3051
        %6983 = vst.msk [vmem:[%s449 + $0x478] sm:$0xff] %vm3176, %v3052
        %6984 = vst.msk [vmem:[%s449 + $0x480] sm:$0xff] %vm3176, %v3053
        %6985 = vst.msk [vmem:[%s449 + $0x488] sm:$0xff] %vm3176, %v3054
        %6986 = vst.msk [vmem:[%s449 + $0x490] sm:$0xff] %vm3176, %v3055
        %6987 = vst.msk [vmem:[%s449 + $0x498] sm:$0xff] %vm3176, %v3056
        %6988 = vst.msk [vmem:[%s449 + $0x4a0] sm:$0xff] %vm3176, %v3057
        %6989 = vst.msk [vmem:[%s449 + $0x4a8] sm:$0xff] %vm3176, %v3058
        %6990 = vst.msk [vmem:[%s449 + $0x4b0] sm:$0xff] %vm3176, %v3059
        %6991 = vst.msk [vmem:[%s449 + $0x4b8] sm:$0xff] %vm3176, %v3060
        %6992 = vst.msk [vmem:[%s449 + $0x4c0] sm:$0xff] %vm3176, %v3061
        %6993 = vst.msk [vmem:[%s449 + $0x4c8] sm:$0xff] %vm3176, %v3062
        %6994 = vst.msk [vmem:[%s449 + $0x4d0] sm:$0xff] %vm3176, %v3063
        %6995 = vst.msk [vmem:[%s449 + $0x4d8] sm:$0xff] %vm3176, %v3064
        %6996 = vst.msk [vmem:[%s449 + $0x4e0] sm:$0xff] %vm3176, %v3065
        %6997 = vst.msk [vmem:[%s449 + $0x4e8] sm:$0xff] %vm3176, %v3066
        %6998 = vst.msk [vmem:[%s449 + $0x4f0] sm:$0xff] %vm3176, %v3067
        %6999 = vst.msk [vmem:[%s449 + $0x4f8] sm:$0xff] %vm3176, %v3068
        %7000 = vst.msk [vmem:[%s449 + $0x500] sm:$0xff] %vm3176, %v3069
        %7001 = vst.msk [vmem:[%s449 + $0x508] sm:$0xff] %vm3176, %v3070
        %7002 = vst.msk [vmem:[%s449 + $0x510] sm:$0xff] %vm3176, %v3071
        %7003 = vst.msk [vmem:[%s449 + $0x518] sm:$0xff] %vm3176, %v3072
        %7004 = vst.msk [vmem:[%s449 + $0x520] sm:$0xff] %vm3176, %v3073
        %7005 = vst.msk [vmem:[%s449 + $0x528] sm:$0xff] %vm3176, %v3074
        %7006 = vst.msk [vmem:[%s449 + $0x530] sm:$0xff] %vm3176, %v3075
        %7007 = vst.msk [vmem:[%s449 + $0x538] sm:$0xff] %vm3176, %v3076
        %7008 = vst.msk [vmem:[%s449 + $0x540] sm:$0xff] %vm3176, %v3077
        %7009 = vst.msk [vmem:[%s449 + $0x548] sm:$0xff] %vm3176, %v3078
        %7010 = vst.msk [vmem:[%s449 + $0x550] sm:$0xff] %vm3176, %v3079
        %7011 = vst.msk [vmem:[%s449 + $0x558] sm:$0xff] %vm3176, %v3080
        %7012 = vst.msk [vmem:[%s449 + $0x560] sm:$0xff] %vm3176, %v3081
        %7013 = vst.msk [vmem:[%s449 + $0x568] sm:$0xff] %vm3176, %v3082
        %7014 = vst.msk [vmem:[%s449 + $0x570] sm:$0xff] %vm3176, %v3083
        %7015 = vst.msk [vmem:[%s449 + $0x578] sm:$0xff] %vm3176, %v3084
        %7016 = vst.msk [vmem:[%s449 + $0x580] sm:$0xff] %vm3176, %v3085
        %7017 = vst.msk [vmem:[%s449 + $0x588] sm:$0xff] %vm3176, %v3086
        %7018 = vst.msk [vmem:[%s449 + $0x590] sm:$0xff] %vm3176, %v3087
        %7019 = vst.msk [vmem:[%s449 + $0x598] sm:$0xff] %vm3176, %v3088
        %7020 = vst.msk [vmem:[%s449 + $0x5a0] sm:$0xff] %vm3176, %v3089
        %7021 = vst.msk [vmem:[%s449 + $0x5a8] sm:$0xff] %vm3176, %v3090
        %7022 = vst.msk [vmem:[%s449 + $0x5b0] sm:$0xff] %vm3176, %v3091
        %7023 = vst.msk [vmem:[%s449 + $0x5b8] sm:$0xff] %vm3176, %v3092
        %7024 = vst.msk [vmem:[%s449 + $0x5c0] sm:$0xff] %vm3176, %v3093
        %7025 = vst.msk [vmem:[%s449 + $0x5c8] sm:$0xff] %vm3176, %v3094
        %7026 = vst.msk [vmem:[%s449 + $0x5d0] sm:$0xff] %vm3176, %v3095
        %7027 = vst.msk [vmem:[%s449 + $0x5d8] sm:$0xff] %vm3176, %v3096
        %7028 = vst.msk [vmem:[%s449 + $0x5e0] sm:$0xff] %vm3176, %v3097
        %7029 = vst.msk [vmem:[%s449 + $0x5e8] sm:$0xff] %vm3176, %v3098
        %7030 = vst.msk [vmem:[%s449 + $0x5f0] sm:$0xff] %vm3176, %v3099
        %7031 = vst.msk [vmem:[%s449 + $0x5f8] sm:$0xff] %vm3176, %v3100
        %7032 = vst.msk [vmem:[%s449 + $0x600] sm:$0xff] %vm3176, %v3101
        %7033 = vst.msk [vmem:[%s449 + $0x608] sm:$0xff] %vm3176, %v3102
        %7034 = vst.msk [vmem:[%s449 + $0x610] sm:$0xff] %vm3176, %v3103
        %7035 = vst.msk [vmem:[%s449 + $0x618] sm:$0xff] %vm3176, %v3104
        %7036 = vst.msk [vmem:[%s449 + $0x620] sm:$0xff] %vm3176, %v3105
        %7037 = vst.msk [vmem:[%s449 + $0x628] sm:$0xff] %vm3176, %v3106
        %7038 = vst.msk [vmem:[%s449 + $0x630] sm:$0xff] %vm3176, %v3107
        %7039 = vst.msk [vmem:[%s449 + $0x638] sm:$0xff] %vm3176, %v3108
        %7040 = vst.msk [vmem:[%s449 + $0x640] sm:$0xff] %vm3176, %v3109
        %7041 = vst.msk [vmem:[%s449 + $0x648] sm:$0xff] %vm3176, %v3110
        %7042 = vst.msk [vmem:[%s449 + $0x650] sm:$0xff] %vm3176, %v3111
        %7043 = vst.msk [vmem:[%s449 + $0x658] sm:$0xff] %vm3176, %v3112
        %7044 = vst.msk [vmem:[%s449 + $0x660] sm:$0xff] %vm3176, %v3113
        %7045 = vst.msk [vmem:[%s449 + $0x668] sm:$0xff] %vm3176, %v3114
        %7046 = vst.msk [vmem:[%s449 + $0x670] sm:$0xff] %vm3176, %v3115
        %7047 = vst.msk [vmem:[%s449 + $0x678] sm:$0xff] %vm3176, %v3116
        %7048 = vst.msk [vmem:[%s449 + $0x680] sm:$0xff] %vm3176, %v3117
        %7049 = vst.msk [vmem:[%s449 + $0x688] sm:$0xff] %vm3176, %v3118
        %7050 = vst.msk [vmem:[%s449 + $0x690] sm:$0xff] %vm3176, %v3119
        %7051 = vst.msk [vmem:[%s449 + $0x698] sm:$0xff] %vm3176, %v3120
        %7052 = vst.msk [vmem:[%s449 + $0x6a0] sm:$0xff] %vm3176, %v3121
        %7053 = vst.msk [vmem:[%s449 + $0x6a8] sm:$0xff] %vm3176, %v3122
        %7054 = vst.msk [vmem:[%s449 + $0x6b0] sm:$0xff] %vm3176, %v3123
        %7055 = vst.msk [vmem:[%s449 + $0x6b8] sm:$0xff] %vm3176, %v3124
        %7056 = vst.msk [vmem:[%s449 + $0x6c0] sm:$0xff] %vm3176, %v3125
        %7057 = vst.msk [vmem:[%s449 + $0x6c8] sm:$0xff] %vm3176, %v3126
        %7058 = vst.msk [vmem:[%s449 + $0x6d0] sm:$0xff] %vm3176, %v3127
        %7059 = vst.msk [vmem:[%s449 + $0x6d8] sm:$0xff] %vm3176, %v3128
        %7060 = vst.msk [vmem:[%s449 + $0x6e0] sm:$0xff] %vm3176, %v3129
        %7061 = vst.msk [vmem:[%s449 + $0x6e8] sm:$0xff] %vm3176, %v3130
        %7062 = vst.msk [vmem:[%s449 + $0x6f0] sm:$0xff] %vm3176, %v3131
        %7063 = vst.msk [vmem:[%s449 + $0x6f8] sm:$0xff] %vm3176, %v3132
        %7064 = vst.msk [vmem:[%s449 + $0x700] sm:$0xff] %vm3176, %v3133
        %7065 = vst.msk [vmem:[%s449 + $0x708] sm:$0xff] %vm3176, %v3134
        %7066 = vst.msk [vmem:[%s449 + $0x710] sm:$0xff] %vm3176, %v3135
        %7067 = vst.msk [vmem:[%s449 + $0x718] sm:$0xff] %vm3176, %v3136
        %7068 = vst.msk [vmem:[%s449 + $0x720] sm:$0xff] %vm3176, %v3137
        %7069 = vst.msk [vmem:[%s449 + $0x728] sm:$0xff] %vm3176, %v3138
        %7070 = vst.msk [vmem:[%s449 + $0x730] sm:$0xff] %vm3176, %v3139
        %7071 = vst.msk [vmem:[%s449 + $0x738] sm:$0xff] %vm3176, %v3140
        %7072 = vst.msk [vmem:[%s449 + $0x740] sm:$0xff] %vm3176, %v3141
        %7073 = vst.msk [vmem:[%s449 + $0x748] sm:$0xff] %vm3176, %v3142
        %7074 = vst.msk [vmem:[%s449 + $0x750] sm:$0xff] %vm3176, %v3143
        %7075 = vst.msk [vmem:[%s449 + $0x758] sm:$0xff] %vm3176, %v3144
        %7076 = vst.msk [vmem:[%s449 + $0x760] sm:$0xff] %vm3176, %v3145
        %7077 = vst.msk [vmem:[%s449 + $0x768] sm:$0xff] %vm3176, %v3146
        %7078 = vst.msk [vmem:[%s449 + $0x770] sm:$0xff] %vm3176, %v3147
        %7079 = vst.msk [vmem:[%s449 + $0x778] sm:$0xff] %vm3176, %v3148
        %7080 = vst.msk [vmem:[%s449 + $0x780] sm:$0xff] %vm3176, %v3149
        %7081 = vst.msk [vmem:[%s449 + $0x788] sm:$0xff] %vm3176, %v3150
        %7082 = vst.msk [vmem:[%s449 + $0x790] sm:$0xff] %vm3176, %v3151
        %7083 = vst.msk [vmem:[%s449 + $0x798] sm:$0xff] %vm3176, %v3152
        %7084 = vst.msk [vmem:[%s449 + $0x7a0] sm:$0xff] %vm3176, %v3153
        %7085 = vst.msk [vmem:[%s449 + $0x7a8] sm:$0xff] %vm3176, %v3154
        %7086 = vst.msk [vmem:[%s449 + $0x7b0] sm:$0xff] %vm3176, %v3155
        %7087 = vst.msk [vmem:[%s449 + $0x7b8] sm:$0xff] %vm3176, %v3156
        %7088 = vst.msk [vmem:[%s449 + $0x7c0] sm:$0xff] %vm3176, %v3157
        %7089 = vst.msk [vmem:[%s449 + $0x7c8] sm:$0xff] %vm3176, %v3158
        %7090 = vst.msk [vmem:[%s449 + $0x7d0] sm:$0xff] %vm3176, %v3159
        %7091 = vst.msk [vmem:[%s449 + $0x7d8] sm:$0xff] %vm3176, %v3160
        %7092 = vst.msk [vmem:[%s449 + $0x7e0] sm:$0xff] %vm3176, %v3161
        %7093 = vst.msk [vmem:[%s449 + $0x7e8] sm:$0xff] %vm3176, %v3162
        %7094 = vst.msk [vmem:[%s449 + $0x7f0] sm:$0xff] %vm3176, %v3163
        %7095 = vst.msk [vmem:[%s449 + $0x7f8] sm:$0xff] %vm3176, %v3164
        %vm7096 = vcmask 15360
        %7097 = vst.msk [vmem:[%s494] sm:$0xff] %vm7096, %v4012
        %7098 = vst.msk [vmem:[%s494 + $0x8] sm:$0xff] %vm7096, %v4017
        %7099 = vst.msk [vmem:[%s494 + $0x10] sm:$0xff] %vm7096, %v4022
        %7100 = vst.msk [vmem:[%s494 + $0x18] sm:$0xff] %vm7096, %v4027
        %7101 = vst.msk [vmem:[%s494 + $0x20] sm:$0xff] %vm7096, %v4032
        %7102 = vst.msk [vmem:[%s494 + $0x28] sm:$0xff] %vm7096, %v4037
        %7103 = vst.msk [vmem:[%s494 + $0x30] sm:$0xff] %vm7096, %v4042
        %7104 = vst.msk [vmem:[%s494 + $0x38] sm:$0xff] %vm7096, %v4047
        %7105 = vst.msk [vmem:[%s494 + $0x40] sm:$0xff] %vm7096, %v4052
        %7106 = vst.msk [vmem:[%s494 + $0x48] sm:$0xff] %vm7096, %v4057
        %7107 = vst.msk [vmem:[%s494 + $0x50] sm:$0xff] %vm7096, %v4062
        %7108 = vst.msk [vmem:[%s494 + $0x58] sm:$0xff] %vm7096, %v4067
        %7109 = vst.msk [vmem:[%s494 + $0x60] sm:$0xff] %vm7096, %v4072
        %7110 = vst.msk [vmem:[%s494 + $0x68] sm:$0xff] %vm7096, %v4077
        %7111 = vst.msk [vmem:[%s494 + $0x70] sm:$0xff] %vm7096, %v4082
        %7112 = vst.msk [vmem:[%s494 + $0x78] sm:$0xff] %vm7096, %v4087
        %7113 = vst.msk [vmem:[%s494 + $0x80] sm:$0xff] %vm7096, %v4092
        %7114 = vst.msk [vmem:[%s494 + $0x88] sm:$0xff] %vm7096, %v4097
        %7115 = vst.msk [vmem:[%s494 + $0x90] sm:$0xff] %vm7096, %v4102
        %7116 = vst.msk [vmem:[%s494 + $0x98] sm:$0xff] %vm7096, %v4107
        %7117 = vst.msk [vmem:[%s494 + $0xa0] sm:$0xff] %vm7096, %v4112
        %7118 = vst.msk [vmem:[%s494 + $0xa8] sm:$0xff] %vm7096, %v4117
        %7119 = vst.msk [vmem:[%s494 + $0xb0] sm:$0xff] %vm7096, %v4122
        %7120 = vst.msk [vmem:[%s494 + $0xb8] sm:$0xff] %vm7096, %v4127
        %7121 = vst.msk [vmem:[%s494 + $0xc0] sm:$0xff] %vm7096, %v4132
        %7122 = vst.msk [vmem:[%s494 + $0xc8] sm:$0xff] %vm7096, %v4137
        %7123 = vst.msk [vmem:[%s494 + $0xd0] sm:$0xff] %vm7096, %v4142
        %7124 = vst.msk [vmem:[%s494 + $0xd8] sm:$0xff] %vm7096, %v4147
        %7125 = vst.msk [vmem:[%s494 + $0xe0] sm:$0xff] %vm7096, %v4152
        %7126 = vst.msk [vmem:[%s494 + $0xe8] sm:$0xff] %vm7096, %v4157
        %7127 = vst.msk [vmem:[%s494 + $0xf0] sm:$0xff] %vm7096, %v4162
        %7128 = vst.msk [vmem:[%s494 + $0xf8] sm:$0xff] %vm7096, %v4167
        %7129 = vst.msk [vmem:[%s494 + $0x100] sm:$0xff] %vm7096, %v4172
        %7130 = vst.msk [vmem:[%s494 + $0x108] sm:$0xff] %vm7096, %v4177
        %7131 = vst.msk [vmem:[%s494 + $0x110] sm:$0xff] %vm7096, %v4182
        %7132 = vst.msk [vmem:[%s494 + $0x118] sm:$0xff] %vm7096, %v4187
        %7133 = vst.msk [vmem:[%s494 + $0x120] sm:$0xff] %vm7096, %v4192
        %7134 = vst.msk [vmem:[%s494 + $0x128] sm:$0xff] %vm7096, %v4197
        %7135 = vst.msk [vmem:[%s494 + $0x130] sm:$0xff] %vm7096, %v4202
        %7136 = vst.msk [vmem:[%s494 + $0x138] sm:$0xff] %vm7096, %v4207
        %7137 = vst.msk [vmem:[%s494 + $0x140] sm:$0xff] %vm7096, %v4212
        %7138 = vst.msk [vmem:[%s494 + $0x148] sm:$0xff] %vm7096, %v4217
        %7139 = vst.msk [vmem:[%s494 + $0x150] sm:$0xff] %vm7096, %v4222
        %7140 = vst.msk [vmem:[%s494 + $0x158] sm:$0xff] %vm7096, %v4227
        %7141 = vst.msk [vmem:[%s494 + $0x160] sm:$0xff] %vm7096, %v4232
        %7142 = vst.msk [vmem:[%s494 + $0x168] sm:$0xff] %vm7096, %v4237
        %7143 = vst.msk [vmem:[%s494 + $0x170] sm:$0xff] %vm7096, %v4242
        %7144 = vst.msk [vmem:[%s494 + $0x178] sm:$0xff] %vm7096, %v4247
        %7145 = vst.msk [vmem:[%s494 + $0x180] sm:$0xff] %vm7096, %v4252
        %7146 = vst.msk [vmem:[%s494 + $0x188] sm:$0xff] %vm7096, %v4257
        %7147 = vst.msk [vmem:[%s494 + $0x190] sm:$0xff] %vm7096, %v4262
        %7148 = vst.msk [vmem:[%s494 + $0x198] sm:$0xff] %vm7096, %v4267
        %7149 = vst.msk [vmem:[%s494 + $0x1a0] sm:$0xff] %vm7096, %v4272
        %7150 = vst.msk [vmem:[%s494 + $0x1a8] sm:$0xff] %vm7096, %v4277
        %7151 = vst.msk [vmem:[%s494 + $0x1b0] sm:$0xff] %vm7096, %v4282
        %7152 = vst.msk [vmem:[%s494 + $0x1b8] sm:$0xff] %vm7096, %v4287
        %7153 = vst.msk [vmem:[%s494 + $0x1c0] sm:$0xff] %vm7096, %v4292
        %7154 = vst.msk [vmem:[%s494 + $0x1c8] sm:$0xff] %vm7096, %v4297
        %7155 = vst.msk [vmem:[%s494 + $0x1d0] sm:$0xff] %vm7096, %v4302
        %7156 = vst.msk [vmem:[%s494 + $0x1d8] sm:$0xff] %vm7096, %v4307
        %7157 = vst.msk [vmem:[%s494 + $0x1e0] sm:$0xff] %vm7096, %v4312
        %7158 = vst.msk [vmem:[%s494 + $0x1e8] sm:$0xff] %vm7096, %v4317
        %7159 = vst.msk [vmem:[%s494 + $0x1f0] sm:$0xff] %vm7096, %v4322
        %7160 = vst.msk [vmem:[%s494 + $0x1f8] sm:$0xff] %vm7096, %v4327
        %7161 = vst.msk [vmem:[%s494 + $0x200] sm:$0xff] %vm7096, %v4332
        %7162 = vst.msk [vmem:[%s494 + $0x208] sm:$0xff] %vm7096, %v4337
        %7163 = vst.msk [vmem:[%s494 + $0x210] sm:$0xff] %vm7096, %v4342
        %7164 = vst.msk [vmem:[%s494 + $0x218] sm:$0xff] %vm7096, %v4347
        %7165 = vst.msk [vmem:[%s494 + $0x220] sm:$0xff] %vm7096, %v4352
        %7166 = vst.msk [vmem:[%s494 + $0x228] sm:$0xff] %vm7096, %v4357
        %7167 = vst.msk [vmem:[%s494 + $0x230] sm:$0xff] %vm7096, %v4362
        %7168 = vst.msk [vmem:[%s494 + $0x238] sm:$0xff] %vm7096, %v4367
        %7169 = vst.msk [vmem:[%s494 + $0x240] sm:$0xff] %vm7096, %v4372
        %7170 = vst.msk [vmem:[%s494 + $0x248] sm:$0xff] %vm7096, %v4377
        %7171 = vst.msk [vmem:[%s494 + $0x250] sm:$0xff] %vm7096, %v4382
        %7172 = vst.msk [vmem:[%s494 + $0x258] sm:$0xff] %vm7096, %v4387
        %7173 = vst.msk [vmem:[%s494 + $0x260] sm:$0xff] %vm7096, %v4392
        %7174 = vst.msk [vmem:[%s494 + $0x268] sm:$0xff] %vm7096, %v4397
        %7175 = vst.msk [vmem:[%s494 + $0x270] sm:$0xff] %vm7096, %v4402
        %7176 = vst.msk [vmem:[%s494 + $0x278] sm:$0xff] %vm7096, %v4407
        %7177 = vst.msk [vmem:[%s494 + $0x280] sm:$0xff] %vm7096, %v4412
        %7178 = vst.msk [vmem:[%s494 + $0x288] sm:$0xff] %vm7096, %v4417
        %7179 = vst.msk [vmem:[%s494 + $0x290] sm:$0xff] %vm7096, %v4422
        %7180 = vst.msk [vmem:[%s494 + $0x298] sm:$0xff] %vm7096, %v4427
        %7181 = vst.msk [vmem:[%s494 + $0x2a0] sm:$0xff] %vm7096, %v4432
        %7182 = vst.msk [vmem:[%s494 + $0x2a8] sm:$0xff] %vm7096, %v4437
        %7183 = vst.msk [vmem:[%s494 + $0x2b0] sm:$0xff] %vm7096, %v4442
        %7184 = vst.msk [vmem:[%s494 + $0x2b8] sm:$0xff] %vm7096, %v4447
        %7185 = vst.msk [vmem:[%s494 + $0x2c0] sm:$0xff] %vm7096, %v4452
        %7186 = vst.msk [vmem:[%s494 + $0x2c8] sm:$0xff] %vm7096, %v4457
        %7187 = vst.msk [vmem:[%s494 + $0x2d0] sm:$0xff] %vm7096, %v4462
        %7188 = vst.msk [vmem:[%s494 + $0x2d8] sm:$0xff] %vm7096, %v4467
        %7189 = vst.msk [vmem:[%s494 + $0x2e0] sm:$0xff] %vm7096, %v4472
        %7190 = vst.msk [vmem:[%s494 + $0x2e8] sm:$0xff] %vm7096, %v4477
        %7191 = vst.msk [vmem:[%s494 + $0x2f0] sm:$0xff] %vm7096, %v4482
        %7192 = vst.msk [vmem:[%s494 + $0x2f8] sm:$0xff] %vm7096, %v4487
        %7193 = vst.msk [vmem:[%s494 + $0x300] sm:$0xff] %vm7096, %v4492
        %7194 = vst.msk [vmem:[%s494 + $0x308] sm:$0xff] %vm7096, %v4497
        %7195 = vst.msk [vmem:[%s494 + $0x310] sm:$0xff] %vm7096, %v4502
        %7196 = vst.msk [vmem:[%s494 + $0x318] sm:$0xff] %vm7096, %v4507
        %7197 = vst.msk [vmem:[%s494 + $0x320] sm:$0xff] %vm7096, %v4512
        %7198 = vst.msk [vmem:[%s494 + $0x328] sm:$0xff] %vm7096, %v4517
        %7199 = vst.msk [vmem:[%s494 + $0x330] sm:$0xff] %vm7096, %v4522
        %7200 = vst.msk [vmem:[%s494 + $0x338] sm:$0xff] %vm7096, %v4527
        %7201 = vst.msk [vmem:[%s494 + $0x340] sm:$0xff] %vm7096, %v4532
        %7202 = vst.msk [vmem:[%s494 + $0x348] sm:$0xff] %vm7096, %v4537
        %7203 = vst.msk [vmem:[%s494 + $0x350] sm:$0xff] %vm7096, %v4542
        %7204 = vst.msk [vmem:[%s494 + $0x358] sm:$0xff] %vm7096, %v4547
        %7205 = vst.msk [vmem:[%s494 + $0x360] sm:$0xff] %vm7096, %v4552
        %7206 = vst.msk [vmem:[%s494 + $0x368] sm:$0xff] %vm7096, %v4557
        %7207 = vst.msk [vmem:[%s494 + $0x370] sm:$0xff] %vm7096, %v4562
        %7208 = vst.msk [vmem:[%s494 + $0x378] sm:$0xff] %vm7096, %v4567
        %7209 = vst.msk [vmem:[%s494 + $0x380] sm:$0xff] %vm7096, %v4572
        %7210 = vst.msk [vmem:[%s494 + $0x388] sm:$0xff] %vm7096, %v4577
        %7211 = vst.msk [vmem:[%s494 + $0x390] sm:$0xff] %vm7096, %v4582
        %7212 = vst.msk [vmem:[%s494 + $0x398] sm:$0xff] %vm7096, %v4587
        %7213 = vst.msk [vmem:[%s494 + $0x3a0] sm:$0xff] %vm7096, %v4592
        %7214 = vst.msk [vmem:[%s494 + $0x3a8] sm:$0xff] %vm7096, %v4597
        %7215 = vst.msk [vmem:[%s494 + $0x3b0] sm:$0xff] %vm7096, %v4602
        %7216 = vst.msk [vmem:[%s494 + $0x3b8] sm:$0xff] %vm7096, %v4607
        %7217 = vst.msk [vmem:[%s494 + $0x3c0] sm:$0xff] %vm7096, %v4612
        %7218 = vst.msk [vmem:[%s494 + $0x3c8] sm:$0xff] %vm7096, %v4617
        %7219 = vst.msk [vmem:[%s494 + $0x3d0] sm:$0xff] %vm7096, %v4622
        %7220 = vst.msk [vmem:[%s494 + $0x3d8] sm:$0xff] %vm7096, %v4627
        %7221 = vst.msk [vmem:[%s494 + $0x3e0] sm:$0xff] %vm7096, %v4632
        %7222 = vst.msk [vmem:[%s494 + $0x3e8] sm:$0xff] %vm7096, %v4637
        %7223 = vst.msk [vmem:[%s494 + $0x3f0] sm:$0xff] %vm7096, %v4642
        %7224 = vst.msk [vmem:[%s494 + $0x3f8] sm:$0xff] %vm7096, %v4647
        %7225 = vst.msk [vmem:[%s494 + $0x400] sm:$0xff] %vm7096, %v4652
        %7226 = vst.msk [vmem:[%s494 + $0x408] sm:$0xff] %vm7096, %v4657
        %7227 = vst.msk [vmem:[%s494 + $0x410] sm:$0xff] %vm7096, %v4662
        %7228 = vst.msk [vmem:[%s494 + $0x418] sm:$0xff] %vm7096, %v4667
        %7229 = vst.msk [vmem:[%s494 + $0x420] sm:$0xff] %vm7096, %v4672
        %7230 = vst.msk [vmem:[%s494 + $0x428] sm:$0xff] %vm7096, %v4677
        %7231 = vst.msk [vmem:[%s494 + $0x430] sm:$0xff] %vm7096, %v4682
        %7232 = vst.msk [vmem:[%s494 + $0x438] sm:$0xff] %vm7096, %v4687
        %7233 = vst.msk [vmem:[%s494 + $0x440] sm:$0xff] %vm7096, %v4692
        %7234 = vst.msk [vmem:[%s494 + $0x448] sm:$0xff] %vm7096, %v4697
        %7235 = vst.msk [vmem:[%s494 + $0x450] sm:$0xff] %vm7096, %v4702
        %7236 = vst.msk [vmem:[%s494 + $0x458] sm:$0xff] %vm7096, %v4707
        %7237 = vst.msk [vmem:[%s494 + $0x460] sm:$0xff] %vm7096, %v4712
        %7238 = vst.msk [vmem:[%s494 + $0x468] sm:$0xff] %vm7096, %v4717
        %7239 = vst.msk [vmem:[%s494 + $0x470] sm:$0xff] %vm7096, %v4722
        %7240 = vst.msk [vmem:[%s494 + $0x478] sm:$0xff] %vm7096, %v4727
        %7241 = vst.msk [vmem:[%s494 + $0x480] sm:$0xff] %vm7096, %v4732
        %7242 = vst.msk [vmem:[%s494 + $0x488] sm:$0xff] %vm7096, %v4737
        %7243 = vst.msk [vmem:[%s494 + $0x490] sm:$0xff] %vm7096, %v4742
        %7244 = vst.msk [vmem:[%s494 + $0x498] sm:$0xff] %vm7096, %v4747
        %7245 = vst.msk [vmem:[%s494 + $0x4a0] sm:$0xff] %vm7096, %v4752
        %7246 = vst.msk [vmem:[%s494 + $0x4a8] sm:$0xff] %vm7096, %v4757
        %7247 = vst.msk [vmem:[%s494 + $0x4b0] sm:$0xff] %vm7096, %v4762
        %7248 = vst.msk [vmem:[%s494 + $0x4b8] sm:$0xff] %vm7096, %v4767
        %7249 = vst.msk [vmem:[%s494 + $0x4c0] sm:$0xff] %vm7096, %v4772
        %7250 = vst.msk [vmem:[%s494 + $0x4c8] sm:$0xff] %vm7096, %v4777
        %7251 = vst.msk [vmem:[%s494 + $0x4d0] sm:$0xff] %vm7096, %v4782
        %7252 = vst.msk [vmem:[%s494 + $0x4d8] sm:$0xff] %vm7096, %v4787
        %7253 = vst.msk [vmem:[%s494 + $0x4e0] sm:$0xff] %vm7096, %v4792
        %7254 = vst.msk [vmem:[%s494 + $0x4e8] sm:$0xff] %vm7096, %v4797
        %7255 = vst.msk [vmem:[%s494 + $0x4f0] sm:$0xff] %vm7096, %v4802
        %7256 = vst.msk [vmem:[%s494 + $0x4f8] sm:$0xff] %vm7096, %v4807
        %7257 = vst.msk [vmem:[%s494 + $0x500] sm:$0xff] %vm7096, %v4812
        %7258 = vst.msk [vmem:[%s494 + $0x508] sm:$0xff] %vm7096, %v4817
        %7259 = vst.msk [vmem:[%s494 + $0x510] sm:$0xff] %vm7096, %v4822
        %7260 = vst.msk [vmem:[%s494 + $0x518] sm:$0xff] %vm7096, %v4827
        %7261 = vst.msk [vmem:[%s494 + $0x520] sm:$0xff] %vm7096, %v4832
        %7262 = vst.msk [vmem:[%s494 + $0x528] sm:$0xff] %vm7096, %v4837
        %7263 = vst.msk [vmem:[%s494 + $0x530] sm:$0xff] %vm7096, %v4842
        %7264 = vst.msk [vmem:[%s494 + $0x538] sm:$0xff] %vm7096, %v4847
        %7265 = vst.msk [vmem:[%s494 + $0x540] sm:$0xff] %vm7096, %v4852
        %7266 = vst.msk [vmem:[%s494 + $0x548] sm:$0xff] %vm7096, %v4857
        %7267 = vst.msk [vmem:[%s494 + $0x550] sm:$0xff] %vm7096, %v4862
        %7268 = vst.msk [vmem:[%s494 + $0x558] sm:$0xff] %vm7096, %v4867
        %7269 = vst.msk [vmem:[%s494 + $0x560] sm:$0xff] %vm7096, %v4872
        %7270 = vst.msk [vmem:[%s494 + $0x568] sm:$0xff] %vm7096, %v4877
        %7271 = vst.msk [vmem:[%s494 + $0x570] sm:$0xff] %vm7096, %v4882
        %7272 = vst.msk [vmem:[%s494 + $0x578] sm:$0xff] %vm7096, %v4887
        %7273 = vst.msk [vmem:[%s494 + $0x580] sm:$0xff] %vm7096, %v4892
        %7274 = vst.msk [vmem:[%s494 + $0x588] sm:$0xff] %vm7096, %v4897
        %7275 = vst.msk [vmem:[%s494 + $0x590] sm:$0xff] %vm7096, %v4902
        %7276 = vst.msk [vmem:[%s494 + $0x598] sm:$0xff] %vm7096, %v4907
        %7277 = vst.msk [vmem:[%s494 + $0x5a0] sm:$0xff] %vm7096, %v4912
        %7278 = vst.msk [vmem:[%s494 + $0x5a8] sm:$0xff] %vm7096, %v4917
        %7279 = vst.msk [vmem:[%s494 + $0x5b0] sm:$0xff] %vm7096, %v4922
        %7280 = vst.msk [vmem:[%s494 + $0x5b8] sm:$0xff] %vm7096, %v4927
        %7281 = vst.msk [vmem:[%s494 + $0x5c0] sm:$0xff] %vm7096, %v4932
        %7282 = vst.msk [vmem:[%s494 + $0x5c8] sm:$0xff] %vm7096, %v4937
        %7283 = vst.msk [vmem:[%s494 + $0x5d0] sm:$0xff] %vm7096, %v4942
        %7284 = vst.msk [vmem:[%s494 + $0x5d8] sm:$0xff] %vm7096, %v4947
        %7285 = vst.msk [vmem:[%s494 + $0x5e0] sm:$0xff] %vm7096, %v4952
        %7286 = vst.msk [vmem:[%s494 + $0x5e8] sm:$0xff] %vm7096, %v4957
        %7287 = vst.msk [vmem:[%s494 + $0x5f0] sm:$0xff] %vm7096, %v4962
        %7288 = vst.msk [vmem:[%s494 + $0x5f8] sm:$0xff] %vm7096, %v4967
        %7289 = vst.msk [vmem:[%s494 + $0x600] sm:$0xff] %vm7096, %v4972
        %7290 = vst.msk [vmem:[%s494 + $0x608] sm:$0xff] %vm7096, %v4977
        %7291 = vst.msk [vmem:[%s494 + $0x610] sm:$0xff] %vm7096, %v4982
        %7292 = vst.msk [vmem:[%s494 + $0x618] sm:$0xff] %vm7096, %v4987
        %7293 = vst.msk [vmem:[%s494 + $0x620] sm:$0xff] %vm7096, %v4992
        %7294 = vst.msk [vmem:[%s494 + $0x628] sm:$0xff] %vm7096, %v4997
        %7295 = vst.msk [vmem:[%s494 + $0x630] sm:$0xff] %vm7096, %v5002
        %7296 = vst.msk [vmem:[%s494 + $0x638] sm:$0xff] %vm7096, %v5007
        %7297 = vst.msk [vmem:[%s494 + $0x640] sm:$0xff] %vm7096, %v5012
        %7298 = vst.msk [vmem:[%s494 + $0x648] sm:$0xff] %vm7096, %v5017
        %7299 = vst.msk [vmem:[%s494 + $0x650] sm:$0xff] %vm7096, %v5022
        %7300 = vst.msk [vmem:[%s494 + $0x658] sm:$0xff] %vm7096, %v5027
        %7301 = vst.msk [vmem:[%s494 + $0x660] sm:$0xff] %vm7096, %v5032
        %7302 = vst.msk [vmem:[%s494 + $0x668] sm:$0xff] %vm7096, %v5037
        %7303 = vst.msk [vmem:[%s494 + $0x670] sm:$0xff] %vm7096, %v5042
        %7304 = vst.msk [vmem:[%s494 + $0x678] sm:$0xff] %vm7096, %v5047
        %7305 = vst.msk [vmem:[%s494 + $0x680] sm:$0xff] %vm7096, %v5052
        %7306 = vst.msk [vmem:[%s494 + $0x688] sm:$0xff] %vm7096, %v5057
        %7307 = vst.msk [vmem:[%s494 + $0x690] sm:$0xff] %vm7096, %v5062
        %7308 = vst.msk [vmem:[%s494 + $0x698] sm:$0xff] %vm7096, %v5067
        %7309 = vst.msk [vmem:[%s494 + $0x6a0] sm:$0xff] %vm7096, %v5072
        %7310 = vst.msk [vmem:[%s494 + $0x6a8] sm:$0xff] %vm7096, %v5077
        %7311 = vst.msk [vmem:[%s494 + $0x6b0] sm:$0xff] %vm7096, %v5082
        %7312 = vst.msk [vmem:[%s494 + $0x6b8] sm:$0xff] %vm7096, %v5087
        %7313 = vst.msk [vmem:[%s494 + $0x6c0] sm:$0xff] %vm7096, %v5092
        %7314 = vst.msk [vmem:[%s494 + $0x6c8] sm:$0xff] %vm7096, %v5097
        %7315 = vst.msk [vmem:[%s494 + $0x6d0] sm:$0xff] %vm7096, %v5102
        %7316 = vst.msk [vmem:[%s494 + $0x6d8] sm:$0xff] %vm7096, %v5107
        %7317 = vst.msk [vmem:[%s494 + $0x6e0] sm:$0xff] %vm7096, %v5112
        %7318 = vst.msk [vmem:[%s494 + $0x6e8] sm:$0xff] %vm7096, %v5117
        %7319 = vst.msk [vmem:[%s494 + $0x6f0] sm:$0xff] %vm7096, %v5122
        %7320 = vst.msk [vmem:[%s494 + $0x6f8] sm:$0xff] %vm7096, %v5127
        %7321 = vst.msk [vmem:[%s494 + $0x700] sm:$0xff] %vm7096, %v5132
        %7322 = vst.msk [vmem:[%s494 + $0x708] sm:$0xff] %vm7096, %v5137
        %7323 = vst.msk [vmem:[%s494 + $0x710] sm:$0xff] %vm7096, %v5142
        %7324 = vst.msk [vmem:[%s494 + $0x718] sm:$0xff] %vm7096, %v5147
        %7325 = vst.msk [vmem:[%s494 + $0x720] sm:$0xff] %vm7096, %v5152
        %7326 = vst.msk [vmem:[%s494 + $0x728] sm:$0xff] %vm7096, %v5157
        %7327 = vst.msk [vmem:[%s494 + $0x730] sm:$0xff] %vm7096, %v5162
        %7328 = vst.msk [vmem:[%s494 + $0x738] sm:$0xff] %vm7096, %v5167
        %7329 = vst.msk [vmem:[%s494 + $0x740] sm:$0xff] %vm7096, %v5172
        %7330 = vst.msk [vmem:[%s494 + $0x748] sm:$0xff] %vm7096, %v5177
        %7331 = vst.msk [vmem:[%s494 + $0x750] sm:$0xff] %vm7096, %v5182
        %7332 = vst.msk [vmem:[%s494 + $0x758] sm:$0xff] %vm7096, %v5187
        %7333 = vst.msk [vmem:[%s494 + $0x760] sm:$0xff] %vm7096, %v5192
        %7334 = vst.msk [vmem:[%s494 + $0x768] sm:$0xff] %vm7096, %v5197
        %7335 = vst.msk [vmem:[%s494 + $0x770] sm:$0xff] %vm7096, %v5202
        %7336 = vst.msk [vmem:[%s494 + $0x778] sm:$0xff] %vm7096, %v5207
        %7337 = vst.msk [vmem:[%s494 + $0x780] sm:$0xff] %vm7096, %v5212
        %7338 = vst.msk [vmem:[%s494 + $0x788] sm:$0xff] %vm7096, %v5217
        %7339 = vst.msk [vmem:[%s494 + $0x790] sm:$0xff] %vm7096, %v5222
        %7340 = vst.msk [vmem:[%s494 + $0x798] sm:$0xff] %vm7096, %v5227
        %7341 = vst.msk [vmem:[%s494 + $0x7a0] sm:$0xff] %vm7096, %v5232
        %7342 = vst.msk [vmem:[%s494 + $0x7a8] sm:$0xff] %vm7096, %v5237
        %7343 = vst.msk [vmem:[%s494 + $0x7b0] sm:$0xff] %vm7096, %v5242
        %7344 = vst.msk [vmem:[%s494 + $0x7b8] sm:$0xff] %vm7096, %v5247
        %7345 = vst.msk [vmem:[%s494 + $0x7c0] sm:$0xff] %vm7096, %v5252
        %7346 = vst.msk [vmem:[%s494 + $0x7c8] sm:$0xff] %vm7096, %v5257
        %7347 = vst.msk [vmem:[%s494 + $0x7d0] sm:$0xff] %vm7096, %v5262
        %7348 = vst.msk [vmem:[%s494 + $0x7d8] sm:$0xff] %vm7096, %v5267
        %7349 = vst.msk [vmem:[%s494 + $0x7e0] sm:$0xff] %vm7096, %v5272
        %7350 = vst.msk [vmem:[%s494 + $0x7e8] sm:$0xff] %vm7096, %v5277
        %7351 = vst.msk [vmem:[%s494 + $0x7f0] sm:$0xff] %vm7096, %v5282
        %7352 = vst.msk [vmem:[%s494 + $0x7f8] sm:$0xff] %vm7096, %v5287
        %vm7353 = vcmask 7168
        %7354 = vst.msk [vmem:[%s504] sm:$0xff] %vm7353, %v6584
        %7355 = vst.msk [vmem:[%s504 + $0x8] sm:$0xff] %vm7353, %v6585
        %7356 = vst.msk [vmem:[%s504 + $0x10] sm:$0xff] %vm7353, %v6586
        %7357 = vst.msk [vmem:[%s504 + $0x18] sm:$0xff] %vm7353, %v6587
        %7358 = vst.msk [vmem:[%s504 + $0x20] sm:$0xff] %vm7353, %v6588
        %7359 = vst.msk [vmem:[%s504 + $0x28] sm:$0xff] %vm7353, %v6589
        %7360 = vst.msk [vmem:[%s504 + $0x30] sm:$0xff] %vm7353, %v6590
        %7361 = vst.msk [vmem:[%s504 + $0x38] sm:$0xff] %vm7353, %v6591
        %7362 = vst.msk [vmem:[%s504 + $0x40] sm:$0xff] %vm7353, %v6592
        %7363 = vst.msk [vmem:[%s504 + $0x48] sm:$0xff] %vm7353, %v6593
        %7364 = vst.msk [vmem:[%s504 + $0x50] sm:$0xff] %vm7353, %v6594
        %7365 = vst.msk [vmem:[%s504 + $0x58] sm:$0xff] %vm7353, %v6595
        %7366 = vst.msk [vmem:[%s504 + $0x60] sm:$0xff] %vm7353, %v6596
        %7367 = vst.msk [vmem:[%s504 + $0x68] sm:$0xff] %vm7353, %v6597
        %7368 = vst.msk [vmem:[%s504 + $0x70] sm:$0xff] %vm7353, %v6598
        %7369 = vst.msk [vmem:[%s504 + $0x78] sm:$0xff] %vm7353, %v6599
        %7370 = vst.msk [vmem:[%s504 + $0x80] sm:$0xff] %vm7353, %v6600
        %7371 = vst.msk [vmem:[%s504 + $0x88] sm:$0xff] %vm7353, %v6601
        %7372 = vst.msk [vmem:[%s504 + $0x90] sm:$0xff] %vm7353, %v6602
        %7373 = vst.msk [vmem:[%s504 + $0x98] sm:$0xff] %vm7353, %v6603
        %7374 = vst.msk [vmem:[%s504 + $0xa0] sm:$0xff] %vm7353, %v6604
        %7375 = vst.msk [vmem:[%s504 + $0xa8] sm:$0xff] %vm7353, %v6605
        %7376 = vst.msk [vmem:[%s504 + $0xb0] sm:$0xff] %vm7353, %v6606
        %7377 = vst.msk [vmem:[%s504 + $0xb8] sm:$0xff] %vm7353, %v6607
        %7378 = vst.msk [vmem:[%s504 + $0xc0] sm:$0xff] %vm7353, %v6608
        %7379 = vst.msk [vmem:[%s504 + $0xc8] sm:$0xff] %vm7353, %v6609
        %7380 = vst.msk [vmem:[%s504 + $0xd0] sm:$0xff] %vm7353, %v6610
        %7381 = vst.msk [vmem:[%s504 + $0xd8] sm:$0xff] %vm7353, %v6611
        %7382 = vst.msk [vmem:[%s504 + $0xe0] sm:$0xff] %vm7353, %v6612
        %7383 = vst.msk [vmem:[%s504 + $0xe8] sm:$0xff] %vm7353, %v6613
        %7384 = vst.msk [vmem:[%s504 + $0xf0] sm:$0xff] %vm7353, %v6614
        %7385 = vst.msk [vmem:[%s504 + $0xf8] sm:$0xff] %vm7353, %v6615
        %7386 = vst.msk [vmem:[%s504 + $0x100] sm:$0xff] %vm7353, %v6616
        %7387 = vst.msk [vmem:[%s504 + $0x108] sm:$0xff] %vm7353, %v6617
        %7388 = vst.msk [vmem:[%s504 + $0x110] sm:$0xff] %vm7353, %v6618
        %7389 = vst.msk [vmem:[%s504 + $0x118] sm:$0xff] %vm7353, %v6619
        %7390 = vst.msk [vmem:[%s504 + $0x120] sm:$0xff] %vm7353, %v6620
        %7391 = vst.msk [vmem:[%s504 + $0x128] sm:$0xff] %vm7353, %v6621
        %7392 = vst.msk [vmem:[%s504 + $0x130] sm:$0xff] %vm7353, %v6622
        %7393 = vst.msk [vmem:[%s504 + $0x138] sm:$0xff] %vm7353, %v6623
        %7394 = vst.msk [vmem:[%s504 + $0x140] sm:$0xff] %vm7353, %v6624
        %7395 = vst.msk [vmem:[%s504 + $0x148] sm:$0xff] %vm7353, %v6625
        %7396 = vst.msk [vmem:[%s504 + $0x150] sm:$0xff] %vm7353, %v6626
        %7397 = vst.msk [vmem:[%s504 + $0x158] sm:$0xff] %vm7353, %v6627
        %7398 = vst.msk [vmem:[%s504 + $0x160] sm:$0xff] %vm7353, %v6628
        %7399 = vst.msk [vmem:[%s504 + $0x168] sm:$0xff] %vm7353, %v6629
        %7400 = vst.msk [vmem:[%s504 + $0x170] sm:$0xff] %vm7353, %v6630
        %7401 = vst.msk [vmem:[%s504 + $0x178] sm:$0xff] %vm7353, %v6631
        %7402 = vst.msk [vmem:[%s504 + $0x180] sm:$0xff] %vm7353, %v6632
        %7403 = vst.msk [vmem:[%s504 + $0x188] sm:$0xff] %vm7353, %v6633
        %7404 = vst.msk [vmem:[%s504 + $0x190] sm:$0xff] %vm7353, %v6634
        %7405 = vst.msk [vmem:[%s504 + $0x198] sm:$0xff] %vm7353, %v6635
        %7406 = vst.msk [vmem:[%s504 + $0x1a0] sm:$0xff] %vm7353, %v6636
        %7407 = vst.msk [vmem:[%s504 + $0x1a8] sm:$0xff] %vm7353, %v6637
        %7408 = vst.msk [vmem:[%s504 + $0x1b0] sm:$0xff] %vm7353, %v6638
        %7409 = vst.msk [vmem:[%s504 + $0x1b8] sm:$0xff] %vm7353, %v6639
        %7410 = vst.msk [vmem:[%s504 + $0x1c0] sm:$0xff] %vm7353, %v6640
        %7411 = vst.msk [vmem:[%s504 + $0x1c8] sm:$0xff] %vm7353, %v6641
        %7412 = vst.msk [vmem:[%s504 + $0x1d0] sm:$0xff] %vm7353, %v6642
        %7413 = vst.msk [vmem:[%s504 + $0x1d8] sm:$0xff] %vm7353, %v6643
        %7414 = vst.msk [vmem:[%s504 + $0x1e0] sm:$0xff] %vm7353, %v6644
        %7415 = vst.msk [vmem:[%s504 + $0x1e8] sm:$0xff] %vm7353, %v6645
        %7416 = vst.msk [vmem:[%s504 + $0x1f0] sm:$0xff] %vm7353, %v6646
        %7417 = vst.msk [vmem:[%s504 + $0x1f8] sm:$0xff] %vm7353, %v6647
        %7418 = vst.msk [vmem:[%s504 + $0x200] sm:$0xff] %vm7353, %v6648
        %7419 = vst.msk [vmem:[%s504 + $0x208] sm:$0xff] %vm7353, %v6649
        %7420 = vst.msk [vmem:[%s504 + $0x210] sm:$0xff] %vm7353, %v6650
        %7421 = vst.msk [vmem:[%s504 + $0x218] sm:$0xff] %vm7353, %v6651
        %7422 = vst.msk [vmem:[%s504 + $0x220] sm:$0xff] %vm7353, %v6652
        %7423 = vst.msk [vmem:[%s504 + $0x228] sm:$0xff] %vm7353, %v6653
        %7424 = vst.msk [vmem:[%s504 + $0x230] sm:$0xff] %vm7353, %v6654
        %7425 = vst.msk [vmem:[%s504 + $0x238] sm:$0xff] %vm7353, %v6655
        %7426 = vst.msk [vmem:[%s504 + $0x240] sm:$0xff] %vm7353, %v6656
        %7427 = vst.msk [vmem:[%s504 + $0x248] sm:$0xff] %vm7353, %v6657
        %7428 = vst.msk [vmem:[%s504 + $0x250] sm:$0xff] %vm7353, %v6658
        %7429 = vst.msk [vmem:[%s504 + $0x258] sm:$0xff] %vm7353, %v6659
        %7430 = vst.msk [vmem:[%s504 + $0x260] sm:$0xff] %vm7353, %v6660
        %7431 = vst.msk [vmem:[%s504 + $0x268] sm:$0xff] %vm7353, %v6661
        %7432 = vst.msk [vmem:[%s504 + $0x270] sm:$0xff] %vm7353, %v6662
        %7433 = vst.msk [vmem:[%s504 + $0x278] sm:$0xff] %vm7353, %v6663
        %7434 = vst.msk [vmem:[%s504 + $0x280] sm:$0xff] %vm7353, %v6664
        %7435 = vst.msk [vmem:[%s504 + $0x288] sm:$0xff] %vm7353, %v6665
        %7436 = vst.msk [vmem:[%s504 + $0x290] sm:$0xff] %vm7353, %v6666
        %7437 = vst.msk [vmem:[%s504 + $0x298] sm:$0xff] %vm7353, %v6667
        %7438 = vst.msk [vmem:[%s504 + $0x2a0] sm:$0xff] %vm7353, %v6668
        %7439 = vst.msk [vmem:[%s504 + $0x2a8] sm:$0xff] %vm7353, %v6669
        %7440 = vst.msk [vmem:[%s504 + $0x2b0] sm:$0xff] %vm7353, %v6670
        %7441 = vst.msk [vmem:[%s504 + $0x2b8] sm:$0xff] %vm7353, %v6671
        %7442 = vst.msk [vmem:[%s504 + $0x2c0] sm:$0xff] %vm7353, %v6672
        %7443 = vst.msk [vmem:[%s504 + $0x2c8] sm:$0xff] %vm7353, %v6673
        %7444 = vst.msk [vmem:[%s504 + $0x2d0] sm:$0xff] %vm7353, %v6674
        %7445 = vst.msk [vmem:[%s504 + $0x2d8] sm:$0xff] %vm7353, %v6675
        %7446 = vst.msk [vmem:[%s504 + $0x2e0] sm:$0xff] %vm7353, %v6676
        %7447 = vst.msk [vmem:[%s504 + $0x2e8] sm:$0xff] %vm7353, %v6677
        %7448 = vst.msk [vmem:[%s504 + $0x2f0] sm:$0xff] %vm7353, %v6678
        %7449 = vst.msk [vmem:[%s504 + $0x2f8] sm:$0xff] %vm7353, %v6679
        %7450 = vst.msk [vmem:[%s504 + $0x300] sm:$0xff] %vm7353, %v6680
        %7451 = vst.msk [vmem:[%s504 + $0x308] sm:$0xff] %vm7353, %v6681
        %7452 = vst.msk [vmem:[%s504 + $0x310] sm:$0xff] %vm7353, %v6682
        %7453 = vst.msk [vmem:[%s504 + $0x318] sm:$0xff] %vm7353, %v6683
        %7454 = vst.msk [vmem:[%s504 + $0x320] sm:$0xff] %vm7353, %v6684
        %7455 = vst.msk [vmem:[%s504 + $0x328] sm:$0xff] %vm7353, %v6685
        %7456 = vst.msk [vmem:[%s504 + $0x330] sm:$0xff] %vm7353, %v6686
        %7457 = vst.msk [vmem:[%s504 + $0x338] sm:$0xff] %vm7353, %v6687
        %7458 = vst.msk [vmem:[%s504 + $0x340] sm:$0xff] %vm7353, %v6688
        %7459 = vst.msk [vmem:[%s504 + $0x348] sm:$0xff] %vm7353, %v6689
        %7460 = vst.msk [vmem:[%s504 + $0x350] sm:$0xff] %vm7353, %v6690
        %7461 = vst.msk [vmem:[%s504 + $0x358] sm:$0xff] %vm7353, %v6691
        %7462 = vst.msk [vmem:[%s504 + $0x360] sm:$0xff] %vm7353, %v6692
        %7463 = vst.msk [vmem:[%s504 + $0x368] sm:$0xff] %vm7353, %v6693
        %7464 = vst.msk [vmem:[%s504 + $0x370] sm:$0xff] %vm7353, %v6694
        %7465 = vst.msk [vmem:[%s504 + $0x378] sm:$0xff] %vm7353, %v6695
        %7466 = vst.msk [vmem:[%s504 + $0x380] sm:$0xff] %vm7353, %v6696
        %7467 = vst.msk [vmem:[%s504 + $0x388] sm:$0xff] %vm7353, %v6697
        %7468 = vst.msk [vmem:[%s504 + $0x390] sm:$0xff] %vm7353, %v6698
        %7469 = vst.msk [vmem:[%s504 + $0x398] sm:$0xff] %vm7353, %v6699
        %7470 = vst.msk [vmem:[%s504 + $0x3a0] sm:$0xff] %vm7353, %v6700
        %7471 = vst.msk [vmem:[%s504 + $0x3a8] sm:$0xff] %vm7353, %v6701
        %7472 = vst.msk [vmem:[%s504 + $0x3b0] sm:$0xff] %vm7353, %v6702
        %7473 = vst.msk [vmem:[%s504 + $0x3b8] sm:$0xff] %vm7353, %v6703
        %7474 = vst.msk [vmem:[%s504 + $0x3c0] sm:$0xff] %vm7353, %v6704
        %7475 = vst.msk [vmem:[%s504 + $0x3c8] sm:$0xff] %vm7353, %v6705
        %7476 = vst.msk [vmem:[%s504 + $0x3d0] sm:$0xff] %vm7353, %v6706
        %7477 = vst.msk [vmem:[%s504 + $0x3d8] sm:$0xff] %vm7353, %v6707
        %7478 = vst.msk [vmem:[%s504 + $0x3e0] sm:$0xff] %vm7353, %v6708
        %7479 = vst.msk [vmem:[%s504 + $0x3e8] sm:$0xff] %vm7353, %v6709
        %7480 = vst.msk [vmem:[%s504 + $0x3f0] sm:$0xff] %vm7353, %v6710
        %7481 = vst.msk [vmem:[%s504 + $0x3f8] sm:$0xff] %vm7353, %v6711
        %7482 = vst.msk [vmem:[%s504 + $0x400] sm:$0xff] %vm7353, %v6712
        %7483 = vst.msk [vmem:[%s504 + $0x408] sm:$0xff] %vm7353, %v6713
        %7484 = vst.msk [vmem:[%s504 + $0x410] sm:$0xff] %vm7353, %v6714
        %7485 = vst.msk [vmem:[%s504 + $0x418] sm:$0xff] %vm7353, %v6715
        %7486 = vst.msk [vmem:[%s504 + $0x420] sm:$0xff] %vm7353, %v6716
        %7487 = vst.msk [vmem:[%s504 + $0x428] sm:$0xff] %vm7353, %v6717
        %7488 = vst.msk [vmem:[%s504 + $0x430] sm:$0xff] %vm7353, %v6718
        %7489 = vst.msk [vmem:[%s504 + $0x438] sm:$0xff] %vm7353, %v6719
        %7490 = vst.msk [vmem:[%s504 + $0x440] sm:$0xff] %vm7353, %v6720
        %7491 = vst.msk [vmem:[%s504 + $0x448] sm:$0xff] %vm7353, %v6721
        %7492 = vst.msk [vmem:[%s504 + $0x450] sm:$0xff] %vm7353, %v6722
        %7493 = vst.msk [vmem:[%s504 + $0x458] sm:$0xff] %vm7353, %v6723
        %7494 = vst.msk [vmem:[%s504 + $0x460] sm:$0xff] %vm7353, %v6724
        %7495 = vst.msk [vmem:[%s504 + $0x468] sm:$0xff] %vm7353, %v6725
        %7496 = vst.msk [vmem:[%s504 + $0x470] sm:$0xff] %vm7353, %v6726
        %7497 = vst.msk [vmem:[%s504 + $0x478] sm:$0xff] %vm7353, %v6727
        %7498 = vst.msk [vmem:[%s504 + $0x480] sm:$0xff] %vm7353, %v6728
        %7499 = vst.msk [vmem:[%s504 + $0x488] sm:$0xff] %vm7353, %v6729
        %7500 = vst.msk [vmem:[%s504 + $0x490] sm:$0xff] %vm7353, %v6730
        %7501 = vst.msk [vmem:[%s504 + $0x498] sm:$0xff] %vm7353, %v6731
        %7502 = vst.msk [vmem:[%s504 + $0x4a0] sm:$0xff] %vm7353, %v6732
        %7503 = vst.msk [vmem:[%s504 + $0x4a8] sm:$0xff] %vm7353, %v6733
        %7504 = vst.msk [vmem:[%s504 + $0x4b0] sm:$0xff] %vm7353, %v6734
        %7505 = vst.msk [vmem:[%s504 + $0x4b8] sm:$0xff] %vm7353, %v6735
        %7506 = vst.msk [vmem:[%s504 + $0x4c0] sm:$0xff] %vm7353, %v6736
        %7507 = vst.msk [vmem:[%s504 + $0x4c8] sm:$0xff] %vm7353, %v6737
        %7508 = vst.msk [vmem:[%s504 + $0x4d0] sm:$0xff] %vm7353, %v6738
        %7509 = vst.msk [vmem:[%s504 + $0x4d8] sm:$0xff] %vm7353, %v6739
        %7510 = vst.msk [vmem:[%s504 + $0x4e0] sm:$0xff] %vm7353, %v6740
        %7511 = vst.msk [vmem:[%s504 + $0x4e8] sm:$0xff] %vm7353, %v6741
        %7512 = vst.msk [vmem:[%s504 + $0x4f0] sm:$0xff] %vm7353, %v6742
        %7513 = vst.msk [vmem:[%s504 + $0x4f8] sm:$0xff] %vm7353, %v6743
        %7514 = vst.msk [vmem:[%s504 + $0x500] sm:$0xff] %vm7353, %v6744
        %7515 = vst.msk [vmem:[%s504 + $0x508] sm:$0xff] %vm7353, %v6745
        %7516 = vst.msk [vmem:[%s504 + $0x510] sm:$0xff] %vm7353, %v6746
        %7517 = vst.msk [vmem:[%s504 + $0x518] sm:$0xff] %vm7353, %v6747
        %7518 = vst.msk [vmem:[%s504 + $0x520] sm:$0xff] %vm7353, %v6748
        %7519 = vst.msk [vmem:[%s504 + $0x528] sm:$0xff] %vm7353, %v6749
        %7520 = vst.msk [vmem:[%s504 + $0x530] sm:$0xff] %vm7353, %v6750
        %7521 = vst.msk [vmem:[%s504 + $0x538] sm:$0xff] %vm7353, %v6751
        %7522 = vst.msk [vmem:[%s504 + $0x540] sm:$0xff] %vm7353, %v6752
        %7523 = vst.msk [vmem:[%s504 + $0x548] sm:$0xff] %vm7353, %v6753
        %7524 = vst.msk [vmem:[%s504 + $0x550] sm:$0xff] %vm7353, %v6754
        %7525 = vst.msk [vmem:[%s504 + $0x558] sm:$0xff] %vm7353, %v6755
        %7526 = vst.msk [vmem:[%s504 + $0x560] sm:$0xff] %vm7353, %v6756
        %7527 = vst.msk [vmem:[%s504 + $0x568] sm:$0xff] %vm7353, %v6757
        %7528 = vst.msk [vmem:[%s504 + $0x570] sm:$0xff] %vm7353, %v6758
        %7529 = vst.msk [vmem:[%s504 + $0x578] sm:$0xff] %vm7353, %v6759
        %7530 = vst.msk [vmem:[%s504 + $0x580] sm:$0xff] %vm7353, %v6760
        %7531 = vst.msk [vmem:[%s504 + $0x588] sm:$0xff] %vm7353, %v6761
        %7532 = vst.msk [vmem:[%s504 + $0x590] sm:$0xff] %vm7353, %v6762
        %7533 = vst.msk [vmem:[%s504 + $0x598] sm:$0xff] %vm7353, %v6763
        %7534 = vst.msk [vmem:[%s504 + $0x5a0] sm:$0xff] %vm7353, %v6764
        %7535 = vst.msk [vmem:[%s504 + $0x5a8] sm:$0xff] %vm7353, %v6765
        %7536 = vst.msk [vmem:[%s504 + $0x5b0] sm:$0xff] %vm7353, %v6766
        %7537 = vst.msk [vmem:[%s504 + $0x5b8] sm:$0xff] %vm7353, %v6767
        %7538 = vst.msk [vmem:[%s504 + $0x5c0] sm:$0xff] %vm7353, %v6768
        %7539 = vst.msk [vmem:[%s504 + $0x5c8] sm:$0xff] %vm7353, %v6769
        %7540 = vst.msk [vmem:[%s504 + $0x5d0] sm:$0xff] %vm7353, %v6770
        %7541 = vst.msk [vmem:[%s504 + $0x5d8] sm:$0xff] %vm7353, %v6771
        %7542 = vst.msk [vmem:[%s504 + $0x5e0] sm:$0xff] %vm7353, %v6772
        %7543 = vst.msk [vmem:[%s504 + $0x5e8] sm:$0xff] %vm7353, %v6773
        %7544 = vst.msk [vmem:[%s504 + $0x5f0] sm:$0xff] %vm7353, %v6774
        %7545 = vst.msk [vmem:[%s504 + $0x5f8] sm:$0xff] %vm7353, %v6775
        %7546 = vst.msk [vmem:[%s504 + $0x600] sm:$0xff] %vm7353, %v6776
        %7547 = vst.msk [vmem:[%s504 + $0x608] sm:$0xff] %vm7353, %v6777
        %7548 = vst.msk [vmem:[%s504 + $0x610] sm:$0xff] %vm7353, %v6778
        %7549 = vst.msk [vmem:[%s504 + $0x618] sm:$0xff] %vm7353, %v6779
        %7550 = vst.msk [vmem:[%s504 + $0x620] sm:$0xff] %vm7353, %v6780
        %7551 = vst.msk [vmem:[%s504 + $0x628] sm:$0xff] %vm7353, %v6781
        %7552 = vst.msk [vmem:[%s504 + $0x630] sm:$0xff] %vm7353, %v6782
        %7553 = vst.msk [vmem:[%s504 + $0x638] sm:$0xff] %vm7353, %v6783
        %7554 = vst.msk [vmem:[%s504 + $0x640] sm:$0xff] %vm7353, %v6784
        %7555 = vst.msk [vmem:[%s504 + $0x648] sm:$0xff] %vm7353, %v6785
        %7556 = vst.msk [vmem:[%s504 + $0x650] sm:$0xff] %vm7353, %v6786
        %7557 = vst.msk [vmem:[%s504 + $0x658] sm:$0xff] %vm7353, %v6787
        %7558 = vst.msk [vmem:[%s504 + $0x660] sm:$0xff] %vm7353, %v6788
        %7559 = vst.msk [vmem:[%s504 + $0x668] sm:$0xff] %vm7353, %v6789
        %7560 = vst.msk [vmem:[%s504 + $0x670] sm:$0xff] %vm7353, %v6790
        %7561 = vst.msk [vmem:[%s504 + $0x678] sm:$0xff] %vm7353, %v6791
        %7562 = vst.msk [vmem:[%s504 + $0x680] sm:$0xff] %vm7353, %v6792
        %7563 = vst.msk [vmem:[%s504 + $0x688] sm:$0xff] %vm7353, %v6793
        %7564 = vst.msk [vmem:[%s504 + $0x690] sm:$0xff] %vm7353, %v6794
        %7565 = vst.msk [vmem:[%s504 + $0x698] sm:$0xff] %vm7353, %v6795
        %7566 = vst.msk [vmem:[%s504 + $0x6a0] sm:$0xff] %vm7353, %v6796
        %7567 = vst.msk [vmem:[%s504 + $0x6a8] sm:$0xff] %vm7353, %v6797
        %7568 = vst.msk [vmem:[%s504 + $0x6b0] sm:$0xff] %vm7353, %v6798
        %7569 = vst.msk [vmem:[%s504 + $0x6b8] sm:$0xff] %vm7353, %v6799
        %7570 = vst.msk [vmem:[%s504 + $0x6c0] sm:$0xff] %vm7353, %v6800
        %7571 = vst.msk [vmem:[%s504 + $0x6c8] sm:$0xff] %vm7353, %v6801
        %7572 = vst.msk [vmem:[%s504 + $0x6d0] sm:$0xff] %vm7353, %v6802
        %7573 = vst.msk [vmem:[%s504 + $0x6d8] sm:$0xff] %vm7353, %v6803
        %7574 = vst.msk [vmem:[%s504 + $0x6e0] sm:$0xff] %vm7353, %v6804
        %7575 = vst.msk [vmem:[%s504 + $0x6e8] sm:$0xff] %vm7353, %v6805
        %7576 = vst.msk [vmem:[%s504 + $0x6f0] sm:$0xff] %vm7353, %v6806
        %7577 = vst.msk [vmem:[%s504 + $0x6f8] sm:$0xff] %vm7353, %v6807
        %7578 = vst.msk [vmem:[%s504 + $0x700] sm:$0xff] %vm7353, %v6808
        %7579 = vst.msk [vmem:[%s504 + $0x708] sm:$0xff] %vm7353, %v6809
        %7580 = vst.msk [vmem:[%s504 + $0x710] sm:$0xff] %vm7353, %v6810
        %7581 = vst.msk [vmem:[%s504 + $0x718] sm:$0xff] %vm7353, %v6811
        %7582 = vst.msk [vmem:[%s504 + $0x720] sm:$0xff] %vm7353, %v6812
        %7583 = vst.msk [vmem:[%s504 + $0x728] sm:$0xff] %vm7353, %v6813
        %7584 = vst.msk [vmem:[%s504 + $0x730] sm:$0xff] %vm7353, %v6814
        %7585 = vst.msk [vmem:[%s504 + $0x738] sm:$0xff] %vm7353, %v6815
        %7586 = vst.msk [vmem:[%s504 + $0x740] sm:$0xff] %vm7353, %v6816
        %7587 = vst.msk [vmem:[%s504 + $0x748] sm:$0xff] %vm7353, %v6817
        %7588 = vst.msk [vmem:[%s504 + $0x750] sm:$0xff] %vm7353, %v6818
        %7589 = vst.msk [vmem:[%s504 + $0x758] sm:$0xff] %vm7353, %v6819
        %7590 = vst.msk [vmem:[%s504 + $0x760] sm:$0xff] %vm7353, %v6820
        %7591 = vst.msk [vmem:[%s504 + $0x768] sm:$0xff] %vm7353, %v6821
        %7592 = vst.msk [vmem:[%s504 + $0x770] sm:$0xff] %vm7353, %v6822
        %7593 = vst.msk [vmem:[%s504 + $0x778] sm:$0xff] %vm7353, %v6823
        %7594 = vst.msk [vmem:[%s504 + $0x780] sm:$0xff] %vm7353, %v6824
        %7595 = vst.msk [vmem:[%s504 + $0x788] sm:$0xff] %vm7353, %v6825
        %7596 = vst.msk [vmem:[%s504 + $0x790] sm:$0xff] %vm7353, %v6826
        %7597 = vst.msk [vmem:[%s504 + $0x798] sm:$0xff] %vm7353, %v6827
        %7598 = vst.msk [vmem:[%s504 + $0x7a0] sm:$0xff] %vm7353, %v6828
        %7599 = vst.msk [vmem:[%s504 + $0x7a8] sm:$0xff] %vm7353, %v6829
        %7600 = vst.msk [vmem:[%s504 + $0x7b0] sm:$0xff] %vm7353, %v6830
        %7601 = vst.msk [vmem:[%s504 + $0x7b8] sm:$0xff] %vm7353, %v6831
        %7602 = vst.msk [vmem:[%s504 + $0x7c0] sm:$0xff] %vm7353, %v6832
        %7603 = vst.msk [vmem:[%s504 + $0x7c8] sm:$0xff] %vm7353, %v6833
        %7604 = vst.msk [vmem:[%s504 + $0x7d0] sm:$0xff] %vm7353, %v6834
        %7605 = vst.msk [vmem:[%s504 + $0x7d8] sm:$0xff] %vm7353, %v6835
        %7606 = vst.msk [vmem:[%s504 + $0x7e0] sm:$0xff] %vm7353, %v6836
        %7607 = vst.msk [vmem:[%s504 + $0x7e8] sm:$0xff] %vm7353, %v6837
        %7608 = vst.msk [vmem:[%s504 + $0x7f0] sm:$0xff] %vm7353, %v6838
        %7609 = vst.msk [vmem:[%s504 + $0x7f8] sm:$0xff] %vm7353, %v6839
        %s7610 = sand.u32 %s273, 1
        %s7611 = scalar_lea.sflag [#allocation4], %s7610
        %s7612 = sand.u32 %s273, 1
        %s7613 = smul.addr %s7612, 2048
        %s7614 = scalar_lea.vmem [#allocation3], %s7613
        %s7615 = smul.u32 256, %s34
        %p7616 = scmp.lt.s32.totalorder %s33, 1
        %s7617 = scalar_select %p7616, %s33, 1
        %p7618 = scmp.lt.s32.totalorder %s7615, 255
        %s7619 = scalar_select %p7618, %s7615, 255
        %s7620 = smul.addr %s7617, 256
        %s7621 = sadd.s32 %s7619, %s7620
        %s7622 = smul.addr %s7621, 8
        %s7623 = scalar_lea.vmem %s11, %s7622
        %s7624 = smul.u32 256, %s34
        %p7625 = scmp.lt.s32.totalorder %s33, 1
        %s7626 = scalar_select %p7625, %s33, 1
        %p7627 = scmp.lt.s32.totalorder %s7624, 255
        %s7628 = scalar_select %p7627, %s7624, 255
        %s7629 = smul.addr %s7626, 256
        %s7630 = sadd.s32 %s7628, %s7629
        %s7631 = smul.addr %s7630, 8
        %s7632 = scalar_lea.vmem %s12, %s7631
        // Predicated region
        $region61: #{madl_forward.3} parent=59 // pred_check
          %p7633 = pneg %p283
        $region62: #{madl_forward.3} parent=59 // pred_check_branch
          %7635 = sbr.rel (%p7633) target = $region64
        $region63: #{madl_forward.3} parent=59 // pred_region
          %s7636 = smul.u32 256, %s34
          %s7638 = ssub.s32 32768, 32768
          %7639 = vsyncadd %s7611, %s7638
          %s7640 = smul.addr %s33, 256
          %s7641 = sadd.s32 %s7636, %s7640
          %s7642 = smul.addr %s7641, 128
          %s7643 = scalar_lea.hbm %s10, %s7642
          %s7644 = sshll.u32 %s7614, 4
          %s7645 = int_to_ptr.vmem [resolvable:$true] %s7644
          %7650 = dma.vmem_to_hbm [thread:$0]  %s7645, 32768, %s7643, %s7611, 128, 128, 8
        $region64: #{madl_forward.3} parent=59 // pred_fallthru
          _
        // Predicated region
        $region65: #{madl_forward.3} parent=59 // pred_check
          %p7651 = pneg %p311
        $region66: #{madl_forward.3} parent=59 // pred_check_branch
          %7653 = sbr.rel (%p7651) target = $region68
        $region67: #{madl_forward.3} parent=59 // pred_region
          %s7654 = smul.u32 256, %s34
        $region68: #{madl_forward.3} parent=59 // pred_fallthru
          _
        // Predicated region
        $region69: #{madl_forward.3} parent=59 // pred_check
          %p7655 = pneg %p339
        $region70: #{madl_forward.3} parent=59 // pred_check_branch
          %7657 = sbr.rel (%p7655) target = $region72
        $region71: #{madl_forward.3} parent=59 // pred_region
          %s7658 = smul.u32 256, %s34
        $region72: #{madl_forward.3} parent=59 // pred_fallthru
          _
      $region60: #{madl_forward.3} parent=5 // pred_fallthru
        _
      %p7659 = scmp.le.s32.totalorder 2, %s24
      // Predicated region
      $region73: #{madl_forward.3} parent=5 // pred_check
        %p7660 = pneg %p7659
      $region74: #{madl_forward.3} parent=5 // pred_check_branch
        %7662 = sbr.rel (%p7660) target = $region76
      $region75: #{madl_forward.3} parent=5 // pred_region
        %s7663 = ssub.s32 %s24, 2
        // Predicated region
        $region77: #{madl_forward.3} parent=75 // pred_check
          %p7664 = pneg %p289
        $region78: #{madl_forward.3} parent=75 // pred_check_branch
          %7666 = sbr.rel (%p7664) target = $region80
        $region79: #{madl_forward.3} parent=75 // pred_region
          %s7667 = sand.u32 %s274, 1
          %s7668 = scalar_lea.sflag [#allocation4], %s7667
          %s7669 = sand.u32 %s274, 1
          %s7670 = smul.addr %s7669, 2048
          %s7671 = scalar_lea.vmem [#allocation3], %s7670
          %7672 = dma.done %s7668, 32768
        $region80: #{madl_forward.3} parent=75 // pred_fallthru
          _
        // Predicated region
        $region81: #{madl_forward.3} parent=75 // pred_check
          %p7673 = pneg %p317
        $region82: #{madl_forward.3} parent=75 // pred_check_branch
          %7675 = sbr.rel (%p7673) target = $region84
        $region83: #{madl_forward.3} parent=75 // pred_region
          %s7676 = smul.u32 256, %s36
          %p7677 = scmp.lt.s32.totalorder %s35, 1
          %s7678 = scalar_select %p7677, %s35, 1
          %p7679 = scmp.lt.s32.totalorder %s7676, 255
          %s7680 = scalar_select %p7679, %s7676, 255
          %s7681 = smul.addr %s7678, 256
          %s7682 = sadd.s32 %s7680, %s7681
          %s7683 = smul.addr %s7682, 8
          %s7684 = scalar_lea.vmem %s11, %s7683
        $region84: #{madl_forward.3} parent=75 // pred_fallthru
          _
        // Predicated region
        $region85: #{madl_forward.3} parent=75 // pred_check
          %p7685 = pneg %p345
        $region86: #{madl_forward.3} parent=75 // pred_check_branch
          %7687 = sbr.rel (%p7685) target = $region88
        $region87: #{madl_forward.3} parent=75 // pred_region
          %s7688 = smul.u32 256, %s36
          %p7689 = scmp.lt.s32.totalorder %s35, 1
          %s7690 = scalar_select %p7689, %s35, 1
          %p7691 = scmp.lt.s32.totalorder %s7688, 255
          %s7692 = scalar_select %p7691, %s7688, 255
          %s7693 = smul.addr %s7690, 256
          %s7694 = sadd.s32 %s7692, %s7693
          %s7695 = smul.addr %s7694, 8
          %s7696 = scalar_lea.vmem %s12, %s7695
        $region88: #{madl_forward.3} parent=75 // pred_fallthru
          _
      $region76: #{madl_forward.3} parent=5 // pred_fallthru
        _
    $region6: #{madl_forward.3} parent=1 // loop_footer
      %s28 = sadd.s32 1, %s24
    $region7: #{madl_forward.3} parent=1 // loop_footer_branch
      %23 = sbr.rel target = $region3
    $region8: #{madl_forward.3} parent=1 // loop_exit
      _
    %7697 = vsyncpa [#allocation4], 1
    %s7698 = scalar_lea.sflag [#allocation4], 1
    %7699 = vsyncpa %s7698, 1

</llo_original>
